<compile_context>
chip_gen: v5e
topology: v5e:2x2
jax: 0.10.0
libtpu: 0.0.40
codegen_flags: <defaults>
</compile_context>

<pallas_src>
import numpy as np
import jax
import jax.numpy as jnp
from jax.experimental import pallas as pl
from jax.experimental.pallas import tpu as pltpu

EPS = 1e-5  # PyTorch BatchNorm1d default eps


def _full_spec(shape):
    """Whole-array block (block_shape == array shape satisfies the (8,128) rule)."""
    return pl.BlockSpec(shape, lambda i: (0,) * len(shape))


# ---------------------------------------------------------------------------
# The single fused kernel: conv+BN+ReLU+maxpool x4, then avgpool+FC+log_softmax
# ---------------------------------------------------------------------------
def _m5_kernel(x_ref, *refs):
    """refs = [w, gamma, beta, pool_sel] * n_layers + [fc_w, fc_b, out_ref]."""
    o_ref = refs[-1]
    fcw_ref, fcb_ref = refs[-3], refs[-2]
    conv_refs = refs[:-3]
    n_layers = len(conv_refs) // 4
    B = x_ref.shape[0]

    # Per-batch channels-last activations (length, features), kept as values.
    hs = [x_ref[b] for b in range(B)]

    for li in range(n_layers):
        w_ref, g_ref, b_ref, s_ref = conv_refs[4 * li:4 * li + 4]
        K = w_ref.shape[0]
        Lin = hs[0].shape[0]
        Lout = Lin - K + 1
        taps = [w_ref[k] for k in range(K)]                 # (F, Cout) bf16 taps

        # --- Conv1d as K shifted matmuls (bf16 operands, f32 accumulation) ---
        ys = []
        for h in hs:
            acc = jnp.dot(h[0:Lout, :].astype(jnp.bfloat16), taps[0],
                          preferred_element_type=jnp.float32)
            for k in range(1, K):
                acc = acc + jnp.dot(h[k:k + Lout, :].astype(jnp.bfloat16), taps[k],
                                    preferred_element_type=jnp.float32)
            ys.append(acc)                                  # (Lout, Cout) f32

        # --- BatchNorm1d: training-mode batch stats over all B*Lout rows -----
        # Single pass (sum / sum-of-squares), biased variance.  The conv bias
        # is omitted because the mean subtraction cancels it exactly.
        s = ys[0].sum(axis=0, keepdims=True)
        s2 = (ys[0] * ys[0]).sum(axis=0, keepdims=True)
        for y in ys[1:]:
            s = s + y.sum(axis=0, keepdims=True)
            s2 = s2 + (y * y).sum(axis=0, keepdims=True)
        inv_n = 1.0 / float(B * Lout)
        mean = s * inv_n
        var = s2 * inv_n - mean * mean
        scale = g_ref[...] * jax.lax.rsqrt(var + EPS)       # (1, Cout)
        shift = b_ref[...] - mean * scale

        # --- BN + ReLU + MaxPool1d(4) fused epilogue --------------------------
        # window max from 4 shifted slices, then stride-4 downsample via a 0/1
        # selection matmul (layout-friendly: no strided or reshaped vectors).
        sel = s_ref[...]                                    # (Lp, Lout - 3) f32
        new_hs = []
        for y in ys:
            y = jnp.maximum(y * scale + shift, 0.0)
            zw = jnp.maximum(jnp.maximum(y[0:Lout - 3, :], y[1:Lout - 2, :]),
                             jnp.maximum(y[2:Lout - 1, :], y[3:Lout, :]))
            new_hs.append(jnp.dot(sel, zw, preferred_element_type=jnp.float32))
        hs = new_hs                                         # (Lp, Cout) f32 each

    # --- avg_pool1d over the full remaining length + Linear + log_softmax ----
    fcw = fcw_ref[...]                                      # (C, n_out) bf16
    fcb = fcb_ref[...]                                      # (1, n_out) f32
    for b in range(B):
        feat = jnp.mean(hs[b], axis=0, keepdims=True)       # (1, C)
        logits = jnp.dot(feat.astype(jnp.bfloat16), fcw,
                         preferred_element_type=jnp.float32) + fcb
        z = logits - jnp.max(logits, axis=-1, keepdims=True)
        o_ref[pl.ds(b, 1), :] = z - jnp.log(jnp.sum(jnp.exp(z), axis=-1,
                                                    keepdims=True))


# ---------------------------------------------------------------------------
# Wrapper
# ---------------------------------------------------------------------------
def _pool_select(l_out):
    """(Lp, l_out-3) 0/1 matrix picking every 4th window-max (MaxPool1d(4))."""
    lp = l_out // 4
    s = np.zeros((lp, l_out - 3), np.float32)
    s[np.arange(lp), 4 * np.arange(lp)] = 1.0
    return jnp.asarray(s)


def m5_forward(x, params):
    """x: (B, n_input, L) float32 -> (B, 1, n_output) log-probabilities."""
    B, cin, L = x.shape
    stride = params["stride"]
    Lc = L // stride
    # Chunked channels-last layout: xr[b, t, ci*stride + u] = x[b, ci, t*stride + u]
    xr = x[:, :, :Lc * stride].reshape(B, cin, Lc, stride)
    xr = jnp.transpose(xr, (0, 2, 1, 3)).reshape(B, Lc, cin * stride)

    # Static per-layer output lengths -> MaxPool selection matrices.
    args = [xr]
    lin = Lc
    for (w, gamma, beta) in params["convs"]:
        lout = lin - w.shape[0] + 1
        assert lout >= 4, "input length too short for the M5 architecture"
        args += [w, gamma, beta, _pool_select(lout)]
        lin = lout // 4
    args += [params["fc_w"], params["fc_b"]]

    n_out = params["fc_w"].shape[1]
    out = pl.pallas_call(
        _m5_kernel,
        out_shape=jax.ShapeDtypeStruct((B, n_out), jnp.float32),
        grid=(1,),
        in_specs=[_full_spec(a.shape) for a in args],
        out_specs=_full_spec((B, n_out)),
        compiler_params=pltpu.CompilerParams(dimension_semantics=("arbitrary",)),
    )(*args)
    return out[:, None, :]                                  # (B, 1, n_output)


# ---------------------------------------------------------------------------
# Parameters (deterministic, synthetic) + pure-JAX reference for validation
# ---------------------------------------------------------------------------
def init_params(key, n_input=1, n_output=2, stride=16, n_channel=32):
    cfg = [(n_input, n_channel, 80),
           (n_channel, n_channel, 3),
           (n_channel, 2 * n_channel, 3),
           (2 * n_channel, 2 * n_channel, 3)]
    ks = jax.random.split(key, 2 * len(cfg) + 1)
    convs, ref_convs = [], []
    for i, (cin, cout, ksz) in enumerate(cfg):
        w = 0.05 * jax.random.normal(ks[2 * i], (cout, cin, ksz), jnp.float32)
        kg, kb = jax.random.split(ks[2 * i + 1])
        gamma = 1.0 + 0.1 * jax.random.normal(kg, (1, cout), jnp.float32)
        beta = 0.1 * jax.random.normal(kb, (1, cout), jnp.float32)
        if i == 0:
            # (Cout, Cin, K) -> (K//stride, Cin*stride, Cout): "chunk" taps.
            wt = w.reshape(cout, cin, ksz // stride, stride)
            wt = jnp.transpose(wt, (2, 1, 3, 0)).reshape(ksz // stride,
                                                         cin * stride, cout)
        else:
            wt = jnp.transpose(w, (2, 1, 0))                # (K, Cin, Cout)
        # Conv1d biases omitted: cancelled exactly by training-mode BatchNorm.
        convs.append((wt.astype(jnp.bfloat16), gamma, beta))
        ref_convs.append((w, gamma, beta))
    kfw, kfb = jax.random.split(ks[-1])
    fc_w = (0.05 * jax.random.normal(kfw, (n_output, 2 * n_channel), jnp.float32)).T
    fc_b = 0.05 * jax.random.normal(kfb, (1, n_output), jnp.float32)
    params = {"convs": convs, "fc_w": fc_w.astype(jnp.bfloat16), "fc_b": fc_b,
              "stride": stride}
    ref_params = {"convs": ref_convs, "fc_w": fc_w, "fc_b": fc_b, "stride": stride}
    return params, ref_params


def m5_reference(x, ref_params):
    """Pure-JAX/XLA f32 reference of the same forward pass (for validation)."""
    h = x                                                   # (B, Cin, L)
    for i, (w, gamma, beta) in enumerate(ref_params["convs"]):
        stride = ref_params["stride"] if i == 0 else 1
        y = jax.lax.conv_general_dilated(
            h, w, window_strides=(stride,), padding="VALID",
            dimension_numbers=("NCH", "OIH", "NCH"),
            precision=jax.lax.Precision.HIGHEST)            # (B, Cout, Lout)
        mean = jnp.mean(y, axis=(0, 2), keepdims=True)
        var = jnp.mean((y - mean) ** 2, axis=(0, 2), keepdims=True)
        y = (y - mean) * jax.lax.rsqrt(var + EPS)
        y = jnp.maximum(y * gamma.reshape(1, -1, 1) + beta.reshape(1, -1, 1), 0.0)
        lp = y.shape[-1] // 4
        h = y[:, :, :4 * lp].reshape(y.shape[0], y.shape[1], lp, 4).max(axis=-1)
    feat = jnp.mean(h, axis=-1)                             # (B, C)
    logits = jnp.dot(feat, ref_params["fc_w"],
                     precision=jax.lax.Precision.HIGHEST) + ref_params["fc_b"]
    return jax.nn.log_softmax(logits, axis=-1)[:, None, :]


if __name__ == "__main__":
    key = jax.random.PRNGKey(0)
    kx, kp = jax.random.split(key)
    # Smallest practical audio length for this architecture is ~6848 samples;
    # use B=2, 1 input channel, 8000 samples.
    x = jax.random.normal(kx, (2, 1, 8000), jnp.float32)
    params, ref_params = init_params(kp, n_input=1, n_output=2,
                                     stride=16, n_channel=32)

    out = m5_forward(x, params)
    jax.block_until_ready(out)

    assert out.shape == (2, 1, 2)
    assert bool(jnp.all(jnp.isfinite(out)))
    # rows of exp(out) must sum to 1 (log_softmax)
    assert bool(jnp.allclose(jnp.sum(jnp.exp(out), axis=-1), 1.0, atol=1e-5))
    # match the pure-JAX f32 reference (kernel uses bf16 matmul operands)
    ref = m5_reference(x, ref_params)
    assert bool(jnp.allclose(out, ref, atol=0.1))
    print("KERNEL_OK")
</pallas_src>

<mosaic_0001>
module attributes {stable_mosaic.version = 11 : i64} {
  func.func @_m5_kernel(%arg0: i32, %arg1: memref<2x500x16xf32, #tpu.memory_space<vmem>>, %arg2: memref<5x16x32xbf16, #tpu.memory_space<vmem>>, %arg3: memref<1x32xf32, #tpu.memory_space<vmem>>, %arg4: memref<1x32xf32, #tpu.memory_space<vmem>>, %arg5: memref<124x493xf32, #tpu.memory_space<vmem>>, %arg6: memref<3x32x32xbf16, #tpu.memory_space<vmem>>, %arg7: memref<1x32xf32, #tpu.memory_space<vmem>>, %arg8: memref<1x32xf32, #tpu.memory_space<vmem>>, %arg9: memref<30x119xf32, #tpu.memory_space<vmem>>, %arg10: memref<3x32x64xbf16, #tpu.memory_space<vmem>>, %arg11: memref<1x64xf32, #tpu.memory_space<vmem>>, %arg12: memref<1x64xf32, #tpu.memory_space<vmem>>, %arg13: memref<7x25xf32, #tpu.memory_space<vmem>>, %arg14: memref<3x64x64xbf16, #tpu.memory_space<vmem>>, %arg15: memref<1x64xf32, #tpu.memory_space<vmem>>, %arg16: memref<1x64xf32, #tpu.memory_space<vmem>>, %arg17: memref<1x2xf32, #tpu.memory_space<vmem>>, %arg18: memref<64x2xbf16, #tpu.memory_space<vmem>>, %arg19: memref<1x2xf32, #tpu.memory_space<vmem>>, %arg20: memref<2x2xf32, #tpu.memory_space<vmem>>) attributes {dimension_semantics = [#tpu.dimension_semantics<arbitrary>], iteration_bounds = array<i64: 1>, scalar_prefetch = 0 : i64, scratch_operands = 0 : i64, tpu.core_type = #tpu.core_type<tc>, window_params = [{pipeline_mode = #tpu.pipeline_mode<synchronous>, transform_indices = @transform_0, window_bounds = array<i64: 2, 500, 16>}, {pipeline_mode = #tpu.pipeline_mode<synchronous>, transform_indices = @transform_1, window_bounds = array<i64: 5, 16, 32>}, {pipeline_mode = #tpu.pipeline_mode<synchronous>, transform_indices = @transform_2, window_bounds = array<i64: 1, 32>}, {pipeline_mode = #tpu.pipeline_mode<synchronous>, transform_indices = @transform_3, window_bounds = array<i64: 1, 32>}, {pipeline_mode = #tpu.pipeline_mode<synchronous>, transform_indices = @transform_4, window_bounds = array<i64: 124, 493>}, {pipeline_mode = #tpu.pipeline_mode<synchronous>, transform_indices = @transform_5, window_bounds = array<i64: 3, 32, 32>}, {pipeline_mode = #tpu.pipeline_mode<synchronous>, transform_indices = @transform_6, window_bounds = array<i64: 1, 32>}, {pipeline_mode = #tpu.pipeline_mode<synchronous>, transform_indices = @transform_7, window_bounds = array<i64: 1, 32>}, {pipeline_mode = #tpu.pipeline_mode<synchronous>, transform_indices = @transform_8, window_bounds = array<i64: 30, 119>}, {pipeline_mode = #tpu.pipeline_mode<synchronous>, transform_indices = @transform_9, window_bounds = array<i64: 3, 32, 64>}, {pipeline_mode = #tpu.pipeline_mode<synchronous>, transform_indices = @transform_10, window_bounds = array<i64: 1, 64>}, {pipeline_mode = #tpu.pipeline_mode<synchronous>, transform_indices = @transform_11, window_bounds = array<i64: 1, 64>}, {pipeline_mode = #tpu.pipeline_mode<synchronous>, transform_indices = @transform_12, window_bounds = array<i64: 7, 25>}, {pipeline_mode = #tpu.pipeline_mode<synchronous>, transform_indices = @transform_13, window_bounds = array<i64: 3, 64, 64>}, {pipeline_mode = #tpu.pipeline_mode<synchronous>, transform_indices = @transform_14, window_bounds = array<i64: 1, 64>}, {pipeline_mode = #tpu.pipeline_mode<synchronous>, transform_indices = @transform_15, window_bounds = array<i64: 1, 64>}, {pipeline_mode = #tpu.pipeline_mode<synchronous>, transform_indices = @transform_16, window_bounds = array<i64: 1, 2>}, {pipeline_mode = #tpu.pipeline_mode<synchronous>, transform_indices = @transform_17, window_bounds = array<i64: 64, 2>}, {pipeline_mode = #tpu.pipeline_mode<synchronous>, transform_indices = @transform_18, window_bounds = array<i64: 1, 2>}, {pipeline_mode = #tpu.pipeline_mode<synchronous>, transform_indices = @transform_19, window_bounds = array<i64: 2, 2>}]} {
    %c0 = arith.constant 0 : index
    %c0_0 = arith.constant 0 : index
    %c0_1 = arith.constant 0 : index
    %0 = vector.load %arg1[%c0, %c0_0, %c0_1] : memref<2x500x16xf32, #tpu.memory_space<vmem>>, vector<1x500x16xf32>
    %1 = vector.shape_cast %0 : vector<1x500x16xf32> to vector<500x16xf32>
    %c1 = arith.constant 1 : index
    %c0_2 = arith.constant 0 : index
    %c0_3 = arith.constant 0 : index
    %2 = vector.load %arg1[%c1, %c0_2, %c0_3] : memref<2x500x16xf32, #tpu.memory_space<vmem>>, vector<1x500x16xf32>
    %3 = vector.shape_cast %2 : vector<1x500x16xf32> to vector<500x16xf32>
    %c0_4 = arith.constant 0 : index
    %c0_5 = arith.constant 0 : index
    %c0_6 = arith.constant 0 : index
    %4 = vector.load %arg2[%c0_4, %c0_5, %c0_6] : memref<5x16x32xbf16, #tpu.memory_space<vmem>>, vector<1x16x32xbf16>
    %5 = vector.shape_cast %4 : vector<1x16x32xbf16> to vector<16x32xbf16>
    %c1_7 = arith.constant 1 : index
    %c0_8 = arith.constant 0 : index
    %c0_9 = arith.constant 0 : index
    %6 = vector.load %arg2[%c1_7, %c0_8, %c0_9] : memref<5x16x32xbf16, #tpu.memory_space<vmem>>, vector<1x16x32xbf16>
    %7 = vector.shape_cast %6 : vector<1x16x32xbf16> to vector<16x32xbf16>
    %c2 = arith.constant 2 : index
    %c0_10 = arith.constant 0 : index
    %c0_11 = arith.constant 0 : index
    %8 = vector.load %arg2[%c2, %c0_10, %c0_11] : memref<5x16x32xbf16, #tpu.memory_space<vmem>>, vector<1x16x32xbf16>
    %9 = vector.shape_cast %8 : vector<1x16x32xbf16> to vector<16x32xbf16>
    %c3 = arith.constant 3 : index
    %c0_12 = arith.constant 0 : index
    %c0_13 = arith.constant 0 : index
    %10 = vector.load %arg2[%c3, %c0_12, %c0_13] : memref<5x16x32xbf16, #tpu.memory_space<vmem>>, vector<1x16x32xbf16>
    %11 = vector.shape_cast %10 : vector<1x16x32xbf16> to vector<16x32xbf16>
    %c4 = arith.constant 4 : index
    %c0_14 = arith.constant 0 : index
    %c0_15 = arith.constant 0 : index
    %12 = vector.load %arg2[%c4, %c0_14, %c0_15] : memref<5x16x32xbf16, #tpu.memory_space<vmem>>, vector<1x16x32xbf16>
    %13 = vector.shape_cast %12 : vector<1x16x32xbf16> to vector<16x32xbf16>
    %14 = vector.extract_strided_slice %1 {offsets = [0, 0], sizes = [496, 16], strides = [1, 1]} : vector<500x16xf32> to vector<496x16xf32>
    %15 = arith.truncf %14 : vector<496x16xf32> to vector<496x16xbf16>
    %cst = arith.constant dense<0.000000e+00> : vector<496x32xf32>
    %16 = tpu.matmul %15, %5, %cst {dimension_numbers = #tpu.dot_dimension_numbers<[1], [0], [0], [1], [0, 0, 1, 1], [], []>} : vector<496x16xbf16>, vector<16x32xbf16>, vector<496x32xf32> -> vector<496x32xf32>
    %17 = vector.extract_strided_slice %1 {offsets = [1, 0], sizes = [496, 16], strides = [1, 1]} : vector<500x16xf32> to vector<496x16xf32>
    %18 = arith.truncf %17 : vector<496x16xf32> to vector<496x16xbf16>
    %cst_16 = arith.constant dense<0.000000e+00> : vector<496x32xf32>
    %19 = tpu.matmul %18, %7, %cst_16 {dimension_numbers = #tpu.dot_dimension_numbers<[1], [0], [0], [1], [0, 0, 1, 1], [], []>} : vector<496x16xbf16>, vector<16x32xbf16>, vector<496x32xf32> -> vector<496x32xf32>
    %20 = arith.addf %16, %19 : vector<496x32xf32>
    %21 = vector.extract_strided_slice %1 {offsets = [2, 0], sizes = [496, 16], strides = [1, 1]} : vector<500x16xf32> to vector<496x16xf32>
    %22 = arith.truncf %21 : vector<496x16xf32> to vector<496x16xbf16>
    %cst_17 = arith.constant dense<0.000000e+00> : vector<496x32xf32>
    %23 = tpu.matmul %22, %9, %cst_17 {dimension_numbers = #tpu.dot_dimension_numbers<[1], [0], [0], [1], [0, 0, 1, 1], [], []>} : vector<496x16xbf16>, vector<16x32xbf16>, vector<496x32xf32> -> vector<496x32xf32>
    %24 = arith.addf %20, %23 : vector<496x32xf32>
    %25 = vector.extract_strided_slice %1 {offsets = [3, 0], sizes = [496, 16], strides = [1, 1]} : vector<500x16xf32> to vector<496x16xf32>
    %26 = arith.truncf %25 : vector<496x16xf32> to vector<496x16xbf16>
    %cst_18 = arith.constant dense<0.000000e+00> : vector<496x32xf32>
    %27 = tpu.matmul %26, %11, %cst_18 {dimension_numbers = #tpu.dot_dimension_numbers<[1], [0], [0], [1], [0, 0, 1, 1], [], []>} : vector<496x16xbf16>, vector<16x32xbf16>, vector<496x32xf32> -> vector<496x32xf32>
    %28 = arith.addf %24, %27 : vector<496x32xf32>
    %29 = vector.extract_strided_slice %1 {offsets = [4, 0], sizes = [496, 16], strides = [1, 1]} : vector<500x16xf32> to vector<496x16xf32>
    %30 = arith.truncf %29 : vector<496x16xf32> to vector<496x16xbf16>
    %cst_19 = arith.constant dense<0.000000e+00> : vector<496x32xf32>
    %31 = tpu.matmul %30, %13, %cst_19 {dimension_numbers = #tpu.dot_dimension_numbers<[1], [0], [0], [1], [0, 0, 1, 1], [], []>} : vector<496x16xbf16>, vector<16x32xbf16>, vector<496x32xf32> -> vector<496x32xf32>
    %32 = arith.addf %28, %31 : vector<496x32xf32>
    %33 = vector.extract_strided_slice %3 {offsets = [0, 0], sizes = [496, 16], strides = [1, 1]} : vector<500x16xf32> to vector<496x16xf32>
    %34 = arith.truncf %33 : vector<496x16xf32> to vector<496x16xbf16>
    %cst_20 = arith.constant dense<0.000000e+00> : vector<496x32xf32>
    %35 = tpu.matmul %34, %5, %cst_20 {dimension_numbers = #tpu.dot_dimension_numbers<[1], [0], [0], [1], [0, 0, 1, 1], [], []>} : vector<496x16xbf16>, vector<16x32xbf16>, vector<496x32xf32> -> vector<496x32xf32>
    %36 = vector.extract_strided_slice %3 {offsets = [1, 0], sizes = [496, 16], strides = [1, 1]} : vector<500x16xf32> to vector<496x16xf32>
    %37 = arith.truncf %36 : vector<496x16xf32> to vector<496x16xbf16>
    %cst_21 = arith.constant dense<0.000000e+00> : vector<496x32xf32>
    %38 = tpu.matmul %37, %7, %cst_21 {dimension_numbers = #tpu.dot_dimension_numbers<[1], [0], [0], [1], [0, 0, 1, 1], [], []>} : vector<496x16xbf16>, vector<16x32xbf16>, vector<496x32xf32> -> vector<496x32xf32>
    %39 = arith.addf %35, %38 : vector<496x32xf32>
    %40 = vector.extract_strided_slice %3 {offsets = [2, 0], sizes = [496, 16], strides = [1, 1]} : vector<500x16xf32> to vector<496x16xf32>
    %41 = arith.truncf %40 : vector<496x16xf32> to vector<496x16xbf16>
    %cst_22 = arith.constant dense<0.000000e+00> : vector<496x32xf32>
    %42 = tpu.matmul %41, %9, %cst_22 {dimension_numbers = #tpu.dot_dimension_numbers<[1], [0], [0], [1], [0, 0, 1, 1], [], []>} : vector<496x16xbf16>, vector<16x32xbf16>, vector<496x32xf32> -> vector<496x32xf32>
    %43 = arith.addf %39, %42 : vector<496x32xf32>
    %44 = vector.extract_strided_slice %3 {offsets = [3, 0], sizes = [496, 16], strides = [1, 1]} : vector<500x16xf32> to vector<496x16xf32>
    %45 = arith.truncf %44 : vector<496x16xf32> to vector<496x16xbf16>
    %cst_23 = arith.constant dense<0.000000e+00> : vector<496x32xf32>
    %46 = tpu.matmul %45, %11, %cst_23 {dimension_numbers = #tpu.dot_dimension_numbers<[1], [0], [0], [1], [0, 0, 1, 1], [], []>} : vector<496x16xbf16>, vector<16x32xbf16>, vector<496x32xf32> -> vector<496x32xf32>
    %47 = arith.addf %43, %46 : vector<496x32xf32>
    %48 = vector.extract_strided_slice %3 {offsets = [4, 0], sizes = [496, 16], strides = [1, 1]} : vector<500x16xf32> to vector<496x16xf32>
    %49 = arith.truncf %48 : vector<496x16xf32> to vector<496x16xbf16>
    %cst_24 = arith.constant dense<0.000000e+00> : vector<496x32xf32>
    %50 = tpu.matmul %49, %13, %cst_24 {dimension_numbers = #tpu.dot_dimension_numbers<[1], [0], [0], [1], [0, 0, 1, 1], [], []>} : vector<496x16xbf16>, vector<16x32xbf16>, vector<496x32xf32> -> vector<496x32xf32>
    %51 = arith.addf %47, %50 : vector<496x32xf32>
    %cst_25 = arith.constant dense<0.000000e+00> : vector<32xf32>
    %52 = vector.multi_reduction <add>, %32, %cst_25 [0] : vector<496x32xf32> to vector<32xf32>
    %53 = vector.shape_cast %52 : vector<32xf32> to vector<1x32xf32>
    %54 = arith.mulf %32, %32 : vector<496x32xf32>
    %cst_26 = arith.constant dense<0.000000e+00> : vector<32xf32>
    %55 = vector.multi_reduction <add>, %54, %cst_26 [0] : vector<496x32xf32> to vector<32xf32>
    %56 = vector.shape_cast %55 : vector<32xf32> to vector<1x32xf32>
    %cst_27 = arith.constant dense<0.000000e+00> : vector<32xf32>
    %57 = vector.multi_reduction <add>, %51, %cst_27 [0] : vector<496x32xf32> to vector<32xf32>
    %58 = vector.shape_cast %57 : vector<32xf32> to vector<1x32xf32>
    %59 = arith.addf %53, %58 : vector<1x32xf32>
    %60 = arith.mulf %51, %51 : vector<496x32xf32>
    %cst_28 = arith.constant dense<0.000000e+00> : vector<32xf32>
    %61 = vector.multi_reduction <add>, %60, %cst_28 [0] : vector<496x32xf32> to vector<32xf32>
    %62 = vector.shape_cast %61 : vector<32xf32> to vector<1x32xf32>
    %63 = arith.addf %56, %62 : vector<1x32xf32>
    %cst_29 = arith.constant 0.00100806449 : f32
    %64 = vector.broadcast %cst_29 : f32 to vector<1x32xf32>
    %65 = arith.mulf %59, %64 : vector<1x32xf32>
    %cst_30 = arith.constant 0.00100806449 : f32
    %66 = vector.broadcast %cst_30 : f32 to vector<1x32xf32>
    %67 = arith.mulf %63, %66 : vector<1x32xf32>
    %68 = arith.mulf %65, %65 : vector<1x32xf32>
    %69 = arith.subf %67, %68 : vector<1x32xf32>
    %c0_31 = arith.constant 0 : index
    %c0_32 = arith.constant 0 : index
    %70 = vector.load %arg3[%c0_31, %c0_32] : memref<1x32xf32, #tpu.memory_space<vmem>>, vector<1x32xf32>
    %cst_33 = arith.constant 9.99999974E-6 : f32
    %71 = vector.broadcast %cst_33 : f32 to vector<1x32xf32>
    %72 = arith.addf %69, %71 : vector<1x32xf32>
    %73 = math.rsqrt %72 : vector<1x32xf32>
    %74 = arith.mulf %70, %73 : vector<1x32xf32>
    %c0_34 = arith.constant 0 : index
    %c0_35 = arith.constant 0 : index
    %75 = vector.load %arg4[%c0_34, %c0_35] : memref<1x32xf32, #tpu.memory_space<vmem>>, vector<1x32xf32>
    %76 = arith.mulf %65, %74 : vector<1x32xf32>
    %77 = arith.subf %75, %76 : vector<1x32xf32>
    %c0_36 = arith.constant 0 : index
    %c0_37 = arith.constant 0 : index
    %78 = vector.load %arg5[%c0_36, %c0_37] : memref<124x493xf32, #tpu.memory_space<vmem>>, vector<124x493xf32>
    %79 = vector.broadcast %74 : vector<1x32xf32> to vector<496x32xf32>
    %80 = arith.mulf %32, %79 : vector<496x32xf32>
    %81 = vector.broadcast %77 : vector<1x32xf32> to vector<496x32xf32>
    %82 = arith.addf %80, %81 : vector<496x32xf32>
    %cst_38 = arith.constant 0.000000e+00 : f32
    %83 = vector.broadcast %cst_38 : f32 to vector<496x32xf32>
    %84 = arith.maximumf %82, %83 : vector<496x32xf32>
    %85 = vector.extract_strided_slice %84 {offsets = [0, 0], sizes = [493, 32], strides = [1, 1]} : vector<496x32xf32> to vector<493x32xf32>
    %86 = vector.extract_strided_slice %84 {offsets = [1, 0], sizes = [493, 32], strides = [1, 1]} : vector<496x32xf32> to vector<493x32xf32>
    %87 = arith.maximumf %85, %86 : vector<493x32xf32>
    %88 = vector.extract_strided_slice %84 {offsets = [2, 0], sizes = [493, 32], strides = [1, 1]} : vector<496x32xf32> to vector<493x32xf32>
    %89 = vector.extract_strided_slice %84 {offsets = [3, 0], sizes = [493, 32], strides = [1, 1]} : vector<496x32xf32> to vector<493x32xf32>
    %90 = arith.maximumf %88, %89 : vector<493x32xf32>
    %91 = arith.maximumf %87, %90 : vector<493x32xf32>
    %cst_39 = arith.constant dense<0.000000e+00> : vector<124x32xf32>
    %92 = tpu.matmul %78, %91, %cst_39 {dimension_numbers = #tpu.dot_dimension_numbers<[1], [0], [0], [1], [0, 0, 1, 1], [], []>} : vector<124x493xf32>, vector<493x32xf32>, vector<124x32xf32> -> vector<124x32xf32>
    %93 = vector.broadcast %74 : vector<1x32xf32> to vector<496x32xf32>
    %94 = arith.mulf %51, %93 : vector<496x32xf32>
    %95 = vector.broadcast %77 : vector<1x32xf32> to vector<496x32xf32>
    %96 = arith.addf %94, %95 : vector<496x32xf32>
    %cst_40 = arith.constant 0.000000e+00 : f32
    %97 = vector.broadcast %cst_40 : f32 to vector<496x32xf32>
    %98 = arith.maximumf %96, %97 : vector<496x32xf32>
    %99 = vector.extract_strided_slice %98 {offsets = [0, 0], sizes = [493, 32], strides = [1, 1]} : vector<496x32xf32> to vector<493x32xf32>
    %100 = vector.extract_strided_slice %98 {offsets = [1, 0], sizes = [493, 32], strides = [1, 1]} : vector<496x32xf32> to vector<493x32xf32>
    %101 = arith.maximumf %99, %100 : vector<493x32xf32>
    %102 = vector.extract_strided_slice %98 {offsets = [2, 0], sizes = [493, 32], strides = [1, 1]} : vector<496x32xf32> to vector<493x32xf32>
    %103 = vector.extract_strided_slice %98 {offsets = [3, 0], sizes = [493, 32], strides = [1, 1]} : vector<496x32xf32> to vector<493x32xf32>
    %104 = arith.maximumf %102, %103 : vector<493x32xf32>
    %105 = arith.maximumf %101, %104 : vector<493x32xf32>
    %cst_41 = arith.constant dense<0.000000e+00> : vector<124x32xf32>
    %106 = tpu.matmul %78, %105, %cst_41 {dimension_numbers = #tpu.dot_dimension_numbers<[1], [0], [0], [1], [0, 0, 1, 1], [], []>} : vector<124x493xf32>, vector<493x32xf32>, vector<124x32xf32> -> vector<124x32xf32>
    %c0_42 = arith.constant 0 : index
    %c0_43 = arith.constant 0 : index
    %c0_44 = arith.constant 0 : index
    %107 = vector.load %arg6[%c0_42, %c0_43, %c0_44] : memref<3x32x32xbf16, #tpu.memory_space<vmem>>, vector<1x32x32xbf16>
    %108 = vector.shape_cast %107 : vector<1x32x32xbf16> to vector<32x32xbf16>
    %c1_45 = arith.constant 1 : index
    %c0_46 = arith.constant 0 : index
    %c0_47 = arith.constant 0 : index
    %109 = vector.load %arg6[%c1_45, %c0_46, %c0_47] : memref<3x32x32xbf16, #tpu.memory_space<vmem>>, vector<1x32x32xbf16>
    %110 = vector.shape_cast %109 : vector<1x32x32xbf16> to vector<32x32xbf16>
    %c2_48 = arith.constant 2 : index
    %c0_49 = arith.constant 0 : index
    %c0_50 = arith.constant 0 : index
    %111 = vector.load %arg6[%c2_48, %c0_49, %c0_50] : memref<3x32x32xbf16, #tpu.memory_space<vmem>>, vector<1x32x32xbf16>
    %112 = vector.shape_cast %111 : vector<1x32x32xbf16> to vector<32x32xbf16>
    %113 = vector.extract_strided_slice %92 {offsets = [0, 0], sizes = [122, 32], strides = [1, 1]} : vector<124x32xf32> to vector<122x32xf32>
    %114 = arith.truncf %113 : vector<122x32xf32> to vector<122x32xbf16>
    %cst_51 = arith.constant dense<0.000000e+00> : vector<122x32xf32>
    %115 = tpu.matmul %114, %108, %cst_51 {dimension_numbers = #tpu.dot_dimension_numbers<[1], [0], [0], [1], [0, 0, 1, 1], [], []>} : vector<122x32xbf16>, vector<32x32xbf16>, vector<122x32xf32> -> vector<122x32xf32>
    %116 = vector.extract_strided_slice %92 {offsets = [1, 0], sizes = [122, 32], strides = [1, 1]} : vector<124x32xf32> to vector<122x32xf32>
    %117 = arith.truncf %116 : vector<122x32xf32> to vector<122x32xbf16>
    %cst_52 = arith.constant dense<0.000000e+00> : vector<122x32xf32>
    %118 = tpu.matmul %117, %110, %cst_52 {dimension_numbers = #tpu.dot_dimension_numbers<[1], [0], [0], [1], [0, 0, 1, 1], [], []>} : vector<122x32xbf16>, vector<32x32xbf16>, vector<122x32xf32> -> vector<122x32xf32>
    %119 = arith.addf %115, %118 : vector<122x32xf32>
    %120 = vector.extract_strided_slice %92 {offsets = [2, 0], sizes = [122, 32], strides = [1, 1]} : vector<124x32xf32> to vector<122x32xf32>
    %121 = arith.truncf %120 : vector<122x32xf32> to vector<122x32xbf16>
    %cst_53 = arith.constant dense<0.000000e+00> : vector<122x32xf32>
    %122 = tpu.matmul %121, %112, %cst_53 {dimension_numbers = #tpu.dot_dimension_numbers<[1], [0], [0], [1], [0, 0, 1, 1], [], []>} : vector<122x32xbf16>, vector<32x32xbf16>, vector<122x32xf32> -> vector<122x32xf32>
    %123 = arith.addf %119, %122 : vector<122x32xf32>
    %124 = vector.extract_strided_slice %106 {offsets = [0, 0], sizes = [122, 32], strides = [1, 1]} : vector<124x32xf32> to vector<122x32xf32>
    %125 = arith.truncf %124 : vector<122x32xf32> to vector<122x32xbf16>
    %cst_54 = arith.constant dense<0.000000e+00> : vector<122x32xf32>
    %126 = tpu.matmul %125, %108, %cst_54 {dimension_numbers = #tpu.dot_dimension_numbers<[1], [0], [0], [1], [0, 0, 1, 1], [], []>} : vector<122x32xbf16>, vector<32x32xbf16>, vector<122x32xf32> -> vector<122x32xf32>
    %127 = vector.extract_strided_slice %106 {offsets = [1, 0], sizes = [122, 32], strides = [1, 1]} : vector<124x32xf32> to vector<122x32xf32>
    %128 = arith.truncf %127 : vector<122x32xf32> to vector<122x32xbf16>
    %cst_55 = arith.constant dense<0.000000e+00> : vector<122x32xf32>
    %129 = tpu.matmul %128, %110, %cst_55 {dimension_numbers = #tpu.dot_dimension_numbers<[1], [0], [0], [1], [0, 0, 1, 1], [], []>} : vector<122x32xbf16>, vector<32x32xbf16>, vector<122x32xf32> -> vector<122x32xf32>
    %130 = arith.addf %126, %129 : vector<122x32xf32>
    %131 = vector.extract_strided_slice %106 {offsets = [2, 0], sizes = [122, 32], strides = [1, 1]} : vector<124x32xf32> to vector<122x32xf32>
    %132 = arith.truncf %131 : vector<122x32xf32> to vector<122x32xbf16>
    %cst_56 = arith.constant dense<0.000000e+00> : vector<122x32xf32>
    %133 = tpu.matmul %132, %112, %cst_56 {dimension_numbers = #tpu.dot_dimension_numbers<[1], [0], [0], [1], [0, 0, 1, 1], [], []>} : vector<122x32xbf16>, vector<32x32xbf16>, vector<122x32xf32> -> vector<122x32xf32>
    %134 = arith.addf %130, %133 : vector<122x32xf32>
    %cst_57 = arith.constant dense<0.000000e+00> : vector<32xf32>
    %135 = vector.multi_reduction <add>, %123, %cst_57 [0] : vector<122x32xf32> to vector<32xf32>
    %136 = vector.shape_cast %135 : vector<32xf32> to vector<1x32xf32>
    %137 = arith.mulf %123, %123 : vector<122x32xf32>
    %cst_58 = arith.constant dense<0.000000e+00> : vector<32xf32>
    %138 = vector.multi_reduction <add>, %137, %cst_58 [0] : vector<122x32xf32> to vector<32xf32>
    %139 = vector.shape_cast %138 : vector<32xf32> to vector<1x32xf32>
    %cst_59 = arith.constant dense<0.000000e+00> : vector<32xf32>
    %140 = vector.multi_reduction <add>, %134, %cst_59 [0] : vector<122x32xf32> to vector<32xf32>
    %141 = vector.shape_cast %140 : vector<32xf32> to vector<1x32xf32>
    %142 = arith.addf %136, %141 : vector<1x32xf32>
    %143 = arith.mulf %134, %134 : vector<122x32xf32>
    %cst_60 = arith.constant dense<0.000000e+00> : vector<32xf32>
    %144 = vector.multi_reduction <add>, %143, %cst_60 [0] : vector<122x32xf32> to vector<32xf32>
    %145 = vector.shape_cast %144 : vector<32xf32> to vector<1x32xf32>
    %146 = arith.addf %139, %145 : vector<1x32xf32>
    %cst_61 = arith.constant 0.00409836043 : f32
    %147 = vector.broadcast %cst_61 : f32 to vector<1x32xf32>
    %148 = arith.mulf %142, %147 : vector<1x32xf32>
    %cst_62 = arith.constant 0.00409836043 : f32
    %149 = vector.broadcast %cst_62 : f32 to vector<1x32xf32>
    %150 = arith.mulf %146, %149 : vector<1x32xf32>
    %151 = arith.mulf %148, %148 : vector<1x32xf32>
    %152 = arith.subf %150, %151 : vector<1x32xf32>
    %c0_63 = arith.constant 0 : index
    %c0_64 = arith.constant 0 : index
    %153 = vector.load %arg7[%c0_63, %c0_64] : memref<1x32xf32, #tpu.memory_space<vmem>>, vector<1x32xf32>
    %cst_65 = arith.constant 9.99999974E-6 : f32
    %154 = vector.broadcast %cst_65 : f32 to vector<1x32xf32>
    %155 = arith.addf %152, %154 : vector<1x32xf32>
    %156 = math.rsqrt %155 : vector<1x32xf32>
    %157 = arith.mulf %153, %156 : vector<1x32xf32>
    %c0_66 = arith.constant 0 : index
    %c0_67 = arith.constant 0 : index
    %158 = vector.load %arg8[%c0_66, %c0_67] : memref<1x32xf32, #tpu.memory_space<vmem>>, vector<1x32xf32>
    %159 = arith.mulf %148, %157 : vector<1x32xf32>
    %160 = arith.subf %158, %159 : vector<1x32xf32>
    %c0_68 = arith.constant 0 : index
    %c0_69 = arith.constant 0 : index
    %161 = vector.load %arg9[%c0_68, %c0_69] : memref<30x119xf32, #tpu.memory_space<vmem>>, vector<30x119xf32>
    %162 = vector.broadcast %157 : vector<1x32xf32> to vector<122x32xf32>
    %163 = arith.mulf %123, %162 : vector<122x32xf32>
    %164 = vector.broadcast %160 : vector<1x32xf32> to vector<122x32xf32>
    %165 = arith.addf %163, %164 : vector<122x32xf32>
    %cst_70 = arith.constant 0.000000e+00 : f32
    %166 = vector.broadcast %cst_70 : f32 to vector<122x32xf32>
    %167 = arith.maximumf %165, %166 : vector<122x32xf32>
    %168 = vector.extract_strided_slice %167 {offsets = [0, 0], sizes = [119, 32], strides = [1, 1]} : vector<122x32xf32> to vector<119x32xf32>
    %169 = vector.extract_strided_slice %167 {offsets = [1, 0], sizes = [119, 32], strides = [1, 1]} : vector<122x32xf32> to vector<119x32xf32>
    %170 = arith.maximumf %168, %169 : vector<119x32xf32>
    %171 = vector.extract_strided_slice %167 {offsets = [2, 0], sizes = [119, 32], strides = [1, 1]} : vector<122x32xf32> to vector<119x32xf32>
    %172 = vector.extract_strided_slice %167 {offsets = [3, 0], sizes = [119, 32], strides = [1, 1]} : vector<122x32xf32> to vector<119x32xf32>
    %173 = arith.maximumf %171, %172 : vector<119x32xf32>
    %174 = arith.maximumf %170, %173 : vector<119x32xf32>
    %cst_71 = arith.constant dense<0.000000e+00> : vector<30x32xf32>
    %175 = tpu.matmul %161, %174, %cst_71 {dimension_numbers = #tpu.dot_dimension_numbers<[1], [0], [0], [1], [0, 0, 1, 1], [], []>} : vector<30x119xf32>, vector<119x32xf32>, vector<30x32xf32> -> vector<30x32xf32>
    %176 = vector.broadcast %157 : vector<1x32xf32> to vector<122x32xf32>
    %177 = arith.mulf %134, %176 : vector<122x32xf32>
    %178 = vector.broadcast %160 : vector<1x32xf32> to vector<122x32xf32>
    %179 = arith.addf %177, %178 : vector<122x32xf32>
    %cst_72 = arith.constant 0.000000e+00 : f32
    %180 = vector.broadcast %cst_72 : f32 to vector<122x32xf32>
    %181 = arith.maximumf %179, %180 : vector<122x32xf32>
    %182 = vector.extract_strided_slice %181 {offsets = [0, 0], sizes = [119, 32], strides = [1, 1]} : vector<122x32xf32> to vector<119x32xf32>
    %183 = vector.extract_strided_slice %181 {offsets = [1, 0], sizes = [119, 32], strides = [1, 1]} : vector<122x32xf32> to vector<119x32xf32>
    %184 = arith.maximumf %182, %183 : vector<119x32xf32>
    %185 = vector.extract_strided_slice %181 {offsets = [2, 0], sizes = [119, 32], strides = [1, 1]} : vector<122x32xf32> to vector<119x32xf32>
    %186 = vector.extract_strided_slice %181 {offsets = [3, 0], sizes = [119, 32], strides = [1, 1]} : vector<122x32xf32> to vector<119x32xf32>
    %187 = arith.maximumf %185, %186 : vector<119x32xf32>
    %188 = arith.maximumf %184, %187 : vector<119x32xf32>
    %cst_73 = arith.constant dense<0.000000e+00> : vector<30x32xf32>
    %189 = tpu.matmul %161, %188, %cst_73 {dimension_numbers = #tpu.dot_dimension_numbers<[1], [0], [0], [1], [0, 0, 1, 1], [], []>} : vector<30x119xf32>, vector<119x32xf32>, vector<30x32xf32> -> vector<30x32xf32>
    %c0_74 = arith.constant 0 : index
    %c0_75 = arith.constant 0 : index
    %c0_76 = arith.constant 0 : index
    %190 = vector.load %arg10[%c0_74, %c0_75, %c0_76] : memref<3x32x64xbf16, #tpu.memory_space<vmem>>, vector<1x32x64xbf16>
    %191 = vector.shape_cast %190 : vector<1x32x64xbf16> to vector<32x64xbf16>
    %c1_77 = arith.constant 1 : index
    %c0_78 = arith.constant 0 : index
    %c0_79 = arith.constant 0 : index
    %192 = vector.load %arg10[%c1_77, %c0_78, %c0_79] : memref<3x32x64xbf16, #tpu.memory_space<vmem>>, vector<1x32x64xbf16>
    %193 = vector.shape_cast %192 : vector<1x32x64xbf16> to vector<32x64xbf16>
    %c2_80 = arith.constant 2 : index
    %c0_81 = arith.constant 0 : index
    %c0_82 = arith.constant 0 : index
    %194 = vector.load %arg10[%c2_80, %c0_81, %c0_82] : memref<3x32x64xbf16, #tpu.memory_space<vmem>>, vector<1x32x64xbf16>
    %195 = vector.shape_cast %194 : vector<1x32x64xbf16> to vector<32x64xbf16>
    %196 = vector.extract_strided_slice %175 {offsets = [0, 0], sizes = [28, 32], strides = [1, 1]} : vector<30x32xf32> to vector<28x32xf32>
    %197 = arith.truncf %196 : vector<28x32xf32> to vector<28x32xbf16>
    %cst_83 = arith.constant dense<0.000000e+00> : vector<28x64xf32>
    %198 = tpu.matmul %197, %191, %cst_83 {dimension_numbers = #tpu.dot_dimension_numbers<[1], [0], [0], [1], [0, 0, 1, 1], [], []>} : vector<28x32xbf16>, vector<32x64xbf16>, vector<28x64xf32> -> vector<28x64xf32>
    %199 = vector.extract_strided_slice %175 {offsets = [1, 0], sizes = [28, 32], strides = [1, 1]} : vector<30x32xf32> to vector<28x32xf32>
    %200 = arith.truncf %199 : vector<28x32xf32> to vector<28x32xbf16>
    %cst_84 = arith.constant dense<0.000000e+00> : vector<28x64xf32>
    %201 = tpu.matmul %200, %193, %cst_84 {dimension_numbers = #tpu.dot_dimension_numbers<[1], [0], [0], [1], [0, 0, 1, 1], [], []>} : vector<28x32xbf16>, vector<32x64xbf16>, vector<28x64xf32> -> vector<28x64xf32>
    %202 = arith.addf %198, %201 : vector<28x64xf32>
    %203 = vector.extract_strided_slice %175 {offsets = [2, 0], sizes = [28, 32], strides = [1, 1]} : vector<30x32xf32> to vector<28x32xf32>
    %204 = arith.truncf %203 : vector<28x32xf32> to vector<28x32xbf16>
    %cst_85 = arith.constant dense<0.000000e+00> : vector<28x64xf32>
    %205 = tpu.matmul %204, %195, %cst_85 {dimension_numbers = #tpu.dot_dimension_numbers<[1], [0], [0], [1], [0, 0, 1, 1], [], []>} : vector<28x32xbf16>, vector<32x64xbf16>, vector<28x64xf32> -> vector<28x64xf32>
    %206 = arith.addf %202, %205 : vector<28x64xf32>
    %207 = vector.extract_strided_slice %189 {offsets = [0, 0], sizes = [28, 32], strides = [1, 1]} : vector<30x32xf32> to vector<28x32xf32>
    %208 = arith.truncf %207 : vector<28x32xf32> to vector<28x32xbf16>
    %cst_86 = arith.constant dense<0.000000e+00> : vector<28x64xf32>
    %209 = tpu.matmul %208, %191, %cst_86 {dimension_numbers = #tpu.dot_dimension_numbers<[1], [0], [0], [1], [0, 0, 1, 1], [], []>} : vector<28x32xbf16>, vector<32x64xbf16>, vector<28x64xf32> -> vector<28x64xf32>
    %210 = vector.extract_strided_slice %189 {offsets = [1, 0], sizes = [28, 32], strides = [1, 1]} : vector<30x32xf32> to vector<28x32xf32>
    %211 = arith.truncf %210 : vector<28x32xf32> to vector<28x32xbf16>
    %cst_87 = arith.constant dense<0.000000e+00> : vector<28x64xf32>
    %212 = tpu.matmul %211, %193, %cst_87 {dimension_numbers = #tpu.dot_dimension_numbers<[1], [0], [0], [1], [0, 0, 1, 1], [], []>} : vector<28x32xbf16>, vector<32x64xbf16>, vector<28x64xf32> -> vector<28x64xf32>
    %213 = arith.addf %209, %212 : vector<28x64xf32>
    %214 = vector.extract_strided_slice %189 {offsets = [2, 0], sizes = [28, 32], strides = [1, 1]} : vector<30x32xf32> to vector<28x32xf32>
    %215 = arith.truncf %214 : vector<28x32xf32> to vector<28x32xbf16>
    %cst_88 = arith.constant dense<0.000000e+00> : vector<28x64xf32>
    %216 = tpu.matmul %215, %195, %cst_88 {dimension_numbers = #tpu.dot_dimension_numbers<[1], [0], [0], [1], [0, 0, 1, 1], [], []>} : vector<28x32xbf16>, vector<32x64xbf16>, vector<28x64xf32> -> vector<28x64xf32>
    %217 = arith.addf %213, %216 : vector<28x64xf32>
    %cst_89 = arith.constant dense<0.000000e+00> : vector<64xf32>
    %218 = vector.multi_reduction <add>, %206, %cst_89 [0] : vector<28x64xf32> to vector<64xf32>
    %219 = vector.shape_cast %218 : vector<64xf32> to vector<1x64xf32>
    %220 = arith.mulf %206, %206 : vector<28x64xf32>
    %cst_90 = arith.constant dense<0.000000e+00> : vector<64xf32>
    %221 = vector.multi_reduction <add>, %220, %cst_90 [0] : vector<28x64xf32> to vector<64xf32>
    %222 = vector.shape_cast %221 : vector<64xf32> to vector<1x64xf32>
    %cst_91 = arith.constant dense<0.000000e+00> : vector<64xf32>
    %223 = vector.multi_reduction <add>, %217, %cst_91 [0] : vector<28x64xf32> to vector<64xf32>
    %224 = vector.shape_cast %223 : vector<64xf32> to vector<1x64xf32>
    %225 = arith.addf %219, %224 : vector<1x64xf32>
    %226 = arith.mulf %217, %217 : vector<28x64xf32>
    %cst_92 = arith.constant dense<0.000000e+00> : vector<64xf32>
    %227 = vector.multi_reduction <add>, %226, %cst_92 [0] : vector<28x64xf32> to vector<64xf32>
    %228 = vector.shape_cast %227 : vector<64xf32> to vector<1x64xf32>
    %229 = arith.addf %222, %228 : vector<1x64xf32>
    %cst_93 = arith.constant 0.0178571437 : f32
    %230 = vector.broadcast %cst_93 : f32 to vector<1x64xf32>
    %231 = arith.mulf %225, %230 : vector<1x64xf32>
    %cst_94 = arith.constant 0.0178571437 : f32
    %232 = vector.broadcast %cst_94 : f32 to vector<1x64xf32>
    %233 = arith.mulf %229, %232 : vector<1x64xf32>
    %234 = arith.mulf %231, %231 : vector<1x64xf32>
    %235 = arith.subf %233, %234 : vector<1x64xf32>
    %c0_95 = arith.constant 0 : index
    %c0_96 = arith.constant 0 : index
    %236 = vector.load %arg11[%c0_95, %c0_96] : memref<1x64xf32, #tpu.memory_space<vmem>>, vector<1x64xf32>
    %cst_97 = arith.constant 9.99999974E-6 : f32
    %237 = vector.broadcast %cst_97 : f32 to vector<1x64xf32>
    %238 = arith.addf %235, %237 : vector<1x64xf32>
    %239 = math.rsqrt %238 : vector<1x64xf32>
    %240 = arith.mulf %236, %239 : vector<1x64xf32>
    %c0_98 = arith.constant 0 : index
    %c0_99 = arith.constant 0 : index
    %241 = vector.load %arg12[%c0_98, %c0_99] : memref<1x64xf32, #tpu.memory_space<vmem>>, vector<1x64xf32>
    %242 = arith.mulf %231, %240 : vector<1x64xf32>
    %243 = arith.subf %241, %242 : vector<1x64xf32>
    %c0_100 = arith.constant 0 : index
    %c0_101 = arith.constant 0 : index
    %244 = vector.load %arg13[%c0_100, %c0_101] : memref<7x25xf32, #tpu.memory_space<vmem>>, vector<7x25xf32>
    %245 = vector.broadcast %240 : vector<1x64xf32> to vector<28x64xf32>
    %246 = arith.mulf %206, %245 : vector<28x64xf32>
    %247 = vector.broadcast %243 : vector<1x64xf32> to vector<28x64xf32>
    %248 = arith.addf %246, %247 : vector<28x64xf32>
    %cst_102 = arith.constant 0.000000e+00 : f32
    %249 = vector.broadcast %cst_102 : f32 to vector<28x64xf32>
    %250 = arith.maximumf %248, %249 : vector<28x64xf32>
    %251 = vector.extract_strided_slice %250 {offsets = [0, 0], sizes = [25, 64], strides = [1, 1]} : vector<28x64xf32> to vector<25x64xf32>
    %252 = vector.extract_strided_slice %250 {offsets = [1, 0], sizes = [25, 64], strides = [1, 1]} : vector<28x64xf32> to vector<25x64xf32>
    %253 = arith.maximumf %251, %252 : vector<25x64xf32>
    %254 = vector.extract_strided_slice %250 {offsets = [2, 0], sizes = [25, 64], strides = [1, 1]} : vector<28x64xf32> to vector<25x64xf32>
    %255 = vector.extract_strided_slice %250 {offsets = [3, 0], sizes = [25, 64], strides = [1, 1]} : vector<28x64xf32> to vector<25x64xf32>
    %256 = arith.maximumf %254, %255 : vector<25x64xf32>
    %257 = arith.maximumf %253, %256 : vector<25x64xf32>
    %cst_103 = arith.constant dense<0.000000e+00> : vector<7x64xf32>
    %258 = tpu.matmul %244, %257, %cst_103 {dimension_numbers = #tpu.dot_dimension_numbers<[1], [0], [0], [1], [0, 0, 1, 1], [], []>} : vector<7x25xf32>, vector<25x64xf32>, vector<7x64xf32> -> vector<7x64xf32>
    %259 = vector.broadcast %240 : vector<1x64xf32> to vector<28x64xf32>
    %260 = arith.mulf %217, %259 : vector<28x64xf32>
    %261 = vector.broadcast %243 : vector<1x64xf32> to vector<28x64xf32>
    %262 = arith.addf %260, %261 : vector<28x64xf32>
    %cst_104 = arith.constant 0.000000e+00 : f32
    %263 = vector.broadcast %cst_104 : f32 to vector<28x64xf32>
    %264 = arith.maximumf %262, %263 : vector<28x64xf32>
    %265 = vector.extract_strided_slice %264 {offsets = [0, 0], sizes = [25, 64], strides = [1, 1]} : vector<28x64xf32> to vector<25x64xf32>
    %266 = vector.extract_strided_slice %264 {offsets = [1, 0], sizes = [25, 64], strides = [1, 1]} : vector<28x64xf32> to vector<25x64xf32>
    %267 = arith.maximumf %265, %266 : vector<25x64xf32>
    %268 = vector.extract_strided_slice %264 {offsets = [2, 0], sizes = [25, 64], strides = [1, 1]} : vector<28x64xf32> to vector<25x64xf32>
    %269 = vector.extract_strided_slice %264 {offsets = [3, 0], sizes = [25, 64], strides = [1, 1]} : vector<28x64xf32> to vector<25x64xf32>
    %270 = arith.maximumf %268, %269 : vector<25x64xf32>
    %271 = arith.maximumf %267, %270 : vector<25x64xf32>
    %cst_105 = arith.constant dense<0.000000e+00> : vector<7x64xf32>
    %272 = tpu.matmul %244, %271, %cst_105 {dimension_numbers = #tpu.dot_dimension_numbers<[1], [0], [0], [1], [0, 0, 1, 1], [], []>} : vector<7x25xf32>, vector<25x64xf32>, vector<7x64xf32> -> vector<7x64xf32>
    %c0_106 = arith.constant 0 : index
    %c0_107 = arith.constant 0 : index
    %c0_108 = arith.constant 0 : index
    %273 = vector.load %arg14[%c0_106, %c0_107, %c0_108] : memref<3x64x64xbf16, #tpu.memory_space<vmem>>, vector<1x64x64xbf16>
    %274 = vector.shape_cast %273 : vector<1x64x64xbf16> to vector<64x64xbf16>
    %c1_109 = arith.constant 1 : index
    %c0_110 = arith.constant 0 : index
    %c0_111 = arith.constant 0 : index
    %275 = vector.load %arg14[%c1_109, %c0_110, %c0_111] : memref<3x64x64xbf16, #tpu.memory_space<vmem>>, vector<1x64x64xbf16>
    %276 = vector.shape_cast %275 : vector<1x64x64xbf16> to vector<64x64xbf16>
    %c2_112 = arith.constant 2 : index
    %c0_113 = arith.constant 0 : index
    %c0_114 = arith.constant 0 : index
    %277 = vector.load %arg14[%c2_112, %c0_113, %c0_114] : memref<3x64x64xbf16, #tpu.memory_space<vmem>>, vector<1x64x64xbf16>
    %278 = vector.shape_cast %277 : vector<1x64x64xbf16> to vector<64x64xbf16>
    %279 = vector.extract_strided_slice %258 {offsets = [0, 0], sizes = [5, 64], strides = [1, 1]} : vector<7x64xf32> to vector<5x64xf32>
    %280 = arith.truncf %279 : vector<5x64xf32> to vector<5x64xbf16>
    %cst_115 = arith.constant dense<0.000000e+00> : vector<5x64xf32>
    %281 = tpu.matmul %280, %274, %cst_115 {dimension_numbers = #tpu.dot_dimension_numbers<[1], [0], [0], [1], [0, 0, 1, 1], [], []>} : vector<5x64xbf16>, vector<64x64xbf16>, vector<5x64xf32> -> vector<5x64xf32>
    %282 = vector.extract_strided_slice %258 {offsets = [1, 0], sizes = [5, 64], strides = [1, 1]} : vector<7x64xf32> to vector<5x64xf32>
    %283 = arith.truncf %282 : vector<5x64xf32> to vector<5x64xbf16>
    %cst_116 = arith.constant dense<0.000000e+00> : vector<5x64xf32>
    %284 = tpu.matmul %283, %276, %cst_116 {dimension_numbers = #tpu.dot_dimension_numbers<[1], [0], [0], [1], [0, 0, 1, 1], [], []>} : vector<5x64xbf16>, vector<64x64xbf16>, vector<5x64xf32> -> vector<5x64xf32>
    %285 = arith.addf %281, %284 : vector<5x64xf32>
    %286 = vector.extract_strided_slice %258 {offsets = [2, 0], sizes = [5, 64], strides = [1, 1]} : vector<7x64xf32> to vector<5x64xf32>
    %287 = arith.truncf %286 : vector<5x64xf32> to vector<5x64xbf16>
    %cst_117 = arith.constant dense<0.000000e+00> : vector<5x64xf32>
    %288 = tpu.matmul %287, %278, %cst_117 {dimension_numbers = #tpu.dot_dimension_numbers<[1], [0], [0], [1], [0, 0, 1, 1], [], []>} : vector<5x64xbf16>, vector<64x64xbf16>, vector<5x64xf32> -> vector<5x64xf32>
    %289 = arith.addf %285, %288 : vector<5x64xf32>
    %290 = vector.extract_strided_slice %272 {offsets = [0, 0], sizes = [5, 64], strides = [1, 1]} : vector<7x64xf32> to vector<5x64xf32>
    %291 = arith.truncf %290 : vector<5x64xf32> to vector<5x64xbf16>
    %cst_118 = arith.constant dense<0.000000e+00> : vector<5x64xf32>
    %292 = tpu.matmul %291, %274, %cst_118 {dimension_numbers = #tpu.dot_dimension_numbers<[1], [0], [0], [1], [0, 0, 1, 1], [], []>} : vector<5x64xbf16>, vector<64x64xbf16>, vector<5x64xf32> -> vector<5x64xf32>
    %293 = vector.extract_strided_slice %272 {offsets = [1, 0], sizes = [5, 64], strides = [1, 1]} : vector<7x64xf32> to vector<5x64xf32>
    %294 = arith.truncf %293 : vector<5x64xf32> to vector<5x64xbf16>
    %cst_119 = arith.constant dense<0.000000e+00> : vector<5x64xf32>
    %295 = tpu.matmul %294, %276, %cst_119 {dimension_numbers = #tpu.dot_dimension_numbers<[1], [0], [0], [1], [0, 0, 1, 1], [], []>} : vector<5x64xbf16>, vector<64x64xbf16>, vector<5x64xf32> -> vector<5x64xf32>
    %296 = arith.addf %292, %295 : vector<5x64xf32>
    %297 = vector.extract_strided_slice %272 {offsets = [2, 0], sizes = [5, 64], strides = [1, 1]} : vector<7x64xf32> to vector<5x64xf32>
    %298 = arith.truncf %297 : vector<5x64xf32> to vector<5x64xbf16>
    %cst_120 = arith.constant dense<0.000000e+00> : vector<5x64xf32>
    %299 = tpu.matmul %298, %278, %cst_120 {dimension_numbers = #tpu.dot_dimension_numbers<[1], [0], [0], [1], [0, 0, 1, 1], [], []>} : vector<5x64xbf16>, vector<64x64xbf16>, vector<5x64xf32> -> vector<5x64xf32>
    %300 = arith.addf %296, %299 : vector<5x64xf32>
    %cst_121 = arith.constant dense<0.000000e+00> : vector<64xf32>
    %301 = vector.multi_reduction <add>, %289, %cst_121 [0] : vector<5x64xf32> to vector<64xf32>
    %302 = vector.shape_cast %301 : vector<64xf32> to vector<1x64xf32>
    %303 = arith.mulf %289, %289 : vector<5x64xf32>
    %cst_122 = arith.constant dense<0.000000e+00> : vector<64xf32>
    %304 = vector.multi_reduction <add>, %303, %cst_122 [0] : vector<5x64xf32> to vector<64xf32>
    %305 = vector.shape_cast %304 : vector<64xf32> to vector<1x64xf32>
    %cst_123 = arith.constant dense<0.000000e+00> : vector<64xf32>
    %306 = vector.multi_reduction <add>, %300, %cst_123 [0] : vector<5x64xf32> to vector<64xf32>
    %307 = vector.shape_cast %306 : vector<64xf32> to vector<1x64xf32>
    %308 = arith.addf %302, %307 : vector<1x64xf32>
    %309 = arith.mulf %300, %300 : vector<5x64xf32>
    %cst_124 = arith.constant dense<0.000000e+00> : vector<64xf32>
    %310 = vector.multi_reduction <add>, %309, %cst_124 [0] : vector<5x64xf32> to vector<64xf32>
    %311 = vector.shape_cast %310 : vector<64xf32> to vector<1x64xf32>
    %312 = arith.addf %305, %311 : vector<1x64xf32>
    %cst_125 = arith.constant 1.000000e-01 : f32
    %313 = vector.broadcast %cst_125 : f32 to vector<1x64xf32>
    %314 = arith.mulf %308, %313 : vector<1x64xf32>
    %cst_126 = arith.constant 1.000000e-01 : f32
    %315 = vector.broadcast %cst_126 : f32 to vector<1x64xf32>
    %316 = arith.mulf %312, %315 : vector<1x64xf32>
    %317 = arith.mulf %314, %314 : vector<1x64xf32>
    %318 = arith.subf %316, %317 : vector<1x64xf32>
    %c0_127 = arith.constant 0 : index
    %c0_128 = arith.constant 0 : index
    %319 = vector.load %arg15[%c0_127, %c0_128] : memref<1x64xf32, #tpu.memory_space<vmem>>, vector<1x64xf32>
    %cst_129 = arith.constant 9.99999974E-6 : f32
    %320 = vector.broadcast %cst_129 : f32 to vector<1x64xf32>
    %321 = arith.addf %318, %320 : vector<1x64xf32>
    %322 = math.rsqrt %321 : vector<1x64xf32>
    %323 = arith.mulf %319, %322 : vector<1x64xf32>
    %c0_130 = arith.constant 0 : index
    %c0_131 = arith.constant 0 : index
    %324 = vector.load %arg16[%c0_130, %c0_131] : memref<1x64xf32, #tpu.memory_space<vmem>>, vector<1x64xf32>
    %325 = arith.mulf %314, %323 : vector<1x64xf32>
    %326 = arith.subf %324, %325 : vector<1x64xf32>
    %c0_132 = arith.constant 0 : index
    %c0_133 = arith.constant 0 : index
    %327 = vector.load %arg17[%c0_132, %c0_133] : memref<1x2xf32, #tpu.memory_space<vmem>>, vector<1x2xf32>
    %328 = vector.broadcast %323 : vector<1x64xf32> to vector<5x64xf32>
    %329 = arith.mulf %289, %328 : vector<5x64xf32>
    %330 = vector.broadcast %326 : vector<1x64xf32> to vector<5x64xf32>
    %331 = arith.addf %329, %330 : vector<5x64xf32>
    %cst_134 = arith.constant 0.000000e+00 : f32
    %332 = vector.broadcast %cst_134 : f32 to vector<5x64xf32>
    %333 = arith.maximumf %331, %332 : vector<5x64xf32>
    %334 = vector.extract_strided_slice %333 {offsets = [0, 0], sizes = [2, 64], strides = [1, 1]} : vector<5x64xf32> to vector<2x64xf32>
    %335 = vector.extract_strided_slice %333 {offsets = [1, 0], sizes = [2, 64], strides = [1, 1]} : vector<5x64xf32> to vector<2x64xf32>
    %336 = arith.maximumf %334, %335 : vector<2x64xf32>
    %337 = vector.extract_strided_slice %333 {offsets = [2, 0], sizes = [2, 64], strides = [1, 1]} : vector<5x64xf32> to vector<2x64xf32>
    %338 = vector.extract_strided_slice %333 {offsets = [3, 0], sizes = [2, 64], strides = [1, 1]} : vector<5x64xf32> to vector<2x64xf32>
    %339 = arith.maximumf %337, %338 : vector<2x64xf32>
    %340 = arith.maximumf %336, %339 : vector<2x64xf32>
    %cst_135 = arith.constant dense<0.000000e+00> : vector<1x64xf32>
    %341 = tpu.matmul %327, %340, %cst_135 {dimension_numbers = #tpu.dot_dimension_numbers<[1], [0], [0], [1], [0, 0, 1, 1], [], []>} : vector<1x2xf32>, vector<2x64xf32>, vector<1x64xf32> -> vector<1x64xf32>
    %342 = vector.broadcast %323 : vector<1x64xf32> to vector<5x64xf32>
    %343 = arith.mulf %300, %342 : vector<5x64xf32>
    %344 = vector.broadcast %326 : vector<1x64xf32> to vector<5x64xf32>
    %345 = arith.addf %343, %344 : vector<5x64xf32>
    %cst_136 = arith.constant 0.000000e+00 : f32
    %346 = vector.broadcast %cst_136 : f32 to vector<5x64xf32>
    %347 = arith.maximumf %345, %346 : vector<5x64xf32>
    %348 = vector.extract_strided_slice %347 {offsets = [0, 0], sizes = [2, 64], strides = [1, 1]} : vector<5x64xf32> to vector<2x64xf32>
    %349 = vector.extract_strided_slice %347 {offsets = [1, 0], sizes = [2, 64], strides = [1, 1]} : vector<5x64xf32> to vector<2x64xf32>
    %350 = arith.maximumf %348, %349 : vector<2x64xf32>
    %351 = vector.extract_strided_slice %347 {offsets = [2, 0], sizes = [2, 64], strides = [1, 1]} : vector<5x64xf32> to vector<2x64xf32>
    %352 = vector.extract_strided_slice %347 {offsets = [3, 0], sizes = [2, 64], strides = [1, 1]} : vector<5x64xf32> to vector<2x64xf32>
    %353 = arith.maximumf %351, %352 : vector<2x64xf32>
    %354 = arith.maximumf %350, %353 : vector<2x64xf32>
    %cst_137 = arith.constant dense<0.000000e+00> : vector<1x64xf32>
    %355 = tpu.matmul %327, %354, %cst_137 {dimension_numbers = #tpu.dot_dimension_numbers<[1], [0], [0], [1], [0, 0, 1, 1], [], []>} : vector<1x2xf32>, vector<2x64xf32>, vector<1x64xf32> -> vector<1x64xf32>
    %c0_138 = arith.constant 0 : index
    %c0_139 = arith.constant 0 : index
    %356 = vector.load %arg18[%c0_138, %c0_139] : memref<64x2xbf16, #tpu.memory_space<vmem>>, vector<64x2xbf16>
    %c0_140 = arith.constant 0 : index
    %c0_141 = arith.constant 0 : index
    %357 = vector.load %arg19[%c0_140, %c0_141] : memref<1x2xf32, #tpu.memory_space<vmem>>, vector<1x2xf32>
    %cst_142 = arith.constant dense<0.000000e+00> : vector<64xf32>
    %358 = vector.multi_reduction <add>, %341, %cst_142 [0] : vector<1x64xf32> to vector<64xf32>
    %359 = vector.shape_cast %358 : vector<64xf32> to vector<1x64xf32>
    %cst_143 = arith.constant 1.000000e+00 : f32
    %360 = vector.broadcast %cst_143 : f32 to vector<1x64xf32>
    %361 = arith.divf %359, %360 : vector<1x64xf32>
    %362 = arith.truncf %361 : vector<1x64xf32> to vector<1x64xbf16>
    %cst_144 = arith.constant dense<0.000000e+00> : vector<1x2xf32>
    %363 = tpu.matmul %362, %356, %cst_144 {dimension_numbers = #tpu.dot_dimension_numbers<[1], [0], [0], [1], [0, 0, 1, 1], [], []>} : vector<1x64xbf16>, vector<64x2xbf16>, vector<1x2xf32> -> vector<1x2xf32>
    %364 = arith.addf %363, %357 : vector<1x2xf32>
    %cst_145 = arith.constant dense<0xFF800000> : vector<1xf32>
    %365 = vector.multi_reduction <maximumf>, %364, %cst_145 [1] : vector<1x2xf32> to vector<1xf32>
    %366 = vector.shape_cast %365 : vector<1xf32> to vector<1x1xf32>
    %367 = vector.broadcast %366 : vector<1x1xf32> to vector<1x2xf32>
    %368 = arith.subf %364, %367 : vector<1x2xf32>
    %369 = math.exp %368 : vector<1x2xf32>
    %cst_146 = arith.constant dense<0.000000e+00> : vector<1xf32>
    %370 = vector.multi_reduction <add>, %369, %cst_146 [1] : vector<1x2xf32> to vector<1xf32>
    %371 = vector.shape_cast %370 : vector<1xf32> to vector<1x1xf32>
    %372 = math.log %371 : vector<1x1xf32>
    %373 = vector.broadcast %372 : vector<1x1xf32> to vector<1x2xf32>
    %374 = arith.subf %368, %373 : vector<1x2xf32>
    %c0_147 = arith.constant 0 : index
    %c0_148 = arith.constant 0 : index
    %375 = vector.load %arg20[%c0_147, %c0_148] : memref<2x2xf32, #tpu.memory_space<vmem>>, vector<1x2xf32>
    tpu.vector_store %arg20[%c0_147, %c0_148], %374 {strides = array<i32>} : memref<2x2xf32, #tpu.memory_space<vmem>>, vector<1x2xf32>,
    %cst_149 = arith.constant dense<0.000000e+00> : vector<64xf32>
    %376 = vector.multi_reduction <add>, %355, %cst_149 [0] : vector<1x64xf32> to vector<64xf32>
    %377 = vector.shape_cast %376 : vector<64xf32> to vector<1x64xf32>
    %cst_150 = arith.constant 1.000000e+00 : f32
    %378 = vector.broadcast %cst_150 : f32 to vector<1x64xf32>
    %379 = arith.divf %377, %378 : vector<1x64xf32>
    %380 = arith.truncf %379 : vector<1x64xf32> to vector<1x64xbf16>
    %cst_151 = arith.constant dense<0.000000e+00> : vector<1x2xf32>
    %381 = tpu.matmul %380, %356, %cst_151 {dimension_numbers = #tpu.dot_dimension_numbers<[1], [0], [0], [1], [0, 0, 1, 1], [], []>} : vector<1x64xbf16>, vector<64x2xbf16>, vector<1x2xf32> -> vector<1x2xf32>
    %382 = arith.addf %381, %357 : vector<1x2xf32>
    %cst_152 = arith.constant dense<0xFF800000> : vector<1xf32>
    %383 = vector.multi_reduction <maximumf>, %382, %cst_152 [1] : vector<1x2xf32> to vector<1xf32>
    %384 = vector.shape_cast %383 : vector<1xf32> to vector<1x1xf32>
    %385 = vector.broadcast %384 : vector<1x1xf32> to vector<1x2xf32>
    %386 = arith.subf %382, %385 : vector<1x2xf32>
    %387 = math.exp %386 : vector<1x2xf32>
    %cst_153 = arith.constant dense<0.000000e+00> : vector<1xf32>
    %388 = vector.multi_reduction <add>, %387, %cst_153 [1] : vector<1x2xf32> to vector<1xf32>
    %389 = vector.shape_cast %388 : vector<1xf32> to vector<1x1xf32>
    %390 = math.log %389 : vector<1x1xf32>
    %391 = vector.broadcast %390 : vector<1x1xf32> to vector<1x2xf32>
    %392 = arith.subf %386, %391 : vector<1x2xf32>
    %c1_154 = arith.constant 1 : index
    %c0_155 = arith.constant 0 : index
    %393 = vector.load %arg20[%c1_154, %c0_155] : memref<2x2xf32, #tpu.memory_space<vmem>>, vector<1x2xf32>
    tpu.vector_store %arg20[%c1_154, %c0_155], %392 {strides = array<i32>} : memref<2x2xf32, #tpu.memory_space<vmem>>, vector<1x2xf32>,
    return
  }
  func.func @transform_0(%arg0: i32) -> (i32, i32, i32) {
    %c0_i32 = arith.constant 0 : i32
    %c0_i32_0 = arith.constant 0 : i32
    %c0_i32_1 = arith.constant 0 : i32
    %c0_i32_2 = arith.constant 0 : i32
    return %c0_i32, %c0_i32_0, %c0_i32_1 : i32, i32, i32
  }
  func.func @transform_1(%arg0: i32) -> (i32, i32, i32) {
    %c0_i32 = arith.constant 0 : i32
    %c0_i32_0 = arith.constant 0 : i32
    %c0_i32_1 = arith.constant 0 : i32
    %c0_i32_2 = arith.constant 0 : i32
    return %c0_i32, %c0_i32_0, %c0_i32_1 : i32, i32, i32
  }
  func.func @transform_2(%arg0: i32) -> (i32, i32) {
    %c0_i32 = arith.constant 0 : i32
    %c0_i32_0 = arith.constant 0 : i32
    %c0_i32_1 = arith.constant 0 : i32
    return %c0_i32, %c0_i32_0 : i32, i32
  }
  func.func @transform_3(%arg0: i32) -> (i32, i32) {
    %c0_i32 = arith.constant 0 : i32
    %c0_i32_0 = arith.constant 0 : i32
    %c0_i32_1 = arith.constant 0 : i32
    return %c0_i32, %c0_i32_0 : i32, i32
  }
  func.func @transform_4(%arg0: i32) -> (i32, i32) {
    %c0_i32 = arith.constant 0 : i32
    %c0_i32_0 = arith.constant 0 : i32
    %c0_i32_1 = arith.constant 0 : i32
    return %c0_i32, %c0_i32_0 : i32, i32
  }
  func.func @transform_5(%arg0: i32) -> (i32, i32, i32) {
    %c0_i32 = arith.constant 0 : i32
    %c0_i32_0 = arith.constant 0 : i32
    %c0_i32_1 = arith.constant 0 : i32
    %c0_i32_2 = arith.constant 0 : i32
    return %c0_i32, %c0_i32_0, %c0_i32_1 : i32, i32, i32
  }
  func.func @transform_6(%arg0: i32) -> (i32, i32) {
    %c0_i32 = arith.constant 0 : i32
    %c0_i32_0 = arith.constant 0 : i32
    %c0_i32_1 = arith.constant 0 : i32
    return %c0_i32, %c0_i32_0 : i32, i32
  }
  func.func @transform_7(%arg0: i32) -> (i32, i32) {
    %c0_i32 = arith.constant 0 : i32
    %c0_i32_0 = arith.constant 0 : i32
    %c0_i32_1 = arith.constant 0 : i32
    return %c0_i32, %c0_i32_0 : i32, i32
  }
  func.func @transform_8(%arg0: i32) -> (i32, i32) {
    %c0_i32 = arith.constant 0 : i32
    %c0_i32_0 = arith.constant 0 : i32
    %c0_i32_1 = arith.constant 0 : i32
    return %c0_i32, %c0_i32_0 : i32, i32
  }
  func.func @transform_9(%arg0: i32) -> (i32, i32, i32) {
    %c0_i32 = arith.constant 0 : i32
    %c0_i32_0 = arith.constant 0 : i32
    %c0_i32_1 = arith.constant 0 : i32
    %c0_i32_2 = arith.constant 0 : i32
    return %c0_i32, %c0_i32_0, %c0_i32_1 : i32, i32, i32
  }
  func.func @transform_10(%arg0: i32) -> (i32, i32) {
    %c0_i32 = arith.constant 0 : i32
    %c0_i32_0 = arith.constant 0 : i32
    %c0_i32_1 = arith.constant 0 : i32
    return %c0_i32, %c0_i32_0 : i32, i32
  }
  func.func @transform_11(%arg0: i32) -> (i32, i32) {
    %c0_i32 = arith.constant 0 : i32
    %c0_i32_0 = arith.constant 0 : i32
    %c0_i32_1 = arith.constant 0 : i32
    return %c0_i32, %c0_i32_0 : i32, i32
  }
  func.func @transform_12(%arg0: i32) -> (i32, i32) {
    %c0_i32 = arith.constant 0 : i32
    %c0_i32_0 = arith.constant 0 : i32
    %c0_i32_1 = arith.constant 0 : i32
    return %c0_i32, %c0_i32_0 : i32, i32
  }
  func.func @transform_13(%arg0: i32) -> (i32, i32, i32) {
    %c0_i32 = arith.constant 0 : i32
    %c0_i32_0 = arith.constant 0 : i32
    %c0_i32_1 = arith.constant 0 : i32
    %c0_i32_2 = arith.constant 0 : i32
    return %c0_i32, %c0_i32_0, %c0_i32_1 : i32, i32, i32
  }
  func.func @transform_14(%arg0: i32) -> (i32, i32) {
    %c0_i32 = arith.constant 0 : i32
    %c0_i32_0 = arith.constant 0 : i32
    %c0_i32_1 = arith.constant 0 : i32
    return %c0_i32, %c0_i32_0 : i32, i32
  }
  func.func @transform_15(%arg0: i32) -> (i32, i32) {
    %c0_i32 = arith.constant 0 : i32
    %c0_i32_0 = arith.constant 0 : i32
    %c0_i32_1 = arith.constant 0 : i32
    return %c0_i32, %c0_i32_0 : i32, i32
  }
  func.func @transform_16(%arg0: i32) -> (i32, i32) {
    %c0_i32 = arith.constant 0 : i32
    %c0_i32_0 = arith.constant 0 : i32
    %c0_i32_1 = arith.constant 0 : i32
    return %c0_i32, %c0_i32_0 : i32, i32
  }
  func.func @transform_17(%arg0: i32) -> (i32, i32) {
    %c0_i32 = arith.constant 0 : i32
    %c0_i32_0 = arith.constant 0 : i32
    %c0_i32_1 = arith.constant 0 : i32
    return %c0_i32, %c0_i32_0 : i32, i32
  }
  func.func @transform_18(%arg0: i32) -> (i32, i32) {
    %c0_i32 = arith.constant 0 : i32
    %c0_i32_0 = arith.constant 0 : i32
    %c0_i32_1 = arith.constant 0 : i32
    return %c0_i32, %c0_i32_0 : i32, i32
  }
  func.func @transform_19(%arg0: i32) -> (i32, i32) {
    %c0_i32 = arith.constant 0 : i32
    %c0_i32_0 = arith.constant 0 : i32
    %c0_i32_1 = arith.constant 0 : i32
    return %c0_i32, %c0_i32_0 : i32, i32
  }
}

</mosaic_0001>

<llo_original>
// kernel: tpu_custom_call.1
$region0: #{tpu_custom_call.1}
  #allocation0 [shape = 'u32[]', space=smem, size = 0x4, offset = 0x4, fixed_abs, tag = 'smem constant byte address 0x4 - core index']
  #allocation1 [shape = 'u32[72,128]{1,0:T(1,128)}', space=vmem, size = 0x9000, scoped, tag = 'internal scratch']
  %s0 = inlined_call_operand.vmem [shape: f32[2,500,16], index: 0, kind: input, shape index: {}]
  %s1 = inlined_call_operand.vmem [shape: bf16[5,16,32], index: 1, kind: input, shape index: {}]
  %s2 = inlined_call_operand.vmem [shape: f32[1,32], index: 2, kind: input, shape index: {}]
  %s3 = inlined_call_operand.vmem [shape: f32[1,32], index: 3, kind: input, shape index: {}]
  %s4 = inlined_call_operand.vmem [shape: f32[124,493], index: 4, kind: input, shape index: {}]
  %s5 = inlined_call_operand.vmem [shape: bf16[3,32,32], index: 5, kind: input, shape index: {}]
  %s6 = inlined_call_operand.vmem [shape: f32[1,32], index: 6, kind: input, shape index: {}]
  %s7 = inlined_call_operand.vmem [shape: f32[1,32], index: 7, kind: input, shape index: {}]
  %s8 = inlined_call_operand.vmem [shape: f32[30,119], index: 8, kind: input, shape index: {}]
  %s9 = inlined_call_operand.vmem [shape: bf16[3,32,64], index: 9, kind: input, shape index: {}]
  %s10 = inlined_call_operand.vmem [shape: f32[1,64], index: 10, kind: input, shape index: {}]
  %s11 = inlined_call_operand.vmem [shape: f32[1,64], index: 11, kind: input, shape index: {}]
  %s12 = inlined_call_operand.vmem [shape: f32[7,25], index: 12, kind: input, shape index: {}]
  %s13 = inlined_call_operand.vmem [shape: bf16[3,64,64], index: 13, kind: input, shape index: {}]
  %s14 = inlined_call_operand.vmem [shape: f32[1,64], index: 14, kind: input, shape index: {}]
  %s15 = inlined_call_operand.vmem [shape: f32[1,64], index: 15, kind: input, shape index: {}]
  %s16 = inlined_call_operand.vmem [shape: f32[1,2], index: 16, kind: input, shape index: {}]
  %s17 = inlined_call_operand.vmem [shape: bf16[64,2], index: 17, kind: input, shape index: {}]
  %s18 = inlined_call_operand.vmem [shape: f32[1,2], index: 18, kind: input, shape index: {}]
  %s19 = inlined_call_operand.hbm [shape: f32[2,2], index: 19, kind: output, shape index: {}]
  %s20 = sld [smem:[#allocation0]]
  $region86: #{tpu_custom_call.1} parent=0
    _
  %s22 = ssub.s32 1, %s20
  %s23 = scalar_select 0, %s22, %s20
  $region1: #{tpu_custom_call.1} parent=0
    #allocation2 [shape = 'u8[1024]{0}', space=vmem, size = 0x400, scoped, tag = 'output window, operand 0, single buffered']
    #allocation3 [shape = 's32[1]{0}', space=sflag, size = 0x4, scoped, tag = 'scoped memory for tpu_custom_call.1']
    %24 = vsyncpa [#allocation3], 0
    // Predicated region
    $region2: #{tpu_custom_call.1} parent=1 // pred_check
      _
    $region3: #{tpu_custom_call.1} parent=1 // pred_check_branch
      %26 = sbr.rel (0) target = $region5
    $region4: #{tpu_custom_call.1} parent=1 // pred_region
      _
    $region5: #{tpu_custom_call.1} parent=1 // pred_fallthru
      _
    // Predicated region
    $region6: #{tpu_custom_call.1} parent=1 // pred_check
      _
    $region7: #{tpu_custom_call.1} parent=1 // pred_check_branch
      %28 = sbr.rel (0) target = $region9
    $region8: #{tpu_custom_call.1} parent=1 // pred_region
      _
    $region9: #{tpu_custom_call.1} parent=1 // pred_fallthru
      _
    // Predicated region
    $region10: #{tpu_custom_call.1} parent=1 // pred_check
      _
    $region11: #{tpu_custom_call.1} parent=1 // pred_check_branch
      %30 = sbr.rel (0) target = $region13
    $region12: #{tpu_custom_call.1} parent=1 // pred_region
      _
    $region13: #{tpu_custom_call.1} parent=1 // pred_fallthru
      _
    // Predicated region
    $region14: #{tpu_custom_call.1} parent=1 // pred_check
      _
    $region15: #{tpu_custom_call.1} parent=1 // pred_check_branch
      %32 = sbr.rel (0) target = $region17
    $region16: #{tpu_custom_call.1} parent=1 // pred_region
      _
    $region17: #{tpu_custom_call.1} parent=1 // pred_fallthru
      _
    // Predicated region
    $region18: #{tpu_custom_call.1} parent=1 // pred_check
      _
    $region19: #{tpu_custom_call.1} parent=1 // pred_check_branch
      %34 = sbr.rel (0) target = $region21
    $region20: #{tpu_custom_call.1} parent=1 // pred_region
      _
    $region21: #{tpu_custom_call.1} parent=1 // pred_fallthru
      _
    // Predicated region
    $region22: #{tpu_custom_call.1} parent=1 // pred_check
      _
    $region23: #{tpu_custom_call.1} parent=1 // pred_check_branch
      %36 = sbr.rel (0) target = $region25
    $region24: #{tpu_custom_call.1} parent=1 // pred_region
      _
    $region25: #{tpu_custom_call.1} parent=1 // pred_fallthru
      _
    // Predicated region
    $region26: #{tpu_custom_call.1} parent=1 // pred_check
      _
    $region27: #{tpu_custom_call.1} parent=1 // pred_check_branch
      %38 = sbr.rel (0) target = $region29
    $region28: #{tpu_custom_call.1} parent=1 // pred_region
      _
    $region29: #{tpu_custom_call.1} parent=1 // pred_fallthru
      _
    // Predicated region
    $region30: #{tpu_custom_call.1} parent=1 // pred_check
      _
    $region31: #{tpu_custom_call.1} parent=1 // pred_check_branch
      %40 = sbr.rel (0) target = $region33
    $region32: #{tpu_custom_call.1} parent=1 // pred_region
      _
    $region33: #{tpu_custom_call.1} parent=1 // pred_fallthru
      _
    // Predicated region
    $region34: #{tpu_custom_call.1} parent=1 // pred_check
      _
    $region35: #{tpu_custom_call.1} parent=1 // pred_check_branch
      %42 = sbr.rel (0) target = $region37
    $region36: #{tpu_custom_call.1} parent=1 // pred_region
      _
    $region37: #{tpu_custom_call.1} parent=1 // pred_fallthru
      _
    // Predicated region
    $region38: #{tpu_custom_call.1} parent=1 // pred_check
      _
    $region39: #{tpu_custom_call.1} parent=1 // pred_check_branch
      %44 = sbr.rel (0) target = $region41
    $region40: #{tpu_custom_call.1} parent=1 // pred_region
      _
    $region41: #{tpu_custom_call.1} parent=1 // pred_fallthru
      _
    // Predicated region
    $region42: #{tpu_custom_call.1} parent=1 // pred_check
      _
    $region43: #{tpu_custom_call.1} parent=1 // pred_check_branch
      %46 = sbr.rel (0) target = $region45
    $region44: #{tpu_custom_call.1} parent=1 // pred_region
      _
    $region45: #{tpu_custom_call.1} parent=1 // pred_fallthru
      _
    // Predicated region
    $region46: #{tpu_custom_call.1} parent=1 // pred_check
      _
    $region47: #{tpu_custom_call.1} parent=1 // pred_check_branch
      %48 = sbr.rel (0) target = $region49
    $region48: #{tpu_custom_call.1} parent=1 // pred_region
      _
    $region49: #{tpu_custom_call.1} parent=1 // pred_fallthru
      _
    // Predicated region
    $region50: #{tpu_custom_call.1} parent=1 // pred_check
      _
    $region51: #{tpu_custom_call.1} parent=1 // pred_check_branch
      %50 = sbr.rel (0) target = $region53
    $region52: #{tpu_custom_call.1} parent=1 // pred_region
      _
    $region53: #{tpu_custom_call.1} parent=1 // pred_fallthru
      _
    // Predicated region
    $region54: #{tpu_custom_call.1} parent=1 // pred_check
      _
    $region55: #{tpu_custom_call.1} parent=1 // pred_check_branch
      %52 = sbr.rel (0) target = $region57
    $region56: #{tpu_custom_call.1} parent=1 // pred_region
      _
    $region57: #{tpu_custom_call.1} parent=1 // pred_fallthru
      _
    // Predicated region
    $region58: #{tpu_custom_call.1} parent=1 // pred_check
      _
    $region59: #{tpu_custom_call.1} parent=1 // pred_check_branch
      %54 = sbr.rel (0) target = $region61
    $region60: #{tpu_custom_call.1} parent=1 // pred_region
      _
    $region61: #{tpu_custom_call.1} parent=1 // pred_fallthru
      _
    // Predicated region
    $region62: #{tpu_custom_call.1} parent=1 // pred_check
      _
    $region63: #{tpu_custom_call.1} parent=1 // pred_check_branch
      %56 = sbr.rel (0) target = $region65
    $region64: #{tpu_custom_call.1} parent=1 // pred_region
      _
    $region65: #{tpu_custom_call.1} parent=1 // pred_fallthru
      _
    // Predicated region
    $region66: #{tpu_custom_call.1} parent=1 // pred_check
      _
    $region67: #{tpu_custom_call.1} parent=1 // pred_check_branch
      %58 = sbr.rel (0) target = $region69
    $region68: #{tpu_custom_call.1} parent=1 // pred_region
      _
    $region69: #{tpu_custom_call.1} parent=1 // pred_fallthru
      _
    // Predicated region
    $region70: #{tpu_custom_call.1} parent=1 // pred_check
      _
    $region71: #{tpu_custom_call.1} parent=1 // pred_check_branch
      %60 = sbr.rel (0) target = $region73
    $region72: #{tpu_custom_call.1} parent=1 // pred_region
      _
    $region73: #{tpu_custom_call.1} parent=1 // pred_fallthru
      _
    // Predicated region
    $region74: #{tpu_custom_call.1} parent=1 // pred_check
      _
    $region75: #{tpu_custom_call.1} parent=1 // pred_check_branch
      %62 = sbr.rel (0) target = $region77
    $region76: #{tpu_custom_call.1} parent=1 // pred_region
      _
    $region77: #{tpu_custom_call.1} parent=1 // pred_fallthru
      _
    %v64 = vld [vmem:[%s0] sm:$0xff]
    %v65 = vld [vmem:[%s0 + $0x8] sm:$0xff]
    %v66 = vld [vmem:[%s0 + $0x10] sm:$0xff]
    %v67 = vld [vmem:[%s0 + $0x18] sm:$0xff]
    %v68 = vld [vmem:[%s0 + $0x20] sm:$0xff]
    %v69 = vld [vmem:[%s0 + $0x28] sm:$0xff]
    %v70 = vld [vmem:[%s0 + $0x30] sm:$0xff]
    %v71 = vld [vmem:[%s0 + $0x38] sm:$0xff]
    %v72 = vld [vmem:[%s0 + $0x40] sm:$0xff]
    %v73 = vld [vmem:[%s0 + $0x48] sm:$0xff]
    %v74 = vld [vmem:[%s0 + $0x50] sm:$0xff]
    %v75 = vld [vmem:[%s0 + $0x58] sm:$0xff]
    %v76 = vld [vmem:[%s0 + $0x60] sm:$0xff]
    %v77 = vld [vmem:[%s0 + $0x68] sm:$0xff]
    %v78 = vld [vmem:[%s0 + $0x70] sm:$0xff]
    %v79 = vld [vmem:[%s0 + $0x78] sm:$0xff]
    %v80 = vld [vmem:[%s0 + $0x80] sm:$0xff]
    %v81 = vld [vmem:[%s0 + $0x88] sm:$0xff]
    %v82 = vld [vmem:[%s0 + $0x90] sm:$0xff]
    %v83 = vld [vmem:[%s0 + $0x98] sm:$0xff]
    %v84 = vld [vmem:[%s0 + $0xa0] sm:$0xff]
    %v85 = vld [vmem:[%s0 + $0xa8] sm:$0xff]
    %v86 = vld [vmem:[%s0 + $0xb0] sm:$0xff]
    %v87 = vld [vmem:[%s0 + $0xb8] sm:$0xff]
    %v88 = vld [vmem:[%s0 + $0xc0] sm:$0xff]
    %v89 = vld [vmem:[%s0 + $0xc8] sm:$0xff]
    %v90 = vld [vmem:[%s0 + $0xd0] sm:$0xff]
    %v91 = vld [vmem:[%s0 + $0xd8] sm:$0xff]
    %v92 = vld [vmem:[%s0 + $0xe0] sm:$0xff]
    %v93 = vld [vmem:[%s0 + $0xe8] sm:$0xff]
    %v94 = vld [vmem:[%s0 + $0xf0] sm:$0xff]
    %v95 = vld [vmem:[%s0 + $0xf8] sm:$0xff]
    %v96 = vld [vmem:[%s0 + $0x100] sm:$0xff]
    %v97 = vld [vmem:[%s0 + $0x108] sm:$0xff]
    %v98 = vld [vmem:[%s0 + $0x110] sm:$0xff]
    %v99 = vld [vmem:[%s0 + $0x118] sm:$0xff]
    %v100 = vld [vmem:[%s0 + $0x120] sm:$0xff]
    %v101 = vld [vmem:[%s0 + $0x128] sm:$0xff]
    %v102 = vld [vmem:[%s0 + $0x130] sm:$0xff]
    %v103 = vld [vmem:[%s0 + $0x138] sm:$0xff]
    %v104 = vld [vmem:[%s0 + $0x140] sm:$0xff]
    %v105 = vld [vmem:[%s0 + $0x148] sm:$0xff]
    %v106 = vld [vmem:[%s0 + $0x150] sm:$0xff]
    %v107 = vld [vmem:[%s0 + $0x158] sm:$0xff]
    %v108 = vld [vmem:[%s0 + $0x160] sm:$0xff]
    %v109 = vld [vmem:[%s0 + $0x168] sm:$0xff]
    %v110 = vld [vmem:[%s0 + $0x170] sm:$0xff]
    %v111 = vld [vmem:[%s0 + $0x178] sm:$0xff]
    %v112 = vld [vmem:[%s0 + $0x180] sm:$0xff]
    %v113 = vld [vmem:[%s0 + $0x188] sm:$0xff]
    %v114 = vld [vmem:[%s0 + $0x190] sm:$0xff]
    %v115 = vld [vmem:[%s0 + $0x198] sm:$0xff]
    %v116 = vld [vmem:[%s0 + $0x1a0] sm:$0xff]
    %v117 = vld [vmem:[%s0 + $0x1a8] sm:$0xff]
    %v118 = vld [vmem:[%s0 + $0x1b0] sm:$0xff]
    %v119 = vld [vmem:[%s0 + $0x1b8] sm:$0xff]
    %v120 = vld [vmem:[%s0 + $0x1c0] sm:$0xff]
    %v121 = vld [vmem:[%s0 + $0x1c8] sm:$0xff]
    %v122 = vld [vmem:[%s0 + $0x1d0] sm:$0xff]
    %v123 = vld [vmem:[%s0 + $0x1d8] sm:$0xff]
    %v124 = vld [vmem:[%s0 + $0x1e0] sm:$0xff]
    %v125 = vld [vmem:[%s0 + $0x1e8] sm:$0xff]
    %v126 = vld [vmem:[%s0 + $0x1f0] sm:$0xf]
    %s127 = scalar_lea.vmem %s0, 504
    %v128 = vld [vmem:[%s127] sm:$0xff]
    %v129 = vld [vmem:[%s127 + $0x8] sm:$0xff]
    %v130 = vld [vmem:[%s127 + $0x10] sm:$0xff]
    %v131 = vld [vmem:[%s127 + $0x18] sm:$0xff]
    %v132 = vld [vmem:[%s127 + $0x20] sm:$0xff]
    %v133 = vld [vmem:[%s127 + $0x28] sm:$0xff]
    %v134 = vld [vmem:[%s127 + $0x30] sm:$0xff]
    %v135 = vld [vmem:[%s127 + $0x38] sm:$0xff]
    %v136 = vld [vmem:[%s127 + $0x40] sm:$0xff]
    %v137 = vld [vmem:[%s127 + $0x48] sm:$0xff]
    %v138 = vld [vmem:[%s127 + $0x50] sm:$0xff]
    %v139 = vld [vmem:[%s127 + $0x58] sm:$0xff]
    %v140 = vld [vmem:[%s127 + $0x60] sm:$0xff]
    %v141 = vld [vmem:[%s127 + $0x68] sm:$0xff]
    %v142 = vld [vmem:[%s127 + $0x70] sm:$0xff]
    %v143 = vld [vmem:[%s127 + $0x78] sm:$0xff]
    %v144 = vld [vmem:[%s127 + $0x80] sm:$0xff]
    %v145 = vld [vmem:[%s127 + $0x88] sm:$0xff]
    %v146 = vld [vmem:[%s127 + $0x90] sm:$0xff]
    %v147 = vld [vmem:[%s127 + $0x98] sm:$0xff]
    %v148 = vld [vmem:[%s127 + $0xa0] sm:$0xff]
    %v149 = vld [vmem:[%s127 + $0xa8] sm:$0xff]
    %v150 = vld [vmem:[%s127 + $0xb0] sm:$0xff]
    %v151 = vld [vmem:[%s127 + $0xb8] sm:$0xff]
    %v152 = vld [vmem:[%s127 + $0xc0] sm:$0xff]
    %v153 = vld [vmem:[%s127 + $0xc8] sm:$0xff]
    %v154 = vld [vmem:[%s127 + $0xd0] sm:$0xff]
    %v155 = vld [vmem:[%s127 + $0xd8] sm:$0xff]
    %v156 = vld [vmem:[%s127 + $0xe0] sm:$0xff]
    %v157 = vld [vmem:[%s127 + $0xe8] sm:$0xff]
    %v158 = vld [vmem:[%s127 + $0xf0] sm:$0xff]
    %v159 = vld [vmem:[%s127 + $0xf8] sm:$0xff]
    %v160 = vld [vmem:[%s127 + $0x100] sm:$0xff]
    %v161 = vld [vmem:[%s127 + $0x108] sm:$0xff]
    %v162 = vld [vmem:[%s127 + $0x110] sm:$0xff]
    %v163 = vld [vmem:[%s127 + $0x118] sm:$0xff]
    %v164 = vld [vmem:[%s127 + $0x120] sm:$0xff]
    %v165 = vld [vmem:[%s127 + $0x128] sm:$0xff]
    %v166 = vld [vmem:[%s127 + $0x130] sm:$0xff]
    %v167 = vld [vmem:[%s127 + $0x138] sm:$0xff]
    %v168 = vld [vmem:[%s127 + $0x140] sm:$0xff]
    %v169 = vld [vmem:[%s127 + $0x148] sm:$0xff]
    %v170 = vld [vmem:[%s127 + $0x150] sm:$0xff]
    %v171 = vld [vmem:[%s127 + $0x158] sm:$0xff]
    %v172 = vld [vmem:[%s127 + $0x160] sm:$0xff]
    %v173 = vld [vmem:[%s127 + $0x168] sm:$0xff]
    %v174 = vld [vmem:[%s127 + $0x170] sm:$0xff]
    %v175 = vld [vmem:[%s127 + $0x178] sm:$0xff]
    %v176 = vld [vmem:[%s127 + $0x180] sm:$0xff]
    %v177 = vld [vmem:[%s127 + $0x188] sm:$0xff]
    %v178 = vld [vmem:[%s127 + $0x190] sm:$0xff]
    %v179 = vld [vmem:[%s127 + $0x198] sm:$0xff]
    %v180 = vld [vmem:[%s127 + $0x1a0] sm:$0xff]
    %v181 = vld [vmem:[%s127 + $0x1a8] sm:$0xff]
    %v182 = vld [vmem:[%s127 + $0x1b0] sm:$0xff]
    %v183 = vld [vmem:[%s127 + $0x1b8] sm:$0xff]
    %v184 = vld [vmem:[%s127 + $0x1c0] sm:$0xff]
    %v185 = vld [vmem:[%s127 + $0x1c8] sm:$0xff]
    %v186 = vld [vmem:[%s127 + $0x1d0] sm:$0xff]
    %v187 = vld [vmem:[%s127 + $0x1d8] sm:$0xff]
    %v188 = vld [vmem:[%s127 + $0x1e0] sm:$0xff]
    %v189 = vld [vmem:[%s127 + $0x1e8] sm:$0xff]
    %v190 = vld [vmem:[%s127 + $0x1f0] sm:$0xf]
    %v191 = vld [vmem:[%s1] sm:$0xf]
    %v192 = vld [vmem:[%s1 + $0x4] sm:$0xf]
    %s193 = scalar_lea.vmem %s1, 8
    %v194 = vld [vmem:[%s193] sm:$0xf]
    %v195 = vld [vmem:[%s193 + $0x4] sm:$0xf]
    %s196 = scalar_lea.vmem %s1, 16
    %v197 = vld [vmem:[%s196] sm:$0xf]
    %v198 = vld [vmem:[%s196 + $0x4] sm:$0xf]
    %s199 = scalar_lea.vmem %s1, 24
    %v200 = vld [vmem:[%s199] sm:$0xf]
    %v201 = vld [vmem:[%s199 + $0x4] sm:$0xf]
    %s202 = scalar_lea.vmem %s1, 32
    %v203 = vld [vmem:[%s202] sm:$0xf]
    %v204 = vld [vmem:[%s202 + $0x4] sm:$0xf]
    %v205 = vpack.c.bf16 %v65, %v64
    %v206 = vpack.c.bf16 %v67, %v66
    %v207 = vpack.c.bf16 %v69, %v68
    %v208 = vpack.c.bf16 %v71, %v70
    %v209 = vpack.c.bf16 %v73, %v72
    %v210 = vpack.c.bf16 %v75, %v74
    %v211 = vpack.c.bf16 %v77, %v76
    %v212 = vpack.c.bf16 %v79, %v78
    %v213 = vpack.c.bf16 %v81, %v80
    %v214 = vpack.c.bf16 %v83, %v82
    %v215 = vpack.c.bf16 %v85, %v84
    %v216 = vpack.c.bf16 %v87, %v86
    %v217 = vpack.c.bf16 %v89, %v88
    %v218 = vpack.c.bf16 %v91, %v90
    %v219 = vpack.c.bf16 %v93, %v92
    %v220 = vpack.c.bf16 %v95, %v94
    %v221 = vpack.c.bf16 %v97, %v96
    %v222 = vpack.c.bf16 %v99, %v98
    %v223 = vpack.c.bf16 %v101, %v100
    %v224 = vpack.c.bf16 %v103, %v102
    %v225 = vpack.c.bf16 %v105, %v104
    %v226 = vpack.c.bf16 %v107, %v106
    %v227 = vpack.c.bf16 %v109, %v108
    %v228 = vpack.c.bf16 %v111, %v110
    %v229 = vpack.c.bf16 %v113, %v112
    %v230 = vpack.c.bf16 %v115, %v114
    %v231 = vpack.c.bf16 %v117, %v116
    %v232 = vpack.c.bf16 %v119, %v118
    %v233 = vpack.c.bf16 %v121, %v120
    %v234 = vpack.c.bf16 %v123, %v122
    %v235 = vpack.c.bf16 %v125, %v124
    %v236 = vpack.c.bf16 %v126, %v126
    %vm237 = vsmask.f32 7424
    %v239 = vshrl.u32 %v205, 16
    %v241 = vshll.u32 %v205, 16
    %v243 = vrot.slane %v241, 1
    %v244 = vor.u32 %v239, %v243
    %v246 = vshll.u32 %v206, 16
    %v248 = vrot.slane %v246, 1
    %v249 = vsel %vm237, %v244, %v248
    %v250 = vshrl.u32 %v206, 16
    %v252 = vor.u32 %v250, %v248
    %v254 = vshll.u32 %v207, 16
    %v256 = vrot.slane %v254, 1
    %v257 = vsel %vm237, %v252, %v256
    %v258 = vshrl.u32 %v207, 16
    %v260 = vor.u32 %v258, %v256
    %v262 = vshll.u32 %v208, 16
    %v264 = vrot.slane %v262, 1
    %v265 = vsel %vm237, %v260, %v264
    %v266 = vshrl.u32 %v208, 16
    %v268 = vor.u32 %v266, %v264
    %v270 = vshll.u32 %v209, 16
    %v272 = vrot.slane %v270, 1
    %v273 = vsel %vm237, %v268, %v272
    %v274 = vshrl.u32 %v209, 16
    %v276 = vor.u32 %v274, %v272
    %v278 = vshll.u32 %v210, 16
    %v280 = vrot.slane %v278, 1
    %v281 = vsel %vm237, %v276, %v280
    %v282 = vshrl.u32 %v210, 16
    %v284 = vor.u32 %v282, %v280
    %v286 = vshll.u32 %v211, 16
    %v288 = vrot.slane %v286, 1
    %v289 = vsel %vm237, %v284, %v288
    %v290 = vshrl.u32 %v211, 16
    %v292 = vor.u32 %v290, %v288
    %v294 = vshll.u32 %v212, 16
    %v296 = vrot.slane %v294, 1
    %v297 = vsel %vm237, %v292, %v296
    %v298 = vshrl.u32 %v212, 16
    %v300 = vor.u32 %v298, %v296
    %v302 = vshll.u32 %v213, 16
    %v304 = vrot.slane %v302, 1
    %v305 = vsel %vm237, %v300, %v304
    %v306 = vshrl.u32 %v213, 16
    %v308 = vor.u32 %v306, %v304
    %v310 = vshll.u32 %v214, 16
    %v312 = vrot.slane %v310, 1
    %v313 = vsel %vm237, %v308, %v312
    %v314 = vshrl.u32 %v214, 16
    %v316 = vor.u32 %v314, %v312
    %v318 = vshll.u32 %v215, 16
    %v320 = vrot.slane %v318, 1
    %v321 = vsel %vm237, %v316, %v320
    %v322 = vshrl.u32 %v215, 16
    %v324 = vor.u32 %v322, %v320
    %v326 = vshll.u32 %v216, 16
    %v328 = vrot.slane %v326, 1
    %v329 = vsel %vm237, %v324, %v328
    %v330 = vshrl.u32 %v216, 16
    %v332 = vor.u32 %v330, %v328
    %v334 = vshll.u32 %v217, 16
    %v336 = vrot.slane %v334, 1
    %v337 = vsel %vm237, %v332, %v336
    %v338 = vshrl.u32 %v217, 16
    %v340 = vor.u32 %v338, %v336
    %v342 = vshll.u32 %v218, 16
    %v344 = vrot.slane %v342, 1
    %v345 = vsel %vm237, %v340, %v344
    %v346 = vshrl.u32 %v218, 16
    %v348 = vor.u32 %v346, %v344
    %v350 = vshll.u32 %v219, 16
    %v352 = vrot.slane %v350, 1
    %v353 = vsel %vm237, %v348, %v352
    %v354 = vshrl.u32 %v219, 16
    %v356 = vor.u32 %v354, %v352
    %v358 = vshll.u32 %v220, 16
    %v360 = vrot.slane %v358, 1
    %v361 = vsel %vm237, %v356, %v360
    %v362 = vshrl.u32 %v220, 16
    %v364 = vor.u32 %v362, %v360
    %v366 = vshll.u32 %v221, 16
    %v368 = vrot.slane %v366, 1
    %v369 = vsel %vm237, %v364, %v368
    %v370 = vshrl.u32 %v221, 16
    %v372 = vor.u32 %v370, %v368
    %v374 = vshll.u32 %v222, 16
    %v376 = vrot.slane %v374, 1
    %v377 = vsel %vm237, %v372, %v376
    %v378 = vshrl.u32 %v222, 16
    %v380 = vor.u32 %v378, %v376
    %v382 = vshll.u32 %v223, 16
    %v384 = vrot.slane %v382, 1
    %v385 = vsel %vm237, %v380, %v384
    %v386 = vshrl.u32 %v223, 16
    %v388 = vor.u32 %v386, %v384
    %v390 = vshll.u32 %v224, 16
    %v392 = vrot.slane %v390, 1
    %v393 = vsel %vm237, %v388, %v392
    %v394 = vshrl.u32 %v224, 16
    %v396 = vor.u32 %v394, %v392
    %v398 = vshll.u32 %v225, 16
    %v400 = vrot.slane %v398, 1
    %v401 = vsel %vm237, %v396, %v400
    %v402 = vshrl.u32 %v225, 16
    %v404 = vor.u32 %v402, %v400
    %v406 = vshll.u32 %v226, 16
    %v408 = vrot.slane %v406, 1
    %v409 = vsel %vm237, %v404, %v408
    %v410 = vshrl.u32 %v226, 16
    %v412 = vor.u32 %v410, %v408
    %v414 = vshll.u32 %v227, 16
    %v416 = vrot.slane %v414, 1
    %v417 = vsel %vm237, %v412, %v416
    %v418 = vshrl.u32 %v227, 16
    %v420 = vor.u32 %v418, %v416
    %v422 = vshll.u32 %v228, 16
    %v424 = vrot.slane %v422, 1
    %v425 = vsel %vm237, %v420, %v424
    %v426 = vshrl.u32 %v228, 16
    %v428 = vor.u32 %v426, %v424
    %v430 = vshll.u32 %v229, 16
    %v432 = vrot.slane %v430, 1
    %v433 = vsel %vm237, %v428, %v432
    %v434 = vshrl.u32 %v229, 16
    %v436 = vor.u32 %v434, %v432
    %v438 = vshll.u32 %v230, 16
    %v440 = vrot.slane %v438, 1
    %v441 = vsel %vm237, %v436, %v440
    %v442 = vshrl.u32 %v230, 16
    %v444 = vor.u32 %v442, %v440
    %v446 = vshll.u32 %v231, 16
    %v448 = vrot.slane %v446, 1
    %v449 = vsel %vm237, %v444, %v448
    %v450 = vshrl.u32 %v231, 16
    %v452 = vor.u32 %v450, %v448
    %v454 = vshll.u32 %v232, 16
    %v456 = vrot.slane %v454, 1
    %v457 = vsel %vm237, %v452, %v456
    %v458 = vshrl.u32 %v232, 16
    %v460 = vor.u32 %v458, %v456
    %v462 = vshll.u32 %v233, 16
    %v464 = vrot.slane %v462, 1
    %v465 = vsel %vm237, %v460, %v464
    %v466 = vshrl.u32 %v233, 16
    %v468 = vor.u32 %v466, %v464
    %v470 = vshll.u32 %v234, 16
    %v472 = vrot.slane %v470, 1
    %v473 = vsel %vm237, %v468, %v472
    %v474 = vshrl.u32 %v234, 16
    %v476 = vor.u32 %v474, %v472
    %v478 = vshll.u32 %v235, 16
    %v480 = vrot.slane %v478, 1
    %v481 = vsel %vm237, %v476, %v480
    %v482 = vshrl.u32 %v235, 16
    %v484 = vor.u32 %v482, %v480
    %v486 = vshll.u32 %v236, 16
    %v488 = vrot.slane %v486, 1
    %v489 = vsel %vm237, %v484, %v488
    %v492 = vunpack.c.l.b16 %v194
    %v493 = vunpack.c.l.b16 %v195
    %v494 = vpack.c.b16 %v493, %v492
    %vm496 = vcmask 130048
    %v498 = vsel %vm496, %v249, 0
    %v501 = vsel %vm496, %v257, 0
    %v504 = vsel %vm496, %v265, 0
    %v507 = vsel %vm496, %v273, 0
    %v510 = vsel %vm496, %v281, 0
    %v513 = vsel %vm496, %v289, 0
    %v516 = vsel %vm496, %v297, 0
    %v519 = vsel %vm496, %v305, 0
    %v522 = vsel %vm496, %v313, 0
    %v525 = vsel %vm496, %v321, 0
    %v528 = vsel %vm496, %v329, 0
    %v531 = vsel %vm496, %v337, 0
    %v534 = vsel %vm496, %v345, 0
    %v537 = vsel %vm496, %v353, 0
    %v540 = vsel %vm496, %v361, 0
    %v543 = vsel %vm496, %v369, 0
    %v546 = vsel %vm496, %v377, 0
    %v549 = vsel %vm496, %v385, 0
    %v552 = vsel %vm496, %v393, 0
    %v555 = vsel %vm496, %v401, 0
    %v558 = vsel %vm496, %v409, 0
    %v561 = vsel %vm496, %v417, 0
    %v564 = vsel %vm496, %v425, 0
    %v567 = vsel %vm496, %v433, 0
    %v570 = vsel %vm496, %v441, 0
    %v573 = vsel %vm496, %v449, 0
    %v576 = vsel %vm496, %v457, 0
    %v579 = vsel %vm496, %v465, 0
    %v582 = vsel %vm496, %v473, 0
    %v585 = vsel %vm496, %v481, 0
    %v588 = vsel %vm496, %v489, 0
    %590 = vmatpush.bf16.msra.mxu0 0
    %591 = vmatpush.bf16.msra.mxu0 0
    %592 = vmatpush.bf16.msra.mxu0 0
    %593 = vmatpush.bf16.msra.mxu0 0
    %594 = vmatpush.bf16.msra.mxu0 0
    %595 = vmatpush.bf16.msra.mxu0 0
    %596 = vmatpush.bf16.msra.mxu0 0
    %597 = vmatpush.bf16.msra.mxu0 %v494
    %598 = vmatmul.bf16.gmra.mxu0 %v498
    %v599 = vpop.f32.mrf.mxu0
    %v600 = vadd.f32 0.0, %v599
    %v601 = vpop.f32.mrf.mxu0
    %v602 = vadd.f32 0.0, %v601
    %603 = vmatmul.bf16.gmra.mxu0 %v501
    %v604 = vpop.f32.mrf.mxu0
    %v605 = vadd.f32 0.0, %v604
    %v606 = vpop.f32.mrf.mxu0
    %v607 = vadd.f32 0.0, %v606
    %608 = vmatmul.bf16.gmra.mxu0 %v504
    %v609 = vpop.f32.mrf.mxu0
    %v610 = vadd.f32 0.0, %v609
    %v611 = vpop.f32.mrf.mxu0
    %v612 = vadd.f32 0.0, %v611
    %613 = vmatmul.bf16.gmra.mxu0 %v507
    %v614 = vpop.f32.mrf.mxu0
    %v615 = vadd.f32 0.0, %v614
    %v616 = vpop.f32.mrf.mxu0
    %v617 = vadd.f32 0.0, %v616
    %618 = vmatmul.bf16.gmra.mxu0 %v510
    %v619 = vpop.f32.mrf.mxu0
    %v620 = vadd.f32 0.0, %v619
    %v621 = vpop.f32.mrf.mxu0
    %v622 = vadd.f32 0.0, %v621
    %623 = vmatmul.bf16.gmra.mxu0 %v513
    %v624 = vpop.f32.mrf.mxu0
    %v625 = vadd.f32 0.0, %v624
    %v626 = vpop.f32.mrf.mxu0
    %v627 = vadd.f32 0.0, %v626
    %628 = vmatmul.bf16.gmra.mxu0 %v516
    %v629 = vpop.f32.mrf.mxu0
    %v630 = vadd.f32 0.0, %v629
    %v631 = vpop.f32.mrf.mxu0
    %v632 = vadd.f32 0.0, %v631
    %633 = vmatmul.bf16.gmra.mxu0 %v519
    %v634 = vpop.f32.mrf.mxu0
    %v635 = vadd.f32 0.0, %v634
    %v636 = vpop.f32.mrf.mxu0
    %v637 = vadd.f32 0.0, %v636
    %638 = vmatmul.bf16.gmra.mxu0 %v522
    %v639 = vpop.f32.mrf.mxu0
    %v640 = vadd.f32 0.0, %v639
    %v641 = vpop.f32.mrf.mxu0
    %v642 = vadd.f32 0.0, %v641
    %643 = vmatmul.bf16.gmra.mxu0 %v525
    %v644 = vpop.f32.mrf.mxu0
    %v645 = vadd.f32 0.0, %v644
    %v646 = vpop.f32.mrf.mxu0
    %v647 = vadd.f32 0.0, %v646
    %648 = vmatmul.bf16.gmra.mxu0 %v528
    %v649 = vpop.f32.mrf.mxu0
    %v650 = vadd.f32 0.0, %v649
    %v651 = vpop.f32.mrf.mxu0
    %v652 = vadd.f32 0.0, %v651
    %653 = vmatmul.bf16.gmra.mxu0 %v531
    %v654 = vpop.f32.mrf.mxu0
    %v655 = vadd.f32 0.0, %v654
    %v656 = vpop.f32.mrf.mxu0
    %v657 = vadd.f32 0.0, %v656
    %658 = vmatmul.bf16.gmra.mxu0 %v534
    %v659 = vpop.f32.mrf.mxu0
    %v660 = vadd.f32 0.0, %v659
    %v661 = vpop.f32.mrf.mxu0
    %v662 = vadd.f32 0.0, %v661
    %663 = vmatmul.bf16.gmra.mxu0 %v537
    %v664 = vpop.f32.mrf.mxu0
    %v665 = vadd.f32 0.0, %v664
    %v666 = vpop.f32.mrf.mxu0
    %v667 = vadd.f32 0.0, %v666
    %668 = vmatmul.bf16.gmra.mxu0 %v540
    %v669 = vpop.f32.mrf.mxu0
    %v670 = vadd.f32 0.0, %v669
    %v671 = vpop.f32.mrf.mxu0
    %v672 = vadd.f32 0.0, %v671
    %673 = vmatmul.bf16.gmra.mxu0 %v543
    %v674 = vpop.f32.mrf.mxu0
    %v675 = vadd.f32 0.0, %v674
    %v676 = vpop.f32.mrf.mxu0
    %v677 = vadd.f32 0.0, %v676
    %678 = vmatmul.bf16.gmra.mxu0 %v546
    %v679 = vpop.f32.mrf.mxu0
    %v680 = vadd.f32 0.0, %v679
    %v681 = vpop.f32.mrf.mxu0
    %v682 = vadd.f32 0.0, %v681
    %683 = vmatmul.bf16.gmra.mxu0 %v549
    %v684 = vpop.f32.mrf.mxu0
    %v685 = vadd.f32 0.0, %v684
    %v686 = vpop.f32.mrf.mxu0
    %v687 = vadd.f32 0.0, %v686
    %688 = vmatmul.bf16.gmra.mxu0 %v552
    %v689 = vpop.f32.mrf.mxu0
    %v690 = vadd.f32 0.0, %v689
    %v691 = vpop.f32.mrf.mxu0
    %v692 = vadd.f32 0.0, %v691
    %693 = vmatmul.bf16.gmra.mxu0 %v555
    %v694 = vpop.f32.mrf.mxu0
    %v695 = vadd.f32 0.0, %v694
    %v696 = vpop.f32.mrf.mxu0
    %v697 = vadd.f32 0.0, %v696
    %698 = vmatmul.bf16.gmra.mxu0 %v558
    %v699 = vpop.f32.mrf.mxu0
    %v700 = vadd.f32 0.0, %v699
    %v701 = vpop.f32.mrf.mxu0
    %v702 = vadd.f32 0.0, %v701
    %703 = vmatmul.bf16.gmra.mxu0 %v561
    %v704 = vpop.f32.mrf.mxu0
    %v705 = vadd.f32 0.0, %v704
    %v706 = vpop.f32.mrf.mxu0
    %v707 = vadd.f32 0.0, %v706
    %708 = vmatmul.bf16.gmra.mxu0 %v564
    %v709 = vpop.f32.mrf.mxu0
    %v710 = vadd.f32 0.0, %v709
    %v711 = vpop.f32.mrf.mxu0
    %v712 = vadd.f32 0.0, %v711
    %713 = vmatmul.bf16.gmra.mxu0 %v567
    %v714 = vpop.f32.mrf.mxu0
    %v715 = vadd.f32 0.0, %v714
    %v716 = vpop.f32.mrf.mxu0
    %v717 = vadd.f32 0.0, %v716
    %718 = vmatmul.bf16.gmra.mxu0 %v570
    %v719 = vpop.f32.mrf.mxu0
    %v720 = vadd.f32 0.0, %v719
    %v721 = vpop.f32.mrf.mxu0
    %v722 = vadd.f32 0.0, %v721
    %723 = vmatmul.bf16.gmra.mxu0 %v573
    %v724 = vpop.f32.mrf.mxu0
    %v725 = vadd.f32 0.0, %v724
    %v726 = vpop.f32.mrf.mxu0
    %v727 = vadd.f32 0.0, %v726
    %728 = vmatmul.bf16.gmra.mxu0 %v576
    %v729 = vpop.f32.mrf.mxu0
    %v730 = vadd.f32 0.0, %v729
    %v731 = vpop.f32.mrf.mxu0
    %v732 = vadd.f32 0.0, %v731
    %733 = vmatmul.bf16.gmra.mxu0 %v579
    %v734 = vpop.f32.mrf.mxu0
    %v735 = vadd.f32 0.0, %v734
    %v736 = vpop.f32.mrf.mxu0
    %v737 = vadd.f32 0.0, %v736
    %738 = vmatmul.bf16.gmra.mxu0 %v582
    %v739 = vpop.f32.mrf.mxu0
    %v740 = vadd.f32 0.0, %v739
    %v741 = vpop.f32.mrf.mxu0
    %v742 = vadd.f32 0.0, %v741
    %743 = vmatmul.bf16.gmra.mxu0 %v585
    %v744 = vpop.f32.mrf.mxu0
    %v745 = vadd.f32 0.0, %v744
    %v746 = vpop.f32.mrf.mxu0
    %v747 = vadd.f32 0.0, %v746
    %748 = vmatmul.bf16.gmra.mxu0 %v588
    %v749 = vpop.f32.mrf.mxu0
    %v750 = vadd.f32 0.0, %v749
    %v751 = vpop.f32.mrf.mxu0
    %v752 = vadd.f32 0.0, %v751
    %753 = vdwg.mxu0
    %v756 = vunpack.c.l.b16 %v191
    %v757 = vunpack.c.l.b16 %v192
    %v758 = vpack.c.b16 %v757, %v756
    %v760 = vsel %vm496, %v205, 0
    %v762 = vsel %vm496, %v206, 0
    %v764 = vsel %vm496, %v207, 0
    %v766 = vsel %vm496, %v208, 0
    %v768 = vsel %vm496, %v209, 0
    %v770 = vsel %vm496, %v210, 0
    %v772 = vsel %vm496, %v211, 0
    %v774 = vsel %vm496, %v212, 0
    %v776 = vsel %vm496, %v213, 0
    %v778 = vsel %vm496, %v214, 0
    %v780 = vsel %vm496, %v215, 0
    %v782 = vsel %vm496, %v216, 0
    %v784 = vsel %vm496, %v217, 0
    %v786 = vsel %vm496, %v218, 0
    %v788 = vsel %vm496, %v219, 0
    %v790 = vsel %vm496, %v220, 0
    %v792 = vsel %vm496, %v221, 0
    %v794 = vsel %vm496, %v222, 0
    %v796 = vsel %vm496, %v223, 0
    %v798 = vsel %vm496, %v224, 0
    %v800 = vsel %vm496, %v225, 0
    %v802 = vsel %vm496, %v226, 0
    %v804 = vsel %vm496, %v227, 0
    %v806 = vsel %vm496, %v228, 0
    %v808 = vsel %vm496, %v229, 0
    %v810 = vsel %vm496, %v230, 0
    %v812 = vsel %vm496, %v231, 0
    %v814 = vsel %vm496, %v232, 0
    %v816 = vsel %vm496, %v233, 0
    %v818 = vsel %vm496, %v234, 0
    %v820 = vsel %vm496, %v235, 0
    %822 = vmatpush.bf16.msra.mxu0 0
    %823 = vmatpush.bf16.msra.mxu0 0
    %824 = vmatpush.bf16.msra.mxu0 0
    %825 = vmatpush.bf16.msra.mxu0 0
    %826 = vmatpush.bf16.msra.mxu0 0
    %827 = vmatpush.bf16.msra.mxu0 0
    %828 = vmatpush.bf16.msra.mxu0 0
    %829 = vmatpush.bf16.msra.mxu0 %v758
    %830 = vmatmul.bf16.gmra.mxu0 %v760
    %v831 = vpop.f32.mrf.mxu0
    %v832 = vadd.f32 %v600, %v831
    %v833 = vpop.f32.mrf.mxu0
    %v834 = vadd.f32 %v602, %v833
    %835 = vmatmul.bf16.gmra.mxu0 %v762
    %v836 = vpop.f32.mrf.mxu0
    %v837 = vadd.f32 %v605, %v836
    %v838 = vpop.f32.mrf.mxu0
    %v839 = vadd.f32 %v607, %v838
    %840 = vmatmul.bf16.gmra.mxu0 %v764
    %v841 = vpop.f32.mrf.mxu0
    %v842 = vadd.f32 %v610, %v841
    %v843 = vpop.f32.mrf.mxu0
    %v844 = vadd.f32 %v612, %v843
    %845 = vmatmul.bf16.gmra.mxu0 %v766
    %v846 = vpop.f32.mrf.mxu0
    %v847 = vadd.f32 %v615, %v846
    %v848 = vpop.f32.mrf.mxu0
    %v849 = vadd.f32 %v617, %v848
    %850 = vmatmul.bf16.gmra.mxu0 %v768
    %v851 = vpop.f32.mrf.mxu0
    %v852 = vadd.f32 %v620, %v851
    %v853 = vpop.f32.mrf.mxu0
    %v854 = vadd.f32 %v622, %v853
    %855 = vmatmul.bf16.gmra.mxu0 %v770
    %v856 = vpop.f32.mrf.mxu0
    %v857 = vadd.f32 %v625, %v856
    %v858 = vpop.f32.mrf.mxu0
    %v859 = vadd.f32 %v627, %v858
    %860 = vmatmul.bf16.gmra.mxu0 %v772
    %v861 = vpop.f32.mrf.mxu0
    %v862 = vadd.f32 %v630, %v861
    %v863 = vpop.f32.mrf.mxu0
    %v864 = vadd.f32 %v632, %v863
    %865 = vmatmul.bf16.gmra.mxu0 %v774
    %v866 = vpop.f32.mrf.mxu0
    %v867 = vadd.f32 %v635, %v866
    %v868 = vpop.f32.mrf.mxu0
    %v869 = vadd.f32 %v637, %v868
    %870 = vmatmul.bf16.gmra.mxu0 %v776
    %v871 = vpop.f32.mrf.mxu0
    %v872 = vadd.f32 %v640, %v871
    %v873 = vpop.f32.mrf.mxu0
    %v874 = vadd.f32 %v642, %v873
    %875 = vmatmul.bf16.gmra.mxu0 %v778
    %v876 = vpop.f32.mrf.mxu0
    %v877 = vadd.f32 %v645, %v876
    %v878 = vpop.f32.mrf.mxu0
    %v879 = vadd.f32 %v647, %v878
    %880 = vmatmul.bf16.gmra.mxu0 %v780
    %v881 = vpop.f32.mrf.mxu0
    %v882 = vadd.f32 %v650, %v881
    %v883 = vpop.f32.mrf.mxu0
    %v884 = vadd.f32 %v652, %v883
    %885 = vmatmul.bf16.gmra.mxu0 %v782
    %v886 = vpop.f32.mrf.mxu0
    %v887 = vadd.f32 %v655, %v886
    %v888 = vpop.f32.mrf.mxu0
    %v889 = vadd.f32 %v657, %v888
    %890 = vmatmul.bf16.gmra.mxu0 %v784
    %v891 = vpop.f32.mrf.mxu0
    %v892 = vadd.f32 %v660, %v891
    %v893 = vpop.f32.mrf.mxu0
    %v894 = vadd.f32 %v662, %v893
    %895 = vmatmul.bf16.gmra.mxu0 %v786
    %v896 = vpop.f32.mrf.mxu0
    %v897 = vadd.f32 %v665, %v896
    %v898 = vpop.f32.mrf.mxu0
    %v899 = vadd.f32 %v667, %v898
    %900 = vmatmul.bf16.gmra.mxu0 %v788
    %v901 = vpop.f32.mrf.mxu0
    %v902 = vadd.f32 %v670, %v901
    %v903 = vpop.f32.mrf.mxu0
    %v904 = vadd.f32 %v672, %v903
    %905 = vmatmul.bf16.gmra.mxu0 %v790
    %v906 = vpop.f32.mrf.mxu0
    %v907 = vadd.f32 %v675, %v906
    %v908 = vpop.f32.mrf.mxu0
    %v909 = vadd.f32 %v677, %v908
    %910 = vmatmul.bf16.gmra.mxu0 %v792
    %v911 = vpop.f32.mrf.mxu0
    %v912 = vadd.f32 %v680, %v911
    %v913 = vpop.f32.mrf.mxu0
    %v914 = vadd.f32 %v682, %v913
    %915 = vmatmul.bf16.gmra.mxu0 %v794
    %v916 = vpop.f32.mrf.mxu0
    %v917 = vadd.f32 %v685, %v916
    %v918 = vpop.f32.mrf.mxu0
    %v919 = vadd.f32 %v687, %v918
    %920 = vmatmul.bf16.gmra.mxu0 %v796
    %v921 = vpop.f32.mrf.mxu0
    %v922 = vadd.f32 %v690, %v921
    %v923 = vpop.f32.mrf.mxu0
    %v924 = vadd.f32 %v692, %v923
    %925 = vmatmul.bf16.gmra.mxu0 %v798
    %v926 = vpop.f32.mrf.mxu0
    %v927 = vadd.f32 %v695, %v926
    %v928 = vpop.f32.mrf.mxu0
    %v929 = vadd.f32 %v697, %v928
    %930 = vmatmul.bf16.gmra.mxu0 %v800
    %v931 = vpop.f32.mrf.mxu0
    %v932 = vadd.f32 %v700, %v931
    %v933 = vpop.f32.mrf.mxu0
    %v934 = vadd.f32 %v702, %v933
    %935 = vmatmul.bf16.gmra.mxu0 %v802
    %v936 = vpop.f32.mrf.mxu0
    %v937 = vadd.f32 %v705, %v936
    %v938 = vpop.f32.mrf.mxu0
    %v939 = vadd.f32 %v707, %v938
    %940 = vmatmul.bf16.gmra.mxu0 %v804
    %v941 = vpop.f32.mrf.mxu0
    %v942 = vadd.f32 %v710, %v941
    %v943 = vpop.f32.mrf.mxu0
    %v944 = vadd.f32 %v712, %v943
    %945 = vmatmul.bf16.gmra.mxu0 %v806
    %v946 = vpop.f32.mrf.mxu0
    %v947 = vadd.f32 %v715, %v946
    %v948 = vpop.f32.mrf.mxu0
    %v949 = vadd.f32 %v717, %v948
    %950 = vmatmul.bf16.gmra.mxu0 %v808
    %v951 = vpop.f32.mrf.mxu0
    %v952 = vadd.f32 %v720, %v951
    %v953 = vpop.f32.mrf.mxu0
    %v954 = vadd.f32 %v722, %v953
    %955 = vmatmul.bf16.gmra.mxu0 %v810
    %v956 = vpop.f32.mrf.mxu0
    %v957 = vadd.f32 %v725, %v956
    %v958 = vpop.f32.mrf.mxu0
    %v959 = vadd.f32 %v727, %v958
    %960 = vmatmul.bf16.gmra.mxu0 %v812
    %v961 = vpop.f32.mrf.mxu0
    %v962 = vadd.f32 %v730, %v961
    %v963 = vpop.f32.mrf.mxu0
    %v964 = vadd.f32 %v732, %v963
    %965 = vmatmul.bf16.gmra.mxu0 %v814
    %v966 = vpop.f32.mrf.mxu0
    %v967 = vadd.f32 %v735, %v966
    %v968 = vpop.f32.mrf.mxu0
    %v969 = vadd.f32 %v737, %v968
    %970 = vmatmul.bf16.gmra.mxu0 %v816
    %v971 = vpop.f32.mrf.mxu0
    %v972 = vadd.f32 %v740, %v971
    %v973 = vpop.f32.mrf.mxu0
    %v974 = vadd.f32 %v742, %v973
    %975 = vmatmul.bf16.gmra.mxu0 %v818
    %v976 = vpop.f32.mrf.mxu0
    %v977 = vadd.f32 %v745, %v976
    %v978 = vpop.f32.mrf.mxu0
    %v979 = vadd.f32 %v747, %v978
    %980 = vmatmul.bf16.gmra.mxu0 %v820
    %v981 = vpop.f32.mrf.mxu0
    %v982 = vadd.f32 %v750, %v981
    %v983 = vpop.f32.mrf.mxu0
    %v984 = vadd.f32 %v752, %v983
    %985 = vdwg.mxu0
    %vm1018 = vcmask 1046528
    %v1019 = vrot.slane %v205, 1
    %v1020 = vrot.slane %v206, 1
    %v1021 = vsel %vm1018, %v1019, %v1020
    %v1022 = vrot.slane %v207, 1
    %v1023 = vsel %vm1018, %v1020, %v1022
    %v1024 = vrot.slane %v208, 1
    %v1025 = vsel %vm1018, %v1022, %v1024
    %v1026 = vrot.slane %v209, 1
    %v1027 = vsel %vm1018, %v1024, %v1026
    %v1028 = vrot.slane %v210, 1
    %v1029 = vsel %vm1018, %v1026, %v1028
    %v1030 = vrot.slane %v211, 1
    %v1031 = vsel %vm1018, %v1028, %v1030
    %v1032 = vrot.slane %v212, 1
    %v1033 = vsel %vm1018, %v1030, %v1032
    %v1034 = vrot.slane %v213, 1
    %v1035 = vsel %vm1018, %v1032, %v1034
    %v1036 = vrot.slane %v214, 1
    %v1037 = vsel %vm1018, %v1034, %v1036
    %v1038 = vrot.slane %v215, 1
    %v1039 = vsel %vm1018, %v1036, %v1038
    %v1040 = vrot.slane %v216, 1
    %v1041 = vsel %vm1018, %v1038, %v1040
    %v1042 = vrot.slane %v217, 1
    %v1043 = vsel %vm1018, %v1040, %v1042
    %v1044 = vrot.slane %v218, 1
    %v1045 = vsel %vm1018, %v1042, %v1044
    %v1046 = vrot.slane %v219, 1
    %v1047 = vsel %vm1018, %v1044, %v1046
    %v1048 = vrot.slane %v220, 1
    %v1049 = vsel %vm1018, %v1046, %v1048
    %v1050 = vrot.slane %v221, 1
    %v1051 = vsel %vm1018, %v1048, %v1050
    %v1052 = vrot.slane %v222, 1
    %v1053 = vsel %vm1018, %v1050, %v1052
    %v1054 = vrot.slane %v223, 1
    %v1055 = vsel %vm1018, %v1052, %v1054
    %v1056 = vrot.slane %v224, 1
    %v1057 = vsel %vm1018, %v1054, %v1056
    %v1058 = vrot.slane %v225, 1
    %v1059 = vsel %vm1018, %v1056, %v1058
    %v1060 = vrot.slane %v226, 1
    %v1061 = vsel %vm1018, %v1058, %v1060
    %v1062 = vrot.slane %v227, 1
    %v1063 = vsel %vm1018, %v1060, %v1062
    %v1064 = vrot.slane %v228, 1
    %v1065 = vsel %vm1018, %v1062, %v1064
    %v1066 = vrot.slane %v229, 1
    %v1067 = vsel %vm1018, %v1064, %v1066
    %v1068 = vrot.slane %v230, 1
    %v1069 = vsel %vm1018, %v1066, %v1068
    %v1070 = vrot.slane %v231, 1
    %v1071 = vsel %vm1018, %v1068, %v1070
    %v1072 = vrot.slane %v232, 1
    %v1073 = vsel %vm1018, %v1070, %v1072
    %v1074 = vrot.slane %v233, 1
    %v1075 = vsel %vm1018, %v1072, %v1074
    %v1076 = vrot.slane %v234, 1
    %v1077 = vsel %vm1018, %v1074, %v1076
    %v1078 = vrot.slane %v235, 1
    %v1079 = vsel %vm1018, %v1076, %v1078
    %v1080 = vrot.slane %v236, 1
    %v1081 = vsel %vm1018, %v1078, %v1080
    %v1084 = vunpack.c.l.b16 %v197
    %v1085 = vunpack.c.l.b16 %v198
    %v1086 = vpack.c.b16 %v1085, %v1084
    %v1089 = vsel %vm496, %v1021, 0
    %v1092 = vsel %vm496, %v1023, 0
    %v1095 = vsel %vm496, %v1025, 0
    %v1098 = vsel %vm496, %v1027, 0
    %v1101 = vsel %vm496, %v1029, 0
    %v1104 = vsel %vm496, %v1031, 0
    %v1107 = vsel %vm496, %v1033, 0
    %v1110 = vsel %vm496, %v1035, 0
    %v1113 = vsel %vm496, %v1037, 0
    %v1116 = vsel %vm496, %v1039, 0
    %v1119 = vsel %vm496, %v1041, 0
    %v1122 = vsel %vm496, %v1043, 0
    %v1125 = vsel %vm496, %v1045, 0
    %v1128 = vsel %vm496, %v1047, 0
    %v1131 = vsel %vm496, %v1049, 0
    %v1134 = vsel %vm496, %v1051, 0
    %v1137 = vsel %vm496, %v1053, 0
    %v1140 = vsel %vm496, %v1055, 0
    %v1143 = vsel %vm496, %v1057, 0
    %v1146 = vsel %vm496, %v1059, 0
    %v1149 = vsel %vm496, %v1061, 0
    %v1152 = vsel %vm496, %v1063, 0
    %v1155 = vsel %vm496, %v1065, 0
    %v1158 = vsel %vm496, %v1067, 0
    %v1161 = vsel %vm496, %v1069, 0
    %v1164 = vsel %vm496, %v1071, 0
    %v1167 = vsel %vm496, %v1073, 0
    %v1170 = vsel %vm496, %v1075, 0
    %v1173 = vsel %vm496, %v1077, 0
    %v1176 = vsel %vm496, %v1079, 0
    %v1179 = vsel %vm496, %v1081, 0
    %1181 = vmatpush.bf16.msra.mxu0 0
    %1182 = vmatpush.bf16.msra.mxu0 0
    %1183 = vmatpush.bf16.msra.mxu0 0
    %1184 = vmatpush.bf16.msra.mxu0 0
    %1185 = vmatpush.bf16.msra.mxu0 0
    %1186 = vmatpush.bf16.msra.mxu0 0
    %1187 = vmatpush.bf16.msra.mxu0 0
    %1188 = vmatpush.bf16.msra.mxu0 %v1086
    %1189 = vmatmul.bf16.gmra.mxu0 %v1089
    %v1190 = vpop.f32.mrf.mxu0
    %v1191 = vadd.f32 0.0, %v1190
    %v1192 = vpop.f32.mrf.mxu0
    %v1193 = vadd.f32 0.0, %v1192
    %1194 = vmatmul.bf16.gmra.mxu0 %v1092
    %v1195 = vpop.f32.mrf.mxu0
    %v1196 = vadd.f32 0.0, %v1195
    %v1197 = vpop.f32.mrf.mxu0
    %v1198 = vadd.f32 0.0, %v1197
    %1199 = vmatmul.bf16.gmra.mxu0 %v1095
    %v1200 = vpop.f32.mrf.mxu0
    %v1201 = vadd.f32 0.0, %v1200
    %v1202 = vpop.f32.mrf.mxu0
    %v1203 = vadd.f32 0.0, %v1202
    %1204 = vmatmul.bf16.gmra.mxu0 %v1098
    %v1205 = vpop.f32.mrf.mxu0
    %v1206 = vadd.f32 0.0, %v1205
    %v1207 = vpop.f32.mrf.mxu0
    %v1208 = vadd.f32 0.0, %v1207
    %1209 = vmatmul.bf16.gmra.mxu0 %v1101
    %v1210 = vpop.f32.mrf.mxu0
    %v1211 = vadd.f32 0.0, %v1210
    %v1212 = vpop.f32.mrf.mxu0
    %v1213 = vadd.f32 0.0, %v1212
    %1214 = vmatmul.bf16.gmra.mxu0 %v1104
    %v1215 = vpop.f32.mrf.mxu0
    %v1216 = vadd.f32 0.0, %v1215
    %v1217 = vpop.f32.mrf.mxu0
    %v1218 = vadd.f32 0.0, %v1217
    %1219 = vmatmul.bf16.gmra.mxu0 %v1107
    %v1220 = vpop.f32.mrf.mxu0
    %v1221 = vadd.f32 0.0, %v1220
    %v1222 = vpop.f32.mrf.mxu0
    %v1223 = vadd.f32 0.0, %v1222
    %1224 = vmatmul.bf16.gmra.mxu0 %v1110
    %v1225 = vpop.f32.mrf.mxu0
    %v1226 = vadd.f32 0.0, %v1225
    %v1227 = vpop.f32.mrf.mxu0
    %v1228 = vadd.f32 0.0, %v1227
    %1229 = vmatmul.bf16.gmra.mxu0 %v1113
    %v1230 = vpop.f32.mrf.mxu0
    %v1231 = vadd.f32 0.0, %v1230
    %v1232 = vpop.f32.mrf.mxu0
    %v1233 = vadd.f32 0.0, %v1232
    %1234 = vmatmul.bf16.gmra.mxu0 %v1116
    %v1235 = vpop.f32.mrf.mxu0
    %v1236 = vadd.f32 0.0, %v1235
    %v1237 = vpop.f32.mrf.mxu0
    %v1238 = vadd.f32 0.0, %v1237
    %1239 = vmatmul.bf16.gmra.mxu0 %v1119
    %v1240 = vpop.f32.mrf.mxu0
    %v1241 = vadd.f32 0.0, %v1240
    %v1242 = vpop.f32.mrf.mxu0
    %v1243 = vadd.f32 0.0, %v1242
    %1244 = vmatmul.bf16.gmra.mxu0 %v1122
    %v1245 = vpop.f32.mrf.mxu0
    %v1246 = vadd.f32 0.0, %v1245
    %v1247 = vpop.f32.mrf.mxu0
    %v1248 = vadd.f32 0.0, %v1247
    %1249 = vmatmul.bf16.gmra.mxu0 %v1125
    %v1250 = vpop.f32.mrf.mxu0
    %v1251 = vadd.f32 0.0, %v1250
    %v1252 = vpop.f32.mrf.mxu0
    %v1253 = vadd.f32 0.0, %v1252
    %1254 = vmatmul.bf16.gmra.mxu0 %v1128
    %v1255 = vpop.f32.mrf.mxu0
    %v1256 = vadd.f32 0.0, %v1255
    %v1257 = vpop.f32.mrf.mxu0
    %v1258 = vadd.f32 0.0, %v1257
    %1259 = vmatmul.bf16.gmra.mxu0 %v1131
    %v1260 = vpop.f32.mrf.mxu0
    %v1261 = vadd.f32 0.0, %v1260
    %v1262 = vpop.f32.mrf.mxu0
    %v1263 = vadd.f32 0.0, %v1262
    %1264 = vmatmul.bf16.gmra.mxu0 %v1134
    %v1265 = vpop.f32.mrf.mxu0
    %v1266 = vadd.f32 0.0, %v1265
    %v1267 = vpop.f32.mrf.mxu0
    %v1268 = vadd.f32 0.0, %v1267
    %1269 = vmatmul.bf16.gmra.mxu0 %v1137
    %v1270 = vpop.f32.mrf.mxu0
    %v1271 = vadd.f32 0.0, %v1270
    %v1272 = vpop.f32.mrf.mxu0
    %v1273 = vadd.f32 0.0, %v1272
    %1274 = vmatmul.bf16.gmra.mxu0 %v1140
    %v1275 = vpop.f32.mrf.mxu0
    %v1276 = vadd.f32 0.0, %v1275
    %v1277 = vpop.f32.mrf.mxu0
    %v1278 = vadd.f32 0.0, %v1277
    %1279 = vmatmul.bf16.gmra.mxu0 %v1143
    %v1280 = vpop.f32.mrf.mxu0
    %v1281 = vadd.f32 0.0, %v1280
    %v1282 = vpop.f32.mrf.mxu0
    %v1283 = vadd.f32 0.0, %v1282
    %1284 = vmatmul.bf16.gmra.mxu0 %v1146
    %v1285 = vpop.f32.mrf.mxu0
    %v1286 = vadd.f32 0.0, %v1285
    %v1287 = vpop.f32.mrf.mxu0
    %v1288 = vadd.f32 0.0, %v1287
    %1289 = vmatmul.bf16.gmra.mxu0 %v1149
    %v1290 = vpop.f32.mrf.mxu0
    %v1291 = vadd.f32 0.0, %v1290
    %v1292 = vpop.f32.mrf.mxu0
    %v1293 = vadd.f32 0.0, %v1292
    %1294 = vmatmul.bf16.gmra.mxu0 %v1152
    %v1295 = vpop.f32.mrf.mxu0
    %v1296 = vadd.f32 0.0, %v1295
    %v1297 = vpop.f32.mrf.mxu0
    %v1298 = vadd.f32 0.0, %v1297
    %1299 = vmatmul.bf16.gmra.mxu0 %v1155
    %v1300 = vpop.f32.mrf.mxu0
    %v1301 = vadd.f32 0.0, %v1300
    %v1302 = vpop.f32.mrf.mxu0
    %v1303 = vadd.f32 0.0, %v1302
    %1304 = vmatmul.bf16.gmra.mxu0 %v1158
    %v1305 = vpop.f32.mrf.mxu0
    %v1306 = vadd.f32 0.0, %v1305
    %v1307 = vpop.f32.mrf.mxu0
    %v1308 = vadd.f32 0.0, %v1307
    %1309 = vmatmul.bf16.gmra.mxu0 %v1161
    %v1310 = vpop.f32.mrf.mxu0
    %v1311 = vadd.f32 0.0, %v1310
    %v1312 = vpop.f32.mrf.mxu0
    %v1313 = vadd.f32 0.0, %v1312
    %1314 = vmatmul.bf16.gmra.mxu0 %v1164
    %v1315 = vpop.f32.mrf.mxu0
    %v1316 = vadd.f32 0.0, %v1315
    %v1317 = vpop.f32.mrf.mxu0
    %v1318 = vadd.f32 0.0, %v1317
    %1319 = vmatmul.bf16.gmra.mxu0 %v1167
    %v1320 = vpop.f32.mrf.mxu0
    %v1321 = vadd.f32 0.0, %v1320
    %v1322 = vpop.f32.mrf.mxu0
    %v1323 = vadd.f32 0.0, %v1322
    %1324 = vmatmul.bf16.gmra.mxu0 %v1170
    %v1325 = vpop.f32.mrf.mxu0
    %v1326 = vadd.f32 0.0, %v1325
    %v1327 = vpop.f32.mrf.mxu0
    %v1328 = vadd.f32 0.0, %v1327
    %1329 = vmatmul.bf16.gmra.mxu0 %v1173
    %v1330 = vpop.f32.mrf.mxu0
    %v1331 = vadd.f32 0.0, %v1330
    %v1332 = vpop.f32.mrf.mxu0
    %v1333 = vadd.f32 0.0, %v1332
    %1334 = vmatmul.bf16.gmra.mxu0 %v1176
    %v1335 = vpop.f32.mrf.mxu0
    %v1336 = vadd.f32 0.0, %v1335
    %v1337 = vpop.f32.mrf.mxu0
    %v1338 = vadd.f32 0.0, %v1337
    %1339 = vmatmul.bf16.gmra.mxu0 %v1179
    %v1340 = vpop.f32.mrf.mxu0
    %v1341 = vadd.f32 0.0, %v1340
    %v1342 = vpop.f32.mrf.mxu0
    %v1343 = vadd.f32 0.0, %v1342
    %1344 = vdwg.mxu0
    %v1345 = vadd.f32 %v832, %v1191
    %v1346 = vadd.f32 %v834, %v1193
    %v1347 = vadd.f32 %v837, %v1196
    %v1348 = vadd.f32 %v839, %v1198
    %v1349 = vadd.f32 %v842, %v1201
    %v1350 = vadd.f32 %v844, %v1203
    %v1351 = vadd.f32 %v847, %v1206
    %v1352 = vadd.f32 %v849, %v1208
    %v1353 = vadd.f32 %v852, %v1211
    %v1354 = vadd.f32 %v854, %v1213
    %v1355 = vadd.f32 %v857, %v1216
    %v1356 = vadd.f32 %v859, %v1218
    %v1357 = vadd.f32 %v862, %v1221
    %v1358 = vadd.f32 %v864, %v1223
    %v1359 = vadd.f32 %v867, %v1226
    %v1360 = vadd.f32 %v869, %v1228
    %v1361 = vadd.f32 %v872, %v1231
    %v1362 = vadd.f32 %v874, %v1233
    %v1363 = vadd.f32 %v877, %v1236
    %v1364 = vadd.f32 %v879, %v1238
    %v1365 = vadd.f32 %v882, %v1241
    %v1366 = vadd.f32 %v884, %v1243
    %v1367 = vadd.f32 %v887, %v1246
    %v1368 = vadd.f32 %v889, %v1248
    %v1369 = vadd.f32 %v892, %v1251
    %v1370 = vadd.f32 %v894, %v1253
    %v1371 = vadd.f32 %v897, %v1256
    %v1372 = vadd.f32 %v899, %v1258
    %v1373 = vadd.f32 %v902, %v1261
    %v1374 = vadd.f32 %v904, %v1263
    %v1375 = vadd.f32 %v907, %v1266
    %v1376 = vadd.f32 %v909, %v1268
    %v1377 = vadd.f32 %v912, %v1271
    %v1378 = vadd.f32 %v914, %v1273
    %v1379 = vadd.f32 %v917, %v1276
    %v1380 = vadd.f32 %v919, %v1278
    %v1381 = vadd.f32 %v922, %v1281
    %v1382 = vadd.f32 %v924, %v1283
    %v1383 = vadd.f32 %v927, %v1286
    %v1384 = vadd.f32 %v929, %v1288
    %v1385 = vadd.f32 %v932, %v1291
    %v1386 = vadd.f32 %v934, %v1293
    %v1387 = vadd.f32 %v937, %v1296
    %v1388 = vadd.f32 %v939, %v1298
    %v1389 = vadd.f32 %v942, %v1301
    %v1390 = vadd.f32 %v944, %v1303
    %v1391 = vadd.f32 %v947, %v1306
    %v1392 = vadd.f32 %v949, %v1308
    %v1393 = vadd.f32 %v952, %v1311
    %v1394 = vadd.f32 %v954, %v1313
    %v1395 = vadd.f32 %v957, %v1316
    %v1396 = vadd.f32 %v959, %v1318
    %v1397 = vadd.f32 %v962, %v1321
    %v1398 = vadd.f32 %v964, %v1323
    %v1399 = vadd.f32 %v967, %v1326
    %v1400 = vadd.f32 %v969, %v1328
    %v1401 = vadd.f32 %v972, %v1331
    %v1402 = vadd.f32 %v974, %v1333
    %v1403 = vadd.f32 %v977, %v1336
    %v1404 = vadd.f32 %v979, %v1338
    %v1405 = vadd.f32 %v982, %v1341
    %v1406 = vadd.f32 %v984, %v1343
    %vm1407 = vsmask.f32 6400
    %v1408 = vrot.slane %v239, 1
    %v1409 = vrot.slane %v241, 2
    %v1410 = vor.u32 %v1408, %v1409
    %v1411 = vrot.slane %v250, 1
    %v1412 = vrot.slane %v246, 2
    %v1413 = vor.u32 %v1411, %v1412
    %v1414 = vsel %vm1407, %v1410, %v1413
    %v1415 = vrot.slane %v258, 1
    %v1416 = vrot.slane %v254, 2
    %v1417 = vor.u32 %v1415, %v1416
    %v1418 = vsel %vm1407, %v1413, %v1417
    %v1419 = vrot.slane %v266, 1
    %v1420 = vrot.slane %v262, 2
    %v1421 = vor.u32 %v1419, %v1420
    %v1422 = vsel %vm1407, %v1417, %v1421
    %v1423 = vrot.slane %v274, 1
    %v1424 = vrot.slane %v270, 2
    %v1425 = vor.u32 %v1423, %v1424
    %v1426 = vsel %vm1407, %v1421, %v1425
    %v1427 = vrot.slane %v282, 1
    %v1428 = vrot.slane %v278, 2
    %v1429 = vor.u32 %v1427, %v1428
    %v1430 = vsel %vm1407, %v1425, %v1429
    %v1431 = vrot.slane %v290, 1
    %v1432 = vrot.slane %v286, 2
    %v1433 = vor.u32 %v1431, %v1432
    %v1434 = vsel %vm1407, %v1429, %v1433
    %v1435 = vrot.slane %v298, 1
    %v1436 = vrot.slane %v294, 2
    %v1437 = vor.u32 %v1435, %v1436
    %v1438 = vsel %vm1407, %v1433, %v1437
    %v1439 = vrot.slane %v306, 1
    %v1440 = vrot.slane %v302, 2
    %v1441 = vor.u32 %v1439, %v1440
    %v1442 = vsel %vm1407, %v1437, %v1441
    %v1443 = vrot.slane %v314, 1
    %v1444 = vrot.slane %v310, 2
    %v1445 = vor.u32 %v1443, %v1444
    %v1446 = vsel %vm1407, %v1441, %v1445
    %v1447 = vrot.slane %v322, 1
    %v1448 = vrot.slane %v318, 2
    %v1449 = vor.u32 %v1447, %v1448
    %v1450 = vsel %vm1407, %v1445, %v1449
    %v1451 = vrot.slane %v330, 1
    %v1452 = vrot.slane %v326, 2
    %v1453 = vor.u32 %v1451, %v1452
    %v1454 = vsel %vm1407, %v1449, %v1453
    %v1455 = vrot.slane %v338, 1
    %v1456 = vrot.slane %v334, 2
    %v1457 = vor.u32 %v1455, %v1456
    %v1458 = vsel %vm1407, %v1453, %v1457
    %v1459 = vrot.slane %v346, 1
    %v1460 = vrot.slane %v342, 2
    %v1461 = vor.u32 %v1459, %v1460
    %v1462 = vsel %vm1407, %v1457, %v1461
    %v1463 = vrot.slane %v354, 1
    %v1464 = vrot.slane %v350, 2
    %v1465 = vor.u32 %v1463, %v1464
    %v1466 = vsel %vm1407, %v1461, %v1465
    %v1467 = vrot.slane %v362, 1
    %v1468 = vrot.slane %v358, 2
    %v1469 = vor.u32 %v1467, %v1468
    %v1470 = vsel %vm1407, %v1465, %v1469
    %v1471 = vrot.slane %v370, 1
    %v1472 = vrot.slane %v366, 2
    %v1473 = vor.u32 %v1471, %v1472
    %v1474 = vsel %vm1407, %v1469, %v1473
    %v1475 = vrot.slane %v378, 1
    %v1476 = vrot.slane %v374, 2
    %v1477 = vor.u32 %v1475, %v1476
    %v1478 = vsel %vm1407, %v1473, %v1477
    %v1479 = vrot.slane %v386, 1
    %v1480 = vrot.slane %v382, 2
    %v1481 = vor.u32 %v1479, %v1480
    %v1482 = vsel %vm1407, %v1477, %v1481
    %v1483 = vrot.slane %v394, 1
    %v1484 = vrot.slane %v390, 2
    %v1485 = vor.u32 %v1483, %v1484
    %v1486 = vsel %vm1407, %v1481, %v1485
    %v1487 = vrot.slane %v402, 1
    %v1488 = vrot.slane %v398, 2
    %v1489 = vor.u32 %v1487, %v1488
    %v1490 = vsel %vm1407, %v1485, %v1489
    %v1491 = vrot.slane %v410, 1
    %v1492 = vrot.slane %v406, 2
    %v1493 = vor.u32 %v1491, %v1492
    %v1494 = vsel %vm1407, %v1489, %v1493
    %v1495 = vrot.slane %v418, 1
    %v1496 = vrot.slane %v414, 2
    %v1497 = vor.u32 %v1495, %v1496
    %v1498 = vsel %vm1407, %v1493, %v1497
    %v1499 = vrot.slane %v426, 1
    %v1500 = vrot.slane %v422, 2
    %v1501 = vor.u32 %v1499, %v1500
    %v1502 = vsel %vm1407, %v1497, %v1501
    %v1503 = vrot.slane %v434, 1
    %v1504 = vrot.slane %v430, 2
    %v1505 = vor.u32 %v1503, %v1504
    %v1506 = vsel %vm1407, %v1501, %v1505
    %v1507 = vrot.slane %v442, 1
    %v1508 = vrot.slane %v438, 2
    %v1509 = vor.u32 %v1507, %v1508
    %v1510 = vsel %vm1407, %v1505, %v1509
    %v1511 = vrot.slane %v450, 1
    %v1512 = vrot.slane %v446, 2
    %v1513 = vor.u32 %v1511, %v1512
    %v1514 = vsel %vm1407, %v1509, %v1513
    %v1515 = vrot.slane %v458, 1
    %v1516 = vrot.slane %v454, 2
    %v1517 = vor.u32 %v1515, %v1516
    %v1518 = vsel %vm1407, %v1513, %v1517
    %v1519 = vrot.slane %v466, 1
    %v1520 = vrot.slane %v462, 2
    %v1521 = vor.u32 %v1519, %v1520
    %v1522 = vsel %vm1407, %v1517, %v1521
    %v1523 = vrot.slane %v474, 1
    %v1524 = vrot.slane %v470, 2
    %v1525 = vor.u32 %v1523, %v1524
    %v1526 = vsel %vm1407, %v1521, %v1525
    %v1527 = vrot.slane %v482, 1
    %v1528 = vrot.slane %v478, 2
    %v1529 = vor.u32 %v1527, %v1528
    %v1530 = vsel %vm1407, %v1525, %v1529
    %v1531 = vshrl.u32 %v236, 16
    %v1533 = vrot.slane %v1531, 1
    %v1534 = vrot.slane %v486, 2
    %v1535 = vor.u32 %v1533, %v1534
    %v1536 = vsel %vm1407, %v1529, %v1535
    %v1539 = vunpack.c.l.b16 %v200
    %v1540 = vunpack.c.l.b16 %v201
    %v1541 = vpack.c.b16 %v1540, %v1539
    %v1544 = vsel %vm496, %v1414, 0
    %v1547 = vsel %vm496, %v1418, 0
    %v1550 = vsel %vm496, %v1422, 0
    %v1553 = vsel %vm496, %v1426, 0
    %v1556 = vsel %vm496, %v1430, 0
    %v1559 = vsel %vm496, %v1434, 0
    %v1562 = vsel %vm496, %v1438, 0
    %v1565 = vsel %vm496, %v1442, 0
    %v1568 = vsel %vm496, %v1446, 0
    %v1571 = vsel %vm496, %v1450, 0
    %v1574 = vsel %vm496, %v1454, 0
    %v1577 = vsel %vm496, %v1458, 0
    %v1580 = vsel %vm496, %v1462, 0
    %v1583 = vsel %vm496, %v1466, 0
    %v1586 = vsel %vm496, %v1470, 0
    %v1589 = vsel %vm496, %v1474, 0
    %v1592 = vsel %vm496, %v1478, 0
    %v1595 = vsel %vm496, %v1482, 0
    %v1598 = vsel %vm496, %v1486, 0
    %v1601 = vsel %vm496, %v1490, 0
    %v1604 = vsel %vm496, %v1494, 0
    %v1607 = vsel %vm496, %v1498, 0
    %v1610 = vsel %vm496, %v1502, 0
    %v1613 = vsel %vm496, %v1506, 0
    %v1616 = vsel %vm496, %v1510, 0
    %v1619 = vsel %vm496, %v1514, 0
    %v1622 = vsel %vm496, %v1518, 0
    %v1625 = vsel %vm496, %v1522, 0
    %v1628 = vsel %vm496, %v1526, 0
    %v1631 = vsel %vm496, %v1530, 0
    %v1634 = vsel %vm496, %v1536, 0
    %1636 = vmatpush.bf16.msra.mxu0 0
    %1637 = vmatpush.bf16.msra.mxu0 0
    %1638 = vmatpush.bf16.msra.mxu0 0
    %1639 = vmatpush.bf16.msra.mxu0 0
    %1640 = vmatpush.bf16.msra.mxu0 0
    %1641 = vmatpush.bf16.msra.mxu0 0
    %1642 = vmatpush.bf16.msra.mxu0 0
    %1643 = vmatpush.bf16.msra.mxu0 %v1541
    %1644 = vmatmul.bf16.gmra.mxu0 %v1544
    %v1645 = vpop.f32.mrf.mxu0
    %v1646 = vadd.f32 0.0, %v1645
    %v1647 = vpop.f32.mrf.mxu0
    %v1648 = vadd.f32 0.0, %v1647
    %1649 = vmatmul.bf16.gmra.mxu0 %v1547
    %v1650 = vpop.f32.mrf.mxu0
    %v1651 = vadd.f32 0.0, %v1650
    %v1652 = vpop.f32.mrf.mxu0
    %v1653 = vadd.f32 0.0, %v1652
    %1654 = vmatmul.bf16.gmra.mxu0 %v1550
    %v1655 = vpop.f32.mrf.mxu0
    %v1656 = vadd.f32 0.0, %v1655
    %v1657 = vpop.f32.mrf.mxu0
    %v1658 = vadd.f32 0.0, %v1657
    %1659 = vmatmul.bf16.gmra.mxu0 %v1553
    %v1660 = vpop.f32.mrf.mxu0
    %v1661 = vadd.f32 0.0, %v1660
    %v1662 = vpop.f32.mrf.mxu0
    %v1663 = vadd.f32 0.0, %v1662
    %1664 = vmatmul.bf16.gmra.mxu0 %v1556
    %v1665 = vpop.f32.mrf.mxu0
    %v1666 = vadd.f32 0.0, %v1665
    %v1667 = vpop.f32.mrf.mxu0
    %v1668 = vadd.f32 0.0, %v1667
    %1669 = vmatmul.bf16.gmra.mxu0 %v1559
    %v1670 = vpop.f32.mrf.mxu0
    %v1671 = vadd.f32 0.0, %v1670
    %v1672 = vpop.f32.mrf.mxu0
    %v1673 = vadd.f32 0.0, %v1672
    %1674 = vmatmul.bf16.gmra.mxu0 %v1562
    %v1675 = vpop.f32.mrf.mxu0
    %v1676 = vadd.f32 0.0, %v1675
    %v1677 = vpop.f32.mrf.mxu0
    %v1678 = vadd.f32 0.0, %v1677
    %1679 = vmatmul.bf16.gmra.mxu0 %v1565
    %v1680 = vpop.f32.mrf.mxu0
    %v1681 = vadd.f32 0.0, %v1680
    %v1682 = vpop.f32.mrf.mxu0
    %v1683 = vadd.f32 0.0, %v1682
    %1684 = vmatmul.bf16.gmra.mxu0 %v1568
    %v1685 = vpop.f32.mrf.mxu0
    %v1686 = vadd.f32 0.0, %v1685
    %v1687 = vpop.f32.mrf.mxu0
    %v1688 = vadd.f32 0.0, %v1687
    %1689 = vmatmul.bf16.gmra.mxu0 %v1571
    %v1690 = vpop.f32.mrf.mxu0
    %v1691 = vadd.f32 0.0, %v1690
    %v1692 = vpop.f32.mrf.mxu0
    %v1693 = vadd.f32 0.0, %v1692
    %1694 = vmatmul.bf16.gmra.mxu0 %v1574
    %v1695 = vpop.f32.mrf.mxu0
    %v1696 = vadd.f32 0.0, %v1695
    %v1697 = vpop.f32.mrf.mxu0
    %v1698 = vadd.f32 0.0, %v1697
    %1699 = vmatmul.bf16.gmra.mxu0 %v1577
    %v1700 = vpop.f32.mrf.mxu0
    %v1701 = vadd.f32 0.0, %v1700
    %v1702 = vpop.f32.mrf.mxu0
    %v1703 = vadd.f32 0.0, %v1702
    %1704 = vmatmul.bf16.gmra.mxu0 %v1580
    %v1705 = vpop.f32.mrf.mxu0
    %v1706 = vadd.f32 0.0, %v1705
    %v1707 = vpop.f32.mrf.mxu0
    %v1708 = vadd.f32 0.0, %v1707
    %1709 = vmatmul.bf16.gmra.mxu0 %v1583
    %v1710 = vpop.f32.mrf.mxu0
    %v1711 = vadd.f32 0.0, %v1710
    %v1712 = vpop.f32.mrf.mxu0
    %v1713 = vadd.f32 0.0, %v1712
    %1714 = vmatmul.bf16.gmra.mxu0 %v1586
    %v1715 = vpop.f32.mrf.mxu0
    %v1716 = vadd.f32 0.0, %v1715
    %v1717 = vpop.f32.mrf.mxu0
    %v1718 = vadd.f32 0.0, %v1717
    %1719 = vmatmul.bf16.gmra.mxu0 %v1589
    %v1720 = vpop.f32.mrf.mxu0
    %v1721 = vadd.f32 0.0, %v1720
    %v1722 = vpop.f32.mrf.mxu0
    %v1723 = vadd.f32 0.0, %v1722
    %1724 = vmatmul.bf16.gmra.mxu0 %v1592
    %v1725 = vpop.f32.mrf.mxu0
    %v1726 = vadd.f32 0.0, %v1725
    %v1727 = vpop.f32.mrf.mxu0
    %v1728 = vadd.f32 0.0, %v1727
    %1729 = vmatmul.bf16.gmra.mxu0 %v1595
    %v1730 = vpop.f32.mrf.mxu0
    %v1731 = vadd.f32 0.0, %v1730
    %v1732 = vpop.f32.mrf.mxu0
    %v1733 = vadd.f32 0.0, %v1732
    %1734 = vmatmul.bf16.gmra.mxu0 %v1598
    %v1735 = vpop.f32.mrf.mxu0
    %v1736 = vadd.f32 0.0, %v1735
    %v1737 = vpop.f32.mrf.mxu0
    %v1738 = vadd.f32 0.0, %v1737
    %1739 = vmatmul.bf16.gmra.mxu0 %v1601
    %v1740 = vpop.f32.mrf.mxu0
    %v1741 = vadd.f32 0.0, %v1740
    %v1742 = vpop.f32.mrf.mxu0
    %v1743 = vadd.f32 0.0, %v1742
    %1744 = vmatmul.bf16.gmra.mxu0 %v1604
    %v1745 = vpop.f32.mrf.mxu0
    %v1746 = vadd.f32 0.0, %v1745
    %v1747 = vpop.f32.mrf.mxu0
    %v1748 = vadd.f32 0.0, %v1747
    %1749 = vmatmul.bf16.gmra.mxu0 %v1607
    %v1750 = vpop.f32.mrf.mxu0
    %v1751 = vadd.f32 0.0, %v1750
    %v1752 = vpop.f32.mrf.mxu0
    %v1753 = vadd.f32 0.0, %v1752
    %1754 = vmatmul.bf16.gmra.mxu0 %v1610
    %v1755 = vpop.f32.mrf.mxu0
    %v1756 = vadd.f32 0.0, %v1755
    %v1757 = vpop.f32.mrf.mxu0
    %v1758 = vadd.f32 0.0, %v1757
    %1759 = vmatmul.bf16.gmra.mxu0 %v1613
    %v1760 = vpop.f32.mrf.mxu0
    %v1761 = vadd.f32 0.0, %v1760
    %v1762 = vpop.f32.mrf.mxu0
    %v1763 = vadd.f32 0.0, %v1762
    %1764 = vmatmul.bf16.gmra.mxu0 %v1616
    %v1765 = vpop.f32.mrf.mxu0
    %v1766 = vadd.f32 0.0, %v1765
    %v1767 = vpop.f32.mrf.mxu0
    %v1768 = vadd.f32 0.0, %v1767
    %1769 = vmatmul.bf16.gmra.mxu0 %v1619
    %v1770 = vpop.f32.mrf.mxu0
    %v1771 = vadd.f32 0.0, %v1770
    %v1772 = vpop.f32.mrf.mxu0
    %v1773 = vadd.f32 0.0, %v1772
    %1774 = vmatmul.bf16.gmra.mxu0 %v1622
    %v1775 = vpop.f32.mrf.mxu0
    %v1776 = vadd.f32 0.0, %v1775
    %v1777 = vpop.f32.mrf.mxu0
    %v1778 = vadd.f32 0.0, %v1777
    %1779 = vmatmul.bf16.gmra.mxu0 %v1625
    %v1780 = vpop.f32.mrf.mxu0
    %v1781 = vadd.f32 0.0, %v1780
    %v1782 = vpop.f32.mrf.mxu0
    %v1783 = vadd.f32 0.0, %v1782
    %1784 = vmatmul.bf16.gmra.mxu0 %v1628
    %v1785 = vpop.f32.mrf.mxu0
    %v1786 = vadd.f32 0.0, %v1785
    %v1787 = vpop.f32.mrf.mxu0
    %v1788 = vadd.f32 0.0, %v1787
    %1789 = vmatmul.bf16.gmra.mxu0 %v1631
    %v1790 = vpop.f32.mrf.mxu0
    %v1791 = vadd.f32 0.0, %v1790
    %v1792 = vpop.f32.mrf.mxu0
    %v1793 = vadd.f32 0.0, %v1792
    %1794 = vmatmul.bf16.gmra.mxu0 %v1634
    %v1795 = vpop.f32.mrf.mxu0
    %v1796 = vadd.f32 0.0, %v1795
    %v1797 = vpop.f32.mrf.mxu0
    %v1798 = vadd.f32 0.0, %v1797
    %1799 = vdwg.mxu0
    %v1800 = vadd.f32 %v1345, %v1646
    %v1801 = vadd.f32 %v1346, %v1648
    %v1802 = vadd.f32 %v1347, %v1651
    %v1803 = vadd.f32 %v1348, %v1653
    %v1804 = vadd.f32 %v1349, %v1656
    %v1805 = vadd.f32 %v1350, %v1658
    %v1806 = vadd.f32 %v1351, %v1661
    %v1807 = vadd.f32 %v1352, %v1663
    %v1808 = vadd.f32 %v1353, %v1666
    %v1809 = vadd.f32 %v1354, %v1668
    %v1810 = vadd.f32 %v1355, %v1671
    %v1811 = vadd.f32 %v1356, %v1673
    %v1812 = vadd.f32 %v1357, %v1676
    %v1813 = vadd.f32 %v1358, %v1678
    %v1814 = vadd.f32 %v1359, %v1681
    %v1815 = vadd.f32 %v1360, %v1683
    %v1816 = vadd.f32 %v1361, %v1686
    %v1817 = vadd.f32 %v1362, %v1688
    %v1818 = vadd.f32 %v1363, %v1691
    %v1819 = vadd.f32 %v1364, %v1693
    %v1820 = vadd.f32 %v1365, %v1696
    %v1821 = vadd.f32 %v1366, %v1698
    %v1822 = vadd.f32 %v1367, %v1701
    %v1823 = vadd.f32 %v1368, %v1703
    %v1824 = vadd.f32 %v1369, %v1706
    %v1825 = vadd.f32 %v1370, %v1708
    %v1826 = vadd.f32 %v1371, %v1711
    %v1827 = vadd.f32 %v1372, %v1713
    %v1828 = vadd.f32 %v1373, %v1716
    %v1829 = vadd.f32 %v1374, %v1718
    %v1830 = vadd.f32 %v1375, %v1721
    %v1831 = vadd.f32 %v1376, %v1723
    %v1832 = vadd.f32 %v1377, %v1726
    %v1833 = vadd.f32 %v1378, %v1728
    %v1834 = vadd.f32 %v1379, %v1731
    %v1835 = vadd.f32 %v1380, %v1733
    %v1836 = vadd.f32 %v1381, %v1736
    %v1837 = vadd.f32 %v1382, %v1738
    %v1838 = vadd.f32 %v1383, %v1741
    %v1839 = vadd.f32 %v1384, %v1743
    %v1840 = vadd.f32 %v1385, %v1746
    %v1841 = vadd.f32 %v1386, %v1748
    %v1842 = vadd.f32 %v1387, %v1751
    %v1843 = vadd.f32 %v1388, %v1753
    %v1844 = vadd.f32 %v1389, %v1756
    %v1845 = vadd.f32 %v1390, %v1758
    %v1846 = vadd.f32 %v1391, %v1761
    %v1847 = vadd.f32 %v1392, %v1763
    %v1848 = vadd.f32 %v1393, %v1766
    %v1849 = vadd.f32 %v1394, %v1768
    %v1850 = vadd.f32 %v1395, %v1771
    %v1851 = vadd.f32 %v1396, %v1773
    %v1852 = vadd.f32 %v1397, %v1776
    %v1853 = vadd.f32 %v1398, %v1778
    %v1854 = vadd.f32 %v1399, %v1781
    %v1855 = vadd.f32 %v1400, %v1783
    %v1856 = vadd.f32 %v1401, %v1786
    %v1857 = vadd.f32 %v1402, %v1788
    %v1858 = vadd.f32 %v1403, %v1791
    %v1859 = vadd.f32 %v1404, %v1793
    %v1860 = vadd.f32 %v1405, %v1796
    %v1861 = vadd.f32 %v1406, %v1798
    %vm1862 = vcmask 1045504
    %v1863 = vrot.slane %v205, 2
    %v1864 = vrot.slane %v206, 2
    %v1865 = vsel %vm1862, %v1863, %v1864
    %v1866 = vrot.slane %v207, 2
    %v1867 = vsel %vm1862, %v1864, %v1866
    %v1868 = vrot.slane %v208, 2
    %v1869 = vsel %vm1862, %v1866, %v1868
    %v1870 = vrot.slane %v209, 2
    %v1871 = vsel %vm1862, %v1868, %v1870
    %v1872 = vrot.slane %v210, 2
    %v1873 = vsel %vm1862, %v1870, %v1872
    %v1874 = vrot.slane %v211, 2
    %v1875 = vsel %vm1862, %v1872, %v1874
    %v1876 = vrot.slane %v212, 2
    %v1877 = vsel %vm1862, %v1874, %v1876
    %v1878 = vrot.slane %v213, 2
    %v1879 = vsel %vm1862, %v1876, %v1878
    %v1880 = vrot.slane %v214, 2
    %v1881 = vsel %vm1862, %v1878, %v1880
    %v1882 = vrot.slane %v215, 2
    %v1883 = vsel %vm1862, %v1880, %v1882
    %v1884 = vrot.slane %v216, 2
    %v1885 = vsel %vm1862, %v1882, %v1884
    %v1886 = vrot.slane %v217, 2
    %v1887 = vsel %vm1862, %v1884, %v1886
    %v1888 = vrot.slane %v218, 2
    %v1889 = vsel %vm1862, %v1886, %v1888
    %v1890 = vrot.slane %v219, 2
    %v1891 = vsel %vm1862, %v1888, %v1890
    %v1892 = vrot.slane %v220, 2
    %v1893 = vsel %vm1862, %v1890, %v1892
    %v1894 = vrot.slane %v221, 2
    %v1895 = vsel %vm1862, %v1892, %v1894
    %v1896 = vrot.slane %v222, 2
    %v1897 = vsel %vm1862, %v1894, %v1896
    %v1898 = vrot.slane %v223, 2
    %v1899 = vsel %vm1862, %v1896, %v1898
    %v1900 = vrot.slane %v224, 2
    %v1901 = vsel %vm1862, %v1898, %v1900
    %v1902 = vrot.slane %v225, 2
    %v1903 = vsel %vm1862, %v1900, %v1902
    %v1904 = vrot.slane %v226, 2
    %v1905 = vsel %vm1862, %v1902, %v1904
    %v1906 = vrot.slane %v227, 2
    %v1907 = vsel %vm1862, %v1904, %v1906
    %v1908 = vrot.slane %v228, 2
    %v1909 = vsel %vm1862, %v1906, %v1908
    %v1910 = vrot.slane %v229, 2
    %v1911 = vsel %vm1862, %v1908, %v1910
    %v1912 = vrot.slane %v230, 2
    %v1913 = vsel %vm1862, %v1910, %v1912
    %v1914 = vrot.slane %v231, 2
    %v1915 = vsel %vm1862, %v1912, %v1914
    %v1916 = vrot.slane %v232, 2
    %v1917 = vsel %vm1862, %v1914, %v1916
    %v1918 = vrot.slane %v233, 2
    %v1919 = vsel %vm1862, %v1916, %v1918
    %v1920 = vrot.slane %v234, 2
    %v1921 = vsel %vm1862, %v1918, %v1920
    %v1922 = vrot.slane %v235, 2
    %v1923 = vsel %vm1862, %v1920, %v1922
    %v1924 = vrot.slane %v236, 2
    %v1925 = vsel %vm1862, %v1922, %v1924
    %v1928 = vunpack.c.l.b16 %v203
    %v1929 = vunpack.c.l.b16 %v204
    %v1930 = vpack.c.b16 %v1929, %v1928
    %v1933 = vsel %vm496, %v1865, 0
    %v1936 = vsel %vm496, %v1867, 0
    %v1939 = vsel %vm496, %v1869, 0
    %v1942 = vsel %vm496, %v1871, 0
    %v1945 = vsel %vm496, %v1873, 0
    %v1948 = vsel %vm496, %v1875, 0
    %v1951 = vsel %vm496, %v1877, 0
    %v1954 = vsel %vm496, %v1879, 0
    %v1957 = vsel %vm496, %v1881, 0
    %v1960 = vsel %vm496, %v1883, 0
    %v1963 = vsel %vm496, %v1885, 0
    %v1966 = vsel %vm496, %v1887, 0
    %v1969 = vsel %vm496, %v1889, 0
    %v1972 = vsel %vm496, %v1891, 0
    %v1975 = vsel %vm496, %v1893, 0
    %v1978 = vsel %vm496, %v1895, 0
    %v1981 = vsel %vm496, %v1897, 0
    %v1984 = vsel %vm496, %v1899, 0
    %v1987 = vsel %vm496, %v1901, 0
    %v1990 = vsel %vm496, %v1903, 0
    %v1993 = vsel %vm496, %v1905, 0
    %v1996 = vsel %vm496, %v1907, 0
    %v1999 = vsel %vm496, %v1909, 0
    %v2002 = vsel %vm496, %v1911, 0
    %v2005 = vsel %vm496, %v1913, 0
    %v2008 = vsel %vm496, %v1915, 0
    %v2011 = vsel %vm496, %v1917, 0
    %v2014 = vsel %vm496, %v1919, 0
    %v2017 = vsel %vm496, %v1921, 0
    %v2020 = vsel %vm496, %v1923, 0
    %v2023 = vsel %vm496, %v1925, 0
    %2025 = vmatpush.bf16.msra.mxu0 0
    %2026 = vmatpush.bf16.msra.mxu0 0
    %2027 = vmatpush.bf16.msra.mxu0 0
    %2028 = vmatpush.bf16.msra.mxu0 0
    %2029 = vmatpush.bf16.msra.mxu0 0
    %2030 = vmatpush.bf16.msra.mxu0 0
    %2031 = vmatpush.bf16.msra.mxu0 0
    %2032 = vmatpush.bf16.msra.mxu0 %v1930
    %2033 = vmatmul.bf16.gmra.mxu0 %v1933
    %v2034 = vpop.f32.mrf.mxu0
    %v2035 = vadd.f32 0.0, %v2034
    %v2036 = vpop.f32.mrf.mxu0
    %v2037 = vadd.f32 0.0, %v2036
    %2038 = vmatmul.bf16.gmra.mxu0 %v1936
    %v2039 = vpop.f32.mrf.mxu0
    %v2040 = vadd.f32 0.0, %v2039
    %v2041 = vpop.f32.mrf.mxu0
    %v2042 = vadd.f32 0.0, %v2041
    %2043 = vmatmul.bf16.gmra.mxu0 %v1939
    %v2044 = vpop.f32.mrf.mxu0
    %v2045 = vadd.f32 0.0, %v2044
    %v2046 = vpop.f32.mrf.mxu0
    %v2047 = vadd.f32 0.0, %v2046
    %2048 = vmatmul.bf16.gmra.mxu0 %v1942
    %v2049 = vpop.f32.mrf.mxu0
    %v2050 = vadd.f32 0.0, %v2049
    %v2051 = vpop.f32.mrf.mxu0
    %v2052 = vadd.f32 0.0, %v2051
    %2053 = vmatmul.bf16.gmra.mxu0 %v1945
    %v2054 = vpop.f32.mrf.mxu0
    %v2055 = vadd.f32 0.0, %v2054
    %v2056 = vpop.f32.mrf.mxu0
    %v2057 = vadd.f32 0.0, %v2056
    %2058 = vmatmul.bf16.gmra.mxu0 %v1948
    %v2059 = vpop.f32.mrf.mxu0
    %v2060 = vadd.f32 0.0, %v2059
    %v2061 = vpop.f32.mrf.mxu0
    %v2062 = vadd.f32 0.0, %v2061
    %2063 = vmatmul.bf16.gmra.mxu0 %v1951
    %v2064 = vpop.f32.mrf.mxu0
    %v2065 = vadd.f32 0.0, %v2064
    %v2066 = vpop.f32.mrf.mxu0
    %v2067 = vadd.f32 0.0, %v2066
    %2068 = vmatmul.bf16.gmra.mxu0 %v1954
    %v2069 = vpop.f32.mrf.mxu0
    %v2070 = vadd.f32 0.0, %v2069
    %v2071 = vpop.f32.mrf.mxu0
    %v2072 = vadd.f32 0.0, %v2071
    %2073 = vmatmul.bf16.gmra.mxu0 %v1957
    %v2074 = vpop.f32.mrf.mxu0
    %v2075 = vadd.f32 0.0, %v2074
    %v2076 = vpop.f32.mrf.mxu0
    %v2077 = vadd.f32 0.0, %v2076
    %2078 = vmatmul.bf16.gmra.mxu0 %v1960
    %v2079 = vpop.f32.mrf.mxu0
    %v2080 = vadd.f32 0.0, %v2079
    %v2081 = vpop.f32.mrf.mxu0
    %v2082 = vadd.f32 0.0, %v2081
    %2083 = vmatmul.bf16.gmra.mxu0 %v1963
    %v2084 = vpop.f32.mrf.mxu0
    %v2085 = vadd.f32 0.0, %v2084
    %v2086 = vpop.f32.mrf.mxu0
    %v2087 = vadd.f32 0.0, %v2086
    %2088 = vmatmul.bf16.gmra.mxu0 %v1966
    %v2089 = vpop.f32.mrf.mxu0
    %v2090 = vadd.f32 0.0, %v2089
    %v2091 = vpop.f32.mrf.mxu0
    %v2092 = vadd.f32 0.0, %v2091
    %2093 = vmatmul.bf16.gmra.mxu0 %v1969
    %v2094 = vpop.f32.mrf.mxu0
    %v2095 = vadd.f32 0.0, %v2094
    %v2096 = vpop.f32.mrf.mxu0
    %v2097 = vadd.f32 0.0, %v2096
    %2098 = vmatmul.bf16.gmra.mxu0 %v1972
    %v2099 = vpop.f32.mrf.mxu0
    %v2100 = vadd.f32 0.0, %v2099
    %v2101 = vpop.f32.mrf.mxu0
    %v2102 = vadd.f32 0.0, %v2101
    %2103 = vmatmul.bf16.gmra.mxu0 %v1975
    %v2104 = vpop.f32.mrf.mxu0
    %v2105 = vadd.f32 0.0, %v2104
    %v2106 = vpop.f32.mrf.mxu0
    %v2107 = vadd.f32 0.0, %v2106
    %2108 = vmatmul.bf16.gmra.mxu0 %v1978
    %v2109 = vpop.f32.mrf.mxu0
    %v2110 = vadd.f32 0.0, %v2109
    %v2111 = vpop.f32.mrf.mxu0
    %v2112 = vadd.f32 0.0, %v2111
    %2113 = vmatmul.bf16.gmra.mxu0 %v1981
    %v2114 = vpop.f32.mrf.mxu0
    %v2115 = vadd.f32 0.0, %v2114
    %v2116 = vpop.f32.mrf.mxu0
    %v2117 = vadd.f32 0.0, %v2116
    %2118 = vmatmul.bf16.gmra.mxu0 %v1984
    %v2119 = vpop.f32.mrf.mxu0
    %v2120 = vadd.f32 0.0, %v2119
    %v2121 = vpop.f32.mrf.mxu0
    %v2122 = vadd.f32 0.0, %v2121
    %2123 = vmatmul.bf16.gmra.mxu0 %v1987
    %v2124 = vpop.f32.mrf.mxu0
    %v2125 = vadd.f32 0.0, %v2124
    %v2126 = vpop.f32.mrf.mxu0
    %v2127 = vadd.f32 0.0, %v2126
    %2128 = vmatmul.bf16.gmra.mxu0 %v1990
    %v2129 = vpop.f32.mrf.mxu0
    %v2130 = vadd.f32 0.0, %v2129
    %v2131 = vpop.f32.mrf.mxu0
    %v2132 = vadd.f32 0.0, %v2131
    %2133 = vmatmul.bf16.gmra.mxu0 %v1993
    %v2134 = vpop.f32.mrf.mxu0
    %v2135 = vadd.f32 0.0, %v2134
    %v2136 = vpop.f32.mrf.mxu0
    %v2137 = vadd.f32 0.0, %v2136
    %2138 = vmatmul.bf16.gmra.mxu0 %v1996
    %v2139 = vpop.f32.mrf.mxu0
    %v2140 = vadd.f32 0.0, %v2139
    %v2141 = vpop.f32.mrf.mxu0
    %v2142 = vadd.f32 0.0, %v2141
    %2143 = vmatmul.bf16.gmra.mxu0 %v1999
    %v2144 = vpop.f32.mrf.mxu0
    %v2145 = vadd.f32 0.0, %v2144
    %v2146 = vpop.f32.mrf.mxu0
    %v2147 = vadd.f32 0.0, %v2146
    %2148 = vmatmul.bf16.gmra.mxu0 %v2002
    %v2149 = vpop.f32.mrf.mxu0
    %v2150 = vadd.f32 0.0, %v2149
    %v2151 = vpop.f32.mrf.mxu0
    %v2152 = vadd.f32 0.0, %v2151
    %2153 = vmatmul.bf16.gmra.mxu0 %v2005
    %v2154 = vpop.f32.mrf.mxu0
    %v2155 = vadd.f32 0.0, %v2154
    %v2156 = vpop.f32.mrf.mxu0
    %v2157 = vadd.f32 0.0, %v2156
    %2158 = vmatmul.bf16.gmra.mxu0 %v2008
    %v2159 = vpop.f32.mrf.mxu0
    %v2160 = vadd.f32 0.0, %v2159
    %v2161 = vpop.f32.mrf.mxu0
    %v2162 = vadd.f32 0.0, %v2161
    %2163 = vmatmul.bf16.gmra.mxu0 %v2011
    %v2164 = vpop.f32.mrf.mxu0
    %v2165 = vadd.f32 0.0, %v2164
    %v2166 = vpop.f32.mrf.mxu0
    %v2167 = vadd.f32 0.0, %v2166
    %2168 = vmatmul.bf16.gmra.mxu0 %v2014
    %v2169 = vpop.f32.mrf.mxu0
    %v2170 = vadd.f32 0.0, %v2169
    %v2171 = vpop.f32.mrf.mxu0
    %v2172 = vadd.f32 0.0, %v2171
    %2173 = vmatmul.bf16.gmra.mxu0 %v2017
    %v2174 = vpop.f32.mrf.mxu0
    %v2175 = vadd.f32 0.0, %v2174
    %v2176 = vpop.f32.mrf.mxu0
    %v2177 = vadd.f32 0.0, %v2176
    %2178 = vmatmul.bf16.gmra.mxu0 %v2020
    %v2179 = vpop.f32.mrf.mxu0
    %v2180 = vadd.f32 0.0, %v2179
    %v2181 = vpop.f32.mrf.mxu0
    %v2182 = vadd.f32 0.0, %v2181
    %2183 = vmatmul.bf16.gmra.mxu0 %v2023
    %v2184 = vpop.f32.mrf.mxu0
    %v2185 = vadd.f32 0.0, %v2184
    %v2186 = vpop.f32.mrf.mxu0
    %v2187 = vadd.f32 0.0, %v2186
    %2188 = vdwg.mxu0
    %v2189 = vadd.f32 %v1800, %v2035
    %v2190 = vadd.f32 %v1801, %v2037
    %v2191 = vadd.f32 %v1802, %v2040
    %v2192 = vadd.f32 %v1803, %v2042
    %v2193 = vadd.f32 %v1804, %v2045
    %v2194 = vadd.f32 %v1805, %v2047
    %v2195 = vadd.f32 %v1806, %v2050
    %v2196 = vadd.f32 %v1807, %v2052
    %v2197 = vadd.f32 %v1808, %v2055
    %v2198 = vadd.f32 %v1809, %v2057
    %v2199 = vadd.f32 %v1810, %v2060
    %v2200 = vadd.f32 %v1811, %v2062
    %v2201 = vadd.f32 %v1812, %v2065
    %v2202 = vadd.f32 %v1813, %v2067
    %v2203 = vadd.f32 %v1814, %v2070
    %v2204 = vadd.f32 %v1815, %v2072
    %v2205 = vadd.f32 %v1816, %v2075
    %v2206 = vadd.f32 %v1817, %v2077
    %v2207 = vadd.f32 %v1818, %v2080
    %v2208 = vadd.f32 %v1819, %v2082
    %v2209 = vadd.f32 %v1820, %v2085
    %v2210 = vadd.f32 %v1821, %v2087
    %v2211 = vadd.f32 %v1822, %v2090
    %v2212 = vadd.f32 %v1823, %v2092
    %v2213 = vadd.f32 %v1824, %v2095
    %v2214 = vadd.f32 %v1825, %v2097
    %v2215 = vadd.f32 %v1826, %v2100
    %v2216 = vadd.f32 %v1827, %v2102
    %v2217 = vadd.f32 %v1828, %v2105
    %v2218 = vadd.f32 %v1829, %v2107
    %v2219 = vadd.f32 %v1830, %v2110
    %v2220 = vadd.f32 %v1831, %v2112
    %v2221 = vadd.f32 %v1832, %v2115
    %v2222 = vadd.f32 %v1833, %v2117
    %v2223 = vadd.f32 %v1834, %v2120
    %v2224 = vadd.f32 %v1835, %v2122
    %v2225 = vadd.f32 %v1836, %v2125
    %v2226 = vadd.f32 %v1837, %v2127
    %v2227 = vadd.f32 %v1838, %v2130
    %v2228 = vadd.f32 %v1839, %v2132
    %v2229 = vadd.f32 %v1840, %v2135
    %v2230 = vadd.f32 %v1841, %v2137
    %v2231 = vadd.f32 %v1842, %v2140
    %v2232 = vadd.f32 %v1843, %v2142
    %v2233 = vadd.f32 %v1844, %v2145
    %v2234 = vadd.f32 %v1845, %v2147
    %v2235 = vadd.f32 %v1846, %v2150
    %v2236 = vadd.f32 %v1847, %v2152
    %v2237 = vadd.f32 %v1848, %v2155
    %v2238 = vadd.f32 %v1849, %v2157
    %v2239 = vadd.f32 %v1850, %v2160
    %v2240 = vadd.f32 %v1851, %v2162
    %v2241 = vadd.f32 %v1852, %v2165
    %v2242 = vadd.f32 %v1853, %v2167
    %v2243 = vadd.f32 %v1854, %v2170
    %v2244 = vadd.f32 %v1855, %v2172
    %v2245 = vadd.f32 %v1856, %v2175
    %v2246 = vadd.f32 %v1857, %v2177
    %v2247 = vadd.f32 %v1858, %v2180
    %v2248 = vadd.f32 %v1859, %v2182
    %v2249 = vadd.f32 %v1860, %v2185
    %v2250 = vadd.f32 %v1861, %v2187
    %v2251 = vpack.c.bf16 %v129, %v128
    %v2252 = vpack.c.bf16 %v131, %v130
    %v2253 = vpack.c.bf16 %v133, %v132
    %v2254 = vpack.c.bf16 %v135, %v134
    %v2255 = vpack.c.bf16 %v137, %v136
    %v2256 = vpack.c.bf16 %v139, %v138
    %v2257 = vpack.c.bf16 %v141, %v140
    %v2258 = vpack.c.bf16 %v143, %v142
    %v2259 = vpack.c.bf16 %v145, %v144
    %v2260 = vpack.c.bf16 %v147, %v146
    %v2261 = vpack.c.bf16 %v149, %v148
    %v2262 = vpack.c.bf16 %v151, %v150
    %v2263 = vpack.c.bf16 %v153, %v152
    %v2264 = vpack.c.bf16 %v155, %v154
    %v2265 = vpack.c.bf16 %v157, %v156
    %v2266 = vpack.c.bf16 %v159, %v158
    %v2267 = vpack.c.bf16 %v161, %v160
    %v2268 = vpack.c.bf16 %v163, %v162
    %v2269 = vpack.c.bf16 %v165, %v164
    %v2270 = vpack.c.bf16 %v167, %v166
    %v2271 = vpack.c.bf16 %v169, %v168
    %v2272 = vpack.c.bf16 %v171, %v170
    %v2273 = vpack.c.bf16 %v173, %v172
    %v2274 = vpack.c.bf16 %v175, %v174
    %v2275 = vpack.c.bf16 %v177, %v176
    %v2276 = vpack.c.bf16 %v179, %v178
    %v2277 = vpack.c.bf16 %v181, %v180
    %v2278 = vpack.c.bf16 %v183, %v182
    %v2279 = vpack.c.bf16 %v185, %v184
    %v2280 = vpack.c.bf16 %v187, %v186
    %v2281 = vpack.c.bf16 %v189, %v188
    %v2282 = vpack.c.bf16 %v190, %v190
    %v2284 = vshrl.u32 %v2251, 16
    %v2286 = vshll.u32 %v2251, 16
    %v2288 = vrot.slane %v2286, 1
    %v2289 = vor.u32 %v2284, %v2288
    %v2291 = vshll.u32 %v2252, 16
    %v2293 = vrot.slane %v2291, 1
    %v2294 = vsel %vm237, %v2289, %v2293
    %v2295 = vshrl.u32 %v2252, 16
    %v2297 = vor.u32 %v2295, %v2293
    %v2299 = vshll.u32 %v2253, 16
    %v2301 = vrot.slane %v2299, 1
    %v2302 = vsel %vm237, %v2297, %v2301
    %v2303 = vshrl.u32 %v2253, 16
    %v2305 = vor.u32 %v2303, %v2301
    %v2307 = vshll.u32 %v2254, 16
    %v2309 = vrot.slane %v2307, 1
    %v2310 = vsel %vm237, %v2305, %v2309
    %v2311 = vshrl.u32 %v2254, 16
    %v2313 = vor.u32 %v2311, %v2309
    %v2315 = vshll.u32 %v2255, 16
    %v2317 = vrot.slane %v2315, 1
    %v2318 = vsel %vm237, %v2313, %v2317
    %v2319 = vshrl.u32 %v2255, 16
    %v2321 = vor.u32 %v2319, %v2317
    %v2323 = vshll.u32 %v2256, 16
    %v2325 = vrot.slane %v2323, 1
    %v2326 = vsel %vm237, %v2321, %v2325
    %v2327 = vshrl.u32 %v2256, 16
    %v2329 = vor.u32 %v2327, %v2325
    %v2331 = vshll.u32 %v2257, 16
    %v2333 = vrot.slane %v2331, 1
    %v2334 = vsel %vm237, %v2329, %v2333
    %v2335 = vshrl.u32 %v2257, 16
    %v2337 = vor.u32 %v2335, %v2333
    %v2339 = vshll.u32 %v2258, 16
    %v2341 = vrot.slane %v2339, 1
    %v2342 = vsel %vm237, %v2337, %v2341
    %v2343 = vshrl.u32 %v2258, 16
    %v2345 = vor.u32 %v2343, %v2341
    %v2347 = vshll.u32 %v2259, 16
    %v2349 = vrot.slane %v2347, 1
    %v2350 = vsel %vm237, %v2345, %v2349
    %v2351 = vshrl.u32 %v2259, 16
    %v2353 = vor.u32 %v2351, %v2349
    %v2355 = vshll.u32 %v2260, 16
    %v2357 = vrot.slane %v2355, 1
    %v2358 = vsel %vm237, %v2353, %v2357
    %v2359 = vshrl.u32 %v2260, 16
    %v2361 = vor.u32 %v2359, %v2357
    %v2363 = vshll.u32 %v2261, 16
    %v2365 = vrot.slane %v2363, 1
    %v2366 = vsel %vm237, %v2361, %v2365
    %v2367 = vshrl.u32 %v2261, 16
    %v2369 = vor.u32 %v2367, %v2365
    %v2371 = vshll.u32 %v2262, 16
    %v2373 = vrot.slane %v2371, 1
    %v2374 = vsel %vm237, %v2369, %v2373
    %v2375 = vshrl.u32 %v2262, 16
    %v2377 = vor.u32 %v2375, %v2373
    %v2379 = vshll.u32 %v2263, 16
    %v2381 = vrot.slane %v2379, 1
    %v2382 = vsel %vm237, %v2377, %v2381
    %v2383 = vshrl.u32 %v2263, 16
    %v2385 = vor.u32 %v2383, %v2381
    %v2387 = vshll.u32 %v2264, 16
    %v2389 = vrot.slane %v2387, 1
    %v2390 = vsel %vm237, %v2385, %v2389
    %v2391 = vshrl.u32 %v2264, 16
    %v2393 = vor.u32 %v2391, %v2389
    %v2395 = vshll.u32 %v2265, 16
    %v2397 = vrot.slane %v2395, 1
    %v2398 = vsel %vm237, %v2393, %v2397
    %v2399 = vshrl.u32 %v2265, 16
    %v2401 = vor.u32 %v2399, %v2397
    %v2403 = vshll.u32 %v2266, 16
    %v2405 = vrot.slane %v2403, 1
    %v2406 = vsel %vm237, %v2401, %v2405
    %v2407 = vshrl.u32 %v2266, 16
    %v2409 = vor.u32 %v2407, %v2405
    %v2411 = vshll.u32 %v2267, 16
    %v2413 = vrot.slane %v2411, 1
    %v2414 = vsel %vm237, %v2409, %v2413
    %v2415 = vshrl.u32 %v2267, 16
    %v2417 = vor.u32 %v2415, %v2413
    %v2419 = vshll.u32 %v2268, 16
    %v2421 = vrot.slane %v2419, 1
    %v2422 = vsel %vm237, %v2417, %v2421
    %v2423 = vshrl.u32 %v2268, 16
    %v2425 = vor.u32 %v2423, %v2421
    %v2427 = vshll.u32 %v2269, 16
    %v2429 = vrot.slane %v2427, 1
    %v2430 = vsel %vm237, %v2425, %v2429
    %v2431 = vshrl.u32 %v2269, 16
    %v2433 = vor.u32 %v2431, %v2429
    %v2435 = vshll.u32 %v2270, 16
    %v2437 = vrot.slane %v2435, 1
    %v2438 = vsel %vm237, %v2433, %v2437
    %v2439 = vshrl.u32 %v2270, 16
    %v2441 = vor.u32 %v2439, %v2437
    %v2443 = vshll.u32 %v2271, 16
    %v2445 = vrot.slane %v2443, 1
    %v2446 = vsel %vm237, %v2441, %v2445
    %v2447 = vshrl.u32 %v2271, 16
    %v2449 = vor.u32 %v2447, %v2445
    %v2451 = vshll.u32 %v2272, 16
    %v2453 = vrot.slane %v2451, 1
    %v2454 = vsel %vm237, %v2449, %v2453
    %v2455 = vshrl.u32 %v2272, 16
    %v2457 = vor.u32 %v2455, %v2453
    %v2459 = vshll.u32 %v2273, 16
    %v2461 = vrot.slane %v2459, 1
    %v2462 = vsel %vm237, %v2457, %v2461
    %v2463 = vshrl.u32 %v2273, 16
    %v2465 = vor.u32 %v2463, %v2461
    %v2467 = vshll.u32 %v2274, 16
    %v2469 = vrot.slane %v2467, 1
    %v2470 = vsel %vm237, %v2465, %v2469
    %v2471 = vshrl.u32 %v2274, 16
    %v2473 = vor.u32 %v2471, %v2469
    %v2475 = vshll.u32 %v2275, 16
    %v2477 = vrot.slane %v2475, 1
    %v2478 = vsel %vm237, %v2473, %v2477
    %v2479 = vshrl.u32 %v2275, 16
    %v2481 = vor.u32 %v2479, %v2477
    %v2483 = vshll.u32 %v2276, 16
    %v2485 = vrot.slane %v2483, 1
    %v2486 = vsel %vm237, %v2481, %v2485
    %v2487 = vshrl.u32 %v2276, 16
    %v2489 = vor.u32 %v2487, %v2485
    %v2491 = vshll.u32 %v2277, 16
    %v2493 = vrot.slane %v2491, 1
    %v2494 = vsel %vm237, %v2489, %v2493
    %v2495 = vshrl.u32 %v2277, 16
    %v2497 = vor.u32 %v2495, %v2493
    %v2499 = vshll.u32 %v2278, 16
    %v2501 = vrot.slane %v2499, 1
    %v2502 = vsel %vm237, %v2497, %v2501
    %v2503 = vshrl.u32 %v2278, 16
    %v2505 = vor.u32 %v2503, %v2501
    %v2507 = vshll.u32 %v2279, 16
    %v2509 = vrot.slane %v2507, 1
    %v2510 = vsel %vm237, %v2505, %v2509
    %v2511 = vshrl.u32 %v2279, 16
    %v2513 = vor.u32 %v2511, %v2509
    %v2515 = vshll.u32 %v2280, 16
    %v2517 = vrot.slane %v2515, 1
    %v2518 = vsel %vm237, %v2513, %v2517
    %v2519 = vshrl.u32 %v2280, 16
    %v2521 = vor.u32 %v2519, %v2517
    %v2523 = vshll.u32 %v2281, 16
    %v2525 = vrot.slane %v2523, 1
    %v2526 = vsel %vm237, %v2521, %v2525
    %v2527 = vshrl.u32 %v2281, 16
    %v2529 = vor.u32 %v2527, %v2525
    %v2531 = vshll.u32 %v2282, 16
    %v2533 = vrot.slane %v2531, 1
    %v2534 = vsel %vm237, %v2529, %v2533
    %v2536 = vsel %vm496, %v2294, 0
    %v2539 = vsel %vm496, %v2302, 0
    %v2542 = vsel %vm496, %v2310, 0
    %v2545 = vsel %vm496, %v2318, 0
    %v2548 = vsel %vm496, %v2326, 0
    %v2551 = vsel %vm496, %v2334, 0
    %v2554 = vsel %vm496, %v2342, 0
    %v2557 = vsel %vm496, %v2350, 0
    %v2560 = vsel %vm496, %v2358, 0
    %v2563 = vsel %vm496, %v2366, 0
    %v2566 = vsel %vm496, %v2374, 0
    %v2569 = vsel %vm496, %v2382, 0
    %v2572 = vsel %vm496, %v2390, 0
    %v2575 = vsel %vm496, %v2398, 0
    %v2578 = vsel %vm496, %v2406, 0
    %v2581 = vsel %vm496, %v2414, 0
    %v2584 = vsel %vm496, %v2422, 0
    %v2587 = vsel %vm496, %v2430, 0
    %v2590 = vsel %vm496, %v2438, 0
    %v2593 = vsel %vm496, %v2446, 0
    %v2596 = vsel %vm496, %v2454, 0
    %v2599 = vsel %vm496, %v2462, 0
    %v2602 = vsel %vm496, %v2470, 0
    %v2605 = vsel %vm496, %v2478, 0
    %v2608 = vsel %vm496, %v2486, 0
    %v2611 = vsel %vm496, %v2494, 0
    %v2614 = vsel %vm496, %v2502, 0
    %v2617 = vsel %vm496, %v2510, 0
    %v2620 = vsel %vm496, %v2518, 0
    %v2623 = vsel %vm496, %v2526, 0
    %v2626 = vsel %vm496, %v2534, 0
    %2628 = vmatpush.bf16.msra.mxu0 0
    %2629 = vmatpush.bf16.msra.mxu0 0
    %2630 = vmatpush.bf16.msra.mxu0 0
    %2631 = vmatpush.bf16.msra.mxu0 0
    %2632 = vmatpush.bf16.msra.mxu0 0
    %2633 = vmatpush.bf16.msra.mxu0 0
    %2634 = vmatpush.bf16.msra.mxu0 0
    %2635 = vmatpush.bf16.msra.mxu0 %v494
    %2636 = vmatmul.bf16.gmra.mxu0 %v2536
    %v2637 = vpop.f32.mrf.mxu0
    %v2638 = vadd.f32 0.0, %v2637
    %v2639 = vpop.f32.mrf.mxu0
    %v2640 = vadd.f32 0.0, %v2639
    %2641 = vmatmul.bf16.gmra.mxu0 %v2539
    %v2642 = vpop.f32.mrf.mxu0
    %v2643 = vadd.f32 0.0, %v2642
    %v2644 = vpop.f32.mrf.mxu0
    %v2645 = vadd.f32 0.0, %v2644
    %2646 = vmatmul.bf16.gmra.mxu0 %v2542
    %v2647 = vpop.f32.mrf.mxu0
    %v2648 = vadd.f32 0.0, %v2647
    %v2649 = vpop.f32.mrf.mxu0
    %v2650 = vadd.f32 0.0, %v2649
    %2651 = vmatmul.bf16.gmra.mxu0 %v2545
    %v2652 = vpop.f32.mrf.mxu0
    %v2653 = vadd.f32 0.0, %v2652
    %v2654 = vpop.f32.mrf.mxu0
    %v2655 = vadd.f32 0.0, %v2654
    %2656 = vmatmul.bf16.gmra.mxu0 %v2548
    %v2657 = vpop.f32.mrf.mxu0
    %v2658 = vadd.f32 0.0, %v2657
    %v2659 = vpop.f32.mrf.mxu0
    %v2660 = vadd.f32 0.0, %v2659
    %2661 = vmatmul.bf16.gmra.mxu0 %v2551
    %v2662 = vpop.f32.mrf.mxu0
    %v2663 = vadd.f32 0.0, %v2662
    %v2664 = vpop.f32.mrf.mxu0
    %v2665 = vadd.f32 0.0, %v2664
    %2666 = vmatmul.bf16.gmra.mxu0 %v2554
    %v2667 = vpop.f32.mrf.mxu0
    %v2668 = vadd.f32 0.0, %v2667
    %v2669 = vpop.f32.mrf.mxu0
    %v2670 = vadd.f32 0.0, %v2669
    %2671 = vmatmul.bf16.gmra.mxu0 %v2557
    %v2672 = vpop.f32.mrf.mxu0
    %v2673 = vadd.f32 0.0, %v2672
    %v2674 = vpop.f32.mrf.mxu0
    %v2675 = vadd.f32 0.0, %v2674
    %2676 = vmatmul.bf16.gmra.mxu0 %v2560
    %v2677 = vpop.f32.mrf.mxu0
    %v2678 = vadd.f32 0.0, %v2677
    %v2679 = vpop.f32.mrf.mxu0
    %v2680 = vadd.f32 0.0, %v2679
    %2681 = vmatmul.bf16.gmra.mxu0 %v2563
    %v2682 = vpop.f32.mrf.mxu0
    %v2683 = vadd.f32 0.0, %v2682
    %v2684 = vpop.f32.mrf.mxu0
    %v2685 = vadd.f32 0.0, %v2684
    %2686 = vmatmul.bf16.gmra.mxu0 %v2566
    %v2687 = vpop.f32.mrf.mxu0
    %v2688 = vadd.f32 0.0, %v2687
    %v2689 = vpop.f32.mrf.mxu0
    %v2690 = vadd.f32 0.0, %v2689
    %2691 = vmatmul.bf16.gmra.mxu0 %v2569
    %v2692 = vpop.f32.mrf.mxu0
    %v2693 = vadd.f32 0.0, %v2692
    %v2694 = vpop.f32.mrf.mxu0
    %v2695 = vadd.f32 0.0, %v2694
    %2696 = vmatmul.bf16.gmra.mxu0 %v2572
    %v2697 = vpop.f32.mrf.mxu0
    %v2698 = vadd.f32 0.0, %v2697
    %v2699 = vpop.f32.mrf.mxu0
    %v2700 = vadd.f32 0.0, %v2699
    %2701 = vmatmul.bf16.gmra.mxu0 %v2575
    %v2702 = vpop.f32.mrf.mxu0
    %v2703 = vadd.f32 0.0, %v2702
    %v2704 = vpop.f32.mrf.mxu0
    %v2705 = vadd.f32 0.0, %v2704
    %2706 = vmatmul.bf16.gmra.mxu0 %v2578
    %v2707 = vpop.f32.mrf.mxu0
    %v2708 = vadd.f32 0.0, %v2707
    %v2709 = vpop.f32.mrf.mxu0
    %v2710 = vadd.f32 0.0, %v2709
    %2711 = vmatmul.bf16.gmra.mxu0 %v2581
    %v2712 = vpop.f32.mrf.mxu0
    %v2713 = vadd.f32 0.0, %v2712
    %v2714 = vpop.f32.mrf.mxu0
    %v2715 = vadd.f32 0.0, %v2714
    %2716 = vmatmul.bf16.gmra.mxu0 %v2584
    %v2717 = vpop.f32.mrf.mxu0
    %v2718 = vadd.f32 0.0, %v2717
    %v2719 = vpop.f32.mrf.mxu0
    %v2720 = vadd.f32 0.0, %v2719
    %2721 = vmatmul.bf16.gmra.mxu0 %v2587
    %v2722 = vpop.f32.mrf.mxu0
    %v2723 = vadd.f32 0.0, %v2722
    %v2724 = vpop.f32.mrf.mxu0
    %v2725 = vadd.f32 0.0, %v2724
    %2726 = vmatmul.bf16.gmra.mxu0 %v2590
    %v2727 = vpop.f32.mrf.mxu0
    %v2728 = vadd.f32 0.0, %v2727
    %v2729 = vpop.f32.mrf.mxu0
    %v2730 = vadd.f32 0.0, %v2729
    %2731 = vmatmul.bf16.gmra.mxu0 %v2593
    %v2732 = vpop.f32.mrf.mxu0
    %v2733 = vadd.f32 0.0, %v2732
    %v2734 = vpop.f32.mrf.mxu0
    %v2735 = vadd.f32 0.0, %v2734
    %2736 = vmatmul.bf16.gmra.mxu0 %v2596
    %v2737 = vpop.f32.mrf.mxu0
    %v2738 = vadd.f32 0.0, %v2737
    %v2739 = vpop.f32.mrf.mxu0
    %v2740 = vadd.f32 0.0, %v2739
    %2741 = vmatmul.bf16.gmra.mxu0 %v2599
    %v2742 = vpop.f32.mrf.mxu0
    %v2743 = vadd.f32 0.0, %v2742
    %v2744 = vpop.f32.mrf.mxu0
    %v2745 = vadd.f32 0.0, %v2744
    %2746 = vmatmul.bf16.gmra.mxu0 %v2602
    %v2747 = vpop.f32.mrf.mxu0
    %v2748 = vadd.f32 0.0, %v2747
    %v2749 = vpop.f32.mrf.mxu0
    %v2750 = vadd.f32 0.0, %v2749
    %2751 = vmatmul.bf16.gmra.mxu0 %v2605
    %v2752 = vpop.f32.mrf.mxu0
    %v2753 = vadd.f32 0.0, %v2752
    %v2754 = vpop.f32.mrf.mxu0
    %v2755 = vadd.f32 0.0, %v2754
    %2756 = vmatmul.bf16.gmra.mxu0 %v2608
    %v2757 = vpop.f32.mrf.mxu0
    %v2758 = vadd.f32 0.0, %v2757
    %v2759 = vpop.f32.mrf.mxu0
    %v2760 = vadd.f32 0.0, %v2759
    %2761 = vmatmul.bf16.gmra.mxu0 %v2611
    %v2762 = vpop.f32.mrf.mxu0
    %v2763 = vadd.f32 0.0, %v2762
    %v2764 = vpop.f32.mrf.mxu0
    %v2765 = vadd.f32 0.0, %v2764
    %2766 = vmatmul.bf16.gmra.mxu0 %v2614
    %v2767 = vpop.f32.mrf.mxu0
    %v2768 = vadd.f32 0.0, %v2767
    %v2769 = vpop.f32.mrf.mxu0
    %v2770 = vadd.f32 0.0, %v2769
    %2771 = vmatmul.bf16.gmra.mxu0 %v2617
    %v2772 = vpop.f32.mrf.mxu0
    %v2773 = vadd.f32 0.0, %v2772
    %v2774 = vpop.f32.mrf.mxu0
    %v2775 = vadd.f32 0.0, %v2774
    %2776 = vmatmul.bf16.gmra.mxu0 %v2620
    %v2777 = vpop.f32.mrf.mxu0
    %v2778 = vadd.f32 0.0, %v2777
    %v2779 = vpop.f32.mrf.mxu0
    %v2780 = vadd.f32 0.0, %v2779
    %2781 = vmatmul.bf16.gmra.mxu0 %v2623
    %v2782 = vpop.f32.mrf.mxu0
    %v2783 = vadd.f32 0.0, %v2782
    %v2784 = vpop.f32.mrf.mxu0
    %v2785 = vadd.f32 0.0, %v2784
    %2786 = vmatmul.bf16.gmra.mxu0 %v2626
    %v2787 = vpop.f32.mrf.mxu0
    %v2788 = vadd.f32 0.0, %v2787
    %v2789 = vpop.f32.mrf.mxu0
    %v2790 = vadd.f32 0.0, %v2789
    %2791 = vdwg.mxu0
    %v2792 = vsel %vm496, %v2251, 0
    %v2794 = vsel %vm496, %v2252, 0
    %v2796 = vsel %vm496, %v2253, 0
    %v2798 = vsel %vm496, %v2254, 0
    %v2800 = vsel %vm496, %v2255, 0
    %v2802 = vsel %vm496, %v2256, 0
    %v2804 = vsel %vm496, %v2257, 0
    %v2806 = vsel %vm496, %v2258, 0
    %v2808 = vsel %vm496, %v2259, 0
    %v2810 = vsel %vm496, %v2260, 0
    %v2812 = vsel %vm496, %v2261, 0
    %v2814 = vsel %vm496, %v2262, 0
    %v2816 = vsel %vm496, %v2263, 0
    %v2818 = vsel %vm496, %v2264, 0
    %v2820 = vsel %vm496, %v2265, 0
    %v2822 = vsel %vm496, %v2266, 0
    %v2824 = vsel %vm496, %v2267, 0
    %v2826 = vsel %vm496, %v2268, 0
    %v2828 = vsel %vm496, %v2269, 0
    %v2830 = vsel %vm496, %v2270, 0
    %v2832 = vsel %vm496, %v2271, 0
    %v2834 = vsel %vm496, %v2272, 0
    %v2836 = vsel %vm496, %v2273, 0
    %v2838 = vsel %vm496, %v2274, 0
    %v2840 = vsel %vm496, %v2275, 0
    %v2842 = vsel %vm496, %v2276, 0
    %v2844 = vsel %vm496, %v2277, 0
    %v2846 = vsel %vm496, %v2278, 0
    %v2848 = vsel %vm496, %v2279, 0
    %v2850 = vsel %vm496, %v2280, 0
    %v2852 = vsel %vm496, %v2281, 0
    %2854 = vmatpush.bf16.msra.mxu0 0
    %2855 = vmatpush.bf16.msra.mxu0 0
    %2856 = vmatpush.bf16.msra.mxu0 0
    %2857 = vmatpush.bf16.msra.mxu0 0
    %2858 = vmatpush.bf16.msra.mxu0 0
    %2859 = vmatpush.bf16.msra.mxu0 0
    %2860 = vmatpush.bf16.msra.mxu0 0
    %2861 = vmatpush.bf16.msra.mxu0 %v758
    %2862 = vmatmul.bf16.gmra.mxu0 %v2792
    %v2863 = vpop.f32.mrf.mxu0
    %v2864 = vadd.f32 %v2638, %v2863
    %v2865 = vpop.f32.mrf.mxu0
    %v2866 = vadd.f32 %v2640, %v2865
    %2867 = vmatmul.bf16.gmra.mxu0 %v2794
    %v2868 = vpop.f32.mrf.mxu0
    %v2869 = vadd.f32 %v2643, %v2868
    %v2870 = vpop.f32.mrf.mxu0
    %v2871 = vadd.f32 %v2645, %v2870
    %2872 = vmatmul.bf16.gmra.mxu0 %v2796
    %v2873 = vpop.f32.mrf.mxu0
    %v2874 = vadd.f32 %v2648, %v2873
    %v2875 = vpop.f32.mrf.mxu0
    %v2876 = vadd.f32 %v2650, %v2875
    %2877 = vmatmul.bf16.gmra.mxu0 %v2798
    %v2878 = vpop.f32.mrf.mxu0
    %v2879 = vadd.f32 %v2653, %v2878
    %v2880 = vpop.f32.mrf.mxu0
    %v2881 = vadd.f32 %v2655, %v2880
    %2882 = vmatmul.bf16.gmra.mxu0 %v2800
    %v2883 = vpop.f32.mrf.mxu0
    %v2884 = vadd.f32 %v2658, %v2883
    %v2885 = vpop.f32.mrf.mxu0
    %v2886 = vadd.f32 %v2660, %v2885
    %2887 = vmatmul.bf16.gmra.mxu0 %v2802
    %v2888 = vpop.f32.mrf.mxu0
    %v2889 = vadd.f32 %v2663, %v2888
    %v2890 = vpop.f32.mrf.mxu0
    %v2891 = vadd.f32 %v2665, %v2890
    %2892 = vmatmul.bf16.gmra.mxu0 %v2804
    %v2893 = vpop.f32.mrf.mxu0
    %v2894 = vadd.f32 %v2668, %v2893
    %v2895 = vpop.f32.mrf.mxu0
    %v2896 = vadd.f32 %v2670, %v2895
    %2897 = vmatmul.bf16.gmra.mxu0 %v2806
    %v2898 = vpop.f32.mrf.mxu0
    %v2899 = vadd.f32 %v2673, %v2898
    %v2900 = vpop.f32.mrf.mxu0
    %v2901 = vadd.f32 %v2675, %v2900
    %2902 = vmatmul.bf16.gmra.mxu0 %v2808
    %v2903 = vpop.f32.mrf.mxu0
    %v2904 = vadd.f32 %v2678, %v2903
    %v2905 = vpop.f32.mrf.mxu0
    %v2906 = vadd.f32 %v2680, %v2905
    %2907 = vmatmul.bf16.gmra.mxu0 %v2810
    %v2908 = vpop.f32.mrf.mxu0
    %v2909 = vadd.f32 %v2683, %v2908
    %v2910 = vpop.f32.mrf.mxu0
    %v2911 = vadd.f32 %v2685, %v2910
    %2912 = vmatmul.bf16.gmra.mxu0 %v2812
    %v2913 = vpop.f32.mrf.mxu0
    %v2914 = vadd.f32 %v2688, %v2913
    %v2915 = vpop.f32.mrf.mxu0
    %v2916 = vadd.f32 %v2690, %v2915
    %2917 = vmatmul.bf16.gmra.mxu0 %v2814
    %v2918 = vpop.f32.mrf.mxu0
    %v2919 = vadd.f32 %v2693, %v2918
    %v2920 = vpop.f32.mrf.mxu0
    %v2921 = vadd.f32 %v2695, %v2920
    %2922 = vmatmul.bf16.gmra.mxu0 %v2816
    %v2923 = vpop.f32.mrf.mxu0
    %v2924 = vadd.f32 %v2698, %v2923
    %v2925 = vpop.f32.mrf.mxu0
    %v2926 = vadd.f32 %v2700, %v2925
    %2927 = vmatmul.bf16.gmra.mxu0 %v2818
    %v2928 = vpop.f32.mrf.mxu0
    %v2929 = vadd.f32 %v2703, %v2928
    %v2930 = vpop.f32.mrf.mxu0
    %v2931 = vadd.f32 %v2705, %v2930
    %2932 = vmatmul.bf16.gmra.mxu0 %v2820
    %v2933 = vpop.f32.mrf.mxu0
    %v2934 = vadd.f32 %v2708, %v2933
    %v2935 = vpop.f32.mrf.mxu0
    %v2936 = vadd.f32 %v2710, %v2935
    %2937 = vmatmul.bf16.gmra.mxu0 %v2822
    %v2938 = vpop.f32.mrf.mxu0
    %v2939 = vadd.f32 %v2713, %v2938
    %v2940 = vpop.f32.mrf.mxu0
    %v2941 = vadd.f32 %v2715, %v2940
    %2942 = vmatmul.bf16.gmra.mxu0 %v2824
    %v2943 = vpop.f32.mrf.mxu0
    %v2944 = vadd.f32 %v2718, %v2943
    %v2945 = vpop.f32.mrf.mxu0
    %v2946 = vadd.f32 %v2720, %v2945
    %2947 = vmatmul.bf16.gmra.mxu0 %v2826
    %v2948 = vpop.f32.mrf.mxu0
    %v2949 = vadd.f32 %v2723, %v2948
    %v2950 = vpop.f32.mrf.mxu0
    %v2951 = vadd.f32 %v2725, %v2950
    %2952 = vmatmul.bf16.gmra.mxu0 %v2828
    %v2953 = vpop.f32.mrf.mxu0
    %v2954 = vadd.f32 %v2728, %v2953
    %v2955 = vpop.f32.mrf.mxu0
    %v2956 = vadd.f32 %v2730, %v2955
    %2957 = vmatmul.bf16.gmra.mxu0 %v2830
    %v2958 = vpop.f32.mrf.mxu0
    %v2959 = vadd.f32 %v2733, %v2958
    %v2960 = vpop.f32.mrf.mxu0
    %v2961 = vadd.f32 %v2735, %v2960
    %2962 = vmatmul.bf16.gmra.mxu0 %v2832
    %v2963 = vpop.f32.mrf.mxu0
    %v2964 = vadd.f32 %v2738, %v2963
    %v2965 = vpop.f32.mrf.mxu0
    %v2966 = vadd.f32 %v2740, %v2965
    %2967 = vmatmul.bf16.gmra.mxu0 %v2834
    %v2968 = vpop.f32.mrf.mxu0
    %v2969 = vadd.f32 %v2743, %v2968
    %v2970 = vpop.f32.mrf.mxu0
    %v2971 = vadd.f32 %v2745, %v2970
    %2972 = vmatmul.bf16.gmra.mxu0 %v2836
    %v2973 = vpop.f32.mrf.mxu0
    %v2974 = vadd.f32 %v2748, %v2973
    %v2975 = vpop.f32.mrf.mxu0
    %v2976 = vadd.f32 %v2750, %v2975
    %2977 = vmatmul.bf16.gmra.mxu0 %v2838
    %v2978 = vpop.f32.mrf.mxu0
    %v2979 = vadd.f32 %v2753, %v2978
    %v2980 = vpop.f32.mrf.mxu0
    %v2981 = vadd.f32 %v2755, %v2980
    %2982 = vmatmul.bf16.gmra.mxu0 %v2840
    %v2983 = vpop.f32.mrf.mxu0
    %v2984 = vadd.f32 %v2758, %v2983
    %v2985 = vpop.f32.mrf.mxu0
    %v2986 = vadd.f32 %v2760, %v2985
    %2987 = vmatmul.bf16.gmra.mxu0 %v2842
    %v2988 = vpop.f32.mrf.mxu0
    %v2989 = vadd.f32 %v2763, %v2988
    %v2990 = vpop.f32.mrf.mxu0
    %v2991 = vadd.f32 %v2765, %v2990
    %2992 = vmatmul.bf16.gmra.mxu0 %v2844
    %v2993 = vpop.f32.mrf.mxu0
    %v2994 = vadd.f32 %v2768, %v2993
    %v2995 = vpop.f32.mrf.mxu0
    %v2996 = vadd.f32 %v2770, %v2995
    %2997 = vmatmul.bf16.gmra.mxu0 %v2846
    %v2998 = vpop.f32.mrf.mxu0
    %v2999 = vadd.f32 %v2773, %v2998
    %v3000 = vpop.f32.mrf.mxu0
    %v3001 = vadd.f32 %v2775, %v3000
    %3002 = vmatmul.bf16.gmra.mxu0 %v2848
    %v3003 = vpop.f32.mrf.mxu0
    %v3004 = vadd.f32 %v2778, %v3003
    %v3005 = vpop.f32.mrf.mxu0
    %v3006 = vadd.f32 %v2780, %v3005
    %3007 = vmatmul.bf16.gmra.mxu0 %v2850
    %v3008 = vpop.f32.mrf.mxu0
    %v3009 = vadd.f32 %v2783, %v3008
    %v3010 = vpop.f32.mrf.mxu0
    %v3011 = vadd.f32 %v2785, %v3010
    %3012 = vmatmul.bf16.gmra.mxu0 %v2852
    %v3013 = vpop.f32.mrf.mxu0
    %v3014 = vadd.f32 %v2788, %v3013
    %v3015 = vpop.f32.mrf.mxu0
    %v3016 = vadd.f32 %v2790, %v3015
    %3017 = vdwg.mxu0
    %v3050 = vrot.slane %v2251, 1
    %v3051 = vrot.slane %v2252, 1
    %v3052 = vsel %vm1018, %v3050, %v3051
    %v3053 = vrot.slane %v2253, 1
    %v3054 = vsel %vm1018, %v3051, %v3053
    %v3055 = vrot.slane %v2254, 1
    %v3056 = vsel %vm1018, %v3053, %v3055
    %v3057 = vrot.slane %v2255, 1
    %v3058 = vsel %vm1018, %v3055, %v3057
    %v3059 = vrot.slane %v2256, 1
    %v3060 = vsel %vm1018, %v3057, %v3059
    %v3061 = vrot.slane %v2257, 1
    %v3062 = vsel %vm1018, %v3059, %v3061
    %v3063 = vrot.slane %v2258, 1
    %v3064 = vsel %vm1018, %v3061, %v3063
    %v3065 = vrot.slane %v2259, 1
    %v3066 = vsel %vm1018, %v3063, %v3065
    %v3067 = vrot.slane %v2260, 1
    %v3068 = vsel %vm1018, %v3065, %v3067
    %v3069 = vrot.slane %v2261, 1
    %v3070 = vsel %vm1018, %v3067, %v3069
    %v3071 = vrot.slane %v2262, 1
    %v3072 = vsel %vm1018, %v3069, %v3071
    %v3073 = vrot.slane %v2263, 1
    %v3074 = vsel %vm1018, %v3071, %v3073
    %v3075 = vrot.slane %v2264, 1
    %v3076 = vsel %vm1018, %v3073, %v3075
    %v3077 = vrot.slane %v2265, 1
    %v3078 = vsel %vm1018, %v3075, %v3077
    %v3079 = vrot.slane %v2266, 1
    %v3080 = vsel %vm1018, %v3077, %v3079
    %v3081 = vrot.slane %v2267, 1
    %v3082 = vsel %vm1018, %v3079, %v3081
    %v3083 = vrot.slane %v2268, 1
    %v3084 = vsel %vm1018, %v3081, %v3083
    %v3085 = vrot.slane %v2269, 1
    %v3086 = vsel %vm1018, %v3083, %v3085
    %v3087 = vrot.slane %v2270, 1
    %v3088 = vsel %vm1018, %v3085, %v3087
    %v3089 = vrot.slane %v2271, 1
    %v3090 = vsel %vm1018, %v3087, %v3089
    %v3091 = vrot.slane %v2272, 1
    %v3092 = vsel %vm1018, %v3089, %v3091
    %v3093 = vrot.slane %v2273, 1
    %v3094 = vsel %vm1018, %v3091, %v3093
    %v3095 = vrot.slane %v2274, 1
    %v3096 = vsel %vm1018, %v3093, %v3095
    %v3097 = vrot.slane %v2275, 1
    %v3098 = vsel %vm1018, %v3095, %v3097
    %v3099 = vrot.slane %v2276, 1
    %v3100 = vsel %vm1018, %v3097, %v3099
    %v3101 = vrot.slane %v2277, 1
    %v3102 = vsel %vm1018, %v3099, %v3101
    %v3103 = vrot.slane %v2278, 1
    %v3104 = vsel %vm1018, %v3101, %v3103
    %v3105 = vrot.slane %v2279, 1
    %v3106 = vsel %vm1018, %v3103, %v3105
    %v3107 = vrot.slane %v2280, 1
    %v3108 = vsel %vm1018, %v3105, %v3107
    %v3109 = vrot.slane %v2281, 1
    %v3110 = vsel %vm1018, %v3107, %v3109
    %v3111 = vrot.slane %v2282, 1
    %v3112 = vsel %vm1018, %v3109, %v3111
    %v3114 = vsel %vm496, %v3052, 0
    %v3117 = vsel %vm496, %v3054, 0
    %v3120 = vsel %vm496, %v3056, 0
    %v3123 = vsel %vm496, %v3058, 0
    %v3126 = vsel %vm496, %v3060, 0
    %v3129 = vsel %vm496, %v3062, 0
    %v3132 = vsel %vm496, %v3064, 0
    %v3135 = vsel %vm496, %v3066, 0
    %v3138 = vsel %vm496, %v3068, 0
    %v3141 = vsel %vm496, %v3070, 0
    %v3144 = vsel %vm496, %v3072, 0
    %v3147 = vsel %vm496, %v3074, 0
    %v3150 = vsel %vm496, %v3076, 0
    %v3153 = vsel %vm496, %v3078, 0
    %v3156 = vsel %vm496, %v3080, 0
    %v3159 = vsel %vm496, %v3082, 0
    %v3162 = vsel %vm496, %v3084, 0
    %v3165 = vsel %vm496, %v3086, 0
    %v3168 = vsel %vm496, %v3088, 0
    %v3171 = vsel %vm496, %v3090, 0
    %v3174 = vsel %vm496, %v3092, 0
    %v3177 = vsel %vm496, %v3094, 0
    %v3180 = vsel %vm496, %v3096, 0
    %v3183 = vsel %vm496, %v3098, 0
    %v3186 = vsel %vm496, %v3100, 0
    %v3189 = vsel %vm496, %v3102, 0
    %v3192 = vsel %vm496, %v3104, 0
    %v3195 = vsel %vm496, %v3106, 0
    %v3198 = vsel %vm496, %v3108, 0
    %v3201 = vsel %vm496, %v3110, 0
    %v3204 = vsel %vm496, %v3112, 0
    %3206 = vmatpush.bf16.msra.mxu0 0
    %3207 = vmatpush.bf16.msra.mxu0 0
    %3208 = vmatpush.bf16.msra.mxu0 0
    %3209 = vmatpush.bf16.msra.mxu0 0
    %3210 = vmatpush.bf16.msra.mxu0 0
    %3211 = vmatpush.bf16.msra.mxu0 0
    %3212 = vmatpush.bf16.msra.mxu0 0
    %3213 = vmatpush.bf16.msra.mxu0 %v1086
    %3214 = vmatmul.bf16.gmra.mxu0 %v3114
    %v3215 = vpop.f32.mrf.mxu0
    %v3216 = vadd.f32 0.0, %v3215
    %v3217 = vpop.f32.mrf.mxu0
    %v3218 = vadd.f32 0.0, %v3217
    %3219 = vmatmul.bf16.gmra.mxu0 %v3117
    %v3220 = vpop.f32.mrf.mxu0
    %v3221 = vadd.f32 0.0, %v3220
    %v3222 = vpop.f32.mrf.mxu0
    %v3223 = vadd.f32 0.0, %v3222
    %3224 = vmatmul.bf16.gmra.mxu0 %v3120
    %v3225 = vpop.f32.mrf.mxu0
    %v3226 = vadd.f32 0.0, %v3225
    %v3227 = vpop.f32.mrf.mxu0
    %v3228 = vadd.f32 0.0, %v3227
    %3229 = vmatmul.bf16.gmra.mxu0 %v3123
    %v3230 = vpop.f32.mrf.mxu0
    %v3231 = vadd.f32 0.0, %v3230
    %v3232 = vpop.f32.mrf.mxu0
    %v3233 = vadd.f32 0.0, %v3232
    %3234 = vmatmul.bf16.gmra.mxu0 %v3126
    %v3235 = vpop.f32.mrf.mxu0
    %v3236 = vadd.f32 0.0, %v3235
    %v3237 = vpop.f32.mrf.mxu0
    %v3238 = vadd.f32 0.0, %v3237
    %3239 = vmatmul.bf16.gmra.mxu0 %v3129
    %v3240 = vpop.f32.mrf.mxu0
    %v3241 = vadd.f32 0.0, %v3240
    %v3242 = vpop.f32.mrf.mxu0
    %v3243 = vadd.f32 0.0, %v3242
    %3244 = vmatmul.bf16.gmra.mxu0 %v3132
    %v3245 = vpop.f32.mrf.mxu0
    %v3246 = vadd.f32 0.0, %v3245
    %v3247 = vpop.f32.mrf.mxu0
    %v3248 = vadd.f32 0.0, %v3247
    %3249 = vmatmul.bf16.gmra.mxu0 %v3135
    %v3250 = vpop.f32.mrf.mxu0
    %v3251 = vadd.f32 0.0, %v3250
    %v3252 = vpop.f32.mrf.mxu0
    %v3253 = vadd.f32 0.0, %v3252
    %3254 = vmatmul.bf16.gmra.mxu0 %v3138
    %v3255 = vpop.f32.mrf.mxu0
    %v3256 = vadd.f32 0.0, %v3255
    %v3257 = vpop.f32.mrf.mxu0
    %v3258 = vadd.f32 0.0, %v3257
    %3259 = vmatmul.bf16.gmra.mxu0 %v3141
    %v3260 = vpop.f32.mrf.mxu0
    %v3261 = vadd.f32 0.0, %v3260
    %v3262 = vpop.f32.mrf.mxu0
    %v3263 = vadd.f32 0.0, %v3262
    %3264 = vmatmul.bf16.gmra.mxu0 %v3144
    %v3265 = vpop.f32.mrf.mxu0
    %v3266 = vadd.f32 0.0, %v3265
    %v3267 = vpop.f32.mrf.mxu0
    %v3268 = vadd.f32 0.0, %v3267
    %3269 = vmatmul.bf16.gmra.mxu0 %v3147
    %v3270 = vpop.f32.mrf.mxu0
    %v3271 = vadd.f32 0.0, %v3270
    %v3272 = vpop.f32.mrf.mxu0
    %v3273 = vadd.f32 0.0, %v3272
    %3274 = vmatmul.bf16.gmra.mxu0 %v3150
    %v3275 = vpop.f32.mrf.mxu0
    %v3276 = vadd.f32 0.0, %v3275
    %v3277 = vpop.f32.mrf.mxu0
    %v3278 = vadd.f32 0.0, %v3277
    %3279 = vmatmul.bf16.gmra.mxu0 %v3153
    %v3280 = vpop.f32.mrf.mxu0
    %v3281 = vadd.f32 0.0, %v3280
    %v3282 = vpop.f32.mrf.mxu0
    %v3283 = vadd.f32 0.0, %v3282
    %3284 = vmatmul.bf16.gmra.mxu0 %v3156
    %v3285 = vpop.f32.mrf.mxu0
    %v3286 = vadd.f32 0.0, %v3285
    %v3287 = vpop.f32.mrf.mxu0
    %v3288 = vadd.f32 0.0, %v3287
    %3289 = vmatmul.bf16.gmra.mxu0 %v3159
    %v3290 = vpop.f32.mrf.mxu0
    %v3291 = vadd.f32 0.0, %v3290
    %v3292 = vpop.f32.mrf.mxu0
    %v3293 = vadd.f32 0.0, %v3292
    %3294 = vmatmul.bf16.gmra.mxu0 %v3162
    %v3295 = vpop.f32.mrf.mxu0
    %v3296 = vadd.f32 0.0, %v3295
    %v3297 = vpop.f32.mrf.mxu0
    %v3298 = vadd.f32 0.0, %v3297
    %3299 = vmatmul.bf16.gmra.mxu0 %v3165
    %v3300 = vpop.f32.mrf.mxu0
    %v3301 = vadd.f32 0.0, %v3300
    %v3302 = vpop.f32.mrf.mxu0
    %v3303 = vadd.f32 0.0, %v3302
    %3304 = vmatmul.bf16.gmra.mxu0 %v3168
    %v3305 = vpop.f32.mrf.mxu0
    %v3306 = vadd.f32 0.0, %v3305
    %v3307 = vpop.f32.mrf.mxu0
    %v3308 = vadd.f32 0.0, %v3307
    %3309 = vmatmul.bf16.gmra.mxu0 %v3171
    %v3310 = vpop.f32.mrf.mxu0
    %v3311 = vadd.f32 0.0, %v3310
    %v3312 = vpop.f32.mrf.mxu0
    %v3313 = vadd.f32 0.0, %v3312
    %3314 = vmatmul.bf16.gmra.mxu0 %v3174
    %v3315 = vpop.f32.mrf.mxu0
    %v3316 = vadd.f32 0.0, %v3315
    %v3317 = vpop.f32.mrf.mxu0
    %v3318 = vadd.f32 0.0, %v3317
    %3319 = vmatmul.bf16.gmra.mxu0 %v3177
    %v3320 = vpop.f32.mrf.mxu0
    %v3321 = vadd.f32 0.0, %v3320
    %v3322 = vpop.f32.mrf.mxu0
    %v3323 = vadd.f32 0.0, %v3322
    %3324 = vmatmul.bf16.gmra.mxu0 %v3180
    %v3325 = vpop.f32.mrf.mxu0
    %v3326 = vadd.f32 0.0, %v3325
    %v3327 = vpop.f32.mrf.mxu0
    %v3328 = vadd.f32 0.0, %v3327
    %3329 = vmatmul.bf16.gmra.mxu0 %v3183
    %v3330 = vpop.f32.mrf.mxu0
    %v3331 = vadd.f32 0.0, %v3330
    %v3332 = vpop.f32.mrf.mxu0
    %v3333 = vadd.f32 0.0, %v3332
    %3334 = vmatmul.bf16.gmra.mxu0 %v3186
    %v3335 = vpop.f32.mrf.mxu0
    %v3336 = vadd.f32 0.0, %v3335
    %v3337 = vpop.f32.mrf.mxu0
    %v3338 = vadd.f32 0.0, %v3337
    %3339 = vmatmul.bf16.gmra.mxu0 %v3189
    %v3340 = vpop.f32.mrf.mxu0
    %v3341 = vadd.f32 0.0, %v3340
    %v3342 = vpop.f32.mrf.mxu0
    %v3343 = vadd.f32 0.0, %v3342
    %3344 = vmatmul.bf16.gmra.mxu0 %v3192
    %v3345 = vpop.f32.mrf.mxu0
    %v3346 = vadd.f32 0.0, %v3345
    %v3347 = vpop.f32.mrf.mxu0
    %v3348 = vadd.f32 0.0, %v3347
    %3349 = vmatmul.bf16.gmra.mxu0 %v3195
    %v3350 = vpop.f32.mrf.mxu0
    %v3351 = vadd.f32 0.0, %v3350
    %v3352 = vpop.f32.mrf.mxu0
    %v3353 = vadd.f32 0.0, %v3352
    %3354 = vmatmul.bf16.gmra.mxu0 %v3198
    %v3355 = vpop.f32.mrf.mxu0
    %v3356 = vadd.f32 0.0, %v3355
    %v3357 = vpop.f32.mrf.mxu0
    %v3358 = vadd.f32 0.0, %v3357
    %3359 = vmatmul.bf16.gmra.mxu0 %v3201
    %v3360 = vpop.f32.mrf.mxu0
    %v3361 = vadd.f32 0.0, %v3360
    %v3362 = vpop.f32.mrf.mxu0
    %v3363 = vadd.f32 0.0, %v3362
    %3364 = vmatmul.bf16.gmra.mxu0 %v3204
    %v3365 = vpop.f32.mrf.mxu0
    %v3366 = vadd.f32 0.0, %v3365
    %v3367 = vpop.f32.mrf.mxu0
    %v3368 = vadd.f32 0.0, %v3367
    %3369 = vdwg.mxu0
    %v3370 = vadd.f32 %v2864, %v3216
    %v3371 = vadd.f32 %v2866, %v3218
    %v3372 = vadd.f32 %v2869, %v3221
    %v3373 = vadd.f32 %v2871, %v3223
    %v3374 = vadd.f32 %v2874, %v3226
    %v3375 = vadd.f32 %v2876, %v3228
    %v3376 = vadd.f32 %v2879, %v3231
    %v3377 = vadd.f32 %v2881, %v3233
    %v3378 = vadd.f32 %v2884, %v3236
    %v3379 = vadd.f32 %v2886, %v3238
    %v3380 = vadd.f32 %v2889, %v3241
    %v3381 = vadd.f32 %v2891, %v3243
    %v3382 = vadd.f32 %v2894, %v3246
    %v3383 = vadd.f32 %v2896, %v3248
    %v3384 = vadd.f32 %v2899, %v3251
    %v3385 = vadd.f32 %v2901, %v3253
    %v3386 = vadd.f32 %v2904, %v3256
    %v3387 = vadd.f32 %v2906, %v3258
    %v3388 = vadd.f32 %v2909, %v3261
    %v3389 = vadd.f32 %v2911, %v3263
    %v3390 = vadd.f32 %v2914, %v3266
    %v3391 = vadd.f32 %v2916, %v3268
    %v3392 = vadd.f32 %v2919, %v3271
    %v3393 = vadd.f32 %v2921, %v3273
    %v3394 = vadd.f32 %v2924, %v3276
    %v3395 = vadd.f32 %v2926, %v3278
    %v3396 = vadd.f32 %v2929, %v3281
    %v3397 = vadd.f32 %v2931, %v3283
    %v3398 = vadd.f32 %v2934, %v3286
    %v3399 = vadd.f32 %v2936, %v3288
    %v3400 = vadd.f32 %v2939, %v3291
    %v3401 = vadd.f32 %v2941, %v3293
    %v3402 = vadd.f32 %v2944, %v3296
    %v3403 = vadd.f32 %v2946, %v3298
    %v3404 = vadd.f32 %v2949, %v3301
    %v3405 = vadd.f32 %v2951, %v3303
    %v3406 = vadd.f32 %v2954, %v3306
    %v3407 = vadd.f32 %v2956, %v3308
    %v3408 = vadd.f32 %v2959, %v3311
    %v3409 = vadd.f32 %v2961, %v3313
    %v3410 = vadd.f32 %v2964, %v3316
    %v3411 = vadd.f32 %v2966, %v3318
    %v3412 = vadd.f32 %v2969, %v3321
    %v3413 = vadd.f32 %v2971, %v3323
    %v3414 = vadd.f32 %v2974, %v3326
    %v3415 = vadd.f32 %v2976, %v3328
    %v3416 = vadd.f32 %v2979, %v3331
    %v3417 = vadd.f32 %v2981, %v3333
    %v3418 = vadd.f32 %v2984, %v3336
    %v3419 = vadd.f32 %v2986, %v3338
    %v3420 = vadd.f32 %v2989, %v3341
    %v3421 = vadd.f32 %v2991, %v3343
    %v3422 = vadd.f32 %v2994, %v3346
    %v3423 = vadd.f32 %v2996, %v3348
    %v3424 = vadd.f32 %v2999, %v3351
    %v3425 = vadd.f32 %v3001, %v3353
    %v3426 = vadd.f32 %v3004, %v3356
    %v3427 = vadd.f32 %v3006, %v3358
    %v3428 = vadd.f32 %v3009, %v3361
    %v3429 = vadd.f32 %v3011, %v3363
    %v3430 = vadd.f32 %v3014, %v3366
    %v3431 = vadd.f32 %v3016, %v3368
    %v3432 = vrot.slane %v2284, 1
    %v3433 = vrot.slane %v2286, 2
    %v3434 = vor.u32 %v3432, %v3433
    %v3435 = vrot.slane %v2295, 1
    %v3436 = vrot.slane %v2291, 2
    %v3437 = vor.u32 %v3435, %v3436
    %v3438 = vsel %vm1407, %v3434, %v3437
    %v3439 = vrot.slane %v2303, 1
    %v3440 = vrot.slane %v2299, 2
    %v3441 = vor.u32 %v3439, %v3440
    %v3442 = vsel %vm1407, %v3437, %v3441
    %v3443 = vrot.slane %v2311, 1
    %v3444 = vrot.slane %v2307, 2
    %v3445 = vor.u32 %v3443, %v3444
    %v3446 = vsel %vm1407, %v3441, %v3445
    %v3447 = vrot.slane %v2319, 1
    %v3448 = vrot.slane %v2315, 2
    %v3449 = vor.u32 %v3447, %v3448
    %v3450 = vsel %vm1407, %v3445, %v3449
    %v3451 = vrot.slane %v2327, 1
    %v3452 = vrot.slane %v2323, 2
    %v3453 = vor.u32 %v3451, %v3452
    %v3454 = vsel %vm1407, %v3449, %v3453
    %v3455 = vrot.slane %v2335, 1
    %v3456 = vrot.slane %v2331, 2
    %v3457 = vor.u32 %v3455, %v3456
    %v3458 = vsel %vm1407, %v3453, %v3457
    %v3459 = vrot.slane %v2343, 1
    %v3460 = vrot.slane %v2339, 2
    %v3461 = vor.u32 %v3459, %v3460
    %v3462 = vsel %vm1407, %v3457, %v3461
    %v3463 = vrot.slane %v2351, 1
    %v3464 = vrot.slane %v2347, 2
    %v3465 = vor.u32 %v3463, %v3464
    %v3466 = vsel %vm1407, %v3461, %v3465
    %v3467 = vrot.slane %v2359, 1
    %v3468 = vrot.slane %v2355, 2
    %v3469 = vor.u32 %v3467, %v3468
    %v3470 = vsel %vm1407, %v3465, %v3469
    %v3471 = vrot.slane %v2367, 1
    %v3472 = vrot.slane %v2363, 2
    %v3473 = vor.u32 %v3471, %v3472
    %v3474 = vsel %vm1407, %v3469, %v3473
    %v3475 = vrot.slane %v2375, 1
    %v3476 = vrot.slane %v2371, 2
    %v3477 = vor.u32 %v3475, %v3476
    %v3478 = vsel %vm1407, %v3473, %v3477
    %v3479 = vrot.slane %v2383, 1
    %v3480 = vrot.slane %v2379, 2
    %v3481 = vor.u32 %v3479, %v3480
    %v3482 = vsel %vm1407, %v3477, %v3481
    %v3483 = vrot.slane %v2391, 1
    %v3484 = vrot.slane %v2387, 2
    %v3485 = vor.u32 %v3483, %v3484
    %v3486 = vsel %vm1407, %v3481, %v3485
    %v3487 = vrot.slane %v2399, 1
    %v3488 = vrot.slane %v2395, 2
    %v3489 = vor.u32 %v3487, %v3488
    %v3490 = vsel %vm1407, %v3485, %v3489
    %v3491 = vrot.slane %v2407, 1
    %v3492 = vrot.slane %v2403, 2
    %v3493 = vor.u32 %v3491, %v3492
    %v3494 = vsel %vm1407, %v3489, %v3493
    %v3495 = vrot.slane %v2415, 1
    %v3496 = vrot.slane %v2411, 2
    %v3497 = vor.u32 %v3495, %v3496
    %v3498 = vsel %vm1407, %v3493, %v3497
    %v3499 = vrot.slane %v2423, 1
    %v3500 = vrot.slane %v2419, 2
    %v3501 = vor.u32 %v3499, %v3500
    %v3502 = vsel %vm1407, %v3497, %v3501
    %v3503 = vrot.slane %v2431, 1
    %v3504 = vrot.slane %v2427, 2
    %v3505 = vor.u32 %v3503, %v3504
    %v3506 = vsel %vm1407, %v3501, %v3505
    %v3507 = vrot.slane %v2439, 1
    %v3508 = vrot.slane %v2435, 2
    %v3509 = vor.u32 %v3507, %v3508
    %v3510 = vsel %vm1407, %v3505, %v3509
    %v3511 = vrot.slane %v2447, 1
    %v3512 = vrot.slane %v2443, 2
    %v3513 = vor.u32 %v3511, %v3512
    %v3514 = vsel %vm1407, %v3509, %v3513
    %v3515 = vrot.slane %v2455, 1
    %v3516 = vrot.slane %v2451, 2
    %v3517 = vor.u32 %v3515, %v3516
    %v3518 = vsel %vm1407, %v3513, %v3517
    %v3519 = vrot.slane %v2463, 1
    %v3520 = vrot.slane %v2459, 2
    %v3521 = vor.u32 %v3519, %v3520
    %v3522 = vsel %vm1407, %v3517, %v3521
    %v3523 = vrot.slane %v2471, 1
    %v3524 = vrot.slane %v2467, 2
    %v3525 = vor.u32 %v3523, %v3524
    %v3526 = vsel %vm1407, %v3521, %v3525
    %v3527 = vrot.slane %v2479, 1
    %v3528 = vrot.slane %v2475, 2
    %v3529 = vor.u32 %v3527, %v3528
    %v3530 = vsel %vm1407, %v3525, %v3529
    %v3531 = vrot.slane %v2487, 1
    %v3532 = vrot.slane %v2483, 2
    %v3533 = vor.u32 %v3531, %v3532
    %v3534 = vsel %vm1407, %v3529, %v3533
    %v3535 = vrot.slane %v2495, 1
    %v3536 = vrot.slane %v2491, 2
    %v3537 = vor.u32 %v3535, %v3536
    %v3538 = vsel %vm1407, %v3533, %v3537
    %v3539 = vrot.slane %v2503, 1
    %v3540 = vrot.slane %v2499, 2
    %v3541 = vor.u32 %v3539, %v3540
    %v3542 = vsel %vm1407, %v3537, %v3541
    %v3543 = vrot.slane %v2511, 1
    %v3544 = vrot.slane %v2507, 2
    %v3545 = vor.u32 %v3543, %v3544
    %v3546 = vsel %vm1407, %v3541, %v3545
    %v3547 = vrot.slane %v2519, 1
    %v3548 = vrot.slane %v2515, 2
    %v3549 = vor.u32 %v3547, %v3548
    %v3550 = vsel %vm1407, %v3545, %v3549
    %v3551 = vrot.slane %v2527, 1
    %v3552 = vrot.slane %v2523, 2
    %v3553 = vor.u32 %v3551, %v3552
    %v3554 = vsel %vm1407, %v3549, %v3553
    %v3555 = vshrl.u32 %v2282, 16
    %v3557 = vrot.slane %v3555, 1
    %v3558 = vrot.slane %v2531, 2
    %v3559 = vor.u32 %v3557, %v3558
    %v3560 = vsel %vm1407, %v3553, %v3559
    %v3562 = vsel %vm496, %v3438, 0
    %v3565 = vsel %vm496, %v3442, 0
    %v3568 = vsel %vm496, %v3446, 0
    %v3571 = vsel %vm496, %v3450, 0
    %v3574 = vsel %vm496, %v3454, 0
    %v3577 = vsel %vm496, %v3458, 0
    %v3580 = vsel %vm496, %v3462, 0
    %v3583 = vsel %vm496, %v3466, 0
    %v3586 = vsel %vm496, %v3470, 0
    %v3589 = vsel %vm496, %v3474, 0
    %v3592 = vsel %vm496, %v3478, 0
    %v3595 = vsel %vm496, %v3482, 0
    %v3598 = vsel %vm496, %v3486, 0
    %v3601 = vsel %vm496, %v3490, 0
    %v3604 = vsel %vm496, %v3494, 0
    %v3607 = vsel %vm496, %v3498, 0
    %v3610 = vsel %vm496, %v3502, 0
    %v3613 = vsel %vm496, %v3506, 0
    %v3616 = vsel %vm496, %v3510, 0
    %v3619 = vsel %vm496, %v3514, 0
    %v3622 = vsel %vm496, %v3518, 0
    %v3625 = vsel %vm496, %v3522, 0
    %v3628 = vsel %vm496, %v3526, 0
    %v3631 = vsel %vm496, %v3530, 0
    %v3634 = vsel %vm496, %v3534, 0
    %v3637 = vsel %vm496, %v3538, 0
    %v3640 = vsel %vm496, %v3542, 0
    %v3643 = vsel %vm496, %v3546, 0
    %v3646 = vsel %vm496, %v3550, 0
    %v3649 = vsel %vm496, %v3554, 0
    %v3652 = vsel %vm496, %v3560, 0
    %3654 = vmatpush.bf16.msra.mxu0 0
    %3655 = vmatpush.bf16.msra.mxu0 0
    %3656 = vmatpush.bf16.msra.mxu0 0
    %3657 = vmatpush.bf16.msra.mxu0 0
    %3658 = vmatpush.bf16.msra.mxu0 0
    %3659 = vmatpush.bf16.msra.mxu0 0
    %3660 = vmatpush.bf16.msra.mxu0 0
    %3661 = vmatpush.bf16.msra.mxu0 %v1541
    %3662 = vmatmul.bf16.gmra.mxu0 %v3562
    %v3663 = vpop.f32.mrf.mxu0
    %v3664 = vadd.f32 0.0, %v3663
    %v3665 = vpop.f32.mrf.mxu0
    %v3666 = vadd.f32 0.0, %v3665
    %3667 = vmatmul.bf16.gmra.mxu0 %v3565
    %v3668 = vpop.f32.mrf.mxu0
    %v3669 = vadd.f32 0.0, %v3668
    %v3670 = vpop.f32.mrf.mxu0
    %v3671 = vadd.f32 0.0, %v3670
    %3672 = vmatmul.bf16.gmra.mxu0 %v3568
    %v3673 = vpop.f32.mrf.mxu0
    %v3674 = vadd.f32 0.0, %v3673
    %v3675 = vpop.f32.mrf.mxu0
    %v3676 = vadd.f32 0.0, %v3675
    %3677 = vmatmul.bf16.gmra.mxu0 %v3571
    %v3678 = vpop.f32.mrf.mxu0
    %v3679 = vadd.f32 0.0, %v3678
    %v3680 = vpop.f32.mrf.mxu0
    %v3681 = vadd.f32 0.0, %v3680
    %3682 = vmatmul.bf16.gmra.mxu0 %v3574
    %v3683 = vpop.f32.mrf.mxu0
    %v3684 = vadd.f32 0.0, %v3683
    %v3685 = vpop.f32.mrf.mxu0
    %v3686 = vadd.f32 0.0, %v3685
    %3687 = vmatmul.bf16.gmra.mxu0 %v3577
    %v3688 = vpop.f32.mrf.mxu0
    %v3689 = vadd.f32 0.0, %v3688
    %v3690 = vpop.f32.mrf.mxu0
    %v3691 = vadd.f32 0.0, %v3690
    %3692 = vmatmul.bf16.gmra.mxu0 %v3580
    %v3693 = vpop.f32.mrf.mxu0
    %v3694 = vadd.f32 0.0, %v3693
    %v3695 = vpop.f32.mrf.mxu0
    %v3696 = vadd.f32 0.0, %v3695
    %3697 = vmatmul.bf16.gmra.mxu0 %v3583
    %v3698 = vpop.f32.mrf.mxu0
    %v3699 = vadd.f32 0.0, %v3698
    %v3700 = vpop.f32.mrf.mxu0
    %v3701 = vadd.f32 0.0, %v3700
    %3702 = vmatmul.bf16.gmra.mxu0 %v3586
    %v3703 = vpop.f32.mrf.mxu0
    %v3704 = vadd.f32 0.0, %v3703
    %v3705 = vpop.f32.mrf.mxu0
    %v3706 = vadd.f32 0.0, %v3705
    %3707 = vmatmul.bf16.gmra.mxu0 %v3589
    %v3708 = vpop.f32.mrf.mxu0
    %v3709 = vadd.f32 0.0, %v3708
    %v3710 = vpop.f32.mrf.mxu0
    %v3711 = vadd.f32 0.0, %v3710
    %3712 = vmatmul.bf16.gmra.mxu0 %v3592
    %v3713 = vpop.f32.mrf.mxu0
    %v3714 = vadd.f32 0.0, %v3713
    %v3715 = vpop.f32.mrf.mxu0
    %v3716 = vadd.f32 0.0, %v3715
    %3717 = vmatmul.bf16.gmra.mxu0 %v3595
    %v3718 = vpop.f32.mrf.mxu0
    %v3719 = vadd.f32 0.0, %v3718
    %v3720 = vpop.f32.mrf.mxu0
    %v3721 = vadd.f32 0.0, %v3720
    %3722 = vmatmul.bf16.gmra.mxu0 %v3598
    %v3723 = vpop.f32.mrf.mxu0
    %v3724 = vadd.f32 0.0, %v3723
    %v3725 = vpop.f32.mrf.mxu0
    %v3726 = vadd.f32 0.0, %v3725
    %3727 = vmatmul.bf16.gmra.mxu0 %v3601
    %v3728 = vpop.f32.mrf.mxu0
    %v3729 = vadd.f32 0.0, %v3728
    %v3730 = vpop.f32.mrf.mxu0
    %v3731 = vadd.f32 0.0, %v3730
    %3732 = vmatmul.bf16.gmra.mxu0 %v3604
    %v3733 = vpop.f32.mrf.mxu0
    %v3734 = vadd.f32 0.0, %v3733
    %v3735 = vpop.f32.mrf.mxu0
    %v3736 = vadd.f32 0.0, %v3735
    %3737 = vmatmul.bf16.gmra.mxu0 %v3607
    %v3738 = vpop.f32.mrf.mxu0
    %v3739 = vadd.f32 0.0, %v3738
    %v3740 = vpop.f32.mrf.mxu0
    %v3741 = vadd.f32 0.0, %v3740
    %3742 = vmatmul.bf16.gmra.mxu0 %v3610
    %v3743 = vpop.f32.mrf.mxu0
    %v3744 = vadd.f32 0.0, %v3743
    %v3745 = vpop.f32.mrf.mxu0
    %v3746 = vadd.f32 0.0, %v3745
    %3747 = vmatmul.bf16.gmra.mxu0 %v3613
    %v3748 = vpop.f32.mrf.mxu0
    %v3749 = vadd.f32 0.0, %v3748
    %v3750 = vpop.f32.mrf.mxu0
    %v3751 = vadd.f32 0.0, %v3750
    %3752 = vmatmul.bf16.gmra.mxu0 %v3616
    %v3753 = vpop.f32.mrf.mxu0
    %v3754 = vadd.f32 0.0, %v3753
    %v3755 = vpop.f32.mrf.mxu0
    %v3756 = vadd.f32 0.0, %v3755
    %3757 = vmatmul.bf16.gmra.mxu0 %v3619
    %v3758 = vpop.f32.mrf.mxu0
    %v3759 = vadd.f32 0.0, %v3758
    %v3760 = vpop.f32.mrf.mxu0
    %v3761 = vadd.f32 0.0, %v3760
    %3762 = vmatmul.bf16.gmra.mxu0 %v3622
    %v3763 = vpop.f32.mrf.mxu0
    %v3764 = vadd.f32 0.0, %v3763
    %v3765 = vpop.f32.mrf.mxu0
    %v3766 = vadd.f32 0.0, %v3765
    %3767 = vmatmul.bf16.gmra.mxu0 %v3625
    %v3768 = vpop.f32.mrf.mxu0
    %v3769 = vadd.f32 0.0, %v3768
    %v3770 = vpop.f32.mrf.mxu0
    %v3771 = vadd.f32 0.0, %v3770
    %3772 = vmatmul.bf16.gmra.mxu0 %v3628
    %v3773 = vpop.f32.mrf.mxu0
    %v3774 = vadd.f32 0.0, %v3773
    %v3775 = vpop.f32.mrf.mxu0
    %v3776 = vadd.f32 0.0, %v3775
    %3777 = vmatmul.bf16.gmra.mxu0 %v3631
    %v3778 = vpop.f32.mrf.mxu0
    %v3779 = vadd.f32 0.0, %v3778
    %v3780 = vpop.f32.mrf.mxu0
    %v3781 = vadd.f32 0.0, %v3780
    %3782 = vmatmul.bf16.gmra.mxu0 %v3634
    %v3783 = vpop.f32.mrf.mxu0
    %v3784 = vadd.f32 0.0, %v3783
    %v3785 = vpop.f32.mrf.mxu0
    %v3786 = vadd.f32 0.0, %v3785
    %3787 = vmatmul.bf16.gmra.mxu0 %v3637
    %v3788 = vpop.f32.mrf.mxu0
    %v3789 = vadd.f32 0.0, %v3788
    %v3790 = vpop.f32.mrf.mxu0
    %v3791 = vadd.f32 0.0, %v3790
    %3792 = vmatmul.bf16.gmra.mxu0 %v3640
    %v3793 = vpop.f32.mrf.mxu0
    %v3794 = vadd.f32 0.0, %v3793
    %v3795 = vpop.f32.mrf.mxu0
    %v3796 = vadd.f32 0.0, %v3795
    %3797 = vmatmul.bf16.gmra.mxu0 %v3643
    %v3798 = vpop.f32.mrf.mxu0
    %v3799 = vadd.f32 0.0, %v3798
    %v3800 = vpop.f32.mrf.mxu0
    %v3801 = vadd.f32 0.0, %v3800
    %3802 = vmatmul.bf16.gmra.mxu0 %v3646
    %v3803 = vpop.f32.mrf.mxu0
    %v3804 = vadd.f32 0.0, %v3803
    %v3805 = vpop.f32.mrf.mxu0
    %v3806 = vadd.f32 0.0, %v3805
    %3807 = vmatmul.bf16.gmra.mxu0 %v3649
    %v3808 = vpop.f32.mrf.mxu0
    %v3809 = vadd.f32 0.0, %v3808
    %v3810 = vpop.f32.mrf.mxu0
    %v3811 = vadd.f32 0.0, %v3810
    %3812 = vmatmul.bf16.gmra.mxu0 %v3652
    %v3813 = vpop.f32.mrf.mxu0
    %v3814 = vadd.f32 0.0, %v3813
    %v3815 = vpop.f32.mrf.mxu0
    %v3816 = vadd.f32 0.0, %v3815
    %3817 = vdwg.mxu0
    %v3818 = vadd.f32 %v3370, %v3664
    %v3819 = vadd.f32 %v3371, %v3666
    %v3820 = vadd.f32 %v3372, %v3669
    %v3821 = vadd.f32 %v3373, %v3671
    %v3822 = vadd.f32 %v3374, %v3674
    %v3823 = vadd.f32 %v3375, %v3676
    %v3824 = vadd.f32 %v3376, %v3679
    %v3825 = vadd.f32 %v3377, %v3681
    %v3826 = vadd.f32 %v3378, %v3684
    %v3827 = vadd.f32 %v3379, %v3686
    %v3828 = vadd.f32 %v3380, %v3689
    %v3829 = vadd.f32 %v3381, %v3691
    %v3830 = vadd.f32 %v3382, %v3694
    %v3831 = vadd.f32 %v3383, %v3696
    %v3832 = vadd.f32 %v3384, %v3699
    %v3833 = vadd.f32 %v3385, %v3701
    %v3834 = vadd.f32 %v3386, %v3704
    %v3835 = vadd.f32 %v3387, %v3706
    %v3836 = vadd.f32 %v3388, %v3709
    %v3837 = vadd.f32 %v3389, %v3711
    %v3838 = vadd.f32 %v3390, %v3714
    %v3839 = vadd.f32 %v3391, %v3716
    %v3840 = vadd.f32 %v3392, %v3719
    %v3841 = vadd.f32 %v3393, %v3721
    %v3842 = vadd.f32 %v3394, %v3724
    %v3843 = vadd.f32 %v3395, %v3726
    %v3844 = vadd.f32 %v3396, %v3729
    %v3845 = vadd.f32 %v3397, %v3731
    %v3846 = vadd.f32 %v3398, %v3734
    %v3847 = vadd.f32 %v3399, %v3736
    %v3848 = vadd.f32 %v3400, %v3739
    %v3849 = vadd.f32 %v3401, %v3741
    %v3850 = vadd.f32 %v3402, %v3744
    %v3851 = vadd.f32 %v3403, %v3746
    %v3852 = vadd.f32 %v3404, %v3749
    %v3853 = vadd.f32 %v3405, %v3751
    %v3854 = vadd.f32 %v3406, %v3754
    %v3855 = vadd.f32 %v3407, %v3756
    %v3856 = vadd.f32 %v3408, %v3759
    %v3857 = vadd.f32 %v3409, %v3761
    %v3858 = vadd.f32 %v3410, %v3764
    %v3859 = vadd.f32 %v3411, %v3766
    %v3860 = vadd.f32 %v3412, %v3769
    %v3861 = vadd.f32 %v3413, %v3771
    %v3862 = vadd.f32 %v3414, %v3774
    %v3863 = vadd.f32 %v3415, %v3776
    %v3864 = vadd.f32 %v3416, %v3779
    %v3865 = vadd.f32 %v3417, %v3781
    %v3866 = vadd.f32 %v3418, %v3784
    %v3867 = vadd.f32 %v3419, %v3786
    %v3868 = vadd.f32 %v3420, %v3789
    %v3869 = vadd.f32 %v3421, %v3791
    %v3870 = vadd.f32 %v3422, %v3794
    %v3871 = vadd.f32 %v3423, %v3796
    %v3872 = vadd.f32 %v3424, %v3799
    %v3873 = vadd.f32 %v3425, %v3801
    %v3874 = vadd.f32 %v3426, %v3804
    %v3875 = vadd.f32 %v3427, %v3806
    %v3876 = vadd.f32 %v3428, %v3809
    %v3877 = vadd.f32 %v3429, %v3811
    %v3878 = vadd.f32 %v3430, %v3814
    %v3879 = vadd.f32 %v3431, %v3816
    %v3880 = vrot.slane %v2251, 2
    %v3881 = vrot.slane %v2252, 2
    %v3882 = vsel %vm1862, %v3880, %v3881
    %v3883 = vrot.slane %v2253, 2
    %v3884 = vsel %vm1862, %v3881, %v3883
    %v3885 = vrot.slane %v2254, 2
    %v3886 = vsel %vm1862, %v3883, %v3885
    %v3887 = vrot.slane %v2255, 2
    %v3888 = vsel %vm1862, %v3885, %v3887
    %v3889 = vrot.slane %v2256, 2
    %v3890 = vsel %vm1862, %v3887, %v3889
    %v3891 = vrot.slane %v2257, 2
    %v3892 = vsel %vm1862, %v3889, %v3891
    %v3893 = vrot.slane %v2258, 2
    %v3894 = vsel %vm1862, %v3891, %v3893
    %v3895 = vrot.slane %v2259, 2
    %v3896 = vsel %vm1862, %v3893, %v3895
    %v3897 = vrot.slane %v2260, 2
    %v3898 = vsel %vm1862, %v3895, %v3897
    %v3899 = vrot.slane %v2261, 2
    %v3900 = vsel %vm1862, %v3897, %v3899
    %v3901 = vrot.slane %v2262, 2
    %v3902 = vsel %vm1862, %v3899, %v3901
    %v3903 = vrot.slane %v2263, 2
    %v3904 = vsel %vm1862, %v3901, %v3903
    %v3905 = vrot.slane %v2264, 2
    %v3906 = vsel %vm1862, %v3903, %v3905
    %v3907 = vrot.slane %v2265, 2
    %v3908 = vsel %vm1862, %v3905, %v3907
    %v3909 = vrot.slane %v2266, 2
    %v3910 = vsel %vm1862, %v3907, %v3909
    %v3911 = vrot.slane %v2267, 2
    %v3912 = vsel %vm1862, %v3909, %v3911
    %v3913 = vrot.slane %v2268, 2
    %v3914 = vsel %vm1862, %v3911, %v3913
    %v3915 = vrot.slane %v2269, 2
    %v3916 = vsel %vm1862, %v3913, %v3915
    %v3917 = vrot.slane %v2270, 2
    %v3918 = vsel %vm1862, %v3915, %v3917
    %v3919 = vrot.slane %v2271, 2
    %v3920 = vsel %vm1862, %v3917, %v3919
    %v3921 = vrot.slane %v2272, 2
    %v3922 = vsel %vm1862, %v3919, %v3921
    %v3923 = vrot.slane %v2273, 2
    %v3924 = vsel %vm1862, %v3921, %v3923
    %v3925 = vrot.slane %v2274, 2
    %v3926 = vsel %vm1862, %v3923, %v3925
    %v3927 = vrot.slane %v2275, 2
    %v3928 = vsel %vm1862, %v3925, %v3927
    %v3929 = vrot.slane %v2276, 2
    %v3930 = vsel %vm1862, %v3927, %v3929
    %v3931 = vrot.slane %v2277, 2
    %v3932 = vsel %vm1862, %v3929, %v3931
    %v3933 = vrot.slane %v2278, 2
    %v3934 = vsel %vm1862, %v3931, %v3933
    %v3935 = vrot.slane %v2279, 2
    %v3936 = vsel %vm1862, %v3933, %v3935
    %v3937 = vrot.slane %v2280, 2
    %v3938 = vsel %vm1862, %v3935, %v3937
    %v3939 = vrot.slane %v2281, 2
    %v3940 = vsel %vm1862, %v3937, %v3939
    %v3941 = vrot.slane %v2282, 2
    %v3942 = vsel %vm1862, %v3939, %v3941
    %v3944 = vsel %vm496, %v3882, 0
    %v3947 = vsel %vm496, %v3884, 0
    %v3950 = vsel %vm496, %v3886, 0
    %v3953 = vsel %vm496, %v3888, 0
    %v3956 = vsel %vm496, %v3890, 0
    %v3959 = vsel %vm496, %v3892, 0
    %v3962 = vsel %vm496, %v3894, 0
    %v3965 = vsel %vm496, %v3896, 0
    %v3968 = vsel %vm496, %v3898, 0
    %v3971 = vsel %vm496, %v3900, 0
    %v3974 = vsel %vm496, %v3902, 0
    %v3977 = vsel %vm496, %v3904, 0
    %v3980 = vsel %vm496, %v3906, 0
    %v3983 = vsel %vm496, %v3908, 0
    %v3986 = vsel %vm496, %v3910, 0
    %v3989 = vsel %vm496, %v3912, 0
    %v3992 = vsel %vm496, %v3914, 0
    %v3995 = vsel %vm496, %v3916, 0
    %v3998 = vsel %vm496, %v3918, 0
    %v4001 = vsel %vm496, %v3920, 0
    %v4004 = vsel %vm496, %v3922, 0
    %v4007 = vsel %vm496, %v3924, 0
    %v4010 = vsel %vm496, %v3926, 0
    %v4013 = vsel %vm496, %v3928, 0
    %v4016 = vsel %vm496, %v3930, 0
    %v4019 = vsel %vm496, %v3932, 0
    %v4022 = vsel %vm496, %v3934, 0
    %v4025 = vsel %vm496, %v3936, 0
    %v4028 = vsel %vm496, %v3938, 0
    %v4031 = vsel %vm496, %v3940, 0
    %v4034 = vsel %vm496, %v3942, 0
    %4036 = vmatpush.bf16.msra.mxu0 0
    %4037 = vmatpush.bf16.msra.mxu0 0
    %4038 = vmatpush.bf16.msra.mxu0 0
    %4039 = vmatpush.bf16.msra.mxu0 0
    %4040 = vmatpush.bf16.msra.mxu0 0
    %4041 = vmatpush.bf16.msra.mxu0 0
    %4042 = vmatpush.bf16.msra.mxu0 0
    %4043 = vmatpush.bf16.msra.mxu0 %v1930
    %4044 = vmatmul.bf16.gmra.mxu0 %v3944
    %v4045 = vpop.f32.mrf.mxu0
    %v4046 = vadd.f32 0.0, %v4045
    %v4047 = vpop.f32.mrf.mxu0
    %v4048 = vadd.f32 0.0, %v4047
    %4049 = vmatmul.bf16.gmra.mxu0 %v3947
    %v4050 = vpop.f32.mrf.mxu0
    %v4051 = vadd.f32 0.0, %v4050
    %v4052 = vpop.f32.mrf.mxu0
    %v4053 = vadd.f32 0.0, %v4052
    %4054 = vmatmul.bf16.gmra.mxu0 %v3950
    %v4055 = vpop.f32.mrf.mxu0
    %v4056 = vadd.f32 0.0, %v4055
    %v4057 = vpop.f32.mrf.mxu0
    %v4058 = vadd.f32 0.0, %v4057
    %4059 = vmatmul.bf16.gmra.mxu0 %v3953
    %v4060 = vpop.f32.mrf.mxu0
    %v4061 = vadd.f32 0.0, %v4060
    %v4062 = vpop.f32.mrf.mxu0
    %v4063 = vadd.f32 0.0, %v4062
    %4064 = vmatmul.bf16.gmra.mxu0 %v3956
    %v4065 = vpop.f32.mrf.mxu0
    %v4066 = vadd.f32 0.0, %v4065
    %v4067 = vpop.f32.mrf.mxu0
    %v4068 = vadd.f32 0.0, %v4067
    %4069 = vmatmul.bf16.gmra.mxu0 %v3959
    %v4070 = vpop.f32.mrf.mxu0
    %v4071 = vadd.f32 0.0, %v4070
    %v4072 = vpop.f32.mrf.mxu0
    %v4073 = vadd.f32 0.0, %v4072
    %4074 = vmatmul.bf16.gmra.mxu0 %v3962
    %v4075 = vpop.f32.mrf.mxu0
    %v4076 = vadd.f32 0.0, %v4075
    %v4077 = vpop.f32.mrf.mxu0
    %v4078 = vadd.f32 0.0, %v4077
    %4079 = vmatmul.bf16.gmra.mxu0 %v3965
    %v4080 = vpop.f32.mrf.mxu0
    %v4081 = vadd.f32 0.0, %v4080
    %v4082 = vpop.f32.mrf.mxu0
    %v4083 = vadd.f32 0.0, %v4082
    %4084 = vmatmul.bf16.gmra.mxu0 %v3968
    %v4085 = vpop.f32.mrf.mxu0
    %v4086 = vadd.f32 0.0, %v4085
    %v4087 = vpop.f32.mrf.mxu0
    %v4088 = vadd.f32 0.0, %v4087
    %4089 = vmatmul.bf16.gmra.mxu0 %v3971
    %v4090 = vpop.f32.mrf.mxu0
    %v4091 = vadd.f32 0.0, %v4090
    %v4092 = vpop.f32.mrf.mxu0
    %v4093 = vadd.f32 0.0, %v4092
    %4094 = vmatmul.bf16.gmra.mxu0 %v3974
    %v4095 = vpop.f32.mrf.mxu0
    %v4096 = vadd.f32 0.0, %v4095
    %v4097 = vpop.f32.mrf.mxu0
    %v4098 = vadd.f32 0.0, %v4097
    %4099 = vmatmul.bf16.gmra.mxu0 %v3977
    %v4100 = vpop.f32.mrf.mxu0
    %v4101 = vadd.f32 0.0, %v4100
    %v4102 = vpop.f32.mrf.mxu0
    %v4103 = vadd.f32 0.0, %v4102
    %4104 = vmatmul.bf16.gmra.mxu0 %v3980
    %v4105 = vpop.f32.mrf.mxu0
    %v4106 = vadd.f32 0.0, %v4105
    %v4107 = vpop.f32.mrf.mxu0
    %v4108 = vadd.f32 0.0, %v4107
    %4109 = vmatmul.bf16.gmra.mxu0 %v3983
    %v4110 = vpop.f32.mrf.mxu0
    %v4111 = vadd.f32 0.0, %v4110
    %v4112 = vpop.f32.mrf.mxu0
    %v4113 = vadd.f32 0.0, %v4112
    %4114 = vmatmul.bf16.gmra.mxu0 %v3986
    %v4115 = vpop.f32.mrf.mxu0
    %v4116 = vadd.f32 0.0, %v4115
    %v4117 = vpop.f32.mrf.mxu0
    %v4118 = vadd.f32 0.0, %v4117
    %4119 = vmatmul.bf16.gmra.mxu0 %v3989
    %v4120 = vpop.f32.mrf.mxu0
    %v4121 = vadd.f32 0.0, %v4120
    %v4122 = vpop.f32.mrf.mxu0
    %v4123 = vadd.f32 0.0, %v4122
    %4124 = vmatmul.bf16.gmra.mxu0 %v3992
    %v4125 = vpop.f32.mrf.mxu0
    %v4126 = vadd.f32 0.0, %v4125
    %v4127 = vpop.f32.mrf.mxu0
    %v4128 = vadd.f32 0.0, %v4127
    %4129 = vmatmul.bf16.gmra.mxu0 %v3995
    %v4130 = vpop.f32.mrf.mxu0
    %v4131 = vadd.f32 0.0, %v4130
    %v4132 = vpop.f32.mrf.mxu0
    %v4133 = vadd.f32 0.0, %v4132
    %4134 = vmatmul.bf16.gmra.mxu0 %v3998
    %v4135 = vpop.f32.mrf.mxu0
    %v4136 = vadd.f32 0.0, %v4135
    %v4137 = vpop.f32.mrf.mxu0
    %v4138 = vadd.f32 0.0, %v4137
    %4139 = vmatmul.bf16.gmra.mxu0 %v4001
    %v4140 = vpop.f32.mrf.mxu0
    %v4141 = vadd.f32 0.0, %v4140
    %v4142 = vpop.f32.mrf.mxu0
    %v4143 = vadd.f32 0.0, %v4142
    %4144 = vmatmul.bf16.gmra.mxu0 %v4004
    %v4145 = vpop.f32.mrf.mxu0
    %v4146 = vadd.f32 0.0, %v4145
    %v4147 = vpop.f32.mrf.mxu0
    %v4148 = vadd.f32 0.0, %v4147
    %4149 = vmatmul.bf16.gmra.mxu0 %v4007
    %v4150 = vpop.f32.mrf.mxu0
    %v4151 = vadd.f32 0.0, %v4150
    %v4152 = vpop.f32.mrf.mxu0
    %v4153 = vadd.f32 0.0, %v4152
    %4154 = vmatmul.bf16.gmra.mxu0 %v4010
    %v4155 = vpop.f32.mrf.mxu0
    %v4156 = vadd.f32 0.0, %v4155
    %v4157 = vpop.f32.mrf.mxu0
    %v4158 = vadd.f32 0.0, %v4157
    %4159 = vmatmul.bf16.gmra.mxu0 %v4013
    %v4160 = vpop.f32.mrf.mxu0
    %v4161 = vadd.f32 0.0, %v4160
    %v4162 = vpop.f32.mrf.mxu0
    %v4163 = vadd.f32 0.0, %v4162
    %4164 = vmatmul.bf16.gmra.mxu0 %v4016
    %v4165 = vpop.f32.mrf.mxu0
    %v4166 = vadd.f32 0.0, %v4165
    %v4167 = vpop.f32.mrf.mxu0
    %v4168 = vadd.f32 0.0, %v4167
    %4169 = vmatmul.bf16.gmra.mxu0 %v4019
    %v4170 = vpop.f32.mrf.mxu0
    %v4171 = vadd.f32 0.0, %v4170
    %v4172 = vpop.f32.mrf.mxu0
    %v4173 = vadd.f32 0.0, %v4172
    %4174 = vmatmul.bf16.gmra.mxu0 %v4022
    %v4175 = vpop.f32.mrf.mxu0
    %v4176 = vadd.f32 0.0, %v4175
    %v4177 = vpop.f32.mrf.mxu0
    %v4178 = vadd.f32 0.0, %v4177
    %4179 = vmatmul.bf16.gmra.mxu0 %v4025
    %v4180 = vpop.f32.mrf.mxu0
    %v4181 = vadd.f32 0.0, %v4180
    %v4182 = vpop.f32.mrf.mxu0
    %v4183 = vadd.f32 0.0, %v4182
    %4184 = vmatmul.bf16.gmra.mxu0 %v4028
    %v4185 = vpop.f32.mrf.mxu0
    %v4186 = vadd.f32 0.0, %v4185
    %v4187 = vpop.f32.mrf.mxu0
    %v4188 = vadd.f32 0.0, %v4187
    %4189 = vmatmul.bf16.gmra.mxu0 %v4031
    %v4190 = vpop.f32.mrf.mxu0
    %v4191 = vadd.f32 0.0, %v4190
    %v4192 = vpop.f32.mrf.mxu0
    %v4193 = vadd.f32 0.0, %v4192
    %4194 = vmatmul.bf16.gmra.mxu0 %v4034
    %v4195 = vpop.f32.mrf.mxu0
    %v4196 = vadd.f32 0.0, %v4195
    %v4197 = vpop.f32.mrf.mxu0
    %v4198 = vadd.f32 0.0, %v4197
    %4199 = vdwg.mxu0
    %v4200 = vadd.f32 %v3818, %v4046
    %v4201 = vadd.f32 %v3819, %v4048
    %v4202 = vadd.f32 %v3820, %v4051
    %v4203 = vadd.f32 %v3821, %v4053
    %v4204 = vadd.f32 %v3822, %v4056
    %v4205 = vadd.f32 %v3823, %v4058
    %v4206 = vadd.f32 %v3824, %v4061
    %v4207 = vadd.f32 %v3825, %v4063
    %v4208 = vadd.f32 %v3826, %v4066
    %v4209 = vadd.f32 %v3827, %v4068
    %v4210 = vadd.f32 %v3828, %v4071
    %v4211 = vadd.f32 %v3829, %v4073
    %v4212 = vadd.f32 %v3830, %v4076
    %v4213 = vadd.f32 %v3831, %v4078
    %v4214 = vadd.f32 %v3832, %v4081
    %v4215 = vadd.f32 %v3833, %v4083
    %v4216 = vadd.f32 %v3834, %v4086
    %v4217 = vadd.f32 %v3835, %v4088
    %v4218 = vadd.f32 %v3836, %v4091
    %v4219 = vadd.f32 %v3837, %v4093
    %v4220 = vadd.f32 %v3838, %v4096
    %v4221 = vadd.f32 %v3839, %v4098
    %v4222 = vadd.f32 %v3840, %v4101
    %v4223 = vadd.f32 %v3841, %v4103
    %v4224 = vadd.f32 %v3842, %v4106
    %v4225 = vadd.f32 %v3843, %v4108
    %v4226 = vadd.f32 %v3844, %v4111
    %v4227 = vadd.f32 %v3845, %v4113
    %v4228 = vadd.f32 %v3846, %v4116
    %v4229 = vadd.f32 %v3847, %v4118
    %v4230 = vadd.f32 %v3848, %v4121
    %v4231 = vadd.f32 %v3849, %v4123
    %v4232 = vadd.f32 %v3850, %v4126
    %v4233 = vadd.f32 %v3851, %v4128
    %v4234 = vadd.f32 %v3852, %v4131
    %v4235 = vadd.f32 %v3853, %v4133
    %v4236 = vadd.f32 %v3854, %v4136
    %v4237 = vadd.f32 %v3855, %v4138
    %v4238 = vadd.f32 %v3856, %v4141
    %v4239 = vadd.f32 %v3857, %v4143
    %v4240 = vadd.f32 %v3858, %v4146
    %v4241 = vadd.f32 %v3859, %v4148
    %v4242 = vadd.f32 %v3860, %v4151
    %v4243 = vadd.f32 %v3861, %v4153
    %v4244 = vadd.f32 %v3862, %v4156
    %v4245 = vadd.f32 %v3863, %v4158
    %v4246 = vadd.f32 %v3864, %v4161
    %v4247 = vadd.f32 %v3865, %v4163
    %v4248 = vadd.f32 %v3866, %v4166
    %v4249 = vadd.f32 %v3867, %v4168
    %v4250 = vadd.f32 %v3868, %v4171
    %v4251 = vadd.f32 %v3869, %v4173
    %v4252 = vadd.f32 %v3870, %v4176
    %v4253 = vadd.f32 %v3871, %v4178
    %v4254 = vadd.f32 %v3872, %v4181
    %v4255 = vadd.f32 %v3873, %v4183
    %v4256 = vadd.f32 %v3874, %v4186
    %v4257 = vadd.f32 %v3875, %v4188
    %v4258 = vadd.f32 %v3876, %v4191
    %v4259 = vadd.f32 %v3877, %v4193
    %v4260 = vadd.f32 %v3878, %v4196
    %v4261 = vadd.f32 %v3879, %v4198
    %vm4262 = vcmask 261120
    %v4263 = vsel %vm4262, %v2189, 0.0
    %v4264 = vsel %vm4262, %v2190, 0.0
    %v4265 = vadd.f32 %v4263, %v4264
    %v4266 = vsel %vm4262, %v2191, 0.0
    %v4267 = vadd.f32 %v4265, %v4266
    %v4268 = vsel %vm4262, %v2192, 0.0
    %v4269 = vadd.f32 %v4267, %v4268
    %v4270 = vsel %vm4262, %v2193, 0.0
    %v4271 = vadd.f32 %v4269, %v4270
    %v4272 = vsel %vm4262, %v2194, 0.0
    %v4273 = vadd.f32 %v4271, %v4272
    %v4274 = vsel %vm4262, %v2195, 0.0
    %v4275 = vadd.f32 %v4273, %v4274
    %v4276 = vsel %vm4262, %v2196, 0.0
    %v4277 = vadd.f32 %v4275, %v4276
    %v4278 = vsel %vm4262, %v2197, 0.0
    %v4279 = vadd.f32 %v4277, %v4278
    %v4280 = vsel %vm4262, %v2198, 0.0
    %v4281 = vadd.f32 %v4279, %v4280
    %v4282 = vsel %vm4262, %v2199, 0.0
    %v4283 = vadd.f32 %v4281, %v4282
    %v4284 = vsel %vm4262, %v2200, 0.0
    %v4285 = vadd.f32 %v4283, %v4284
    %v4286 = vsel %vm4262, %v2201, 0.0
    %v4287 = vadd.f32 %v4285, %v4286
    %v4288 = vsel %vm4262, %v2202, 0.0
    %v4289 = vadd.f32 %v4287, %v4288
    %v4290 = vsel %vm4262, %v2203, 0.0
    %v4291 = vadd.f32 %v4289, %v4290
    %v4292 = vsel %vm4262, %v2204, 0.0
    %v4293 = vadd.f32 %v4291, %v4292
    %v4294 = vsel %vm4262, %v2205, 0.0
    %v4295 = vadd.f32 %v4293, %v4294
    %v4296 = vsel %vm4262, %v2206, 0.0
    %v4297 = vadd.f32 %v4295, %v4296
    %v4298 = vsel %vm4262, %v2207, 0.0
    %v4299 = vadd.f32 %v4297, %v4298
    %v4300 = vsel %vm4262, %v2208, 0.0
    %v4301 = vadd.f32 %v4299, %v4300
    %v4302 = vsel %vm4262, %v2209, 0.0
    %v4303 = vadd.f32 %v4301, %v4302
    %v4304 = vsel %vm4262, %v2210, 0.0
    %v4305 = vadd.f32 %v4303, %v4304
    %v4306 = vsel %vm4262, %v2211, 0.0
    %v4307 = vadd.f32 %v4305, %v4306
    %v4308 = vsel %vm4262, %v2212, 0.0
    %v4309 = vadd.f32 %v4307, %v4308
    %v4310 = vsel %vm4262, %v2213, 0.0
    %v4311 = vadd.f32 %v4309, %v4310
    %v4312 = vsel %vm4262, %v2214, 0.0
    %v4313 = vadd.f32 %v4311, %v4312
    %v4314 = vsel %vm4262, %v2215, 0.0
    %v4315 = vadd.f32 %v4313, %v4314
    %v4316 = vsel %vm4262, %v2216, 0.0
    %v4317 = vadd.f32 %v4315, %v4316
    %v4318 = vsel %vm4262, %v2217, 0.0
    %v4319 = vadd.f32 %v4317, %v4318
    %v4320 = vsel %vm4262, %v2218, 0.0
    %v4321 = vadd.f32 %v4319, %v4320
    %v4322 = vsel %vm4262, %v2219, 0.0
    %v4323 = vadd.f32 %v4321, %v4322
    %v4324 = vsel %vm4262, %v2220, 0.0
    %v4325 = vadd.f32 %v4323, %v4324
    %v4326 = vsel %vm4262, %v2221, 0.0
    %v4327 = vadd.f32 %v4325, %v4326
    %v4328 = vsel %vm4262, %v2222, 0.0
    %v4329 = vadd.f32 %v4327, %v4328
    %v4330 = vsel %vm4262, %v2223, 0.0
    %v4331 = vadd.f32 %v4329, %v4330
    %v4332 = vsel %vm4262, %v2224, 0.0
    %v4333 = vadd.f32 %v4331, %v4332
    %v4334 = vsel %vm4262, %v2225, 0.0
    %v4335 = vadd.f32 %v4333, %v4334
    %v4336 = vsel %vm4262, %v2226, 0.0
    %v4337 = vadd.f32 %v4335, %v4336
    %v4338 = vsel %vm4262, %v2227, 0.0
    %v4339 = vadd.f32 %v4337, %v4338
    %v4340 = vsel %vm4262, %v2228, 0.0
    %v4341 = vadd.f32 %v4339, %v4340
    %v4342 = vsel %vm4262, %v2229, 0.0
    %v4343 = vadd.f32 %v4341, %v4342
    %v4344 = vsel %vm4262, %v2230, 0.0
    %v4345 = vadd.f32 %v4343, %v4344
    %v4346 = vsel %vm4262, %v2231, 0.0
    %v4347 = vadd.f32 %v4345, %v4346
    %v4348 = vsel %vm4262, %v2232, 0.0
    %v4349 = vadd.f32 %v4347, %v4348
    %v4350 = vsel %vm4262, %v2233, 0.0
    %v4351 = vadd.f32 %v4349, %v4350
    %v4352 = vsel %vm4262, %v2234, 0.0
    %v4353 = vadd.f32 %v4351, %v4352
    %v4354 = vsel %vm4262, %v2235, 0.0
    %v4355 = vadd.f32 %v4353, %v4354
    %v4356 = vsel %vm4262, %v2236, 0.0
    %v4357 = vadd.f32 %v4355, %v4356
    %v4358 = vsel %vm4262, %v2237, 0.0
    %v4359 = vadd.f32 %v4357, %v4358
    %v4360 = vsel %vm4262, %v2238, 0.0
    %v4361 = vadd.f32 %v4359, %v4360
    %v4362 = vsel %vm4262, %v2239, 0.0
    %v4363 = vadd.f32 %v4361, %v4362
    %v4364 = vsel %vm4262, %v2240, 0.0
    %v4365 = vadd.f32 %v4363, %v4364
    %v4366 = vsel %vm4262, %v2241, 0.0
    %v4367 = vadd.f32 %v4365, %v4366
    %v4368 = vsel %vm4262, %v2242, 0.0
    %v4369 = vadd.f32 %v4367, %v4368
    %v4370 = vsel %vm4262, %v2243, 0.0
    %v4371 = vadd.f32 %v4369, %v4370
    %v4372 = vsel %vm4262, %v2244, 0.0
    %v4373 = vadd.f32 %v4371, %v4372
    %v4374 = vsel %vm4262, %v2245, 0.0
    %v4375 = vadd.f32 %v4373, %v4374
    %v4376 = vsel %vm4262, %v2246, 0.0
    %v4377 = vadd.f32 %v4375, %v4376
    %v4378 = vsel %vm4262, %v2247, 0.0
    %v4379 = vadd.f32 %v4377, %v4378
    %v4380 = vsel %vm4262, %v2248, 0.0
    %v4381 = vadd.f32 %v4379, %v4380
    %v4382 = vsel %vm4262, %v2249, 0.0
    %v4383 = vadd.f32 %v4381, %v4382
    %v4384 = vsel %vm4262, %v2250, 0.0
    %v4385 = vadd.f32 %v4383, %v4384
    %v4386 = vrot.slane %v4385, 4
    %v4387 = vadd.f32 %v4385, %v4386
    %v4388 = vrot.slane %v4387, 2
    %v4389 = vadd.f32 %v4387, %v4388
    %v4390 = vrot.slane %v4389, 1
    %v4391 = vadd.f32 %v4389, %v4390
    %v4392 = vmul.f32 %v2189, %v2189
    %v4393 = vmul.f32 %v2190, %v2190
    %v4394 = vmul.f32 %v2191, %v2191
    %v4395 = vmul.f32 %v2192, %v2192
    %v4396 = vmul.f32 %v2193, %v2193
    %v4397 = vmul.f32 %v2194, %v2194
    %v4398 = vmul.f32 %v2195, %v2195
    %v4399 = vmul.f32 %v2196, %v2196
    %v4400 = vmul.f32 %v2197, %v2197
    %v4401 = vmul.f32 %v2198, %v2198
    %v4402 = vmul.f32 %v2199, %v2199
    %v4403 = vmul.f32 %v2200, %v2200
    %v4404 = vmul.f32 %v2201, %v2201
    %v4405 = vmul.f32 %v2202, %v2202
    %v4406 = vmul.f32 %v2203, %v2203
    %v4407 = vmul.f32 %v2204, %v2204
    %v4408 = vmul.f32 %v2205, %v2205
    %v4409 = vmul.f32 %v2206, %v2206
    %v4410 = vmul.f32 %v2207, %v2207
    %v4411 = vmul.f32 %v2208, %v2208
    %v4412 = vmul.f32 %v2209, %v2209
    %v4413 = vmul.f32 %v2210, %v2210
    %v4414 = vmul.f32 %v2211, %v2211
    %v4415 = vmul.f32 %v2212, %v2212
    %v4416 = vmul.f32 %v2213, %v2213
    %v4417 = vmul.f32 %v2214, %v2214
    %v4418 = vmul.f32 %v2215, %v2215
    %v4419 = vmul.f32 %v2216, %v2216
    %v4420 = vmul.f32 %v2217, %v2217
    %v4421 = vmul.f32 %v2218, %v2218
    %v4422 = vmul.f32 %v2219, %v2219
    %v4423 = vmul.f32 %v2220, %v2220
    %v4424 = vmul.f32 %v2221, %v2221
    %v4425 = vmul.f32 %v2222, %v2222
    %v4426 = vmul.f32 %v2223, %v2223
    %v4427 = vmul.f32 %v2224, %v2224
    %v4428 = vmul.f32 %v2225, %v2225
    %v4429 = vmul.f32 %v2226, %v2226
    %v4430 = vmul.f32 %v2227, %v2227
    %v4431 = vmul.f32 %v2228, %v2228
    %v4432 = vmul.f32 %v2229, %v2229
    %v4433 = vmul.f32 %v2230, %v2230
    %v4434 = vmul.f32 %v2231, %v2231
    %v4435 = vmul.f32 %v2232, %v2232
    %v4436 = vmul.f32 %v2233, %v2233
    %v4437 = vmul.f32 %v2234, %v2234
    %v4438 = vmul.f32 %v2235, %v2235
    %v4439 = vmul.f32 %v2236, %v2236
    %v4440 = vmul.f32 %v2237, %v2237
    %v4441 = vmul.f32 %v2238, %v2238
    %v4442 = vmul.f32 %v2239, %v2239
    %v4443 = vmul.f32 %v2240, %v2240
    %v4444 = vmul.f32 %v2241, %v2241
    %v4445 = vmul.f32 %v2242, %v2242
    %v4446 = vmul.f32 %v2243, %v2243
    %v4447 = vmul.f32 %v2244, %v2244
    %v4448 = vmul.f32 %v2245, %v2245
    %v4449 = vmul.f32 %v2246, %v2246
    %v4450 = vmul.f32 %v2247, %v2247
    %v4451 = vmul.f32 %v2248, %v2248
    %v4452 = vmul.f32 %v2249, %v2249
    %v4453 = vmul.f32 %v2250, %v2250
    %v4454 = vsel %vm4262, %v4392, 0.0
    %v4455 = vsel %vm4262, %v4393, 0.0
    %v4456 = vadd.f32 %v4454, %v4455
    %v4457 = vsel %vm4262, %v4394, 0.0
    %v4458 = vadd.f32 %v4456, %v4457
    %v4459 = vsel %vm4262, %v4395, 0.0
    %v4460 = vadd.f32 %v4458, %v4459
    %v4461 = vsel %vm4262, %v4396, 0.0
    %v4462 = vadd.f32 %v4460, %v4461
    %v4463 = vsel %vm4262, %v4397, 0.0
    %v4464 = vadd.f32 %v4462, %v4463
    %v4465 = vsel %vm4262, %v4398, 0.0
    %v4466 = vadd.f32 %v4464, %v4465
    %v4467 = vsel %vm4262, %v4399, 0.0
    %v4468 = vadd.f32 %v4466, %v4467
    %v4469 = vsel %vm4262, %v4400, 0.0
    %v4470 = vadd.f32 %v4468, %v4469
    %v4471 = vsel %vm4262, %v4401, 0.0
    %v4472 = vadd.f32 %v4470, %v4471
    %v4473 = vsel %vm4262, %v4402, 0.0
    %v4474 = vadd.f32 %v4472, %v4473
    %v4475 = vsel %vm4262, %v4403, 0.0
    %v4476 = vadd.f32 %v4474, %v4475
    %v4477 = vsel %vm4262, %v4404, 0.0
    %v4478 = vadd.f32 %v4476, %v4477
    %v4479 = vsel %vm4262, %v4405, 0.0
    %v4480 = vadd.f32 %v4478, %v4479
    %v4481 = vsel %vm4262, %v4406, 0.0
    %v4482 = vadd.f32 %v4480, %v4481
    %v4483 = vsel %vm4262, %v4407, 0.0
    %v4484 = vadd.f32 %v4482, %v4483
    %v4485 = vsel %vm4262, %v4408, 0.0
    %v4486 = vadd.f32 %v4484, %v4485
    %v4487 = vsel %vm4262, %v4409, 0.0
    %v4488 = vadd.f32 %v4486, %v4487
    %v4489 = vsel %vm4262, %v4410, 0.0
    %v4490 = vadd.f32 %v4488, %v4489
    %v4491 = vsel %vm4262, %v4411, 0.0
    %v4492 = vadd.f32 %v4490, %v4491
    %v4493 = vsel %vm4262, %v4412, 0.0
    %v4494 = vadd.f32 %v4492, %v4493
    %v4495 = vsel %vm4262, %v4413, 0.0
    %v4496 = vadd.f32 %v4494, %v4495
    %v4497 = vsel %vm4262, %v4414, 0.0
    %v4498 = vadd.f32 %v4496, %v4497
    %v4499 = vsel %vm4262, %v4415, 0.0
    %v4500 = vadd.f32 %v4498, %v4499
    %v4501 = vsel %vm4262, %v4416, 0.0
    %v4502 = vadd.f32 %v4500, %v4501
    %v4503 = vsel %vm4262, %v4417, 0.0
    %v4504 = vadd.f32 %v4502, %v4503
    %v4505 = vsel %vm4262, %v4418, 0.0
    %v4506 = vadd.f32 %v4504, %v4505
    %v4507 = vsel %vm4262, %v4419, 0.0
    %v4508 = vadd.f32 %v4506, %v4507
    %v4509 = vsel %vm4262, %v4420, 0.0
    %v4510 = vadd.f32 %v4508, %v4509
    %v4511 = vsel %vm4262, %v4421, 0.0
    %v4512 = vadd.f32 %v4510, %v4511
    %v4513 = vsel %vm4262, %v4422, 0.0
    %v4514 = vadd.f32 %v4512, %v4513
    %v4515 = vsel %vm4262, %v4423, 0.0
    %v4516 = vadd.f32 %v4514, %v4515
    %v4517 = vsel %vm4262, %v4424, 0.0
    %v4518 = vadd.f32 %v4516, %v4517
    %v4519 = vsel %vm4262, %v4425, 0.0
    %v4520 = vadd.f32 %v4518, %v4519
    %v4521 = vsel %vm4262, %v4426, 0.0
    %v4522 = vadd.f32 %v4520, %v4521
    %v4523 = vsel %vm4262, %v4427, 0.0
    %v4524 = vadd.f32 %v4522, %v4523
    %v4525 = vsel %vm4262, %v4428, 0.0
    %v4526 = vadd.f32 %v4524, %v4525
    %v4527 = vsel %vm4262, %v4429, 0.0
    %v4528 = vadd.f32 %v4526, %v4527
    %v4529 = vsel %vm4262, %v4430, 0.0
    %v4530 = vadd.f32 %v4528, %v4529
    %v4531 = vsel %vm4262, %v4431, 0.0
    %v4532 = vadd.f32 %v4530, %v4531
    %v4533 = vsel %vm4262, %v4432, 0.0
    %v4534 = vadd.f32 %v4532, %v4533
    %v4535 = vsel %vm4262, %v4433, 0.0
    %v4536 = vadd.f32 %v4534, %v4535
    %v4537 = vsel %vm4262, %v4434, 0.0
    %v4538 = vadd.f32 %v4536, %v4537
    %v4539 = vsel %vm4262, %v4435, 0.0
    %v4540 = vadd.f32 %v4538, %v4539
    %v4541 = vsel %vm4262, %v4436, 0.0
    %v4542 = vadd.f32 %v4540, %v4541
    %v4543 = vsel %vm4262, %v4437, 0.0
    %v4544 = vadd.f32 %v4542, %v4543
    %v4545 = vsel %vm4262, %v4438, 0.0
    %v4546 = vadd.f32 %v4544, %v4545
    %v4547 = vsel %vm4262, %v4439, 0.0
    %v4548 = vadd.f32 %v4546, %v4547
    %v4549 = vsel %vm4262, %v4440, 0.0
    %v4550 = vadd.f32 %v4548, %v4549
    %v4551 = vsel %vm4262, %v4441, 0.0
    %v4552 = vadd.f32 %v4550, %v4551
    %v4553 = vsel %vm4262, %v4442, 0.0
    %v4554 = vadd.f32 %v4552, %v4553
    %v4555 = vsel %vm4262, %v4443, 0.0
    %v4556 = vadd.f32 %v4554, %v4555
    %v4557 = vsel %vm4262, %v4444, 0.0
    %v4558 = vadd.f32 %v4556, %v4557
    %v4559 = vsel %vm4262, %v4445, 0.0
    %v4560 = vadd.f32 %v4558, %v4559
    %v4561 = vsel %vm4262, %v4446, 0.0
    %v4562 = vadd.f32 %v4560, %v4561
    %v4563 = vsel %vm4262, %v4447, 0.0
    %v4564 = vadd.f32 %v4562, %v4563
    %v4565 = vsel %vm4262, %v4448, 0.0
    %v4566 = vadd.f32 %v4564, %v4565
    %v4567 = vsel %vm4262, %v4449, 0.0
    %v4568 = vadd.f32 %v4566, %v4567
    %v4569 = vsel %vm4262, %v4450, 0.0
    %v4570 = vadd.f32 %v4568, %v4569
    %v4571 = vsel %vm4262, %v4451, 0.0
    %v4572 = vadd.f32 %v4570, %v4571
    %v4573 = vsel %vm4262, %v4452, 0.0
    %v4574 = vadd.f32 %v4572, %v4573
    %v4575 = vsel %vm4262, %v4453, 0.0
    %v4576 = vadd.f32 %v4574, %v4575
    %v4577 = vrot.slane %v4576, 4
    %v4578 = vadd.f32 %v4576, %v4577
    %v4579 = vrot.slane %v4578, 2
    %v4580 = vadd.f32 %v4578, %v4579
    %v4581 = vrot.slane %v4580, 1
    %v4582 = vadd.f32 %v4580, %v4581
    %v4583 = vsel %vm4262, %v4200, 0.0
    %v4584 = vsel %vm4262, %v4201, 0.0
    %v4585 = vadd.f32 %v4583, %v4584
    %v4586 = vsel %vm4262, %v4202, 0.0
    %v4587 = vadd.f32 %v4585, %v4586
    %v4588 = vsel %vm4262, %v4203, 0.0
    %v4589 = vadd.f32 %v4587, %v4588
    %v4590 = vsel %vm4262, %v4204, 0.0
    %v4591 = vadd.f32 %v4589, %v4590
    %v4592 = vsel %vm4262, %v4205, 0.0
    %v4593 = vadd.f32 %v4591, %v4592
    %v4594 = vsel %vm4262, %v4206, 0.0
    %v4595 = vadd.f32 %v4593, %v4594
    %v4596 = vsel %vm4262, %v4207, 0.0
    %v4597 = vadd.f32 %v4595, %v4596
    %v4598 = vsel %vm4262, %v4208, 0.0
    %v4599 = vadd.f32 %v4597, %v4598
    %v4600 = vsel %vm4262, %v4209, 0.0
    %v4601 = vadd.f32 %v4599, %v4600
    %v4602 = vsel %vm4262, %v4210, 0.0
    %v4603 = vadd.f32 %v4601, %v4602
    %v4604 = vsel %vm4262, %v4211, 0.0
    %v4605 = vadd.f32 %v4603, %v4604
    %v4606 = vsel %vm4262, %v4212, 0.0
    %v4607 = vadd.f32 %v4605, %v4606
    %v4608 = vsel %vm4262, %v4213, 0.0
    %v4609 = vadd.f32 %v4607, %v4608
    %v4610 = vsel %vm4262, %v4214, 0.0
    %v4611 = vadd.f32 %v4609, %v4610
    %v4612 = vsel %vm4262, %v4215, 0.0
    %v4613 = vadd.f32 %v4611, %v4612
    %v4614 = vsel %vm4262, %v4216, 0.0
    %v4615 = vadd.f32 %v4613, %v4614
    %v4616 = vsel %vm4262, %v4217, 0.0
    %v4617 = vadd.f32 %v4615, %v4616
    %v4618 = vsel %vm4262, %v4218, 0.0
    %v4619 = vadd.f32 %v4617, %v4618
    %v4620 = vsel %vm4262, %v4219, 0.0
    %v4621 = vadd.f32 %v4619, %v4620
    %v4622 = vsel %vm4262, %v4220, 0.0
    %v4623 = vadd.f32 %v4621, %v4622
    %v4624 = vsel %vm4262, %v4221, 0.0
    %v4625 = vadd.f32 %v4623, %v4624
    %v4626 = vsel %vm4262, %v4222, 0.0
    %v4627 = vadd.f32 %v4625, %v4626
    %v4628 = vsel %vm4262, %v4223, 0.0
    %v4629 = vadd.f32 %v4627, %v4628
    %v4630 = vsel %vm4262, %v4224, 0.0
    %v4631 = vadd.f32 %v4629, %v4630
    %v4632 = vsel %vm4262, %v4225, 0.0
    %v4633 = vadd.f32 %v4631, %v4632
    %v4634 = vsel %vm4262, %v4226, 0.0
    %v4635 = vadd.f32 %v4633, %v4634
    %v4636 = vsel %vm4262, %v4227, 0.0
    %v4637 = vadd.f32 %v4635, %v4636
    %v4638 = vsel %vm4262, %v4228, 0.0
    %v4639 = vadd.f32 %v4637, %v4638
    %v4640 = vsel %vm4262, %v4229, 0.0
    %v4641 = vadd.f32 %v4639, %v4640
    %v4642 = vsel %vm4262, %v4230, 0.0
    %v4643 = vadd.f32 %v4641, %v4642
    %v4644 = vsel %vm4262, %v4231, 0.0
    %v4645 = vadd.f32 %v4643, %v4644
    %v4646 = vsel %vm4262, %v4232, 0.0
    %v4647 = vadd.f32 %v4645, %v4646
    %v4648 = vsel %vm4262, %v4233, 0.0
    %v4649 = vadd.f32 %v4647, %v4648
    %v4650 = vsel %vm4262, %v4234, 0.0
    %v4651 = vadd.f32 %v4649, %v4650
    %v4652 = vsel %vm4262, %v4235, 0.0
    %v4653 = vadd.f32 %v4651, %v4652
    %v4654 = vsel %vm4262, %v4236, 0.0
    %v4655 = vadd.f32 %v4653, %v4654
    %v4656 = vsel %vm4262, %v4237, 0.0
    %v4657 = vadd.f32 %v4655, %v4656
    %v4658 = vsel %vm4262, %v4238, 0.0
    %v4659 = vadd.f32 %v4657, %v4658
    %v4660 = vsel %vm4262, %v4239, 0.0
    %v4661 = vadd.f32 %v4659, %v4660
    %v4662 = vsel %vm4262, %v4240, 0.0
    %v4663 = vadd.f32 %v4661, %v4662
    %v4664 = vsel %vm4262, %v4241, 0.0
    %v4665 = vadd.f32 %v4663, %v4664
    %v4666 = vsel %vm4262, %v4242, 0.0
    %v4667 = vadd.f32 %v4665, %v4666
    %v4668 = vsel %vm4262, %v4243, 0.0
    %v4669 = vadd.f32 %v4667, %v4668
    %v4670 = vsel %vm4262, %v4244, 0.0
    %v4671 = vadd.f32 %v4669, %v4670
    %v4672 = vsel %vm4262, %v4245, 0.0
    %v4673 = vadd.f32 %v4671, %v4672
    %v4674 = vsel %vm4262, %v4246, 0.0
    %v4675 = vadd.f32 %v4673, %v4674
    %v4676 = vsel %vm4262, %v4247, 0.0
    %v4677 = vadd.f32 %v4675, %v4676
    %v4678 = vsel %vm4262, %v4248, 0.0
    %v4679 = vadd.f32 %v4677, %v4678
    %v4680 = vsel %vm4262, %v4249, 0.0
    %v4681 = vadd.f32 %v4679, %v4680
    %v4682 = vsel %vm4262, %v4250, 0.0
    %v4683 = vadd.f32 %v4681, %v4682
    %v4684 = vsel %vm4262, %v4251, 0.0
    %v4685 = vadd.f32 %v4683, %v4684
    %v4686 = vsel %vm4262, %v4252, 0.0
    %v4687 = vadd.f32 %v4685, %v4686
    %v4688 = vsel %vm4262, %v4253, 0.0
    %v4689 = vadd.f32 %v4687, %v4688
    %v4690 = vsel %vm4262, %v4254, 0.0
    %v4691 = vadd.f32 %v4689, %v4690
    %v4692 = vsel %vm4262, %v4255, 0.0
    %v4693 = vadd.f32 %v4691, %v4692
    %v4694 = vsel %vm4262, %v4256, 0.0
    %v4695 = vadd.f32 %v4693, %v4694
    %v4696 = vsel %vm4262, %v4257, 0.0
    %v4697 = vadd.f32 %v4695, %v4696
    %v4698 = vsel %vm4262, %v4258, 0.0
    %v4699 = vadd.f32 %v4697, %v4698
    %v4700 = vsel %vm4262, %v4259, 0.0
    %v4701 = vadd.f32 %v4699, %v4700
    %v4702 = vsel %vm4262, %v4260, 0.0
    %v4703 = vadd.f32 %v4701, %v4702
    %v4704 = vsel %vm4262, %v4261, 0.0
    %v4705 = vadd.f32 %v4703, %v4704
    %v4706 = vrot.slane %v4705, 4
    %v4707 = vadd.f32 %v4705, %v4706
    %v4708 = vrot.slane %v4707, 2
    %v4709 = vadd.f32 %v4707, %v4708
    %v4710 = vrot.slane %v4709, 1
    %v4711 = vadd.f32 %v4709, %v4710
    %v4712 = vadd.f32 %v4391, %v4711
    %v4713 = vmul.f32 %v4200, %v4200
    %v4714 = vmul.f32 %v4201, %v4201
    %v4715 = vmul.f32 %v4202, %v4202
    %v4716 = vmul.f32 %v4203, %v4203
    %v4717 = vmul.f32 %v4204, %v4204
    %v4718 = vmul.f32 %v4205, %v4205
    %v4719 = vmul.f32 %v4206, %v4206
    %v4720 = vmul.f32 %v4207, %v4207
    %v4721 = vmul.f32 %v4208, %v4208
    %v4722 = vmul.f32 %v4209, %v4209
    %v4723 = vmul.f32 %v4210, %v4210
    %v4724 = vmul.f32 %v4211, %v4211
    %v4725 = vmul.f32 %v4212, %v4212
    %v4726 = vmul.f32 %v4213, %v4213
    %v4727 = vmul.f32 %v4214, %v4214
    %v4728 = vmul.f32 %v4215, %v4215
    %v4729 = vmul.f32 %v4216, %v4216
    %v4730 = vmul.f32 %v4217, %v4217
    %v4731 = vmul.f32 %v4218, %v4218
    %v4732 = vmul.f32 %v4219, %v4219
    %v4733 = vmul.f32 %v4220, %v4220
    %v4734 = vmul.f32 %v4221, %v4221
    %v4735 = vmul.f32 %v4222, %v4222
    %v4736 = vmul.f32 %v4223, %v4223
    %v4737 = vmul.f32 %v4224, %v4224
    %v4738 = vmul.f32 %v4225, %v4225
    %v4739 = vmul.f32 %v4226, %v4226
    %v4740 = vmul.f32 %v4227, %v4227
    %v4741 = vmul.f32 %v4228, %v4228
    %v4742 = vmul.f32 %v4229, %v4229
    %v4743 = vmul.f32 %v4230, %v4230
    %v4744 = vmul.f32 %v4231, %v4231
    %v4745 = vmul.f32 %v4232, %v4232
    %v4746 = vmul.f32 %v4233, %v4233
    %v4747 = vmul.f32 %v4234, %v4234
    %v4748 = vmul.f32 %v4235, %v4235
    %v4749 = vmul.f32 %v4236, %v4236
    %v4750 = vmul.f32 %v4237, %v4237
    %v4751 = vmul.f32 %v4238, %v4238
    %v4752 = vmul.f32 %v4239, %v4239
    %v4753 = vmul.f32 %v4240, %v4240
    %v4754 = vmul.f32 %v4241, %v4241
    %v4755 = vmul.f32 %v4242, %v4242
    %v4756 = vmul.f32 %v4243, %v4243
    %v4757 = vmul.f32 %v4244, %v4244
    %v4758 = vmul.f32 %v4245, %v4245
    %v4759 = vmul.f32 %v4246, %v4246
    %v4760 = vmul.f32 %v4247, %v4247
    %v4761 = vmul.f32 %v4248, %v4248
    %v4762 = vmul.f32 %v4249, %v4249
    %v4763 = vmul.f32 %v4250, %v4250
    %v4764 = vmul.f32 %v4251, %v4251
    %v4765 = vmul.f32 %v4252, %v4252
    %v4766 = vmul.f32 %v4253, %v4253
    %v4767 = vmul.f32 %v4254, %v4254
    %v4768 = vmul.f32 %v4255, %v4255
    %v4769 = vmul.f32 %v4256, %v4256
    %v4770 = vmul.f32 %v4257, %v4257
    %v4771 = vmul.f32 %v4258, %v4258
    %v4772 = vmul.f32 %v4259, %v4259
    %v4773 = vmul.f32 %v4260, %v4260
    %v4774 = vmul.f32 %v4261, %v4261
    %v4775 = vsel %vm4262, %v4713, 0.0
    %v4776 = vsel %vm4262, %v4714, 0.0
    %v4777 = vadd.f32 %v4775, %v4776
    %v4778 = vsel %vm4262, %v4715, 0.0
    %v4779 = vadd.f32 %v4777, %v4778
    %v4780 = vsel %vm4262, %v4716, 0.0
    %v4781 = vadd.f32 %v4779, %v4780
    %v4782 = vsel %vm4262, %v4717, 0.0
    %v4783 = vadd.f32 %v4781, %v4782
    %v4784 = vsel %vm4262, %v4718, 0.0
    %v4785 = vadd.f32 %v4783, %v4784
    %v4786 = vsel %vm4262, %v4719, 0.0
    %v4787 = vadd.f32 %v4785, %v4786
    %v4788 = vsel %vm4262, %v4720, 0.0
    %v4789 = vadd.f32 %v4787, %v4788
    %v4790 = vsel %vm4262, %v4721, 0.0
    %v4791 = vadd.f32 %v4789, %v4790
    %v4792 = vsel %vm4262, %v4722, 0.0
    %v4793 = vadd.f32 %v4791, %v4792
    %v4794 = vsel %vm4262, %v4723, 0.0
    %v4795 = vadd.f32 %v4793, %v4794
    %v4796 = vsel %vm4262, %v4724, 0.0
    %v4797 = vadd.f32 %v4795, %v4796
    %v4798 = vsel %vm4262, %v4725, 0.0
    %v4799 = vadd.f32 %v4797, %v4798
    %v4800 = vsel %vm4262, %v4726, 0.0
    %v4801 = vadd.f32 %v4799, %v4800
    %v4802 = vsel %vm4262, %v4727, 0.0
    %v4803 = vadd.f32 %v4801, %v4802
    %v4804 = vsel %vm4262, %v4728, 0.0
    %v4805 = vadd.f32 %v4803, %v4804
    %v4806 = vsel %vm4262, %v4729, 0.0
    %v4807 = vadd.f32 %v4805, %v4806
    %v4808 = vsel %vm4262, %v4730, 0.0
    %v4809 = vadd.f32 %v4807, %v4808
    %v4810 = vsel %vm4262, %v4731, 0.0
    %v4811 = vadd.f32 %v4809, %v4810
    %v4812 = vsel %vm4262, %v4732, 0.0
    %v4813 = vadd.f32 %v4811, %v4812
    %v4814 = vsel %vm4262, %v4733, 0.0
    %v4815 = vadd.f32 %v4813, %v4814
    %v4816 = vsel %vm4262, %v4734, 0.0
    %v4817 = vadd.f32 %v4815, %v4816
    %v4818 = vsel %vm4262, %v4735, 0.0
    %v4819 = vadd.f32 %v4817, %v4818
    %v4820 = vsel %vm4262, %v4736, 0.0
    %v4821 = vadd.f32 %v4819, %v4820
    %v4822 = vsel %vm4262, %v4737, 0.0
    %v4823 = vadd.f32 %v4821, %v4822
    %v4824 = vsel %vm4262, %v4738, 0.0
    %v4825 = vadd.f32 %v4823, %v4824
    %v4826 = vsel %vm4262, %v4739, 0.0
    %v4827 = vadd.f32 %v4825, %v4826
    %v4828 = vsel %vm4262, %v4740, 0.0
    %v4829 = vadd.f32 %v4827, %v4828
    %v4830 = vsel %vm4262, %v4741, 0.0
    %v4831 = vadd.f32 %v4829, %v4830
    %v4832 = vsel %vm4262, %v4742, 0.0
    %v4833 = vadd.f32 %v4831, %v4832
    %v4834 = vsel %vm4262, %v4743, 0.0
    %v4835 = vadd.f32 %v4833, %v4834
    %v4836 = vsel %vm4262, %v4744, 0.0
    %v4837 = vadd.f32 %v4835, %v4836
    %v4838 = vsel %vm4262, %v4745, 0.0
    %v4839 = vadd.f32 %v4837, %v4838
    %v4840 = vsel %vm4262, %v4746, 0.0
    %v4841 = vadd.f32 %v4839, %v4840
    %v4842 = vsel %vm4262, %v4747, 0.0
    %v4843 = vadd.f32 %v4841, %v4842
    %v4844 = vsel %vm4262, %v4748, 0.0
    %v4845 = vadd.f32 %v4843, %v4844
    %v4846 = vsel %vm4262, %v4749, 0.0
    %v4847 = vadd.f32 %v4845, %v4846
    %v4848 = vsel %vm4262, %v4750, 0.0
    %v4849 = vadd.f32 %v4847, %v4848
    %v4850 = vsel %vm4262, %v4751, 0.0
    %v4851 = vadd.f32 %v4849, %v4850
    %v4852 = vsel %vm4262, %v4752, 0.0
    %v4853 = vadd.f32 %v4851, %v4852
    %v4854 = vsel %vm4262, %v4753, 0.0
    %v4855 = vadd.f32 %v4853, %v4854
    %v4856 = vsel %vm4262, %v4754, 0.0
    %v4857 = vadd.f32 %v4855, %v4856
    %v4858 = vsel %vm4262, %v4755, 0.0
    %v4859 = vadd.f32 %v4857, %v4858
    %v4860 = vsel %vm4262, %v4756, 0.0
    %v4861 = vadd.f32 %v4859, %v4860
    %v4862 = vsel %vm4262, %v4757, 0.0
    %v4863 = vadd.f32 %v4861, %v4862
    %v4864 = vsel %vm4262, %v4758, 0.0
    %v4865 = vadd.f32 %v4863, %v4864
    %v4866 = vsel %vm4262, %v4759, 0.0
    %v4867 = vadd.f32 %v4865, %v4866
    %v4868 = vsel %vm4262, %v4760, 0.0
    %v4869 = vadd.f32 %v4867, %v4868
    %v4870 = vsel %vm4262, %v4761, 0.0
    %v4871 = vadd.f32 %v4869, %v4870
    %v4872 = vsel %vm4262, %v4762, 0.0
    %v4873 = vadd.f32 %v4871, %v4872
    %v4874 = vsel %vm4262, %v4763, 0.0
    %v4875 = vadd.f32 %v4873, %v4874
    %v4876 = vsel %vm4262, %v4764, 0.0
    %v4877 = vadd.f32 %v4875, %v4876
    %v4878 = vsel %vm4262, %v4765, 0.0
    %v4879 = vadd.f32 %v4877, %v4878
    %v4880 = vsel %vm4262, %v4766, 0.0
    %v4881 = vadd.f32 %v4879, %v4880
    %v4882 = vsel %vm4262, %v4767, 0.0
    %v4883 = vadd.f32 %v4881, %v4882
    %v4884 = vsel %vm4262, %v4768, 0.0
    %v4885 = vadd.f32 %v4883, %v4884
    %v4886 = vsel %vm4262, %v4769, 0.0
    %v4887 = vadd.f32 %v4885, %v4886
    %v4888 = vsel %vm4262, %v4770, 0.0
    %v4889 = vadd.f32 %v4887, %v4888
    %v4890 = vsel %vm4262, %v4771, 0.0
    %v4891 = vadd.f32 %v4889, %v4890
    %v4892 = vsel %vm4262, %v4772, 0.0
    %v4893 = vadd.f32 %v4891, %v4892
    %v4894 = vsel %vm4262, %v4773, 0.0
    %v4895 = vadd.f32 %v4893, %v4894
    %v4896 = vsel %vm4262, %v4774, 0.0
    %v4897 = vadd.f32 %v4895, %v4896
    %v4898 = vrot.slane %v4897, 4
    %v4899 = vadd.f32 %v4897, %v4898
    %v4900 = vrot.slane %v4899, 2
    %v4901 = vadd.f32 %v4899, %v4900
    %v4902 = vrot.slane %v4901, 1
    %v4903 = vadd.f32 %v4901, %v4902
    %v4904 = vadd.f32 %v4582, %v4903
    %v4905 = vmul.f32 %v4712, 0.0010080645
    %v4906 = vmul.f32 %v4904, 0.0010080645
    %v4907 = vmul.f32 %v4905, %v4905
    %v4908 = vsub.f32 %v4906, %v4907
    %v4909 = vld [vmem:[%s2] sm:$0x1]
    %v4910 = vadd.f32 %v4908, 1e-05
    %v4911 = vrsqrt.pop %v4910
    %v4912 = vmul.f32 %v4911, %v4910
    %v4913 = vmul.f32 %v4912, %v4911
    %v4914 = vmul.f32 0.5, %v4913
    %v4915 = vsub.f32 1.5, %v4914
    %v4916 = vmul.f32 %v4911, %v4915
    %vm4917 = vweird.f32 %v4910
    %vm4918 = vweird.f32 %v4911
    %vm4919 = vmor %vm4917, %vm4918
    %v4920 = vsel %vm4919, %v4911, %v4916
    %v4921 = vmul.f32 %v4909, %v4920
    %v4922 = vld [vmem:[%s3] sm:$0x1]
    %v4923 = vmul.f32 %v4905, %v4921
    %v4924 = vsub.f32 %v4922, %v4923
    %v4925 = vld [vmem:[%s4] sm:$0xff]
    %v4926 = vld [vmem:[%s4 + $0x8] sm:$0xff]
    %v4927 = vld [vmem:[%s4 + $0x10] sm:$0xff]
    %v4928 = vld [vmem:[%s4 + $0x18] sm:$0xff]
    %v4929 = vld [vmem:[%s4 + $0x20] sm:$0xff]
    %v4930 = vld [vmem:[%s4 + $0x28] sm:$0xff]
    %v4931 = vld [vmem:[%s4 + $0x30] sm:$0xff]
    %v4932 = vld [vmem:[%s4 + $0x38] sm:$0xff]
    %v4933 = vld [vmem:[%s4 + $0x40] sm:$0xff]
    %v4934 = vld [vmem:[%s4 + $0x48] sm:$0xff]
    %v4935 = vld [vmem:[%s4 + $0x50] sm:$0xff]
    %v4936 = vld [vmem:[%s4 + $0x58] sm:$0xff]
    %v4937 = vld [vmem:[%s4 + $0x60] sm:$0xff]
    %v4938 = vld [vmem:[%s4 + $0x68] sm:$0xff]
    %v4939 = vld [vmem:[%s4 + $0x70] sm:$0xff]
    %v4940 = vld [vmem:[%s4 + $0x78] sm:$0xff]
    %v4941 = vld [vmem:[%s4 + $0x80] sm:$0xff]
    %v4942 = vld [vmem:[%s4 + $0x88] sm:$0xff]
    %v4943 = vld [vmem:[%s4 + $0x90] sm:$0xff]
    %v4944 = vld [vmem:[%s4 + $0x98] sm:$0xff]
    %v4945 = vld [vmem:[%s4 + $0xa0] sm:$0xff]
    %v4946 = vld [vmem:[%s4 + $0xa8] sm:$0xff]
    %v4947 = vld [vmem:[%s4 + $0xb0] sm:$0xff]
    %v4948 = vld [vmem:[%s4 + $0xb8] sm:$0xff]
    %v4949 = vld [vmem:[%s4 + $0xc0] sm:$0xff]
    %v4950 = vld [vmem:[%s4 + $0xc8] sm:$0xff]
    %v4951 = vld [vmem:[%s4 + $0xd0] sm:$0xff]
    %v4952 = vld [vmem:[%s4 + $0xd8] sm:$0xff]
    %v4953 = vld [vmem:[%s4 + $0xe0] sm:$0xff]
    %v4954 = vld [vmem:[%s4 + $0xe8] sm:$0xff]
    %v4955 = vld [vmem:[%s4 + $0xf0] sm:$0xff]
    %v4956 = vld [vmem:[%s4 + $0xf8] sm:$0xff]
    %v4957 = vld [vmem:[%s4 + $0x100] sm:$0xff]
    %v4958 = vld [vmem:[%s4 + $0x108] sm:$0xff]
    %v4959 = vld [vmem:[%s4 + $0x110] sm:$0xff]
    %v4960 = vld [vmem:[%s4 + $0x118] sm:$0xff]
    %v4961 = vld [vmem:[%s4 + $0x120] sm:$0xff]
    %v4962 = vld [vmem:[%s4 + $0x128] sm:$0xff]
    %v4963 = vld [vmem:[%s4 + $0x130] sm:$0xff]
    %v4964 = vld [vmem:[%s4 + $0x138] sm:$0xff]
    %v4965 = vld [vmem:[%s4 + $0x140] sm:$0xff]
    %v4966 = vld [vmem:[%s4 + $0x148] sm:$0xff]
    %v4967 = vld [vmem:[%s4 + $0x150] sm:$0xff]
    %v4968 = vld [vmem:[%s4 + $0x158] sm:$0xff]
    %v4969 = vld [vmem:[%s4 + $0x160] sm:$0xff]
    %v4970 = vld [vmem:[%s4 + $0x168] sm:$0xff]
    %v4971 = vld [vmem:[%s4 + $0x170] sm:$0xff]
    %v4972 = vld [vmem:[%s4 + $0x178] sm:$0xff]
    %v4973 = vld [vmem:[%s4 + $0x180] sm:$0xff]
    %v4974 = vld [vmem:[%s4 + $0x188] sm:$0xff]
    %v4975 = vld [vmem:[%s4 + $0x190] sm:$0xff]
    %v4976 = vld [vmem:[%s4 + $0x198] sm:$0xff]
    %v4977 = vld [vmem:[%s4 + $0x1a0] sm:$0xff]
    %v4978 = vld [vmem:[%s4 + $0x1a8] sm:$0xff]
    %v4979 = vld [vmem:[%s4 + $0x1b0] sm:$0xff]
    %v4980 = vld [vmem:[%s4 + $0x1b8] sm:$0xff]
    %v4981 = vld [vmem:[%s4 + $0x1c0] sm:$0xff]
    %v4982 = vld [vmem:[%s4 + $0x1c8] sm:$0xff]
    %v4983 = vld [vmem:[%s4 + $0x1d0] sm:$0xff]
    %v4984 = vld [vmem:[%s4 + $0x1d8] sm:$0xff]
    %v4985 = vld [vmem:[%s4 + $0x1e0] sm:$0xf]
    %v4986 = vld [vmem:[%s4 + $0x1e8] sm:$0xf]
    %v4987 = vld [vmem:[%s4 + $0x1f0] sm:$0xf]
    %v4988 = vld [vmem:[%s4 + $0x1f8] sm:$0xf]
    %v4990 = vperm.slane %v4921, 0
    %v4992 = vmul.f32 %v2189, %v4990
    %v4993 = vmul.f32 %v2190, %v4990
    %v4994 = vmul.f32 %v2191, %v4990
    %v4995 = vmul.f32 %v2192, %v4990
    %v4996 = vmul.f32 %v2193, %v4990
    %v4997 = vmul.f32 %v2194, %v4990
    %v4998 = vmul.f32 %v2195, %v4990
    %v4999 = vmul.f32 %v2196, %v4990
    %v5000 = vmul.f32 %v2197, %v4990
    %v5001 = vmul.f32 %v2198, %v4990
    %v5002 = vmul.f32 %v2199, %v4990
    %v5003 = vmul.f32 %v2200, %v4990
    %v5004 = vmul.f32 %v2201, %v4990
    %v5005 = vmul.f32 %v2202, %v4990
    %v5006 = vmul.f32 %v2203, %v4990
    %v5007 = vmul.f32 %v2204, %v4990
    %v5008 = vmul.f32 %v2205, %v4990
    %v5009 = vmul.f32 %v2206, %v4990
    %v5010 = vmul.f32 %v2207, %v4990
    %v5011 = vmul.f32 %v2208, %v4990
    %v5012 = vmul.f32 %v2209, %v4990
    %v5013 = vmul.f32 %v2210, %v4990
    %v5014 = vmul.f32 %v2211, %v4990
    %v5015 = vmul.f32 %v2212, %v4990
    %v5016 = vmul.f32 %v2213, %v4990
    %v5017 = vmul.f32 %v2214, %v4990
    %v5018 = vmul.f32 %v2215, %v4990
    %v5019 = vmul.f32 %v2216, %v4990
    %v5020 = vmul.f32 %v2217, %v4990
    %v5021 = vmul.f32 %v2218, %v4990
    %v5022 = vmul.f32 %v2219, %v4990
    %v5023 = vmul.f32 %v2220, %v4990
    %v5024 = vmul.f32 %v2221, %v4990
    %v5025 = vmul.f32 %v2222, %v4990
    %v5026 = vmul.f32 %v2223, %v4990
    %v5027 = vmul.f32 %v2224, %v4990
    %v5028 = vmul.f32 %v2225, %v4990
    %v5029 = vmul.f32 %v2226, %v4990
    %v5030 = vmul.f32 %v2227, %v4990
    %v5031 = vmul.f32 %v2228, %v4990
    %v5032 = vmul.f32 %v2229, %v4990
    %v5033 = vmul.f32 %v2230, %v4990
    %v5034 = vmul.f32 %v2231, %v4990
    %v5035 = vmul.f32 %v2232, %v4990
    %v5036 = vmul.f32 %v2233, %v4990
    %v5037 = vmul.f32 %v2234, %v4990
    %v5038 = vmul.f32 %v2235, %v4990
    %v5039 = vmul.f32 %v2236, %v4990
    %v5040 = vmul.f32 %v2237, %v4990
    %v5041 = vmul.f32 %v2238, %v4990
    %v5042 = vmul.f32 %v2239, %v4990
    %v5043 = vmul.f32 %v2240, %v4990
    %v5044 = vmul.f32 %v2241, %v4990
    %v5045 = vmul.f32 %v2242, %v4990
    %v5046 = vmul.f32 %v2243, %v4990
    %v5047 = vmul.f32 %v2244, %v4990
    %v5048 = vmul.f32 %v2245, %v4990
    %v5049 = vmul.f32 %v2246, %v4990
    %v5050 = vmul.f32 %v2247, %v4990
    %v5051 = vmul.f32 %v2248, %v4990
    %v5052 = vmul.f32 %v2249, %v4990
    %v5053 = vmul.f32 %v2250, %v4990
    %v5055 = vperm.slane %v4924, 0
    %v5057 = vadd.f32 %v4992, %v5055
    %v5058 = vadd.f32 %v4993, %v5055
    %v5059 = vadd.f32 %v4994, %v5055
    %v5060 = vadd.f32 %v4995, %v5055
    %v5061 = vadd.f32 %v4996, %v5055
    %v5062 = vadd.f32 %v4997, %v5055
    %v5063 = vadd.f32 %v4998, %v5055
    %v5064 = vadd.f32 %v4999, %v5055
    %v5065 = vadd.f32 %v5000, %v5055
    %v5066 = vadd.f32 %v5001, %v5055
    %v5067 = vadd.f32 %v5002, %v5055
    %v5068 = vadd.f32 %v5003, %v5055
    %v5069 = vadd.f32 %v5004, %v5055
    %v5070 = vadd.f32 %v5005, %v5055
    %v5071 = vadd.f32 %v5006, %v5055
    %v5072 = vadd.f32 %v5007, %v5055
    %v5073 = vadd.f32 %v5008, %v5055
    %v5074 = vadd.f32 %v5009, %v5055
    %v5075 = vadd.f32 %v5010, %v5055
    %v5076 = vadd.f32 %v5011, %v5055
    %v5077 = vadd.f32 %v5012, %v5055
    %v5078 = vadd.f32 %v5013, %v5055
    %v5079 = vadd.f32 %v5014, %v5055
    %v5080 = vadd.f32 %v5015, %v5055
    %v5081 = vadd.f32 %v5016, %v5055
    %v5082 = vadd.f32 %v5017, %v5055
    %v5083 = vadd.f32 %v5018, %v5055
    %v5084 = vadd.f32 %v5019, %v5055
    %v5085 = vadd.f32 %v5020, %v5055
    %v5086 = vadd.f32 %v5021, %v5055
    %v5087 = vadd.f32 %v5022, %v5055
    %v5088 = vadd.f32 %v5023, %v5055
    %v5089 = vadd.f32 %v5024, %v5055
    %v5090 = vadd.f32 %v5025, %v5055
    %v5091 = vadd.f32 %v5026, %v5055
    %v5092 = vadd.f32 %v5027, %v5055
    %v5093 = vadd.f32 %v5028, %v5055
    %v5094 = vadd.f32 %v5029, %v5055
    %v5095 = vadd.f32 %v5030, %v5055
    %v5096 = vadd.f32 %v5031, %v5055
    %v5097 = vadd.f32 %v5032, %v5055
    %v5098 = vadd.f32 %v5033, %v5055
    %v5099 = vadd.f32 %v5034, %v5055
    %v5100 = vadd.f32 %v5035, %v5055
    %v5101 = vadd.f32 %v5036, %v5055
    %v5102 = vadd.f32 %v5037, %v5055
    %v5103 = vadd.f32 %v5038, %v5055
    %v5104 = vadd.f32 %v5039, %v5055
    %v5105 = vadd.f32 %v5040, %v5055
    %v5106 = vadd.f32 %v5041, %v5055
    %v5107 = vadd.f32 %v5042, %v5055
    %v5108 = vadd.f32 %v5043, %v5055
    %v5109 = vadd.f32 %v5044, %v5055
    %v5110 = vadd.f32 %v5045, %v5055
    %v5111 = vadd.f32 %v5046, %v5055
    %v5112 = vadd.f32 %v5047, %v5055
    %v5113 = vadd.f32 %v5048, %v5055
    %v5114 = vadd.f32 %v5049, %v5055
    %v5115 = vadd.f32 %v5050, %v5055
    %v5116 = vadd.f32 %v5051, %v5055
    %v5117 = vadd.f32 %v5052, %v5055
    %v5118 = vadd.f32 %v5053, %v5055
    %v5119 = vmax.f32 %v5057, 0.0
    %v5120 = vmax.f32 %v5058, 0.0
    %v5121 = vmax.f32 %v5059, 0.0
    %v5122 = vmax.f32 %v5060, 0.0
    %v5123 = vmax.f32 %v5061, 0.0
    %v5124 = vmax.f32 %v5062, 0.0
    %v5125 = vmax.f32 %v5063, 0.0
    %v5126 = vmax.f32 %v5064, 0.0
    %v5127 = vmax.f32 %v5065, 0.0
    %v5128 = vmax.f32 %v5066, 0.0
    %v5129 = vmax.f32 %v5067, 0.0
    %v5130 = vmax.f32 %v5068, 0.0
    %v5131 = vmax.f32 %v5069, 0.0
    %v5132 = vmax.f32 %v5070, 0.0
    %v5133 = vmax.f32 %v5071, 0.0
    %v5134 = vmax.f32 %v5072, 0.0
    %v5135 = vmax.f32 %v5073, 0.0
    %v5136 = vmax.f32 %v5074, 0.0
    %v5137 = vmax.f32 %v5075, 0.0
    %v5138 = vmax.f32 %v5076, 0.0
    %v5139 = vmax.f32 %v5077, 0.0
    %v5140 = vmax.f32 %v5078, 0.0
    %v5141 = vmax.f32 %v5079, 0.0
    %v5142 = vmax.f32 %v5080, 0.0
    %v5143 = vmax.f32 %v5081, 0.0
    %v5144 = vmax.f32 %v5082, 0.0
    %v5145 = vmax.f32 %v5083, 0.0
    %v5146 = vmax.f32 %v5084, 0.0
    %v5147 = vmax.f32 %v5085, 0.0
    %v5148 = vmax.f32 %v5086, 0.0
    %v5149 = vmax.f32 %v5087, 0.0
    %v5150 = vmax.f32 %v5088, 0.0
    %v5151 = vmax.f32 %v5089, 0.0
    %v5152 = vmax.f32 %v5090, 0.0
    %v5153 = vmax.f32 %v5091, 0.0
    %v5154 = vmax.f32 %v5092, 0.0
    %v5155 = vmax.f32 %v5093, 0.0
    %v5156 = vmax.f32 %v5094, 0.0
    %v5157 = vmax.f32 %v5095, 0.0
    %v5158 = vmax.f32 %v5096, 0.0
    %v5159 = vmax.f32 %v5097, 0.0
    %v5160 = vmax.f32 %v5098, 0.0
    %v5161 = vmax.f32 %v5099, 0.0
    %v5162 = vmax.f32 %v5100, 0.0
    %v5163 = vmax.f32 %v5101, 0.0
    %v5164 = vmax.f32 %v5102, 0.0
    %v5165 = vmax.f32 %v5103, 0.0
    %v5166 = vmax.f32 %v5104, 0.0
    %v5167 = vmax.f32 %v5105, 0.0
    %v5168 = vmax.f32 %v5106, 0.0
    %v5169 = vmax.f32 %v5107, 0.0
    %v5170 = vmax.f32 %v5108, 0.0
    %v5171 = vmax.f32 %v5109, 0.0
    %v5172 = vmax.f32 %v5110, 0.0
    %v5173 = vmax.f32 %v5111, 0.0
    %v5174 = vmax.f32 %v5112, 0.0
    %v5175 = vmax.f32 %v5113, 0.0
    %v5176 = vmax.f32 %v5114, 0.0
    %v5177 = vmax.f32 %v5115, 0.0
    %v5178 = vmax.f32 %v5116, 0.0
    %v5179 = vmax.f32 %v5117, 0.0
    %v5180 = vmax.f32 %v5118, 0.0
    %vm5243 = vcmask 1046528
    %v5244 = vrot.slane %v5119, 1
    %v5245 = vrot.slane %v5120, 1
    %v5246 = vsel %vm5243, %v5244, %v5245
    %v5247 = vrot.slane %v5121, 1
    %v5248 = vsel %vm5243, %v5245, %v5247
    %v5249 = vrot.slane %v5122, 1
    %v5250 = vsel %vm5243, %v5247, %v5249
    %v5251 = vrot.slane %v5123, 1
    %v5252 = vsel %vm5243, %v5249, %v5251
    %v5253 = vrot.slane %v5124, 1
    %v5254 = vsel %vm5243, %v5251, %v5253
    %v5255 = vrot.slane %v5125, 1
    %v5256 = vsel %vm5243, %v5253, %v5255
    %v5257 = vrot.slane %v5126, 1
    %v5258 = vsel %vm5243, %v5255, %v5257
    %v5259 = vrot.slane %v5127, 1
    %v5260 = vsel %vm5243, %v5257, %v5259
    %v5261 = vrot.slane %v5128, 1
    %v5262 = vsel %vm5243, %v5259, %v5261
    %v5263 = vrot.slane %v5129, 1
    %v5264 = vsel %vm5243, %v5261, %v5263
    %v5265 = vrot.slane %v5130, 1
    %v5266 = vsel %vm5243, %v5263, %v5265
    %v5267 = vrot.slane %v5131, 1
    %v5268 = vsel %vm5243, %v5265, %v5267
    %v5269 = vrot.slane %v5132, 1
    %v5270 = vsel %vm5243, %v5267, %v5269
    %v5271 = vrot.slane %v5133, 1
    %v5272 = vsel %vm5243, %v5269, %v5271
    %v5273 = vrot.slane %v5134, 1
    %v5274 = vsel %vm5243, %v5271, %v5273
    %v5275 = vrot.slane %v5135, 1
    %v5276 = vsel %vm5243, %v5273, %v5275
    %v5277 = vrot.slane %v5136, 1
    %v5278 = vsel %vm5243, %v5275, %v5277
    %v5279 = vrot.slane %v5137, 1
    %v5280 = vsel %vm5243, %v5277, %v5279
    %v5281 = vrot.slane %v5138, 1
    %v5282 = vsel %vm5243, %v5279, %v5281
    %v5283 = vrot.slane %v5139, 1
    %v5284 = vsel %vm5243, %v5281, %v5283
    %v5285 = vrot.slane %v5140, 1
    %v5286 = vsel %vm5243, %v5283, %v5285
    %v5287 = vrot.slane %v5141, 1
    %v5288 = vsel %vm5243, %v5285, %v5287
    %v5289 = vrot.slane %v5142, 1
    %v5290 = vsel %vm5243, %v5287, %v5289
    %v5291 = vrot.slane %v5143, 1
    %v5292 = vsel %vm5243, %v5289, %v5291
    %v5293 = vrot.slane %v5144, 1
    %v5294 = vsel %vm5243, %v5291, %v5293
    %v5295 = vrot.slane %v5145, 1
    %v5296 = vsel %vm5243, %v5293, %v5295
    %v5297 = vrot.slane %v5146, 1
    %v5298 = vsel %vm5243, %v5295, %v5297
    %v5299 = vrot.slane %v5147, 1
    %v5300 = vsel %vm5243, %v5297, %v5299
    %v5301 = vrot.slane %v5148, 1
    %v5302 = vsel %vm5243, %v5299, %v5301
    %v5303 = vrot.slane %v5149, 1
    %v5304 = vsel %vm5243, %v5301, %v5303
    %v5305 = vrot.slane %v5150, 1
    %v5306 = vsel %vm5243, %v5303, %v5305
    %v5307 = vrot.slane %v5151, 1
    %v5308 = vsel %vm5243, %v5305, %v5307
    %v5309 = vrot.slane %v5152, 1
    %v5310 = vsel %vm5243, %v5307, %v5309
    %v5311 = vrot.slane %v5153, 1
    %v5312 = vsel %vm5243, %v5309, %v5311
    %v5313 = vrot.slane %v5154, 1
    %v5314 = vsel %vm5243, %v5311, %v5313
    %v5315 = vrot.slane %v5155, 1
    %v5316 = vsel %vm5243, %v5313, %v5315
    %v5317 = vrot.slane %v5156, 1
    %v5318 = vsel %vm5243, %v5315, %v5317
    %v5319 = vrot.slane %v5157, 1
    %v5320 = vsel %vm5243, %v5317, %v5319
    %v5321 = vrot.slane %v5158, 1
    %v5322 = vsel %vm5243, %v5319, %v5321
    %v5323 = vrot.slane %v5159, 1
    %v5324 = vsel %vm5243, %v5321, %v5323
    %v5325 = vrot.slane %v5160, 1
    %v5326 = vsel %vm5243, %v5323, %v5325
    %v5327 = vrot.slane %v5161, 1
    %v5328 = vsel %vm5243, %v5325, %v5327
    %v5329 = vrot.slane %v5162, 1
    %v5330 = vsel %vm5243, %v5327, %v5329
    %v5331 = vrot.slane %v5163, 1
    %v5332 = vsel %vm5243, %v5329, %v5331
    %v5333 = vrot.slane %v5164, 1
    %v5334 = vsel %vm5243, %v5331, %v5333
    %v5335 = vrot.slane %v5165, 1
    %v5336 = vsel %vm5243, %v5333, %v5335
    %v5337 = vrot.slane %v5166, 1
    %v5338 = vsel %vm5243, %v5335, %v5337
    %v5339 = vrot.slane %v5167, 1
    %v5340 = vsel %vm5243, %v5337, %v5339
    %v5341 = vrot.slane %v5168, 1
    %v5342 = vsel %vm5243, %v5339, %v5341
    %v5343 = vrot.slane %v5169, 1
    %v5344 = vsel %vm5243, %v5341, %v5343
    %v5345 = vrot.slane %v5170, 1
    %v5346 = vsel %vm5243, %v5343, %v5345
    %v5347 = vrot.slane %v5171, 1
    %v5348 = vsel %vm5243, %v5345, %v5347
    %v5349 = vrot.slane %v5172, 1
    %v5350 = vsel %vm5243, %v5347, %v5349
    %v5351 = vrot.slane %v5173, 1
    %v5352 = vsel %vm5243, %v5349, %v5351
    %v5353 = vrot.slane %v5174, 1
    %v5354 = vsel %vm5243, %v5351, %v5353
    %v5355 = vrot.slane %v5175, 1
    %v5356 = vsel %vm5243, %v5353, %v5355
    %v5357 = vrot.slane %v5176, 1
    %v5358 = vsel %vm5243, %v5355, %v5357
    %v5359 = vrot.slane %v5177, 1
    %v5360 = vsel %vm5243, %v5357, %v5359
    %v5361 = vrot.slane %v5178, 1
    %v5362 = vsel %vm5243, %v5359, %v5361
    %v5363 = vrot.slane %v5179, 1
    %v5364 = vsel %vm5243, %v5361, %v5363
    %v5365 = vrot.slane %v5180, 1
    %v5366 = vsel %vm5243, %v5363, %v5365
    %v5429 = vmax.f32 %v5119, %v5246
    %v5430 = vmax.f32 %v5120, %v5248
    %v5431 = vmax.f32 %v5121, %v5250
    %v5432 = vmax.f32 %v5122, %v5252
    %v5433 = vmax.f32 %v5123, %v5254
    %v5434 = vmax.f32 %v5124, %v5256
    %v5435 = vmax.f32 %v5125, %v5258
    %v5436 = vmax.f32 %v5126, %v5260
    %v5437 = vmax.f32 %v5127, %v5262
    %v5438 = vmax.f32 %v5128, %v5264
    %v5439 = vmax.f32 %v5129, %v5266
    %v5440 = vmax.f32 %v5130, %v5268
    %v5441 = vmax.f32 %v5131, %v5270
    %v5442 = vmax.f32 %v5132, %v5272
    %v5443 = vmax.f32 %v5133, %v5274
    %v5444 = vmax.f32 %v5134, %v5276
    %v5445 = vmax.f32 %v5135, %v5278
    %v5446 = vmax.f32 %v5136, %v5280
    %v5447 = vmax.f32 %v5137, %v5282
    %v5448 = vmax.f32 %v5138, %v5284
    %v5449 = vmax.f32 %v5139, %v5286
    %v5450 = vmax.f32 %v5140, %v5288
    %v5451 = vmax.f32 %v5141, %v5290
    %v5452 = vmax.f32 %v5142, %v5292
    %v5453 = vmax.f32 %v5143, %v5294
    %v5454 = vmax.f32 %v5144, %v5296
    %v5455 = vmax.f32 %v5145, %v5298
    %v5456 = vmax.f32 %v5146, %v5300
    %v5457 = vmax.f32 %v5147, %v5302
    %v5458 = vmax.f32 %v5148, %v5304
    %v5459 = vmax.f32 %v5149, %v5306
    %v5460 = vmax.f32 %v5150, %v5308
    %v5461 = vmax.f32 %v5151, %v5310
    %v5462 = vmax.f32 %v5152, %v5312
    %v5463 = vmax.f32 %v5153, %v5314
    %v5464 = vmax.f32 %v5154, %v5316
    %v5465 = vmax.f32 %v5155, %v5318
    %v5466 = vmax.f32 %v5156, %v5320
    %v5467 = vmax.f32 %v5157, %v5322
    %v5468 = vmax.f32 %v5158, %v5324
    %v5469 = vmax.f32 %v5159, %v5326
    %v5470 = vmax.f32 %v5160, %v5328
    %v5471 = vmax.f32 %v5161, %v5330
    %v5472 = vmax.f32 %v5162, %v5332
    %v5473 = vmax.f32 %v5163, %v5334
    %v5474 = vmax.f32 %v5164, %v5336
    %v5475 = vmax.f32 %v5165, %v5338
    %v5476 = vmax.f32 %v5166, %v5340
    %v5477 = vmax.f32 %v5167, %v5342
    %v5478 = vmax.f32 %v5168, %v5344
    %v5479 = vmax.f32 %v5169, %v5346
    %v5480 = vmax.f32 %v5170, %v5348
    %v5481 = vmax.f32 %v5171, %v5350
    %v5482 = vmax.f32 %v5172, %v5352
    %v5483 = vmax.f32 %v5173, %v5354
    %v5484 = vmax.f32 %v5174, %v5356
    %v5485 = vmax.f32 %v5175, %v5358
    %v5486 = vmax.f32 %v5176, %v5360
    %v5487 = vmax.f32 %v5177, %v5362
    %v5488 = vmax.f32 %v5178, %v5364
    %v5489 = vmax.f32 %v5179, %v5366
    %v5490 = vmax.f32 %v5180, %v5365
    %vm5553 = vcmask 1045504
    %v5554 = vrot.slane %v5429, 2
    %v5555 = vrot.slane %v5430, 2
    %v5556 = vsel %vm5553, %v5554, %v5555
    %v5557 = vrot.slane %v5431, 2
    %v5558 = vsel %vm5553, %v5555, %v5557
    %v5559 = vrot.slane %v5432, 2
    %v5560 = vsel %vm5553, %v5557, %v5559
    %v5561 = vrot.slane %v5433, 2
    %v5562 = vsel %vm5553, %v5559, %v5561
    %v5563 = vrot.slane %v5434, 2
    %v5564 = vsel %vm5553, %v5561, %v5563
    %v5565 = vrot.slane %v5435, 2
    %v5566 = vsel %vm5553, %v5563, %v5565
    %v5567 = vrot.slane %v5436, 2
    %v5568 = vsel %vm5553, %v5565, %v5567
    %v5569 = vrot.slane %v5437, 2
    %v5570 = vsel %vm5553, %v5567, %v5569
    %v5571 = vrot.slane %v5438, 2
    %v5572 = vsel %vm5553, %v5569, %v5571
    %v5573 = vrot.slane %v5439, 2
    %v5574 = vsel %vm5553, %v5571, %v5573
    %v5575 = vrot.slane %v5440, 2
    %v5576 = vsel %vm5553, %v5573, %v5575
    %v5577 = vrot.slane %v5441, 2
    %v5578 = vsel %vm5553, %v5575, %v5577
    %v5579 = vrot.slane %v5442, 2
    %v5580 = vsel %vm5553, %v5577, %v5579
    %v5581 = vrot.slane %v5443, 2
    %v5582 = vsel %vm5553, %v5579, %v5581
    %v5583 = vrot.slane %v5444, 2
    %v5584 = vsel %vm5553, %v5581, %v5583
    %v5585 = vrot.slane %v5445, 2
    %v5586 = vsel %vm5553, %v5583, %v5585
    %v5587 = vrot.slane %v5446, 2
    %v5588 = vsel %vm5553, %v5585, %v5587
    %v5589 = vrot.slane %v5447, 2
    %v5590 = vsel %vm5553, %v5587, %v5589
    %v5591 = vrot.slane %v5448, 2
    %v5592 = vsel %vm5553, %v5589, %v5591
    %v5593 = vrot.slane %v5449, 2
    %v5594 = vsel %vm5553, %v5591, %v5593
    %v5595 = vrot.slane %v5450, 2
    %v5596 = vsel %vm5553, %v5593, %v5595
    %v5597 = vrot.slane %v5451, 2
    %v5598 = vsel %vm5553, %v5595, %v5597
    %v5599 = vrot.slane %v5452, 2
    %v5600 = vsel %vm5553, %v5597, %v5599
    %v5601 = vrot.slane %v5453, 2
    %v5602 = vsel %vm5553, %v5599, %v5601
    %v5603 = vrot.slane %v5454, 2
    %v5604 = vsel %vm5553, %v5601, %v5603
    %v5605 = vrot.slane %v5455, 2
    %v5606 = vsel %vm5553, %v5603, %v5605
    %v5607 = vrot.slane %v5456, 2
    %v5608 = vsel %vm5553, %v5605, %v5607
    %v5609 = vrot.slane %v5457, 2
    %v5610 = vsel %vm5553, %v5607, %v5609
    %v5611 = vrot.slane %v5458, 2
    %v5612 = vsel %vm5553, %v5609, %v5611
    %v5613 = vrot.slane %v5459, 2
    %v5614 = vsel %vm5553, %v5611, %v5613
    %v5615 = vrot.slane %v5460, 2
    %v5616 = vsel %vm5553, %v5613, %v5615
    %v5617 = vrot.slane %v5461, 2
    %v5618 = vsel %vm5553, %v5615, %v5617
    %v5619 = vrot.slane %v5462, 2
    %v5620 = vsel %vm5553, %v5617, %v5619
    %v5621 = vrot.slane %v5463, 2
    %v5622 = vsel %vm5553, %v5619, %v5621
    %v5623 = vrot.slane %v5464, 2
    %v5624 = vsel %vm5553, %v5621, %v5623
    %v5625 = vrot.slane %v5465, 2
    %v5626 = vsel %vm5553, %v5623, %v5625
    %v5627 = vrot.slane %v5466, 2
    %v5628 = vsel %vm5553, %v5625, %v5627
    %v5629 = vrot.slane %v5467, 2
    %v5630 = vsel %vm5553, %v5627, %v5629
    %v5631 = vrot.slane %v5468, 2
    %v5632 = vsel %vm5553, %v5629, %v5631
    %v5633 = vrot.slane %v5469, 2
    %v5634 = vsel %vm5553, %v5631, %v5633
    %v5635 = vrot.slane %v5470, 2
    %v5636 = vsel %vm5553, %v5633, %v5635
    %v5637 = vrot.slane %v5471, 2
    %v5638 = vsel %vm5553, %v5635, %v5637
    %v5639 = vrot.slane %v5472, 2
    %v5640 = vsel %vm5553, %v5637, %v5639
    %v5641 = vrot.slane %v5473, 2
    %v5642 = vsel %vm5553, %v5639, %v5641
    %v5643 = vrot.slane %v5474, 2
    %v5644 = vsel %vm5553, %v5641, %v5643
    %v5645 = vrot.slane %v5475, 2
    %v5646 = vsel %vm5553, %v5643, %v5645
    %v5647 = vrot.slane %v5476, 2
    %v5648 = vsel %vm5553, %v5645, %v5647
    %v5649 = vrot.slane %v5477, 2
    %v5650 = vsel %vm5553, %v5647, %v5649
    %v5651 = vrot.slane %v5478, 2
    %v5652 = vsel %vm5553, %v5649, %v5651
    %v5653 = vrot.slane %v5479, 2
    %v5654 = vsel %vm5553, %v5651, %v5653
    %v5655 = vrot.slane %v5480, 2
    %v5656 = vsel %vm5553, %v5653, %v5655
    %v5657 = vrot.slane %v5481, 2
    %v5658 = vsel %vm5553, %v5655, %v5657
    %v5659 = vrot.slane %v5482, 2
    %v5660 = vsel %vm5553, %v5657, %v5659
    %v5661 = vrot.slane %v5483, 2
    %v5662 = vsel %vm5553, %v5659, %v5661
    %v5663 = vrot.slane %v5484, 2
    %v5664 = vsel %vm5553, %v5661, %v5663
    %v5665 = vrot.slane %v5485, 2
    %v5666 = vsel %vm5553, %v5663, %v5665
    %v5667 = vrot.slane %v5486, 2
    %v5668 = vsel %vm5553, %v5665, %v5667
    %v5669 = vrot.slane %v5487, 2
    %v5670 = vsel %vm5553, %v5667, %v5669
    %v5671 = vrot.slane %v5488, 2
    %v5672 = vsel %vm5553, %v5669, %v5671
    %v5673 = vrot.slane %v5489, 2
    %v5674 = vsel %vm5553, %v5671, %v5673
    %v5675 = vrot.slane %v5490, 2
    %v5676 = vsel %vm5553, %v5673, %v5675
    %v5739 = vmax.f32 %v5429, %v5556
    %v5740 = vmax.f32 %v5430, %v5558
    %v5741 = vmax.f32 %v5431, %v5560
    %v5742 = vmax.f32 %v5432, %v5562
    %v5743 = vmax.f32 %v5433, %v5564
    %v5744 = vmax.f32 %v5434, %v5566
    %v5745 = vmax.f32 %v5435, %v5568
    %v5746 = vmax.f32 %v5436, %v5570
    %v5747 = vmax.f32 %v5437, %v5572
    %v5748 = vmax.f32 %v5438, %v5574
    %v5749 = vmax.f32 %v5439, %v5576
    %v5750 = vmax.f32 %v5440, %v5578
    %v5751 = vmax.f32 %v5441, %v5580
    %v5752 = vmax.f32 %v5442, %v5582
    %v5753 = vmax.f32 %v5443, %v5584
    %v5754 = vmax.f32 %v5444, %v5586
    %v5755 = vmax.f32 %v5445, %v5588
    %v5756 = vmax.f32 %v5446, %v5590
    %v5757 = vmax.f32 %v5447, %v5592
    %v5758 = vmax.f32 %v5448, %v5594
    %v5759 = vmax.f32 %v5449, %v5596
    %v5760 = vmax.f32 %v5450, %v5598
    %v5761 = vmax.f32 %v5451, %v5600
    %v5762 = vmax.f32 %v5452, %v5602
    %v5763 = vmax.f32 %v5453, %v5604
    %v5764 = vmax.f32 %v5454, %v5606
    %v5765 = vmax.f32 %v5455, %v5608
    %v5766 = vmax.f32 %v5456, %v5610
    %v5767 = vmax.f32 %v5457, %v5612
    %v5768 = vmax.f32 %v5458, %v5614
    %v5769 = vmax.f32 %v5459, %v5616
    %v5770 = vmax.f32 %v5460, %v5618
    %v5771 = vmax.f32 %v5461, %v5620
    %v5772 = vmax.f32 %v5462, %v5622
    %v5773 = vmax.f32 %v5463, %v5624
    %v5774 = vmax.f32 %v5464, %v5626
    %v5775 = vmax.f32 %v5465, %v5628
    %v5776 = vmax.f32 %v5466, %v5630
    %v5777 = vmax.f32 %v5467, %v5632
    %v5778 = vmax.f32 %v5468, %v5634
    %v5779 = vmax.f32 %v5469, %v5636
    %v5780 = vmax.f32 %v5470, %v5638
    %v5781 = vmax.f32 %v5471, %v5640
    %v5782 = vmax.f32 %v5472, %v5642
    %v5783 = vmax.f32 %v5473, %v5644
    %v5784 = vmax.f32 %v5474, %v5646
    %v5785 = vmax.f32 %v5475, %v5648
    %v5786 = vmax.f32 %v5476, %v5650
    %v5787 = vmax.f32 %v5477, %v5652
    %v5788 = vmax.f32 %v5478, %v5654
    %v5789 = vmax.f32 %v5479, %v5656
    %v5790 = vmax.f32 %v5480, %v5658
    %v5791 = vmax.f32 %v5481, %v5660
    %v5792 = vmax.f32 %v5482, %v5662
    %v5793 = vmax.f32 %v5483, %v5664
    %v5794 = vmax.f32 %v5484, %v5666
    %v5795 = vmax.f32 %v5485, %v5668
    %v5796 = vmax.f32 %v5486, %v5670
    %v5797 = vmax.f32 %v5487, %v5672
    %v5798 = vmax.f32 %v5488, %v5674
    %v5799 = vmax.f32 %v5489, %v5676
    %v5800 = vmax.f32 %v5490, %v5675
    %vm5801 = vcmask 891904
    %v5803 = vsel %vm5801, %v4928, 0
    %v5806 = vsel %vm5801, %v4932, 0
    %v5809 = vsel %vm5801, %v4936, 0
    %v5812 = vsel %vm5801, %v4940, 0
    %v5815 = vsel %vm5801, %v4944, 0
    %v5818 = vsel %vm5801, %v4948, 0
    %v5821 = vsel %vm5801, %v4952, 0
    %v5824 = vsel %vm5801, %v4956, 0
    %v5827 = vsel %vm5801, %v4960, 0
    %v5830 = vsel %vm5801, %v4964, 0
    %v5833 = vsel %vm5801, %v4968, 0
    %v5836 = vsel %vm5801, %v4972, 0
    %v5839 = vsel %vm5801, %v4976, 0
    %v5842 = vsel %vm5801, %v4980, 0
    %v5845 = vsel %vm5801, %v4984, 0
    %v5848 = vsel %vm5801, %v4988, 0
    %vm5850 = vcmask 1044480
    %v5852 = vsel %vm5850, %v5800, 0
    %5854 = vmatpush.msra.mxu0 %v5754
    %5855 = vmatpush.msra.mxu0 %v5753
    %5856 = vmatpush.msra.mxu0 %v5752
    %5857 = vmatpush.msra.mxu0 %v5751
    %5858 = vmatpush.msra.mxu0 %v5750
    %5859 = vmatpush.msra.mxu0 %v5749
    %5860 = vmatpush.msra.mxu0 %v5748
    %5861 = vmatpush.msra.mxu0 %v5747
    %5862 = vmatpush.msra.mxu0 %v5746
    %5863 = vmatpush.msra.mxu0 %v5745
    %5864 = vmatpush.msra.mxu0 %v5744
    %5865 = vmatpush.msra.mxu0 %v5743
    %5866 = vmatpush.msra.mxu0 %v5742
    %5867 = vmatpush.msra.mxu0 %v5741
    %5868 = vmatpush.msra.mxu0 %v5740
    %5869 = vmatpush.msra.mxu0 %v5739
    %5870 = vmatmul.f32.gmra.mxu0 %v4925
    %v5871 = vpop.f32.mrf.mxu0
    %v5872 = vadd.f32 0.0, %v5871
    %5873 = vmatmul.f32.gmra.mxu0 %v4929
    %v5874 = vpop.f32.mrf.mxu0
    %v5875 = vadd.f32 0.0, %v5874
    %5876 = vmatmul.f32.gmra.mxu0 %v4933
    %v5877 = vpop.f32.mrf.mxu0
    %v5878 = vadd.f32 0.0, %v5877
    %5879 = vmatmul.f32.gmra.mxu0 %v4937
    %v5880 = vpop.f32.mrf.mxu0
    %v5881 = vadd.f32 0.0, %v5880
    %5882 = vmatmul.f32.gmra.mxu0 %v4941
    %v5883 = vpop.f32.mrf.mxu0
    %v5884 = vadd.f32 0.0, %v5883
    %5885 = vmatmul.f32.gmra.mxu0 %v4945
    %v5886 = vpop.f32.mrf.mxu0
    %v5887 = vadd.f32 0.0, %v5886
    %5888 = vmatmul.f32.gmra.mxu0 %v4949
    %v5889 = vpop.f32.mrf.mxu0
    %v5890 = vadd.f32 0.0, %v5889
    %5891 = vmatmul.f32.gmra.mxu0 %v4953
    %v5892 = vpop.f32.mrf.mxu0
    %v5893 = vadd.f32 0.0, %v5892
    %5894 = vmatmul.f32.gmra.mxu0 %v4957
    %v5895 = vpop.f32.mrf.mxu0
    %v5896 = vadd.f32 0.0, %v5895
    %5897 = vmatmul.f32.gmra.mxu0 %v4961
    %v5898 = vpop.f32.mrf.mxu0
    %v5899 = vadd.f32 0.0, %v5898
    %5900 = vmatmul.f32.gmra.mxu0 %v4965
    %v5901 = vpop.f32.mrf.mxu0
    %v5902 = vadd.f32 0.0, %v5901
    %5903 = vmatmul.f32.gmra.mxu0 %v4969
    %v5904 = vpop.f32.mrf.mxu0
    %v5905 = vadd.f32 0.0, %v5904
    %5906 = vmatmul.f32.gmra.mxu0 %v4973
    %v5907 = vpop.f32.mrf.mxu0
    %v5908 = vadd.f32 0.0, %v5907
    %5909 = vmatmul.f32.gmra.mxu0 %v4977
    %v5910 = vpop.f32.mrf.mxu0
    %v5911 = vadd.f32 0.0, %v5910
    %5912 = vmatmul.f32.gmra.mxu0 %v4981
    %v5913 = vpop.f32.mrf.mxu0
    %v5914 = vadd.f32 0.0, %v5913
    %5915 = vmatmul.f32.gmra.mxu0 %v4985
    %v5916 = vpop.f32.mrf.mxu0
    %v5917 = vadd.f32 0.0, %v5916
    %5918 = vdwg.mxu0
    %5919 = vmatpush.msra.mxu0 %v5770
    %5920 = vmatpush.msra.mxu0 %v5769
    %5921 = vmatpush.msra.mxu0 %v5768
    %5922 = vmatpush.msra.mxu0 %v5767
    %5923 = vmatpush.msra.mxu0 %v5766
    %5924 = vmatpush.msra.mxu0 %v5765
    %5925 = vmatpush.msra.mxu0 %v5764
    %5926 = vmatpush.msra.mxu0 %v5763
    %5927 = vmatpush.msra.mxu0 %v5762
    %5928 = vmatpush.msra.mxu0 %v5761
    %5929 = vmatpush.msra.mxu0 %v5760
    %5930 = vmatpush.msra.mxu0 %v5759
    %5931 = vmatpush.msra.mxu0 %v5758
    %5932 = vmatpush.msra.mxu0 %v5757
    %5933 = vmatpush.msra.mxu0 %v5756
    %5934 = vmatpush.msra.mxu0 %v5755
    %5935 = vmatmul.f32.gmra.mxu0 %v4926
    %v5936 = vpop.f32.mrf.mxu0
    %v5937 = vadd.f32 %v5872, %v5936
    %5938 = vmatmul.f32.gmra.mxu0 %v4930
    %v5939 = vpop.f32.mrf.mxu0
    %v5940 = vadd.f32 %v5875, %v5939
    %5941 = vmatmul.f32.gmra.mxu0 %v4934
    %v5942 = vpop.f32.mrf.mxu0
    %v5943 = vadd.f32 %v5878, %v5942
    %5944 = vmatmul.f32.gmra.mxu0 %v4938
    %v5945 = vpop.f32.mrf.mxu0
    %v5946 = vadd.f32 %v5881, %v5945
    %5947 = vmatmul.f32.gmra.mxu0 %v4942
    %v5948 = vpop.f32.mrf.mxu0
    %v5949 = vadd.f32 %v5884, %v5948
    %5950 = vmatmul.f32.gmra.mxu0 %v4946
    %v5951 = vpop.f32.mrf.mxu0
    %v5952 = vadd.f32 %v5887, %v5951
    %5953 = vmatmul.f32.gmra.mxu0 %v4950
    %v5954 = vpop.f32.mrf.mxu0
    %v5955 = vadd.f32 %v5890, %v5954
    %5956 = vmatmul.f32.gmra.mxu0 %v4954
    %v5957 = vpop.f32.mrf.mxu0
    %v5958 = vadd.f32 %v5893, %v5957
    %5959 = vmatmul.f32.gmra.mxu0 %v4958
    %v5960 = vpop.f32.mrf.mxu0
    %v5961 = vadd.f32 %v5896, %v5960
    %5962 = vmatmul.f32.gmra.mxu0 %v4962
    %v5963 = vpop.f32.mrf.mxu0
    %v5964 = vadd.f32 %v5899, %v5963
    %5965 = vmatmul.f32.gmra.mxu0 %v4966
    %v5966 = vpop.f32.mrf.mxu0
    %v5967 = vadd.f32 %v5902, %v5966
    %5968 = vmatmul.f32.gmra.mxu0 %v4970
    %v5969 = vpop.f32.mrf.mxu0
    %v5970 = vadd.f32 %v5905, %v5969
    %5971 = vmatmul.f32.gmra.mxu0 %v4974
    %v5972 = vpop.f32.mrf.mxu0
    %v5973 = vadd.f32 %v5908, %v5972
    %5974 = vmatmul.f32.gmra.mxu0 %v4978
    %v5975 = vpop.f32.mrf.mxu0
    %v5976 = vadd.f32 %v5911, %v5975
    %5977 = vmatmul.f32.gmra.mxu0 %v4982
    %v5978 = vpop.f32.mrf.mxu0
    %v5979 = vadd.f32 %v5914, %v5978
    %5980 = vmatmul.f32.gmra.mxu0 %v4986
    %v5981 = vpop.f32.mrf.mxu0
    %v5982 = vadd.f32 %v5917, %v5981
    %5983 = vdwg.mxu0
    %5984 = vmatpush.msra.mxu0 %v5786
    %5985 = vmatpush.msra.mxu0 %v5785
    %5986 = vmatpush.msra.mxu0 %v5784
    %5987 = vmatpush.msra.mxu0 %v5783
    %5988 = vmatpush.msra.mxu0 %v5782
    %5989 = vmatpush.msra.mxu0 %v5781
    %5990 = vmatpush.msra.mxu0 %v5780
    %5991 = vmatpush.msra.mxu0 %v5779
    %5992 = vmatpush.msra.mxu0 %v5778
    %5993 = vmatpush.msra.mxu0 %v5777
    %5994 = vmatpush.msra.mxu0 %v5776
    %5995 = vmatpush.msra.mxu0 %v5775
    %5996 = vmatpush.msra.mxu0 %v5774
    %5997 = vmatpush.msra.mxu0 %v5773
    %5998 = vmatpush.msra.mxu0 %v5772
    %5999 = vmatpush.msra.mxu0 %v5771
    %6000 = vmatmul.f32.gmra.mxu0 %v4927
    %v6001 = vpop.f32.mrf.mxu0
    %v6002 = vadd.f32 %v5937, %v6001
    %6003 = vmatmul.f32.gmra.mxu0 %v4931
    %v6004 = vpop.f32.mrf.mxu0
    %v6005 = vadd.f32 %v5940, %v6004
    %6006 = vmatmul.f32.gmra.mxu0 %v4935
    %v6007 = vpop.f32.mrf.mxu0
    %v6008 = vadd.f32 %v5943, %v6007
    %6009 = vmatmul.f32.gmra.mxu0 %v4939
    %v6010 = vpop.f32.mrf.mxu0
    %v6011 = vadd.f32 %v5946, %v6010
    %6012 = vmatmul.f32.gmra.mxu0 %v4943
    %v6013 = vpop.f32.mrf.mxu0
    %v6014 = vadd.f32 %v5949, %v6013
    %6015 = vmatmul.f32.gmra.mxu0 %v4947
    %v6016 = vpop.f32.mrf.mxu0
    %v6017 = vadd.f32 %v5952, %v6016
    %6018 = vmatmul.f32.gmra.mxu0 %v4951
    %v6019 = vpop.f32.mrf.mxu0
    %v6020 = vadd.f32 %v5955, %v6019
    %6021 = vmatmul.f32.gmra.mxu0 %v4955
    %v6022 = vpop.f32.mrf.mxu0
    %v6023 = vadd.f32 %v5958, %v6022
    %6024 = vmatmul.f32.gmra.mxu0 %v4959
    %v6025 = vpop.f32.mrf.mxu0
    %v6026 = vadd.f32 %v5961, %v6025
    %6027 = vmatmul.f32.gmra.mxu0 %v4963
    %v6028 = vpop.f32.mrf.mxu0
    %v6029 = vadd.f32 %v5964, %v6028
    %6030 = vmatmul.f32.gmra.mxu0 %v4967
    %v6031 = vpop.f32.mrf.mxu0
    %v6032 = vadd.f32 %v5967, %v6031
    %6033 = vmatmul.f32.gmra.mxu0 %v4971
    %v6034 = vpop.f32.mrf.mxu0
    %v6035 = vadd.f32 %v5970, %v6034
    %6036 = vmatmul.f32.gmra.mxu0 %v4975
    %v6037 = vpop.f32.mrf.mxu0
    %v6038 = vadd.f32 %v5973, %v6037
    %6039 = vmatmul.f32.gmra.mxu0 %v4979
    %v6040 = vpop.f32.mrf.mxu0
    %v6041 = vadd.f32 %v5976, %v6040
    %6042 = vmatmul.f32.gmra.mxu0 %v4983
    %v6043 = vpop.f32.mrf.mxu0
    %v6044 = vadd.f32 %v5979, %v6043
    %6045 = vmatmul.f32.gmra.mxu0 %v4987
    %v6046 = vpop.f32.mrf.mxu0
    %v6047 = vadd.f32 %v5982, %v6046
    %6048 = vdwg.mxu0
    %6049 = vmatpush.msra.mxu0 0.0
    %6050 = vmatpush.msra.mxu0 0.0
    %6051 = vmatpush.msra.mxu0 %v5852
    %6052 = vmatpush.msra.mxu0 %v5799
    %6053 = vmatpush.msra.mxu0 %v5798
    %6054 = vmatpush.msra.mxu0 %v5797
    %6055 = vmatpush.msra.mxu0 %v5796
    %6056 = vmatpush.msra.mxu0 %v5795
    %6057 = vmatpush.msra.mxu0 %v5794
    %6058 = vmatpush.msra.mxu0 %v5793
    %6059 = vmatpush.msra.mxu0 %v5792
    %6060 = vmatpush.msra.mxu0 %v5791
    %6061 = vmatpush.msra.mxu0 %v5790
    %6062 = vmatpush.msra.mxu0 %v5789
    %6063 = vmatpush.msra.mxu0 %v5788
    %6064 = vmatpush.msra.mxu0 %v5787
    %6065 = vmatmul.f32.gmra.mxu0 %v5803
    %v6066 = vpop.f32.mrf.mxu0
    %v6067 = vadd.f32 %v6002, %v6066
    %6068 = vmatmul.f32.gmra.mxu0 %v5806
    %v6069 = vpop.f32.mrf.mxu0
    %v6070 = vadd.f32 %v6005, %v6069
    %6071 = vmatmul.f32.gmra.mxu0 %v5809
    %v6072 = vpop.f32.mrf.mxu0
    %v6073 = vadd.f32 %v6008, %v6072
    %6074 = vmatmul.f32.gmra.mxu0 %v5812
    %v6075 = vpop.f32.mrf.mxu0
    %v6076 = vadd.f32 %v6011, %v6075
    %6077 = vmatmul.f32.gmra.mxu0 %v5815
    %v6078 = vpop.f32.mrf.mxu0
    %v6079 = vadd.f32 %v6014, %v6078
    %6080 = vmatmul.f32.gmra.mxu0 %v5818
    %v6081 = vpop.f32.mrf.mxu0
    %v6082 = vadd.f32 %v6017, %v6081
    %6083 = vmatmul.f32.gmra.mxu0 %v5821
    %v6084 = vpop.f32.mrf.mxu0
    %v6085 = vadd.f32 %v6020, %v6084
    %6086 = vmatmul.f32.gmra.mxu0 %v5824
    %v6087 = vpop.f32.mrf.mxu0
    %v6088 = vadd.f32 %v6023, %v6087
    %6089 = vmatmul.f32.gmra.mxu0 %v5827
    %v6090 = vpop.f32.mrf.mxu0
    %v6091 = vadd.f32 %v6026, %v6090
    %6092 = vmatmul.f32.gmra.mxu0 %v5830
    %v6093 = vpop.f32.mrf.mxu0
    %v6094 = vadd.f32 %v6029, %v6093
    %6095 = vmatmul.f32.gmra.mxu0 %v5833
    %v6096 = vpop.f32.mrf.mxu0
    %v6097 = vadd.f32 %v6032, %v6096
    %6098 = vmatmul.f32.gmra.mxu0 %v5836
    %v6099 = vpop.f32.mrf.mxu0
    %v6100 = vadd.f32 %v6035, %v6099
    %6101 = vmatmul.f32.gmra.mxu0 %v5839
    %v6102 = vpop.f32.mrf.mxu0
    %v6103 = vadd.f32 %v6038, %v6102
    %6104 = vmatmul.f32.gmra.mxu0 %v5842
    %v6105 = vpop.f32.mrf.mxu0
    %v6106 = vadd.f32 %v6041, %v6105
    %6107 = vmatmul.f32.gmra.mxu0 %v5845
    %v6108 = vpop.f32.mrf.mxu0
    %v6109 = vadd.f32 %v6044, %v6108
    %6110 = vmatmul.f32.gmra.mxu0 %v5848
    %v6111 = vpop.f32.mrf.mxu0
    %v6112 = vadd.f32 %v6047, %v6111
    %6113 = vdwg.mxu0
    %v6114 = vmul.f32 %v4200, %v4990
    %v6115 = vmul.f32 %v4201, %v4990
    %v6116 = vmul.f32 %v4202, %v4990
    %v6117 = vmul.f32 %v4203, %v4990
    %v6118 = vmul.f32 %v4204, %v4990
    %v6119 = vmul.f32 %v4205, %v4990
    %v6120 = vmul.f32 %v4206, %v4990
    %v6121 = vmul.f32 %v4207, %v4990
    %v6122 = vmul.f32 %v4208, %v4990
    %v6123 = vmul.f32 %v4209, %v4990
    %v6124 = vmul.f32 %v4210, %v4990
    %v6125 = vmul.f32 %v4211, %v4990
    %v6126 = vmul.f32 %v4212, %v4990
    %v6127 = vmul.f32 %v4213, %v4990
    %v6128 = vmul.f32 %v4214, %v4990
    %v6129 = vmul.f32 %v4215, %v4990
    %v6130 = vmul.f32 %v4216, %v4990
    %v6131 = vmul.f32 %v4217, %v4990
    %v6132 = vmul.f32 %v4218, %v4990
    %v6133 = vmul.f32 %v4219, %v4990
    %v6134 = vmul.f32 %v4220, %v4990
    %v6135 = vmul.f32 %v4221, %v4990
    %v6136 = vmul.f32 %v4222, %v4990
    %v6137 = vmul.f32 %v4223, %v4990
    %v6138 = vmul.f32 %v4224, %v4990
    %v6139 = vmul.f32 %v4225, %v4990
    %v6140 = vmul.f32 %v4226, %v4990
    %v6141 = vmul.f32 %v4227, %v4990
    %v6142 = vmul.f32 %v4228, %v4990
    %v6143 = vmul.f32 %v4229, %v4990
    %v6144 = vmul.f32 %v4230, %v4990
    %v6145 = vmul.f32 %v4231, %v4990
    %v6146 = vmul.f32 %v4232, %v4990
    %v6147 = vmul.f32 %v4233, %v4990
    %v6148 = vmul.f32 %v4234, %v4990
    %v6149 = vmul.f32 %v4235, %v4990
    %v6150 = vmul.f32 %v4236, %v4990
    %v6151 = vmul.f32 %v4237, %v4990
    %v6152 = vmul.f32 %v4238, %v4990
    %v6153 = vmul.f32 %v4239, %v4990
    %v6154 = vmul.f32 %v4240, %v4990
    %v6155 = vmul.f32 %v4241, %v4990
    %v6156 = vmul.f32 %v4242, %v4990
    %v6157 = vmul.f32 %v4243, %v4990
    %v6158 = vmul.f32 %v4244, %v4990
    %v6159 = vmul.f32 %v4245, %v4990
    %v6160 = vmul.f32 %v4246, %v4990
    %v6161 = vmul.f32 %v4247, %v4990
    %v6162 = vmul.f32 %v4248, %v4990
    %v6163 = vmul.f32 %v4249, %v4990
    %v6164 = vmul.f32 %v4250, %v4990
    %v6165 = vmul.f32 %v4251, %v4990
    %v6166 = vmul.f32 %v4252, %v4990
    %v6167 = vmul.f32 %v4253, %v4990
    %v6168 = vmul.f32 %v4254, %v4990
    %v6169 = vmul.f32 %v4255, %v4990
    %v6170 = vmul.f32 %v4256, %v4990
    %v6171 = vmul.f32 %v4257, %v4990
    %v6172 = vmul.f32 %v4258, %v4990
    %v6173 = vmul.f32 %v4259, %v4990
    %v6174 = vmul.f32 %v4260, %v4990
    %v6175 = vmul.f32 %v4261, %v4990
    %v6176 = vadd.f32 %v6114, %v5055
    %v6177 = vadd.f32 %v6115, %v5055
    %v6178 = vadd.f32 %v6116, %v5055
    %v6179 = vadd.f32 %v6117, %v5055
    %v6180 = vadd.f32 %v6118, %v5055
    %v6181 = vadd.f32 %v6119, %v5055
    %v6182 = vadd.f32 %v6120, %v5055
    %v6183 = vadd.f32 %v6121, %v5055
    %v6184 = vadd.f32 %v6122, %v5055
    %v6185 = vadd.f32 %v6123, %v5055
    %v6186 = vadd.f32 %v6124, %v5055
    %v6187 = vadd.f32 %v6125, %v5055
    %v6188 = vadd.f32 %v6126, %v5055
    %v6189 = vadd.f32 %v6127, %v5055
    %v6190 = vadd.f32 %v6128, %v5055
    %v6191 = vadd.f32 %v6129, %v5055
    %v6192 = vadd.f32 %v6130, %v5055
    %v6193 = vadd.f32 %v6131, %v5055
    %v6194 = vadd.f32 %v6132, %v5055
    %v6195 = vadd.f32 %v6133, %v5055
    %v6196 = vadd.f32 %v6134, %v5055
    %v6197 = vadd.f32 %v6135, %v5055
    %v6198 = vadd.f32 %v6136, %v5055
    %v6199 = vadd.f32 %v6137, %v5055
    %v6200 = vadd.f32 %v6138, %v5055
    %v6201 = vadd.f32 %v6139, %v5055
    %v6202 = vadd.f32 %v6140, %v5055
    %v6203 = vadd.f32 %v6141, %v5055
    %v6204 = vadd.f32 %v6142, %v5055
    %v6205 = vadd.f32 %v6143, %v5055
    %v6206 = vadd.f32 %v6144, %v5055
    %v6207 = vadd.f32 %v6145, %v5055
    %v6208 = vadd.f32 %v6146, %v5055
    %v6209 = vadd.f32 %v6147, %v5055
    %v6210 = vadd.f32 %v6148, %v5055
    %v6211 = vadd.f32 %v6149, %v5055
    %v6212 = vadd.f32 %v6150, %v5055
    %v6213 = vadd.f32 %v6151, %v5055
    %v6214 = vadd.f32 %v6152, %v5055
    %v6215 = vadd.f32 %v6153, %v5055
    %v6216 = vadd.f32 %v6154, %v5055
    %v6217 = vadd.f32 %v6155, %v5055
    %v6218 = vadd.f32 %v6156, %v5055
    %v6219 = vadd.f32 %v6157, %v5055
    %v6220 = vadd.f32 %v6158, %v5055
    %v6221 = vadd.f32 %v6159, %v5055
    %v6222 = vadd.f32 %v6160, %v5055
    %v6223 = vadd.f32 %v6161, %v5055
    %v6224 = vadd.f32 %v6162, %v5055
    %v6225 = vadd.f32 %v6163, %v5055
    %v6226 = vadd.f32 %v6164, %v5055
    %v6227 = vadd.f32 %v6165, %v5055
    %v6228 = vadd.f32 %v6166, %v5055
    %v6229 = vadd.f32 %v6167, %v5055
    %v6230 = vadd.f32 %v6168, %v5055
    %v6231 = vadd.f32 %v6169, %v5055
    %v6232 = vadd.f32 %v6170, %v5055
    %v6233 = vadd.f32 %v6171, %v5055
    %v6234 = vadd.f32 %v6172, %v5055
    %v6235 = vadd.f32 %v6173, %v5055
    %v6236 = vadd.f32 %v6174, %v5055
    %v6237 = vadd.f32 %v6175, %v5055
    %v6238 = vmax.f32 %v6176, 0.0
    %v6239 = vmax.f32 %v6177, 0.0
    %v6240 = vmax.f32 %v6178, 0.0
    %v6241 = vmax.f32 %v6179, 0.0
    %v6242 = vmax.f32 %v6180, 0.0
    %v6243 = vmax.f32 %v6181, 0.0
    %v6244 = vmax.f32 %v6182, 0.0
    %v6245 = vmax.f32 %v6183, 0.0
    %v6246 = vmax.f32 %v6184, 0.0
    %v6247 = vmax.f32 %v6185, 0.0
    %v6248 = vmax.f32 %v6186, 0.0
    %v6249 = vmax.f32 %v6187, 0.0
    %v6250 = vmax.f32 %v6188, 0.0
    %v6251 = vmax.f32 %v6189, 0.0
    %v6252 = vmax.f32 %v6190, 0.0
    %v6253 = vmax.f32 %v6191, 0.0
    %v6254 = vmax.f32 %v6192, 0.0
    %v6255 = vmax.f32 %v6193, 0.0
    %v6256 = vmax.f32 %v6194, 0.0
    %v6257 = vmax.f32 %v6195, 0.0
    %v6258 = vmax.f32 %v6196, 0.0
    %v6259 = vmax.f32 %v6197, 0.0
    %v6260 = vmax.f32 %v6198, 0.0
    %v6261 = vmax.f32 %v6199, 0.0
    %v6262 = vmax.f32 %v6200, 0.0
    %v6263 = vmax.f32 %v6201, 0.0
    %v6264 = vmax.f32 %v6202, 0.0
    %v6265 = vmax.f32 %v6203, 0.0
    %v6266 = vmax.f32 %v6204, 0.0
    %v6267 = vmax.f32 %v6205, 0.0
    %v6268 = vmax.f32 %v6206, 0.0
    %v6269 = vmax.f32 %v6207, 0.0
    %v6270 = vmax.f32 %v6208, 0.0
    %v6271 = vmax.f32 %v6209, 0.0
    %v6272 = vmax.f32 %v6210, 0.0
    %v6273 = vmax.f32 %v6211, 0.0
    %v6274 = vmax.f32 %v6212, 0.0
    %v6275 = vmax.f32 %v6213, 0.0
    %v6276 = vmax.f32 %v6214, 0.0
    %v6277 = vmax.f32 %v6215, 0.0
    %v6278 = vmax.f32 %v6216, 0.0
    %v6279 = vmax.f32 %v6217, 0.0
    %v6280 = vmax.f32 %v6218, 0.0
    %v6281 = vmax.f32 %v6219, 0.0
    %v6282 = vmax.f32 %v6220, 0.0
    %v6283 = vmax.f32 %v6221, 0.0
    %v6284 = vmax.f32 %v6222, 0.0
    %v6285 = vmax.f32 %v6223, 0.0
    %v6286 = vmax.f32 %v6224, 0.0
    %v6287 = vmax.f32 %v6225, 0.0
    %v6288 = vmax.f32 %v6226, 0.0
    %v6289 = vmax.f32 %v6227, 0.0
    %v6290 = vmax.f32 %v6228, 0.0
    %v6291 = vmax.f32 %v6229, 0.0
    %v6292 = vmax.f32 %v6230, 0.0
    %v6293 = vmax.f32 %v6231, 0.0
    %v6294 = vmax.f32 %v6232, 0.0
    %v6295 = vmax.f32 %v6233, 0.0
    %v6296 = vmax.f32 %v6234, 0.0
    %v6297 = vmax.f32 %v6235, 0.0
    %v6298 = vmax.f32 %v6236, 0.0
    %v6299 = vmax.f32 %v6237, 0.0
    %v6362 = vrot.slane %v6238, 1
    %v6363 = vrot.slane %v6239, 1
    %v6364 = vsel %vm5243, %v6362, %v6363
    %v6365 = vrot.slane %v6240, 1
    %v6366 = vsel %vm5243, %v6363, %v6365
    %v6367 = vrot.slane %v6241, 1
    %v6368 = vsel %vm5243, %v6365, %v6367
    %v6369 = vrot.slane %v6242, 1
    %v6370 = vsel %vm5243, %v6367, %v6369
    %v6371 = vrot.slane %v6243, 1
    %v6372 = vsel %vm5243, %v6369, %v6371
    %v6373 = vrot.slane %v6244, 1
    %v6374 = vsel %vm5243, %v6371, %v6373
    %v6375 = vrot.slane %v6245, 1
    %v6376 = vsel %vm5243, %v6373, %v6375
    %v6377 = vrot.slane %v6246, 1
    %v6378 = vsel %vm5243, %v6375, %v6377
    %v6379 = vrot.slane %v6247, 1
    %v6380 = vsel %vm5243, %v6377, %v6379
    %v6381 = vrot.slane %v6248, 1
    %v6382 = vsel %vm5243, %v6379, %v6381
    %v6383 = vrot.slane %v6249, 1
    %v6384 = vsel %vm5243, %v6381, %v6383
    %v6385 = vrot.slane %v6250, 1
    %v6386 = vsel %vm5243, %v6383, %v6385
    %v6387 = vrot.slane %v6251, 1
    %v6388 = vsel %vm5243, %v6385, %v6387
    %v6389 = vrot.slane %v6252, 1
    %v6390 = vsel %vm5243, %v6387, %v6389
    %v6391 = vrot.slane %v6253, 1
    %v6392 = vsel %vm5243, %v6389, %v6391
    %v6393 = vrot.slane %v6254, 1
    %v6394 = vsel %vm5243, %v6391, %v6393
    %v6395 = vrot.slane %v6255, 1
    %v6396 = vsel %vm5243, %v6393, %v6395
    %v6397 = vrot.slane %v6256, 1
    %v6398 = vsel %vm5243, %v6395, %v6397
    %v6399 = vrot.slane %v6257, 1
    %v6400 = vsel %vm5243, %v6397, %v6399
    %v6401 = vrot.slane %v6258, 1
    %v6402 = vsel %vm5243, %v6399, %v6401
    %v6403 = vrot.slane %v6259, 1
    %v6404 = vsel %vm5243, %v6401, %v6403
    %v6405 = vrot.slane %v6260, 1
    %v6406 = vsel %vm5243, %v6403, %v6405
    %v6407 = vrot.slane %v6261, 1
    %v6408 = vsel %vm5243, %v6405, %v6407
    %v6409 = vrot.slane %v6262, 1
    %v6410 = vsel %vm5243, %v6407, %v6409
    %v6411 = vrot.slane %v6263, 1
    %v6412 = vsel %vm5243, %v6409, %v6411
    %v6413 = vrot.slane %v6264, 1
    %v6414 = vsel %vm5243, %v6411, %v6413
    %v6415 = vrot.slane %v6265, 1
    %v6416 = vsel %vm5243, %v6413, %v6415
    %v6417 = vrot.slane %v6266, 1
    %v6418 = vsel %vm5243, %v6415, %v6417
    %v6419 = vrot.slane %v6267, 1
    %v6420 = vsel %vm5243, %v6417, %v6419
    %v6421 = vrot.slane %v6268, 1
    %v6422 = vsel %vm5243, %v6419, %v6421
    %v6423 = vrot.slane %v6269, 1
    %v6424 = vsel %vm5243, %v6421, %v6423
    %v6425 = vrot.slane %v6270, 1
    %v6426 = vsel %vm5243, %v6423, %v6425
    %v6427 = vrot.slane %v6271, 1
    %v6428 = vsel %vm5243, %v6425, %v6427
    %v6429 = vrot.slane %v6272, 1
    %v6430 = vsel %vm5243, %v6427, %v6429
    %v6431 = vrot.slane %v6273, 1
    %v6432 = vsel %vm5243, %v6429, %v6431
    %v6433 = vrot.slane %v6274, 1
    %v6434 = vsel %vm5243, %v6431, %v6433
    %v6435 = vrot.slane %v6275, 1
    %v6436 = vsel %vm5243, %v6433, %v6435
    %v6437 = vrot.slane %v6276, 1
    %v6438 = vsel %vm5243, %v6435, %v6437
    %v6439 = vrot.slane %v6277, 1
    %v6440 = vsel %vm5243, %v6437, %v6439
    %v6441 = vrot.slane %v6278, 1
    %v6442 = vsel %vm5243, %v6439, %v6441
    %v6443 = vrot.slane %v6279, 1
    %v6444 = vsel %vm5243, %v6441, %v6443
    %v6445 = vrot.slane %v6280, 1
    %v6446 = vsel %vm5243, %v6443, %v6445
    %v6447 = vrot.slane %v6281, 1
    %v6448 = vsel %vm5243, %v6445, %v6447
    %v6449 = vrot.slane %v6282, 1
    %v6450 = vsel %vm5243, %v6447, %v6449
    %v6451 = vrot.slane %v6283, 1
    %v6452 = vsel %vm5243, %v6449, %v6451
    %v6453 = vrot.slane %v6284, 1
    %v6454 = vsel %vm5243, %v6451, %v6453
    %v6455 = vrot.slane %v6285, 1
    %v6456 = vsel %vm5243, %v6453, %v6455
    %v6457 = vrot.slane %v6286, 1
    %v6458 = vsel %vm5243, %v6455, %v6457
    %v6459 = vrot.slane %v6287, 1
    %v6460 = vsel %vm5243, %v6457, %v6459
    %v6461 = vrot.slane %v6288, 1
    %v6462 = vsel %vm5243, %v6459, %v6461
    %v6463 = vrot.slane %v6289, 1
    %v6464 = vsel %vm5243, %v6461, %v6463
    %v6465 = vrot.slane %v6290, 1
    %v6466 = vsel %vm5243, %v6463, %v6465
    %v6467 = vrot.slane %v6291, 1
    %v6468 = vsel %vm5243, %v6465, %v6467
    %v6469 = vrot.slane %v6292, 1
    %v6470 = vsel %vm5243, %v6467, %v6469
    %v6471 = vrot.slane %v6293, 1
    %v6472 = vsel %vm5243, %v6469, %v6471
    %v6473 = vrot.slane %v6294, 1
    %v6474 = vsel %vm5243, %v6471, %v6473
    %v6475 = vrot.slane %v6295, 1
    %v6476 = vsel %vm5243, %v6473, %v6475
    %v6477 = vrot.slane %v6296, 1
    %v6478 = vsel %vm5243, %v6475, %v6477
    %v6479 = vrot.slane %v6297, 1
    %v6480 = vsel %vm5243, %v6477, %v6479
    %v6481 = vrot.slane %v6298, 1
    %v6482 = vsel %vm5243, %v6479, %v6481
    %v6483 = vrot.slane %v6299, 1
    %v6484 = vsel %vm5243, %v6481, %v6483
    %v6547 = vmax.f32 %v6238, %v6364
    %v6548 = vmax.f32 %v6239, %v6366
    %v6549 = vmax.f32 %v6240, %v6368
    %v6550 = vmax.f32 %v6241, %v6370
    %v6551 = vmax.f32 %v6242, %v6372
    %v6552 = vmax.f32 %v6243, %v6374
    %v6553 = vmax.f32 %v6244, %v6376
    %v6554 = vmax.f32 %v6245, %v6378
    %v6555 = vmax.f32 %v6246, %v6380
    %v6556 = vmax.f32 %v6247, %v6382
    %v6557 = vmax.f32 %v6248, %v6384
    %v6558 = vmax.f32 %v6249, %v6386
    %v6559 = vmax.f32 %v6250, %v6388
    %v6560 = vmax.f32 %v6251, %v6390
    %v6561 = vmax.f32 %v6252, %v6392
    %v6562 = vmax.f32 %v6253, %v6394
    %v6563 = vmax.f32 %v6254, %v6396
    %v6564 = vmax.f32 %v6255, %v6398
    %v6565 = vmax.f32 %v6256, %v6400
    %v6566 = vmax.f32 %v6257, %v6402
    %v6567 = vmax.f32 %v6258, %v6404
    %v6568 = vmax.f32 %v6259, %v6406
    %v6569 = vmax.f32 %v6260, %v6408
    %v6570 = vmax.f32 %v6261, %v6410
    %v6571 = vmax.f32 %v6262, %v6412
    %v6572 = vmax.f32 %v6263, %v6414
    %v6573 = vmax.f32 %v6264, %v6416
    %v6574 = vmax.f32 %v6265, %v6418
    %v6575 = vmax.f32 %v6266, %v6420
    %v6576 = vmax.f32 %v6267, %v6422
    %v6577 = vmax.f32 %v6268, %v6424
    %v6578 = vmax.f32 %v6269, %v6426
    %v6579 = vmax.f32 %v6270, %v6428
    %v6580 = vmax.f32 %v6271, %v6430
    %v6581 = vmax.f32 %v6272, %v6432
    %v6582 = vmax.f32 %v6273, %v6434
    %v6583 = vmax.f32 %v6274, %v6436
    %v6584 = vmax.f32 %v6275, %v6438
    %v6585 = vmax.f32 %v6276, %v6440
    %v6586 = vmax.f32 %v6277, %v6442
    %v6587 = vmax.f32 %v6278, %v6444
    %v6588 = vmax.f32 %v6279, %v6446
    %v6589 = vmax.f32 %v6280, %v6448
    %v6590 = vmax.f32 %v6281, %v6450
    %v6591 = vmax.f32 %v6282, %v6452
    %v6592 = vmax.f32 %v6283, %v6454
    %v6593 = vmax.f32 %v6284, %v6456
    %v6594 = vmax.f32 %v6285, %v6458
    %v6595 = vmax.f32 %v6286, %v6460
    %v6596 = vmax.f32 %v6287, %v6462
    %v6597 = vmax.f32 %v6288, %v6464
    %v6598 = vmax.f32 %v6289, %v6466
    %v6599 = vmax.f32 %v6290, %v6468
    %v6600 = vmax.f32 %v6291, %v6470
    %v6601 = vmax.f32 %v6292, %v6472
    %v6602 = vmax.f32 %v6293, %v6474
    %v6603 = vmax.f32 %v6294, %v6476
    %v6604 = vmax.f32 %v6295, %v6478
    %v6605 = vmax.f32 %v6296, %v6480
    %v6606 = vmax.f32 %v6297, %v6482
    %v6607 = vmax.f32 %v6298, %v6484
    %v6608 = vmax.f32 %v6299, %v6483
    %v6671 = vrot.slane %v6547, 2
    %v6672 = vrot.slane %v6548, 2
    %v6673 = vsel %vm5553, %v6671, %v6672
    %v6674 = vrot.slane %v6549, 2
    %v6675 = vsel %vm5553, %v6672, %v6674
    %v6676 = vrot.slane %v6550, 2
    %v6677 = vsel %vm5553, %v6674, %v6676
    %v6678 = vrot.slane %v6551, 2
    %v6679 = vsel %vm5553, %v6676, %v6678
    %v6680 = vrot.slane %v6552, 2
    %v6681 = vsel %vm5553, %v6678, %v6680
    %v6682 = vrot.slane %v6553, 2
    %v6683 = vsel %vm5553, %v6680, %v6682
    %v6684 = vrot.slane %v6554, 2
    %v6685 = vsel %vm5553, %v6682, %v6684
    %v6686 = vrot.slane %v6555, 2
    %v6687 = vsel %vm5553, %v6684, %v6686
    %v6688 = vrot.slane %v6556, 2
    %v6689 = vsel %vm5553, %v6686, %v6688
    %v6690 = vrot.slane %v6557, 2
    %v6691 = vsel %vm5553, %v6688, %v6690
    %v6692 = vrot.slane %v6558, 2
    %v6693 = vsel %vm5553, %v6690, %v6692
    %v6694 = vrot.slane %v6559, 2
    %v6695 = vsel %vm5553, %v6692, %v6694
    %v6696 = vrot.slane %v6560, 2
    %v6697 = vsel %vm5553, %v6694, %v6696
    %v6698 = vrot.slane %v6561, 2
    %v6699 = vsel %vm5553, %v6696, %v6698
    %v6700 = vrot.slane %v6562, 2
    %v6701 = vsel %vm5553, %v6698, %v6700
    %v6702 = vrot.slane %v6563, 2
    %v6703 = vsel %vm5553, %v6700, %v6702
    %v6704 = vrot.slane %v6564, 2
    %v6705 = vsel %vm5553, %v6702, %v6704
    %v6706 = vrot.slane %v6565, 2
    %v6707 = vsel %vm5553, %v6704, %v6706
    %v6708 = vrot.slane %v6566, 2
    %v6709 = vsel %vm5553, %v6706, %v6708
    %v6710 = vrot.slane %v6567, 2
    %v6711 = vsel %vm5553, %v6708, %v6710
    %v6712 = vrot.slane %v6568, 2
    %v6713 = vsel %vm5553, %v6710, %v6712
    %v6714 = vrot.slane %v6569, 2
    %v6715 = vsel %vm5553, %v6712, %v6714
    %v6716 = vrot.slane %v6570, 2
    %v6717 = vsel %vm5553, %v6714, %v6716
    %v6718 = vrot.slane %v6571, 2
    %v6719 = vsel %vm5553, %v6716, %v6718
    %v6720 = vrot.slane %v6572, 2
    %v6721 = vsel %vm5553, %v6718, %v6720
    %v6722 = vrot.slane %v6573, 2
    %v6723 = vsel %vm5553, %v6720, %v6722
    %v6724 = vrot.slane %v6574, 2
    %v6725 = vsel %vm5553, %v6722, %v6724
    %v6726 = vrot.slane %v6575, 2
    %v6727 = vsel %vm5553, %v6724, %v6726
    %v6728 = vrot.slane %v6576, 2
    %v6729 = vsel %vm5553, %v6726, %v6728
    %v6730 = vrot.slane %v6577, 2
    %v6731 = vsel %vm5553, %v6728, %v6730
    %v6732 = vrot.slane %v6578, 2
    %v6733 = vsel %vm5553, %v6730, %v6732
    %v6734 = vrot.slane %v6579, 2
    %v6735 = vsel %vm5553, %v6732, %v6734
    %v6736 = vrot.slane %v6580, 2
    %v6737 = vsel %vm5553, %v6734, %v6736
    %v6738 = vrot.slane %v6581, 2
    %v6739 = vsel %vm5553, %v6736, %v6738
    %v6740 = vrot.slane %v6582, 2
    %v6741 = vsel %vm5553, %v6738, %v6740
    %v6742 = vrot.slane %v6583, 2
    %v6743 = vsel %vm5553, %v6740, %v6742
    %v6744 = vrot.slane %v6584, 2
    %v6745 = vsel %vm5553, %v6742, %v6744
    %v6746 = vrot.slane %v6585, 2
    %v6747 = vsel %vm5553, %v6744, %v6746
    %v6748 = vrot.slane %v6586, 2
    %v6749 = vsel %vm5553, %v6746, %v6748
    %v6750 = vrot.slane %v6587, 2
    %v6751 = vsel %vm5553, %v6748, %v6750
    %v6752 = vrot.slane %v6588, 2
    %v6753 = vsel %vm5553, %v6750, %v6752
    %v6754 = vrot.slane %v6589, 2
    %v6755 = vsel %vm5553, %v6752, %v6754
    %v6756 = vrot.slane %v6590, 2
    %v6757 = vsel %vm5553, %v6754, %v6756
    %v6758 = vrot.slane %v6591, 2
    %v6759 = vsel %vm5553, %v6756, %v6758
    %v6760 = vrot.slane %v6592, 2
    %v6761 = vsel %vm5553, %v6758, %v6760
    %v6762 = vrot.slane %v6593, 2
    %v6763 = vsel %vm5553, %v6760, %v6762
    %v6764 = vrot.slane %v6594, 2
    %v6765 = vsel %vm5553, %v6762, %v6764
    %v6766 = vrot.slane %v6595, 2
    %v6767 = vsel %vm5553, %v6764, %v6766
    %v6768 = vrot.slane %v6596, 2
    %v6769 = vsel %vm5553, %v6766, %v6768
    %v6770 = vrot.slane %v6597, 2
    %v6771 = vsel %vm5553, %v6768, %v6770
    %v6772 = vrot.slane %v6598, 2
    %v6773 = vsel %vm5553, %v6770, %v6772
    %v6774 = vrot.slane %v6599, 2
    %v6775 = vsel %vm5553, %v6772, %v6774
    %v6776 = vrot.slane %v6600, 2
    %v6777 = vsel %vm5553, %v6774, %v6776
    %v6778 = vrot.slane %v6601, 2
    %v6779 = vsel %vm5553, %v6776, %v6778
    %v6780 = vrot.slane %v6602, 2
    %v6781 = vsel %vm5553, %v6778, %v6780
    %v6782 = vrot.slane %v6603, 2
    %v6783 = vsel %vm5553, %v6780, %v6782
    %v6784 = vrot.slane %v6604, 2
    %v6785 = vsel %vm5553, %v6782, %v6784
    %v6786 = vrot.slane %v6605, 2
    %v6787 = vsel %vm5553, %v6784, %v6786
    %v6788 = vrot.slane %v6606, 2
    %v6789 = vsel %vm5553, %v6786, %v6788
    %v6790 = vrot.slane %v6607, 2
    %v6791 = vsel %vm5553, %v6788, %v6790
    %v6792 = vrot.slane %v6608, 2
    %v6793 = vsel %vm5553, %v6790, %v6792
    %v6856 = vmax.f32 %v6547, %v6673
    %v6857 = vmax.f32 %v6548, %v6675
    %v6858 = vmax.f32 %v6549, %v6677
    %v6859 = vmax.f32 %v6550, %v6679
    %v6860 = vmax.f32 %v6551, %v6681
    %v6861 = vmax.f32 %v6552, %v6683
    %v6862 = vmax.f32 %v6553, %v6685
    %v6863 = vmax.f32 %v6554, %v6687
    %v6864 = vmax.f32 %v6555, %v6689
    %v6865 = vmax.f32 %v6556, %v6691
    %v6866 = vmax.f32 %v6557, %v6693
    %v6867 = vmax.f32 %v6558, %v6695
    %v6868 = vmax.f32 %v6559, %v6697
    %v6869 = vmax.f32 %v6560, %v6699
    %v6870 = vmax.f32 %v6561, %v6701
    %v6871 = vmax.f32 %v6562, %v6703
    %v6872 = vmax.f32 %v6563, %v6705
    %v6873 = vmax.f32 %v6564, %v6707
    %v6874 = vmax.f32 %v6565, %v6709
    %v6875 = vmax.f32 %v6566, %v6711
    %v6876 = vmax.f32 %v6567, %v6713
    %v6877 = vmax.f32 %v6568, %v6715
    %v6878 = vmax.f32 %v6569, %v6717
    %v6879 = vmax.f32 %v6570, %v6719
    %v6880 = vmax.f32 %v6571, %v6721
    %v6881 = vmax.f32 %v6572, %v6723
    %v6882 = vmax.f32 %v6573, %v6725
    %v6883 = vmax.f32 %v6574, %v6727
    %v6884 = vmax.f32 %v6575, %v6729
    %v6885 = vmax.f32 %v6576, %v6731
    %v6886 = vmax.f32 %v6577, %v6733
    %v6887 = vmax.f32 %v6578, %v6735
    %v6888 = vmax.f32 %v6579, %v6737
    %v6889 = vmax.f32 %v6580, %v6739
    %v6890 = vmax.f32 %v6581, %v6741
    %v6891 = vmax.f32 %v6582, %v6743
    %v6892 = vmax.f32 %v6583, %v6745
    %v6893 = vmax.f32 %v6584, %v6747
    %v6894 = vmax.f32 %v6585, %v6749
    %v6895 = vmax.f32 %v6586, %v6751
    %v6896 = vmax.f32 %v6587, %v6753
    %v6897 = vmax.f32 %v6588, %v6755
    %v6898 = vmax.f32 %v6589, %v6757
    %v6899 = vmax.f32 %v6590, %v6759
    %v6900 = vmax.f32 %v6591, %v6761
    %v6901 = vmax.f32 %v6592, %v6763
    %v6902 = vmax.f32 %v6593, %v6765
    %v6903 = vmax.f32 %v6594, %v6767
    %v6904 = vmax.f32 %v6595, %v6769
    %v6905 = vmax.f32 %v6596, %v6771
    %v6906 = vmax.f32 %v6597, %v6773
    %v6907 = vmax.f32 %v6598, %v6775
    %v6908 = vmax.f32 %v6599, %v6777
    %v6909 = vmax.f32 %v6600, %v6779
    %v6910 = vmax.f32 %v6601, %v6781
    %v6911 = vmax.f32 %v6602, %v6783
    %v6912 = vmax.f32 %v6603, %v6785
    %v6913 = vmax.f32 %v6604, %v6787
    %v6914 = vmax.f32 %v6605, %v6789
    %v6915 = vmax.f32 %v6606, %v6791
    %v6916 = vmax.f32 %v6607, %v6793
    %v6917 = vmax.f32 %v6608, %v6792
    %v6919 = vsel %vm5850, %v6917, 0
    %6921 = vmatpush.msra.mxu0 %v6871
    %6922 = vmatpush.msra.mxu0 %v6870
    %6923 = vmatpush.msra.mxu0 %v6869
    %6924 = vmatpush.msra.mxu0 %v6868
    %6925 = vmatpush.msra.mxu0 %v6867
    %6926 = vmatpush.msra.mxu0 %v6866
    %6927 = vmatpush.msra.mxu0 %v6865
    %6928 = vmatpush.msra.mxu0 %v6864
    %6929 = vmatpush.msra.mxu0 %v6863
    %6930 = vmatpush.msra.mxu0 %v6862
    %6931 = vmatpush.msra.mxu0 %v6861
    %6932 = vmatpush.msra.mxu0 %v6860
    %6933 = vmatpush.msra.mxu0 %v6859
    %6934 = vmatpush.msra.mxu0 %v6858
    %6935 = vmatpush.msra.mxu0 %v6857
    %6936 = vmatpush.msra.mxu0 %v6856
    %6937 = vmatmul.f32.gmra.mxu0 %v4925
    %v6938 = vpop.f32.mrf.mxu0
    %v6939 = vadd.f32 0.0, %v6938
    %6940 = vmatmul.f32.gmra.mxu0 %v4929
    %v6941 = vpop.f32.mrf.mxu0
    %v6942 = vadd.f32 0.0, %v6941
    %6943 = vmatmul.f32.gmra.mxu0 %v4933
    %v6944 = vpop.f32.mrf.mxu0
    %v6945 = vadd.f32 0.0, %v6944
    %6946 = vmatmul.f32.gmra.mxu0 %v4937
    %v6947 = vpop.f32.mrf.mxu0
    %v6948 = vadd.f32 0.0, %v6947
    %6949 = vmatmul.f32.gmra.mxu0 %v4941
    %v6950 = vpop.f32.mrf.mxu0
    %v6951 = vadd.f32 0.0, %v6950
    %6952 = vmatmul.f32.gmra.mxu0 %v4945
    %v6953 = vpop.f32.mrf.mxu0
    %v6954 = vadd.f32 0.0, %v6953
    %6955 = vmatmul.f32.gmra.mxu0 %v4949
    %v6956 = vpop.f32.mrf.mxu0
    %v6957 = vadd.f32 0.0, %v6956
    %6958 = vmatmul.f32.gmra.mxu0 %v4953
    %v6959 = vpop.f32.mrf.mxu0
    %v6960 = vadd.f32 0.0, %v6959
    %6961 = vmatmul.f32.gmra.mxu0 %v4957
    %v6962 = vpop.f32.mrf.mxu0
    %v6963 = vadd.f32 0.0, %v6962
    %6964 = vmatmul.f32.gmra.mxu0 %v4961
    %v6965 = vpop.f32.mrf.mxu0
    %v6966 = vadd.f32 0.0, %v6965
    %6967 = vmatmul.f32.gmra.mxu0 %v4965
    %v6968 = vpop.f32.mrf.mxu0
    %v6969 = vadd.f32 0.0, %v6968
    %6970 = vmatmul.f32.gmra.mxu0 %v4969
    %v6971 = vpop.f32.mrf.mxu0
    %v6972 = vadd.f32 0.0, %v6971
    %6973 = vmatmul.f32.gmra.mxu0 %v4973
    %v6974 = vpop.f32.mrf.mxu0
    %v6975 = vadd.f32 0.0, %v6974
    %6976 = vmatmul.f32.gmra.mxu0 %v4977
    %v6977 = vpop.f32.mrf.mxu0
    %v6978 = vadd.f32 0.0, %v6977
    %6979 = vmatmul.f32.gmra.mxu0 %v4981
    %v6980 = vpop.f32.mrf.mxu0
    %v6981 = vadd.f32 0.0, %v6980
    %6982 = vmatmul.f32.gmra.mxu0 %v4985
    %v6983 = vpop.f32.mrf.mxu0
    %v6984 = vadd.f32 0.0, %v6983
    %6985 = vdwg.mxu0
    %6986 = vmatpush.msra.mxu0 %v6887
    %6987 = vmatpush.msra.mxu0 %v6886
    %6988 = vmatpush.msra.mxu0 %v6885
    %6989 = vmatpush.msra.mxu0 %v6884
    %6990 = vmatpush.msra.mxu0 %v6883
    %6991 = vmatpush.msra.mxu0 %v6882
    %6992 = vmatpush.msra.mxu0 %v6881
    %6993 = vmatpush.msra.mxu0 %v6880
    %6994 = vmatpush.msra.mxu0 %v6879
    %6995 = vmatpush.msra.mxu0 %v6878
    %6996 = vmatpush.msra.mxu0 %v6877
    %6997 = vmatpush.msra.mxu0 %v6876
    %6998 = vmatpush.msra.mxu0 %v6875
    %6999 = vmatpush.msra.mxu0 %v6874
    %7000 = vmatpush.msra.mxu0 %v6873
    %7001 = vmatpush.msra.mxu0 %v6872
    %7002 = vmatmul.f32.gmra.mxu0 %v4926
    %v7003 = vpop.f32.mrf.mxu0
    %v7004 = vadd.f32 %v6939, %v7003
    %7005 = vmatmul.f32.gmra.mxu0 %v4930
    %v7006 = vpop.f32.mrf.mxu0
    %v7007 = vadd.f32 %v6942, %v7006
    %7008 = vmatmul.f32.gmra.mxu0 %v4934
    %v7009 = vpop.f32.mrf.mxu0
    %v7010 = vadd.f32 %v6945, %v7009
    %7011 = vmatmul.f32.gmra.mxu0 %v4938
    %v7012 = vpop.f32.mrf.mxu0
    %v7013 = vadd.f32 %v6948, %v7012
    %7014 = vmatmul.f32.gmra.mxu0 %v4942
    %v7015 = vpop.f32.mrf.mxu0
    %v7016 = vadd.f32 %v6951, %v7015
    %7017 = vmatmul.f32.gmra.mxu0 %v4946
    %v7018 = vpop.f32.mrf.mxu0
    %v7019 = vadd.f32 %v6954, %v7018
    %7020 = vmatmul.f32.gmra.mxu0 %v4950
    %v7021 = vpop.f32.mrf.mxu0
    %v7022 = vadd.f32 %v6957, %v7021
    %7023 = vmatmul.f32.gmra.mxu0 %v4954
    %v7024 = vpop.f32.mrf.mxu0
    %v7025 = vadd.f32 %v6960, %v7024
    %7026 = vmatmul.f32.gmra.mxu0 %v4958
    %v7027 = vpop.f32.mrf.mxu0
    %v7028 = vadd.f32 %v6963, %v7027
    %7029 = vmatmul.f32.gmra.mxu0 %v4962
    %v7030 = vpop.f32.mrf.mxu0
    %v7031 = vadd.f32 %v6966, %v7030
    %7032 = vmatmul.f32.gmra.mxu0 %v4966
    %v7033 = vpop.f32.mrf.mxu0
    %v7034 = vadd.f32 %v6969, %v7033
    %7035 = vmatmul.f32.gmra.mxu0 %v4970
    %v7036 = vpop.f32.mrf.mxu0
    %v7037 = vadd.f32 %v6972, %v7036
    %7038 = vmatmul.f32.gmra.mxu0 %v4974
    %v7039 = vpop.f32.mrf.mxu0
    %v7040 = vadd.f32 %v6975, %v7039
    %7041 = vmatmul.f32.gmra.mxu0 %v4978
    %v7042 = vpop.f32.mrf.mxu0
    %v7043 = vadd.f32 %v6978, %v7042
    %7044 = vmatmul.f32.gmra.mxu0 %v4982
    %v7045 = vpop.f32.mrf.mxu0
    %v7046 = vadd.f32 %v6981, %v7045
    %7047 = vmatmul.f32.gmra.mxu0 %v4986
    %v7048 = vpop.f32.mrf.mxu0
    %v7049 = vadd.f32 %v6984, %v7048
    %7050 = vdwg.mxu0
    %7051 = vmatpush.msra.mxu0 %v6903
    %7052 = vmatpush.msra.mxu0 %v6902
    %7053 = vmatpush.msra.mxu0 %v6901
    %7054 = vmatpush.msra.mxu0 %v6900
    %7055 = vmatpush.msra.mxu0 %v6899
    %7056 = vmatpush.msra.mxu0 %v6898
    %7057 = vmatpush.msra.mxu0 %v6897
    %7058 = vmatpush.msra.mxu0 %v6896
    %7059 = vmatpush.msra.mxu0 %v6895
    %7060 = vmatpush.msra.mxu0 %v6894
    %7061 = vmatpush.msra.mxu0 %v6893
    %7062 = vmatpush.msra.mxu0 %v6892
    %7063 = vmatpush.msra.mxu0 %v6891
    %7064 = vmatpush.msra.mxu0 %v6890
    %7065 = vmatpush.msra.mxu0 %v6889
    %7066 = vmatpush.msra.mxu0 %v6888
    %7067 = vmatmul.f32.gmra.mxu0 %v4927
    %v7068 = vpop.f32.mrf.mxu0
    %v7069 = vadd.f32 %v7004, %v7068
    %7070 = vmatmul.f32.gmra.mxu0 %v4931
    %v7071 = vpop.f32.mrf.mxu0
    %v7072 = vadd.f32 %v7007, %v7071
    %7073 = vmatmul.f32.gmra.mxu0 %v4935
    %v7074 = vpop.f32.mrf.mxu0
    %v7075 = vadd.f32 %v7010, %v7074
    %7076 = vmatmul.f32.gmra.mxu0 %v4939
    %v7077 = vpop.f32.mrf.mxu0
    %v7078 = vadd.f32 %v7013, %v7077
    %7079 = vmatmul.f32.gmra.mxu0 %v4943
    %v7080 = vpop.f32.mrf.mxu0
    %v7081 = vadd.f32 %v7016, %v7080
    %7082 = vmatmul.f32.gmra.mxu0 %v4947
    %v7083 = vpop.f32.mrf.mxu0
    %v7084 = vadd.f32 %v7019, %v7083
    %7085 = vmatmul.f32.gmra.mxu0 %v4951
    %v7086 = vpop.f32.mrf.mxu0
    %v7087 = vadd.f32 %v7022, %v7086
    %7088 = vmatmul.f32.gmra.mxu0 %v4955
    %v7089 = vpop.f32.mrf.mxu0
    %v7090 = vadd.f32 %v7025, %v7089
    %7091 = vmatmul.f32.gmra.mxu0 %v4959
    %v7092 = vpop.f32.mrf.mxu0
    %v7093 = vadd.f32 %v7028, %v7092
    %7094 = vmatmul.f32.gmra.mxu0 %v4963
    %v7095 = vpop.f32.mrf.mxu0
    %v7096 = vadd.f32 %v7031, %v7095
    %7097 = vmatmul.f32.gmra.mxu0 %v4967
    %v7098 = vpop.f32.mrf.mxu0
    %v7099 = vadd.f32 %v7034, %v7098
    %7100 = vmatmul.f32.gmra.mxu0 %v4971
    %v7101 = vpop.f32.mrf.mxu0
    %v7102 = vadd.f32 %v7037, %v7101
    %7103 = vmatmul.f32.gmra.mxu0 %v4975
    %v7104 = vpop.f32.mrf.mxu0
    %v7105 = vadd.f32 %v7040, %v7104
    %7106 = vmatmul.f32.gmra.mxu0 %v4979
    %v7107 = vpop.f32.mrf.mxu0
    %v7108 = vadd.f32 %v7043, %v7107
    %7109 = vmatmul.f32.gmra.mxu0 %v4983
    %v7110 = vpop.f32.mrf.mxu0
    %v7111 = vadd.f32 %v7046, %v7110
    %7112 = vmatmul.f32.gmra.mxu0 %v4987
    %v7113 = vpop.f32.mrf.mxu0
    %v7114 = vadd.f32 %v7049, %v7113
    %7115 = vdwg.mxu0
    %7116 = vmatpush.msra.mxu0 0.0
    %7117 = vmatpush.msra.mxu0 0.0
    %7118 = vmatpush.msra.mxu0 %v6919
    %7119 = vmatpush.msra.mxu0 %v6916
    %7120 = vmatpush.msra.mxu0 %v6915
    %7121 = vmatpush.msra.mxu0 %v6914
    %7122 = vmatpush.msra.mxu0 %v6913
    %7123 = vmatpush.msra.mxu0 %v6912
    %7124 = vmatpush.msra.mxu0 %v6911
    %7125 = vmatpush.msra.mxu0 %v6910
    %7126 = vmatpush.msra.mxu0 %v6909
    %7127 = vmatpush.msra.mxu0 %v6908
    %7128 = vmatpush.msra.mxu0 %v6907
    %7129 = vmatpush.msra.mxu0 %v6906
    %7130 = vmatpush.msra.mxu0 %v6905
    %7131 = vmatpush.msra.mxu0 %v6904
    %7132 = vmatmul.f32.gmra.mxu0 %v5803
    %v7133 = vpop.f32.mrf.mxu0
    %v7134 = vadd.f32 %v7069, %v7133
    %7135 = vmatmul.f32.gmra.mxu0 %v5806
    %v7136 = vpop.f32.mrf.mxu0
    %v7137 = vadd.f32 %v7072, %v7136
    %7138 = vmatmul.f32.gmra.mxu0 %v5809
    %v7139 = vpop.f32.mrf.mxu0
    %v7140 = vadd.f32 %v7075, %v7139
    %7141 = vmatmul.f32.gmra.mxu0 %v5812
    %v7142 = vpop.f32.mrf.mxu0
    %v7143 = vadd.f32 %v7078, %v7142
    %7144 = vmatmul.f32.gmra.mxu0 %v5815
    %v7145 = vpop.f32.mrf.mxu0
    %v7146 = vadd.f32 %v7081, %v7145
    %7147 = vmatmul.f32.gmra.mxu0 %v5818
    %v7148 = vpop.f32.mrf.mxu0
    %v7149 = vadd.f32 %v7084, %v7148
    %7150 = vmatmul.f32.gmra.mxu0 %v5821
    %v7151 = vpop.f32.mrf.mxu0
    %v7152 = vadd.f32 %v7087, %v7151
    %7153 = vmatmul.f32.gmra.mxu0 %v5824
    %v7154 = vpop.f32.mrf.mxu0
    %v7155 = vadd.f32 %v7090, %v7154
    %7156 = vmatmul.f32.gmra.mxu0 %v5827
    %v7157 = vpop.f32.mrf.mxu0
    %v7158 = vadd.f32 %v7093, %v7157
    %7159 = vmatmul.f32.gmra.mxu0 %v5830
    %v7160 = vpop.f32.mrf.mxu0
    %v7161 = vadd.f32 %v7096, %v7160
    %7162 = vmatmul.f32.gmra.mxu0 %v5833
    %v7163 = vpop.f32.mrf.mxu0
    %v7164 = vadd.f32 %v7099, %v7163
    %7165 = vmatmul.f32.gmra.mxu0 %v5836
    %v7166 = vpop.f32.mrf.mxu0
    %v7167 = vadd.f32 %v7102, %v7166
    %7168 = vmatmul.f32.gmra.mxu0 %v5839
    %v7169 = vpop.f32.mrf.mxu0
    %v7170 = vadd.f32 %v7105, %v7169
    %7171 = vmatmul.f32.gmra.mxu0 %v5842
    %v7172 = vpop.f32.mrf.mxu0
    %v7173 = vadd.f32 %v7108, %v7172
    %7174 = vmatmul.f32.gmra.mxu0 %v5845
    %v7175 = vpop.f32.mrf.mxu0
    %v7176 = vadd.f32 %v7111, %v7175
    %7177 = vmatmul.f32.gmra.mxu0 %v5848
    %v7178 = vpop.f32.mrf.mxu0
    %v7179 = vadd.f32 %v7114, %v7178
    %7180 = vdwg.mxu0
    %v7181 = vld [vmem:[%s5] sm:$0xf]
    %v7182 = vld [vmem:[%s5 + $0x4] sm:$0xf]
    %v7183 = vld [vmem:[%s5 + $0x8] sm:$0xf]
    %v7184 = vld [vmem:[%s5 + $0xc] sm:$0xf]
    %s7185 = scalar_lea.vmem %s5, 16
    %v7186 = vld [vmem:[%s7185] sm:$0xf]
    %v7187 = vld [vmem:[%s7185 + $0x4] sm:$0xf]
    %v7188 = vld [vmem:[%s7185 + $0x8] sm:$0xf]
    %v7189 = vld [vmem:[%s7185 + $0xc] sm:$0xf]
    %s7190 = scalar_lea.vmem %s5, 32
    %v7191 = vld [vmem:[%s7190] sm:$0xf]
    %v7192 = vld [vmem:[%s7190 + $0x4] sm:$0xf]
    %v7193 = vld [vmem:[%s7190 + $0x8] sm:$0xf]
    %v7194 = vld [vmem:[%s7190 + $0xc] sm:$0xf]
    %v7195 = vpack.c.bf16 %v6070, %v6067
    %v7196 = vpack.c.bf16 %v6076, %v6073
    %v7197 = vpack.c.bf16 %v6082, %v6079
    %v7198 = vpack.c.bf16 %v6088, %v6085
    %v7199 = vpack.c.bf16 %v6094, %v6091
    %v7200 = vpack.c.bf16 %v6100, %v6097
    %v7201 = vpack.c.bf16 %v6106, %v6103
    %v7202 = vpack.c.bf16 %v6112, %v6109
    %v7204 = vshrl.u32 %v7195, 16
    %v7206 = vshll.u32 %v7195, 16
    %v7208 = vrot.slane %v7206, 1
    %v7209 = vor.u32 %v7204, %v7208
    %v7211 = vshll.u32 %v7196, 16
    %v7213 = vrot.slane %v7211, 1
    %v7214 = vsel %vm237, %v7209, %v7213
    %v7215 = vshrl.u32 %v7196, 16
    %v7217 = vor.u32 %v7215, %v7213
    %v7219 = vshll.u32 %v7197, 16
    %v7221 = vrot.slane %v7219, 1
    %v7222 = vsel %vm237, %v7217, %v7221
    %v7223 = vshrl.u32 %v7197, 16
    %v7225 = vor.u32 %v7223, %v7221
    %v7227 = vshll.u32 %v7198, 16
    %v7229 = vrot.slane %v7227, 1
    %v7230 = vsel %vm237, %v7225, %v7229
    %v7231 = vshrl.u32 %v7198, 16
    %v7233 = vor.u32 %v7231, %v7229
    %v7235 = vshll.u32 %v7199, 16
    %v7237 = vrot.slane %v7235, 1
    %v7238 = vsel %vm237, %v7233, %v7237
    %v7239 = vshrl.u32 %v7199, 16
    %v7241 = vor.u32 %v7239, %v7237
    %v7243 = vshll.u32 %v7200, 16
    %v7245 = vrot.slane %v7243, 1
    %v7246 = vsel %vm237, %v7241, %v7245
    %v7247 = vshrl.u32 %v7200, 16
    %v7249 = vor.u32 %v7247, %v7245
    %v7251 = vshll.u32 %v7201, 16
    %v7253 = vrot.slane %v7251, 1
    %v7254 = vsel %vm237, %v7249, %v7253
    %v7255 = vshrl.u32 %v7201, 16
    %v7257 = vor.u32 %v7255, %v7253
    %v7259 = vshll.u32 %v7202, 16
    %v7261 = vrot.slane %v7259, 1
    %v7262 = vsel %vm237, %v7257, %v7261
    %v7263 = vshrl.u32 %v7202, 16
    %v7265 = vor.u32 %v7263, %v7261
    %v7270 = vunpack.c.l.b16 %v7186
    %v7271 = vunpack.c.l.b16 %v7187
    %v7272 = vunpack.c.l.b16 %v7188
    %v7273 = vunpack.c.l.b16 %v7189
    %v7274 = vpack.c.b16 %v7271, %v7270
    %v7275 = vpack.c.b16 %v7273, %v7272
    %v7279 = vsel %vm4262, %v7214, 0
    %v7282 = vsel %vm4262, %v7222, 0
    %v7285 = vsel %vm4262, %v7230, 0
    %v7288 = vsel %vm4262, %v7238, 0
    %v7291 = vsel %vm4262, %v7246, 0
    %v7294 = vsel %vm4262, %v7254, 0
    %v7297 = vsel %vm4262, %v7262, 0
    %v7300 = vsel %vm4262, %v7265, 0
    %7302 = vmatpush.bf16.msra.mxu0 0
    %7303 = vmatpush.bf16.msra.mxu0 0
    %7304 = vmatpush.bf16.msra.mxu0 0
    %7305 = vmatpush.bf16.msra.mxu0 0
    %7306 = vmatpush.bf16.msra.mxu0 0
    %7307 = vmatpush.bf16.msra.mxu0 0
    %7308 = vmatpush.bf16.msra.mxu0 %v7275
    %7309 = vmatpush.bf16.msra.mxu0 %v7274
    %7310 = vmatmul.bf16.gmra.mxu0 %v7279
    %v7311 = vpop.f32.mrf.mxu0
    %v7312 = vadd.f32 0.0, %v7311
    %v7313 = vpop.f32.mrf.mxu0
    %v7314 = vadd.f32 0.0, %v7313
    %7315 = vmatmul.bf16.gmra.mxu0 %v7282
    %v7316 = vpop.f32.mrf.mxu0
    %v7317 = vadd.f32 0.0, %v7316
    %v7318 = vpop.f32.mrf.mxu0
    %v7319 = vadd.f32 0.0, %v7318
    %7320 = vmatmul.bf16.gmra.mxu0 %v7285
    %v7321 = vpop.f32.mrf.mxu0
    %v7322 = vadd.f32 0.0, %v7321
    %v7323 = vpop.f32.mrf.mxu0
    %v7324 = vadd.f32 0.0, %v7323
    %7325 = vmatmul.bf16.gmra.mxu0 %v7288
    %v7326 = vpop.f32.mrf.mxu0
    %v7327 = vadd.f32 0.0, %v7326
    %v7328 = vpop.f32.mrf.mxu0
    %v7329 = vadd.f32 0.0, %v7328
    %7330 = vmatmul.bf16.gmra.mxu0 %v7291
    %v7331 = vpop.f32.mrf.mxu0
    %v7332 = vadd.f32 0.0, %v7331
    %v7333 = vpop.f32.mrf.mxu0
    %v7334 = vadd.f32 0.0, %v7333
    %7335 = vmatmul.bf16.gmra.mxu0 %v7294
    %v7336 = vpop.f32.mrf.mxu0
    %v7337 = vadd.f32 0.0, %v7336
    %v7338 = vpop.f32.mrf.mxu0
    %v7339 = vadd.f32 0.0, %v7338
    %7340 = vmatmul.bf16.gmra.mxu0 %v7297
    %v7341 = vpop.f32.mrf.mxu0
    %v7342 = vadd.f32 0.0, %v7341
    %v7343 = vpop.f32.mrf.mxu0
    %v7344 = vadd.f32 0.0, %v7343
    %7345 = vmatmul.bf16.gmra.mxu0 %v7300
    %v7346 = vpop.f32.mrf.mxu0
    %v7347 = vadd.f32 0.0, %v7346
    %v7348 = vpop.f32.mrf.mxu0
    %v7349 = vadd.f32 0.0, %v7348
    %7350 = vdwg.mxu0
    %v7355 = vunpack.c.l.b16 %v7181
    %v7356 = vunpack.c.l.b16 %v7182
    %v7357 = vunpack.c.l.b16 %v7183
    %v7358 = vunpack.c.l.b16 %v7184
    %v7359 = vpack.c.b16 %v7356, %v7355
    %v7360 = vpack.c.b16 %v7358, %v7357
    %v7363 = vsel %vm4262, %v7195, 0
    %v7365 = vsel %vm4262, %v7196, 0
    %v7367 = vsel %vm4262, %v7197, 0
    %v7369 = vsel %vm4262, %v7198, 0
    %v7371 = vsel %vm4262, %v7199, 0
    %v7373 = vsel %vm4262, %v7200, 0
    %v7375 = vsel %vm4262, %v7201, 0
    %v7377 = vsel %vm4262, %v7202, 0
    %7379 = vmatpush.bf16.msra.mxu0 0
    %7380 = vmatpush.bf16.msra.mxu0 0
    %7381 = vmatpush.bf16.msra.mxu0 0
    %7382 = vmatpush.bf16.msra.mxu0 0
    %7383 = vmatpush.bf16.msra.mxu0 0
    %7384 = vmatpush.bf16.msra.mxu0 0
    %7385 = vmatpush.bf16.msra.mxu0 %v7360
    %7386 = vmatpush.bf16.msra.mxu0 %v7359
    %7387 = vmatmul.bf16.gmra.mxu0 %v7363
    %v7388 = vpop.f32.mrf.mxu0
    %v7389 = vadd.f32 %v7312, %v7388
    %v7390 = vpop.f32.mrf.mxu0
    %v7391 = vadd.f32 %v7314, %v7390
    %7392 = vmatmul.bf16.gmra.mxu0 %v7365
    %v7393 = vpop.f32.mrf.mxu0
    %v7394 = vadd.f32 %v7317, %v7393
    %v7395 = vpop.f32.mrf.mxu0
    %v7396 = vadd.f32 %v7319, %v7395
    %7397 = vmatmul.bf16.gmra.mxu0 %v7367
    %v7398 = vpop.f32.mrf.mxu0
    %v7399 = vadd.f32 %v7322, %v7398
    %v7400 = vpop.f32.mrf.mxu0
    %v7401 = vadd.f32 %v7324, %v7400
    %7402 = vmatmul.bf16.gmra.mxu0 %v7369
    %v7403 = vpop.f32.mrf.mxu0
    %v7404 = vadd.f32 %v7327, %v7403
    %v7405 = vpop.f32.mrf.mxu0
    %v7406 = vadd.f32 %v7329, %v7405
    %7407 = vmatmul.bf16.gmra.mxu0 %v7371
    %v7408 = vpop.f32.mrf.mxu0
    %v7409 = vadd.f32 %v7332, %v7408
    %v7410 = vpop.f32.mrf.mxu0
    %v7411 = vadd.f32 %v7334, %v7410
    %7412 = vmatmul.bf16.gmra.mxu0 %v7373
    %v7413 = vpop.f32.mrf.mxu0
    %v7414 = vadd.f32 %v7337, %v7413
    %v7415 = vpop.f32.mrf.mxu0
    %v7416 = vadd.f32 %v7339, %v7415
    %7417 = vmatmul.bf16.gmra.mxu0 %v7375
    %v7418 = vpop.f32.mrf.mxu0
    %v7419 = vadd.f32 %v7342, %v7418
    %v7420 = vpop.f32.mrf.mxu0
    %v7421 = vadd.f32 %v7344, %v7420
    %7422 = vmatmul.bf16.gmra.mxu0 %v7377
    %v7423 = vpop.f32.mrf.mxu0
    %v7424 = vadd.f32 %v7347, %v7423
    %v7425 = vpop.f32.mrf.mxu0
    %v7426 = vadd.f32 %v7349, %v7425
    %7427 = vdwg.mxu0
    %v7436 = vrot.slane %v7195, 1
    %v7437 = vrot.slane %v7196, 1
    %v7438 = vsel %vm1018, %v7436, %v7437
    %v7439 = vrot.slane %v7197, 1
    %v7440 = vsel %vm1018, %v7437, %v7439
    %v7441 = vrot.slane %v7198, 1
    %v7442 = vsel %vm1018, %v7439, %v7441
    %v7443 = vrot.slane %v7199, 1
    %v7444 = vsel %vm1018, %v7441, %v7443
    %v7445 = vrot.slane %v7200, 1
    %v7446 = vsel %vm1018, %v7443, %v7445
    %v7447 = vrot.slane %v7201, 1
    %v7448 = vsel %vm1018, %v7445, %v7447
    %v7449 = vrot.slane %v7202, 1
    %v7450 = vsel %vm1018, %v7447, %v7449
    %v7455 = vunpack.c.l.b16 %v7191
    %v7456 = vunpack.c.l.b16 %v7192
    %v7457 = vunpack.c.l.b16 %v7193
    %v7458 = vunpack.c.l.b16 %v7194
    %v7459 = vpack.c.b16 %v7456, %v7455
    %v7460 = vpack.c.b16 %v7458, %v7457
    %v7464 = vsel %vm4262, %v7438, 0
    %v7467 = vsel %vm4262, %v7440, 0
    %v7470 = vsel %vm4262, %v7442, 0
    %v7473 = vsel %vm4262, %v7444, 0
    %v7476 = vsel %vm4262, %v7446, 0
    %v7479 = vsel %vm4262, %v7448, 0
    %v7482 = vsel %vm4262, %v7450, 0
    %v7485 = vsel %vm4262, %v7449, 0
    %7487 = vmatpush.bf16.msra.mxu0 0
    %7488 = vmatpush.bf16.msra.mxu0 0
    %7489 = vmatpush.bf16.msra.mxu0 0
    %7490 = vmatpush.bf16.msra.mxu0 0
    %7491 = vmatpush.bf16.msra.mxu0 0
    %7492 = vmatpush.bf16.msra.mxu0 0
    %7493 = vmatpush.bf16.msra.mxu0 %v7460
    %7494 = vmatpush.bf16.msra.mxu0 %v7459
    %7495 = vmatmul.bf16.gmra.mxu0 %v7464
    %v7496 = vpop.f32.mrf.mxu0
    %v7497 = vadd.f32 0.0, %v7496
    %v7498 = vpop.f32.mrf.mxu0
    %v7499 = vadd.f32 0.0, %v7498
    %7500 = vmatmul.bf16.gmra.mxu0 %v7467
    %v7501 = vpop.f32.mrf.mxu0
    %v7502 = vadd.f32 0.0, %v7501
    %v7503 = vpop.f32.mrf.mxu0
    %v7504 = vadd.f32 0.0, %v7503
    %7505 = vmatmul.bf16.gmra.mxu0 %v7470
    %v7506 = vpop.f32.mrf.mxu0
    %v7507 = vadd.f32 0.0, %v7506
    %v7508 = vpop.f32.mrf.mxu0
    %v7509 = vadd.f32 0.0, %v7508
    %7510 = vmatmul.bf16.gmra.mxu0 %v7473
    %v7511 = vpop.f32.mrf.mxu0
    %v7512 = vadd.f32 0.0, %v7511
    %v7513 = vpop.f32.mrf.mxu0
    %v7514 = vadd.f32 0.0, %v7513
    %7515 = vmatmul.bf16.gmra.mxu0 %v7476
    %v7516 = vpop.f32.mrf.mxu0
    %v7517 = vadd.f32 0.0, %v7516
    %v7518 = vpop.f32.mrf.mxu0
    %v7519 = vadd.f32 0.0, %v7518
    %7520 = vmatmul.bf16.gmra.mxu0 %v7479
    %v7521 = vpop.f32.mrf.mxu0
    %v7522 = vadd.f32 0.0, %v7521
    %v7523 = vpop.f32.mrf.mxu0
    %v7524 = vadd.f32 0.0, %v7523
    %7525 = vmatmul.bf16.gmra.mxu0 %v7482
    %v7526 = vpop.f32.mrf.mxu0
    %v7527 = vadd.f32 0.0, %v7526
    %v7528 = vpop.f32.mrf.mxu0
    %v7529 = vadd.f32 0.0, %v7528
    %7530 = vmatmul.bf16.gmra.mxu0 %v7485
    %v7531 = vpop.f32.mrf.mxu0
    %v7532 = vadd.f32 0.0, %v7531
    %v7533 = vpop.f32.mrf.mxu0
    %v7534 = vadd.f32 0.0, %v7533
    %7535 = vdwg.mxu0
    %v7536 = vadd.f32 %v7389, %v7497
    %v7537 = vadd.f32 %v7391, %v7499
    %v7538 = vadd.f32 %v7394, %v7502
    %v7539 = vadd.f32 %v7396, %v7504
    %v7540 = vadd.f32 %v7399, %v7507
    %v7541 = vadd.f32 %v7401, %v7509
    %v7542 = vadd.f32 %v7404, %v7512
    %v7543 = vadd.f32 %v7406, %v7514
    %v7544 = vadd.f32 %v7409, %v7517
    %v7545 = vadd.f32 %v7411, %v7519
    %v7546 = vadd.f32 %v7414, %v7522
    %v7547 = vadd.f32 %v7416, %v7524
    %v7548 = vadd.f32 %v7419, %v7527
    %v7549 = vadd.f32 %v7421, %v7529
    %v7550 = vadd.f32 %v7424, %v7532
    %v7551 = vadd.f32 %v7426, %v7534
    %v7552 = vpack.c.bf16 %v7137, %v7134
    %v7553 = vpack.c.bf16 %v7143, %v7140
    %v7554 = vpack.c.bf16 %v7149, %v7146
    %v7555 = vpack.c.bf16 %v7155, %v7152
    %v7556 = vpack.c.bf16 %v7161, %v7158
    %v7557 = vpack.c.bf16 %v7167, %v7164
    %v7558 = vpack.c.bf16 %v7173, %v7170
    %v7559 = vpack.c.bf16 %v7179, %v7176
    %v7561 = vshrl.u32 %v7552, 16
    %v7563 = vshll.u32 %v7552, 16
    %v7565 = vrot.slane %v7563, 1
    %v7566 = vor.u32 %v7561, %v7565
    %v7568 = vshll.u32 %v7553, 16
    %v7570 = vrot.slane %v7568, 1
    %v7571 = vsel %vm237, %v7566, %v7570
    %v7572 = vshrl.u32 %v7553, 16
    %v7574 = vor.u32 %v7572, %v7570
    %v7576 = vshll.u32 %v7554, 16
    %v7578 = vrot.slane %v7576, 1
    %v7579 = vsel %vm237, %v7574, %v7578
    %v7580 = vshrl.u32 %v7554, 16
    %v7582 = vor.u32 %v7580, %v7578
    %v7584 = vshll.u32 %v7555, 16
    %v7586 = vrot.slane %v7584, 1
    %v7587 = vsel %vm237, %v7582, %v7586
    %v7588 = vshrl.u32 %v7555, 16
    %v7590 = vor.u32 %v7588, %v7586
    %v7592 = vshll.u32 %v7556, 16
    %v7594 = vrot.slane %v7592, 1
    %v7595 = vsel %vm237, %v7590, %v7594
    %v7596 = vshrl.u32 %v7556, 16
    %v7598 = vor.u32 %v7596, %v7594
    %v7600 = vshll.u32 %v7557, 16
    %v7602 = vrot.slane %v7600, 1
    %v7603 = vsel %vm237, %v7598, %v7602
    %v7604 = vshrl.u32 %v7557, 16
    %v7606 = vor.u32 %v7604, %v7602
    %v7608 = vshll.u32 %v7558, 16
    %v7610 = vrot.slane %v7608, 1
    %v7611 = vsel %vm237, %v7606, %v7610
    %v7612 = vshrl.u32 %v7558, 16
    %v7614 = vor.u32 %v7612, %v7610
    %v7616 = vshll.u32 %v7559, 16
    %v7618 = vrot.slane %v7616, 1
    %v7619 = vsel %vm237, %v7614, %v7618
    %v7620 = vshrl.u32 %v7559, 16
    %v7622 = vor.u32 %v7620, %v7618
    %v7624 = vsel %vm4262, %v7571, 0
    %v7627 = vsel %vm4262, %v7579, 0
    %v7630 = vsel %vm4262, %v7587, 0
    %v7633 = vsel %vm4262, %v7595, 0
    %v7636 = vsel %vm4262, %v7603, 0
    %v7639 = vsel %vm4262, %v7611, 0
    %v7642 = vsel %vm4262, %v7619, 0
    %v7645 = vsel %vm4262, %v7622, 0
    %7647 = vmatpush.bf16.msra.mxu0 0
    %7648 = vmatpush.bf16.msra.mxu0 0
    %7649 = vmatpush.bf16.msra.mxu0 0
    %7650 = vmatpush.bf16.msra.mxu0 0
    %7651 = vmatpush.bf16.msra.mxu0 0
    %7652 = vmatpush.bf16.msra.mxu0 0
    %7653 = vmatpush.bf16.msra.mxu0 %v7275
    %7654 = vmatpush.bf16.msra.mxu0 %v7274
    %7655 = vmatmul.bf16.gmra.mxu0 %v7624
    %v7656 = vpop.f32.mrf.mxu0
    %v7657 = vadd.f32 0.0, %v7656
    %v7658 = vpop.f32.mrf.mxu0
    %v7659 = vadd.f32 0.0, %v7658
    %7660 = vmatmul.bf16.gmra.mxu0 %v7627
    %v7661 = vpop.f32.mrf.mxu0
    %v7662 = vadd.f32 0.0, %v7661
    %v7663 = vpop.f32.mrf.mxu0
    %v7664 = vadd.f32 0.0, %v7663
    %7665 = vmatmul.bf16.gmra.mxu0 %v7630
    %v7666 = vpop.f32.mrf.mxu0
    %v7667 = vadd.f32 0.0, %v7666
    %v7668 = vpop.f32.mrf.mxu0
    %v7669 = vadd.f32 0.0, %v7668
    %7670 = vmatmul.bf16.gmra.mxu0 %v7633
    %v7671 = vpop.f32.mrf.mxu0
    %v7672 = vadd.f32 0.0, %v7671
    %v7673 = vpop.f32.mrf.mxu0
    %v7674 = vadd.f32 0.0, %v7673
    %7675 = vmatmul.bf16.gmra.mxu0 %v7636
    %v7676 = vpop.f32.mrf.mxu0
    %v7677 = vadd.f32 0.0, %v7676
    %v7678 = vpop.f32.mrf.mxu0
    %v7679 = vadd.f32 0.0, %v7678
    %7680 = vmatmul.bf16.gmra.mxu0 %v7639
    %v7681 = vpop.f32.mrf.mxu0
    %v7682 = vadd.f32 0.0, %v7681
    %v7683 = vpop.f32.mrf.mxu0
    %v7684 = vadd.f32 0.0, %v7683
    %7685 = vmatmul.bf16.gmra.mxu0 %v7642
    %v7686 = vpop.f32.mrf.mxu0
    %v7687 = vadd.f32 0.0, %v7686
    %v7688 = vpop.f32.mrf.mxu0
    %v7689 = vadd.f32 0.0, %v7688
    %7690 = vmatmul.bf16.gmra.mxu0 %v7645
    %v7691 = vpop.f32.mrf.mxu0
    %v7692 = vadd.f32 0.0, %v7691
    %v7693 = vpop.f32.mrf.mxu0
    %v7694 = vadd.f32 0.0, %v7693
    %7695 = vdwg.mxu0
    %v7696 = vsel %vm4262, %v7552, 0
    %v7698 = vsel %vm4262, %v7553, 0
    %v7700 = vsel %vm4262, %v7554, 0
    %v7702 = vsel %vm4262, %v7555, 0
    %v7704 = vsel %vm4262, %v7556, 0
    %v7706 = vsel %vm4262, %v7557, 0
    %v7708 = vsel %vm4262, %v7558, 0
    %v7710 = vsel %vm4262, %v7559, 0
    %7712 = vmatpush.bf16.msra.mxu0 0
    %7713 = vmatpush.bf16.msra.mxu0 0
    %7714 = vmatpush.bf16.msra.mxu0 0
    %7715 = vmatpush.bf16.msra.mxu0 0
    %7716 = vmatpush.bf16.msra.mxu0 0
    %7717 = vmatpush.bf16.msra.mxu0 0
    %7718 = vmatpush.bf16.msra.mxu0 %v7360
    %7719 = vmatpush.bf16.msra.mxu0 %v7359
    %7720 = vmatmul.bf16.gmra.mxu0 %v7696
    %v7721 = vpop.f32.mrf.mxu0
    %v7722 = vadd.f32 %v7657, %v7721
    %v7723 = vpop.f32.mrf.mxu0
    %v7724 = vadd.f32 %v7659, %v7723
    %7725 = vmatmul.bf16.gmra.mxu0 %v7698
    %v7726 = vpop.f32.mrf.mxu0
    %v7727 = vadd.f32 %v7662, %v7726
    %v7728 = vpop.f32.mrf.mxu0
    %v7729 = vadd.f32 %v7664, %v7728
    %7730 = vmatmul.bf16.gmra.mxu0 %v7700
    %v7731 = vpop.f32.mrf.mxu0
    %v7732 = vadd.f32 %v7667, %v7731
    %v7733 = vpop.f32.mrf.mxu0
    %v7734 = vadd.f32 %v7669, %v7733
    %7735 = vmatmul.bf16.gmra.mxu0 %v7702
    %v7736 = vpop.f32.mrf.mxu0
    %v7737 = vadd.f32 %v7672, %v7736
    %v7738 = vpop.f32.mrf.mxu0
    %v7739 = vadd.f32 %v7674, %v7738
    %7740 = vmatmul.bf16.gmra.mxu0 %v7704
    %v7741 = vpop.f32.mrf.mxu0
    %v7742 = vadd.f32 %v7677, %v7741
    %v7743 = vpop.f32.mrf.mxu0
    %v7744 = vadd.f32 %v7679, %v7743
    %7745 = vmatmul.bf16.gmra.mxu0 %v7706
    %v7746 = vpop.f32.mrf.mxu0
    %v7747 = vadd.f32 %v7682, %v7746
    %v7748 = vpop.f32.mrf.mxu0
    %v7749 = vadd.f32 %v7684, %v7748
    %7750 = vmatmul.bf16.gmra.mxu0 %v7708
    %v7751 = vpop.f32.mrf.mxu0
    %v7752 = vadd.f32 %v7687, %v7751
    %v7753 = vpop.f32.mrf.mxu0
    %v7754 = vadd.f32 %v7689, %v7753
    %7755 = vmatmul.bf16.gmra.mxu0 %v7710
    %v7756 = vpop.f32.mrf.mxu0
    %v7757 = vadd.f32 %v7692, %v7756
    %v7758 = vpop.f32.mrf.mxu0
    %v7759 = vadd.f32 %v7694, %v7758
    %7760 = vdwg.mxu0
    %v7769 = vrot.slane %v7552, 1
    %v7770 = vrot.slane %v7553, 1
    %v7771 = vsel %vm1018, %v7769, %v7770
    %v7772 = vrot.slane %v7554, 1
    %v7773 = vsel %vm1018, %v7770, %v7772
    %v7774 = vrot.slane %v7555, 1
    %v7775 = vsel %vm1018, %v7772, %v7774
    %v7776 = vrot.slane %v7556, 1
    %v7777 = vsel %vm1018, %v7774, %v7776
    %v7778 = vrot.slane %v7557, 1
    %v7779 = vsel %vm1018, %v7776, %v7778
    %v7780 = vrot.slane %v7558, 1
    %v7781 = vsel %vm1018, %v7778, %v7780
    %v7782 = vrot.slane %v7559, 1
    %v7783 = vsel %vm1018, %v7780, %v7782
    %v7785 = vsel %vm4262, %v7771, 0
    %v7788 = vsel %vm4262, %v7773, 0
    %v7791 = vsel %vm4262, %v7775, 0
    %v7794 = vsel %vm4262, %v7777, 0
    %v7797 = vsel %vm4262, %v7779, 0
    %v7800 = vsel %vm4262, %v7781, 0
    %v7803 = vsel %vm4262, %v7783, 0
    %v7806 = vsel %vm4262, %v7782, 0
    %7808 = vmatpush.bf16.msra.mxu0 0
    %7809 = vmatpush.bf16.msra.mxu0 0
    %7810 = vmatpush.bf16.msra.mxu0 0
    %7811 = vmatpush.bf16.msra.mxu0 0
    %7812 = vmatpush.bf16.msra.mxu0 0
    %7813 = vmatpush.bf16.msra.mxu0 0
    %7814 = vmatpush.bf16.msra.mxu0 %v7460
    %7815 = vmatpush.bf16.msra.mxu0 %v7459
    %7816 = vmatmul.bf16.gmra.mxu0 %v7785
    %v7817 = vpop.f32.mrf.mxu0
    %v7818 = vadd.f32 0.0, %v7817
    %v7819 = vpop.f32.mrf.mxu0
    %v7820 = vadd.f32 0.0, %v7819
    %7821 = vmatmul.bf16.gmra.mxu0 %v7788
    %v7822 = vpop.f32.mrf.mxu0
    %v7823 = vadd.f32 0.0, %v7822
    %v7824 = vpop.f32.mrf.mxu0
    %v7825 = vadd.f32 0.0, %v7824
    %7826 = vmatmul.bf16.gmra.mxu0 %v7791
    %v7827 = vpop.f32.mrf.mxu0
    %v7828 = vadd.f32 0.0, %v7827
    %v7829 = vpop.f32.mrf.mxu0
    %v7830 = vadd.f32 0.0, %v7829
    %7831 = vmatmul.bf16.gmra.mxu0 %v7794
    %v7832 = vpop.f32.mrf.mxu0
    %v7833 = vadd.f32 0.0, %v7832
    %v7834 = vpop.f32.mrf.mxu0
    %v7835 = vadd.f32 0.0, %v7834
    %7836 = vmatmul.bf16.gmra.mxu0 %v7797
    %v7837 = vpop.f32.mrf.mxu0
    %v7838 = vadd.f32 0.0, %v7837
    %v7839 = vpop.f32.mrf.mxu0
    %v7840 = vadd.f32 0.0, %v7839
    %7841 = vmatmul.bf16.gmra.mxu0 %v7800
    %v7842 = vpop.f32.mrf.mxu0
    %v7843 = vadd.f32 0.0, %v7842
    %v7844 = vpop.f32.mrf.mxu0
    %v7845 = vadd.f32 0.0, %v7844
    %7846 = vmatmul.bf16.gmra.mxu0 %v7803
    %v7847 = vpop.f32.mrf.mxu0
    %v7848 = vadd.f32 0.0, %v7847
    %v7849 = vpop.f32.mrf.mxu0
    %v7850 = vadd.f32 0.0, %v7849
    %7851 = vmatmul.bf16.gmra.mxu0 %v7806
    %v7852 = vpop.f32.mrf.mxu0
    %v7853 = vadd.f32 0.0, %v7852
    %v7854 = vpop.f32.mrf.mxu0
    %v7855 = vadd.f32 0.0, %v7854
    %7856 = vdwg.mxu0
    %v7857 = vadd.f32 %v7722, %v7818
    %v7858 = vadd.f32 %v7724, %v7820
    %v7859 = vadd.f32 %v7727, %v7823
    %v7860 = vadd.f32 %v7729, %v7825
    %v7861 = vadd.f32 %v7732, %v7828
    %v7862 = vadd.f32 %v7734, %v7830
    %v7863 = vadd.f32 %v7737, %v7833
    %v7864 = vadd.f32 %v7739, %v7835
    %v7865 = vadd.f32 %v7742, %v7838
    %v7866 = vadd.f32 %v7744, %v7840
    %v7867 = vadd.f32 %v7747, %v7843
    %v7868 = vadd.f32 %v7749, %v7845
    %v7869 = vadd.f32 %v7752, %v7848
    %v7870 = vadd.f32 %v7754, %v7850
    %v7871 = vadd.f32 %v7757, %v7853
    %v7872 = vadd.f32 %v7759, %v7855
    %v7873 = vsel %vm4262, %v7536, 0.0
    %v7874 = vsel %vm4262, %v7537, 0.0
    %v7875 = vadd.f32 %v7873, %v7874
    %v7876 = vsel %vm4262, %v7538, 0.0
    %v7877 = vadd.f32 %v7875, %v7876
    %v7878 = vsel %vm4262, %v7539, 0.0
    %v7879 = vadd.f32 %v7877, %v7878
    %v7880 = vsel %vm4262, %v7540, 0.0
    %v7881 = vadd.f32 %v7879, %v7880
    %v7882 = vsel %vm4262, %v7541, 0.0
    %v7883 = vadd.f32 %v7881, %v7882
    %v7884 = vsel %vm4262, %v7542, 0.0
    %v7885 = vadd.f32 %v7883, %v7884
    %v7886 = vsel %vm4262, %v7543, 0.0
    %v7887 = vadd.f32 %v7885, %v7886
    %v7888 = vsel %vm4262, %v7544, 0.0
    %v7889 = vadd.f32 %v7887, %v7888
    %v7890 = vsel %vm4262, %v7545, 0.0
    %v7891 = vadd.f32 %v7889, %v7890
    %v7892 = vsel %vm4262, %v7546, 0.0
    %v7893 = vadd.f32 %v7891, %v7892
    %v7894 = vsel %vm4262, %v7547, 0.0
    %v7895 = vadd.f32 %v7893, %v7894
    %v7896 = vsel %vm4262, %v7548, 0.0
    %v7897 = vadd.f32 %v7895, %v7896
    %v7898 = vsel %vm4262, %v7549, 0.0
    %v7899 = vadd.f32 %v7897, %v7898
    %v7900 = vsel %vm4262, %v7550, 0.0
    %v7901 = vadd.f32 %v7899, %v7900
    %vm7902 = vcmask 254976
    %v7903 = vsel %vm7902, %v7551, 0.0
    %v7904 = vadd.f32 %v7901, %v7903
    %v7905 = vrot.slane %v7904, 4
    %v7906 = vadd.f32 %v7904, %v7905
    %v7907 = vrot.slane %v7906, 2
    %v7908 = vadd.f32 %v7906, %v7907
    %v7909 = vrot.slane %v7908, 1
    %v7910 = vadd.f32 %v7908, %v7909
    %v7911 = vmul.f32 %v7536, %v7536
    %v7912 = vmul.f32 %v7537, %v7537
    %v7913 = vmul.f32 %v7538, %v7538
    %v7914 = vmul.f32 %v7539, %v7539
    %v7915 = vmul.f32 %v7540, %v7540
    %v7916 = vmul.f32 %v7541, %v7541
    %v7917 = vmul.f32 %v7542, %v7542
    %v7918 = vmul.f32 %v7543, %v7543
    %v7919 = vmul.f32 %v7544, %v7544
    %v7920 = vmul.f32 %v7545, %v7545
    %v7921 = vmul.f32 %v7546, %v7546
    %v7922 = vmul.f32 %v7547, %v7547
    %v7923 = vmul.f32 %v7548, %v7548
    %v7924 = vmul.f32 %v7549, %v7549
    %v7925 = vmul.f32 %v7550, %v7550
    %v7926 = vmul.f32 %v7551, %v7551
    %v7927 = vsel %vm4262, %v7911, 0.0
    %v7928 = vsel %vm4262, %v7912, 0.0
    %v7929 = vadd.f32 %v7927, %v7928
    %v7930 = vsel %vm4262, %v7913, 0.0
    %v7931 = vadd.f32 %v7929, %v7930
    %v7932 = vsel %vm4262, %v7914, 0.0
    %v7933 = vadd.f32 %v7931, %v7932
    %v7934 = vsel %vm4262, %v7915, 0.0
    %v7935 = vadd.f32 %v7933, %v7934
    %v7936 = vsel %vm4262, %v7916, 0.0
    %v7937 = vadd.f32 %v7935, %v7936
    %v7938 = vsel %vm4262, %v7917, 0.0
    %v7939 = vadd.f32 %v7937, %v7938
    %v7940 = vsel %vm4262, %v7918, 0.0
    %v7941 = vadd.f32 %v7939, %v7940
    %v7942 = vsel %vm4262, %v7919, 0.0
    %v7943 = vadd.f32 %v7941, %v7942
    %v7944 = vsel %vm4262, %v7920, 0.0
    %v7945 = vadd.f32 %v7943, %v7944
    %v7946 = vsel %vm4262, %v7921, 0.0
    %v7947 = vadd.f32 %v7945, %v7946
    %v7948 = vsel %vm4262, %v7922, 0.0
    %v7949 = vadd.f32 %v7947, %v7948
    %v7950 = vsel %vm4262, %v7923, 0.0
    %v7951 = vadd.f32 %v7949, %v7950
    %v7952 = vsel %vm4262, %v7924, 0.0
    %v7953 = vadd.f32 %v7951, %v7952
    %v7954 = vsel %vm4262, %v7925, 0.0
    %v7955 = vadd.f32 %v7953, %v7954
    %v7956 = vsel %vm7902, %v7926, 0.0
    %v7957 = vadd.f32 %v7955, %v7956
    %v7958 = vrot.slane %v7957, 4
    %v7959 = vadd.f32 %v7957, %v7958
    %v7960 = vrot.slane %v7959, 2
    %v7961 = vadd.f32 %v7959, %v7960
    %v7962 = vrot.slane %v7961, 1
    %v7963 = vadd.f32 %v7961, %v7962
    %v7964 = vsel %vm4262, %v7857, 0.0
    %v7965 = vsel %vm4262, %v7858, 0.0
    %v7966 = vadd.f32 %v7964, %v7965
    %v7967 = vsel %vm4262, %v7859, 0.0
    %v7968 = vadd.f32 %v7966, %v7967
    %v7969 = vsel %vm4262, %v7860, 0.0
    %v7970 = vadd.f32 %v7968, %v7969
    %v7971 = vsel %vm4262, %v7861, 0.0
    %v7972 = vadd.f32 %v7970, %v7971
    %v7973 = vsel %vm4262, %v7862, 0.0
    %v7974 = vadd.f32 %v7972, %v7973
    %v7975 = vsel %vm4262, %v7863, 0.0
    %v7976 = vadd.f32 %v7974, %v7975
    %v7977 = vsel %vm4262, %v7864, 0.0
    %v7978 = vadd.f32 %v7976, %v7977
    %v7979 = vsel %vm4262, %v7865, 0.0
    %v7980 = vadd.f32 %v7978, %v7979
    %v7981 = vsel %vm4262, %v7866, 0.0
    %v7982 = vadd.f32 %v7980, %v7981
    %v7983 = vsel %vm4262, %v7867, 0.0
    %v7984 = vadd.f32 %v7982, %v7983
    %v7985 = vsel %vm4262, %v7868, 0.0
    %v7986 = vadd.f32 %v7984, %v7985
    %v7987 = vsel %vm4262, %v7869, 0.0
    %v7988 = vadd.f32 %v7986, %v7987
    %v7989 = vsel %vm4262, %v7870, 0.0
    %v7990 = vadd.f32 %v7988, %v7989
    %v7991 = vsel %vm4262, %v7871, 0.0
    %v7992 = vadd.f32 %v7990, %v7991
    %v7993 = vsel %vm7902, %v7872, 0.0
    %v7994 = vadd.f32 %v7992, %v7993
    %v7995 = vrot.slane %v7994, 4
    %v7996 = vadd.f32 %v7994, %v7995
    %v7997 = vrot.slane %v7996, 2
    %v7998 = vadd.f32 %v7996, %v7997
    %v7999 = vrot.slane %v7998, 1
    %v8000 = vadd.f32 %v7998, %v7999
    %v8001 = vadd.f32 %v7910, %v8000
    %v8002 = vmul.f32 %v7857, %v7857
    %v8003 = vmul.f32 %v7858, %v7858
    %v8004 = vmul.f32 %v7859, %v7859
    %v8005 = vmul.f32 %v7860, %v7860
    %v8006 = vmul.f32 %v7861, %v7861
    %v8007 = vmul.f32 %v7862, %v7862
    %v8008 = vmul.f32 %v7863, %v7863
    %v8009 = vmul.f32 %v7864, %v7864
    %v8010 = vmul.f32 %v7865, %v7865
    %v8011 = vmul.f32 %v7866, %v7866
    %v8012 = vmul.f32 %v7867, %v7867
    %v8013 = vmul.f32 %v7868, %v7868
    %v8014 = vmul.f32 %v7869, %v7869
    %v8015 = vmul.f32 %v7870, %v7870
    %v8016 = vmul.f32 %v7871, %v7871
    %v8017 = vmul.f32 %v7872, %v7872
    %v8018 = vsel %vm4262, %v8002, 0.0
    %v8019 = vsel %vm4262, %v8003, 0.0
    %v8020 = vadd.f32 %v8018, %v8019
    %v8021 = vsel %vm4262, %v8004, 0.0
    %v8022 = vadd.f32 %v8020, %v8021
    %v8023 = vsel %vm4262, %v8005, 0.0
    %v8024 = vadd.f32 %v8022, %v8023
    %v8025 = vsel %vm4262, %v8006, 0.0
    %v8026 = vadd.f32 %v8024, %v8025
    %v8027 = vsel %vm4262, %v8007, 0.0
    %v8028 = vadd.f32 %v8026, %v8027
    %v8029 = vsel %vm4262, %v8008, 0.0
    %v8030 = vadd.f32 %v8028, %v8029
    %v8031 = vsel %vm4262, %v8009, 0.0
    %v8032 = vadd.f32 %v8030, %v8031
    %v8033 = vsel %vm4262, %v8010, 0.0
    %v8034 = vadd.f32 %v8032, %v8033
    %v8035 = vsel %vm4262, %v8011, 0.0
    %v8036 = vadd.f32 %v8034, %v8035
    %v8037 = vsel %vm4262, %v8012, 0.0
    %v8038 = vadd.f32 %v8036, %v8037
    %v8039 = vsel %vm4262, %v8013, 0.0
    %v8040 = vadd.f32 %v8038, %v8039
    %v8041 = vsel %vm4262, %v8014, 0.0
    %v8042 = vadd.f32 %v8040, %v8041
    %v8043 = vsel %vm4262, %v8015, 0.0
    %v8044 = vadd.f32 %v8042, %v8043
    %v8045 = vsel %vm4262, %v8016, 0.0
    %v8046 = vadd.f32 %v8044, %v8045
    %v8047 = vsel %vm7902, %v8017, 0.0
    %v8048 = vadd.f32 %v8046, %v8047
    %v8049 = vrot.slane %v8048, 4
    %v8050 = vadd.f32 %v8048, %v8049
    %v8051 = vrot.slane %v8050, 2
    %v8052 = vadd.f32 %v8050, %v8051
    %v8053 = vrot.slane %v8052, 1
    %v8054 = vadd.f32 %v8052, %v8053
    %v8055 = vadd.f32 %v7963, %v8054
    %v8056 = vmul.f32 %v8001, 0.0040983604
    %v8057 = vmul.f32 %v8055, 0.0040983604
    %v8058 = vmul.f32 %v8056, %v8056
    %v8059 = vsub.f32 %v8057, %v8058
    %v8060 = vld [vmem:[%s6] sm:$0x1]
    %v8061 = vadd.f32 %v8059, 1e-05
    %v8062 = vrsqrt.pop %v8061
    %v8063 = vmul.f32 %v8062, %v8061
    %v8064 = vmul.f32 %v8063, %v8062
    %v8065 = vmul.f32 0.5, %v8064
    %v8066 = vsub.f32 1.5, %v8065
    %v8067 = vmul.f32 %v8062, %v8066
    %vm8068 = vweird.f32 %v8061
    %vm8069 = vweird.f32 %v8062
    %vm8070 = vmor %vm8068, %vm8069
    %v8071 = vsel %vm8070, %v8062, %v8067
    %v8072 = vmul.f32 %v8060, %v8071
    %v8073 = vld [vmem:[%s7] sm:$0x1]
    %v8074 = vmul.f32 %v8056, %v8072
    %v8075 = vsub.f32 %v8073, %v8074
    %v8076 = vld [vmem:[%s8] sm:$0xff]
    %v8077 = vld [vmem:[%s8 + $0x8] sm:$0xff]
    %v8078 = vld [vmem:[%s8 + $0x10] sm:$0xff]
    %v8079 = vld [vmem:[%s8 + $0x18] sm:$0x3f]
    %v8081 = vperm.slane %v8072, 0
    %v8083 = vmul.f32 %v7536, %v8081
    %v8084 = vmul.f32 %v7537, %v8081
    %v8085 = vmul.f32 %v7538, %v8081
    %v8086 = vmul.f32 %v7539, %v8081
    %v8087 = vmul.f32 %v7540, %v8081
    %v8088 = vmul.f32 %v7541, %v8081
    %v8089 = vmul.f32 %v7542, %v8081
    %v8090 = vmul.f32 %v7543, %v8081
    %v8091 = vmul.f32 %v7544, %v8081
    %v8092 = vmul.f32 %v7545, %v8081
    %v8093 = vmul.f32 %v7546, %v8081
    %v8094 = vmul.f32 %v7547, %v8081
    %v8095 = vmul.f32 %v7548, %v8081
    %v8096 = vmul.f32 %v7549, %v8081
    %v8097 = vmul.f32 %v7550, %v8081
    %v8098 = vmul.f32 %v7551, %v8081
    %v8100 = vperm.slane %v8075, 0
    %v8102 = vadd.f32 %v8083, %v8100
    %v8103 = vadd.f32 %v8084, %v8100
    %v8104 = vadd.f32 %v8085, %v8100
    %v8105 = vadd.f32 %v8086, %v8100
    %v8106 = vadd.f32 %v8087, %v8100
    %v8107 = vadd.f32 %v8088, %v8100
    %v8108 = vadd.f32 %v8089, %v8100
    %v8109 = vadd.f32 %v8090, %v8100
    %v8110 = vadd.f32 %v8091, %v8100
    %v8111 = vadd.f32 %v8092, %v8100
    %v8112 = vadd.f32 %v8093, %v8100
    %v8113 = vadd.f32 %v8094, %v8100
    %v8114 = vadd.f32 %v8095, %v8100
    %v8115 = vadd.f32 %v8096, %v8100
    %v8116 = vadd.f32 %v8097, %v8100
    %v8117 = vadd.f32 %v8098, %v8100
    %v8118 = vmax.f32 %v8102, 0.0
    %v8119 = vmax.f32 %v8103, 0.0
    %v8120 = vmax.f32 %v8104, 0.0
    %v8121 = vmax.f32 %v8105, 0.0
    %v8122 = vmax.f32 %v8106, 0.0
    %v8123 = vmax.f32 %v8107, 0.0
    %v8124 = vmax.f32 %v8108, 0.0
    %v8125 = vmax.f32 %v8109, 0.0
    %v8126 = vmax.f32 %v8110, 0.0
    %v8127 = vmax.f32 %v8111, 0.0
    %v8128 = vmax.f32 %v8112, 0.0
    %v8129 = vmax.f32 %v8113, 0.0
    %v8130 = vmax.f32 %v8114, 0.0
    %v8131 = vmax.f32 %v8115, 0.0
    %v8132 = vmax.f32 %v8116, 0.0
    %v8133 = vmax.f32 %v8117, 0.0
    %v8149 = vrot.slane %v8118, 1
    %v8150 = vrot.slane %v8119, 1
    %v8151 = vsel %vm5243, %v8149, %v8150
    %v8152 = vrot.slane %v8120, 1
    %v8153 = vsel %vm5243, %v8150, %v8152
    %v8154 = vrot.slane %v8121, 1
    %v8155 = vsel %vm5243, %v8152, %v8154
    %v8156 = vrot.slane %v8122, 1
    %v8157 = vsel %vm5243, %v8154, %v8156
    %v8158 = vrot.slane %v8123, 1
    %v8159 = vsel %vm5243, %v8156, %v8158
    %v8160 = vrot.slane %v8124, 1
    %v8161 = vsel %vm5243, %v8158, %v8160
    %v8162 = vrot.slane %v8125, 1
    %v8163 = vsel %vm5243, %v8160, %v8162
    %v8164 = vrot.slane %v8126, 1
    %v8165 = vsel %vm5243, %v8162, %v8164
    %v8166 = vrot.slane %v8127, 1
    %v8167 = vsel %vm5243, %v8164, %v8166
    %v8168 = vrot.slane %v8128, 1
    %v8169 = vsel %vm5243, %v8166, %v8168
    %v8170 = vrot.slane %v8129, 1
    %v8171 = vsel %vm5243, %v8168, %v8170
    %v8172 = vrot.slane %v8130, 1
    %v8173 = vsel %vm5243, %v8170, %v8172
    %v8174 = vrot.slane %v8131, 1
    %v8175 = vsel %vm5243, %v8172, %v8174
    %v8176 = vrot.slane %v8132, 1
    %v8177 = vsel %vm5243, %v8174, %v8176
    %v8193 = vmax.f32 %v8118, %v8151
    %v8194 = vmax.f32 %v8119, %v8153
    %v8195 = vmax.f32 %v8120, %v8155
    %v8196 = vmax.f32 %v8121, %v8157
    %v8197 = vmax.f32 %v8122, %v8159
    %v8198 = vmax.f32 %v8123, %v8161
    %v8199 = vmax.f32 %v8124, %v8163
    %v8200 = vmax.f32 %v8125, %v8165
    %v8201 = vmax.f32 %v8126, %v8167
    %v8202 = vmax.f32 %v8127, %v8169
    %v8203 = vmax.f32 %v8128, %v8171
    %v8204 = vmax.f32 %v8129, %v8173
    %v8205 = vmax.f32 %v8130, %v8175
    %v8206 = vmax.f32 %v8131, %v8177
    %v8207 = vmax.f32 %v8132, %v8176
    %v8209 = vrot.slane %v8133, 1
    %v8210 = vsel %vm5243, %v8176, %v8209
    %v8213 = vmax.f32 %v8132, %v8210
    %v8214 = vmax.f32 %v8133, %v8209
    %v8231 = vrot.slane %v8193, 2
    %v8232 = vrot.slane %v8194, 2
    %v8233 = vsel %vm5553, %v8231, %v8232
    %v8234 = vrot.slane %v8195, 2
    %v8235 = vsel %vm5553, %v8232, %v8234
    %v8236 = vrot.slane %v8196, 2
    %v8237 = vsel %vm5553, %v8234, %v8236
    %v8238 = vrot.slane %v8197, 2
    %v8239 = vsel %vm5553, %v8236, %v8238
    %v8240 = vrot.slane %v8198, 2
    %v8241 = vsel %vm5553, %v8238, %v8240
    %v8242 = vrot.slane %v8199, 2
    %v8243 = vsel %vm5553, %v8240, %v8242
    %v8244 = vrot.slane %v8200, 2
    %v8245 = vsel %vm5553, %v8242, %v8244
    %v8246 = vrot.slane %v8201, 2
    %v8247 = vsel %vm5553, %v8244, %v8246
    %v8248 = vrot.slane %v8202, 2
    %v8249 = vsel %vm5553, %v8246, %v8248
    %v8250 = vrot.slane %v8203, 2
    %v8251 = vsel %vm5553, %v8248, %v8250
    %v8252 = vrot.slane %v8204, 2
    %v8253 = vsel %vm5553, %v8250, %v8252
    %v8254 = vrot.slane %v8205, 2
    %v8255 = vsel %vm5553, %v8252, %v8254
    %v8256 = vrot.slane %v8206, 2
    %v8257 = vsel %vm5553, %v8254, %v8256
    %v8258 = vrot.slane %v8213, 2
    %v8259 = vsel %vm5553, %v8256, %v8258
    %v8260 = vrot.slane %v8214, 2
    %v8261 = vsel %vm5553, %v8258, %v8260
    %v8277 = vmax.f32 %v8193, %v8233
    %v8278 = vmax.f32 %v8194, %v8235
    %v8279 = vmax.f32 %v8195, %v8237
    %v8280 = vmax.f32 %v8196, %v8239
    %v8281 = vmax.f32 %v8197, %v8241
    %v8282 = vmax.f32 %v8198, %v8243
    %v8283 = vmax.f32 %v8199, %v8245
    %v8284 = vmax.f32 %v8200, %v8247
    %v8285 = vmax.f32 %v8201, %v8249
    %v8286 = vmax.f32 %v8202, %v8251
    %v8287 = vmax.f32 %v8203, %v8253
    %v8288 = vmax.f32 %v8204, %v8255
    %v8289 = vmax.f32 %v8205, %v8257
    %v8290 = vmax.f32 %v8206, %v8259
    %v8291 = vmax.f32 %v8207, %v8261
    %vm8292 = vcmask 973824
    %v8294 = vsel %vm8292, %v8076, 0
    %v8297 = vsel %vm8292, %v8077, 0
    %v8300 = vsel %vm8292, %v8078, 0
    %v8303 = vsel %vm8292, %v8079, 0
    %v8306 = vsel %vm5243, %v8291, 0
    %8308 = vmatpush.msra.mxu0 0.0
    %8309 = vmatpush.msra.mxu0 %v8306
    %8310 = vmatpush.msra.mxu0 %v8290
    %8311 = vmatpush.msra.mxu0 %v8289
    %8312 = vmatpush.msra.mxu0 %v8288
    %8313 = vmatpush.msra.mxu0 %v8287
    %8314 = vmatpush.msra.mxu0 %v8286
    %8315 = vmatpush.msra.mxu0 %v8285
    %8316 = vmatpush.msra.mxu0 %v8284
    %8317 = vmatpush.msra.mxu0 %v8283
    %8318 = vmatpush.msra.mxu0 %v8282
    %8319 = vmatpush.msra.mxu0 %v8281
    %8320 = vmatpush.msra.mxu0 %v8280
    %8321 = vmatpush.msra.mxu0 %v8279
    %8322 = vmatpush.msra.mxu0 %v8278
    %8323 = vmatpush.msra.mxu0 %v8277
    %8324 = vmatmul.f32.gmra.mxu0 %v8294
    %v8325 = vpop.f32.mrf.mxu0
    %v8326 = vadd.f32 0.0, %v8325
    %8327 = vmatmul.f32.gmra.mxu0 %v8297
    %v8328 = vpop.f32.mrf.mxu0
    %v8329 = vadd.f32 0.0, %v8328
    %8330 = vmatmul.f32.gmra.mxu0 %v8300
    %v8331 = vpop.f32.mrf.mxu0
    %v8332 = vadd.f32 0.0, %v8331
    %8333 = vmatmul.f32.gmra.mxu0 %v8303
    %v8334 = vpop.f32.mrf.mxu0
    %v8335 = vadd.f32 0.0, %v8334
    %8336 = vdwg.mxu0
    %v8337 = vmul.f32 %v7857, %v8081
    %v8338 = vmul.f32 %v7858, %v8081
    %v8339 = vmul.f32 %v7859, %v8081
    %v8340 = vmul.f32 %v7860, %v8081
    %v8341 = vmul.f32 %v7861, %v8081
    %v8342 = vmul.f32 %v7862, %v8081
    %v8343 = vmul.f32 %v7863, %v8081
    %v8344 = vmul.f32 %v7864, %v8081
    %v8345 = vmul.f32 %v7865, %v8081
    %v8346 = vmul.f32 %v7866, %v8081
    %v8347 = vmul.f32 %v7867, %v8081
    %v8348 = vmul.f32 %v7868, %v8081
    %v8349 = vmul.f32 %v7869, %v8081
    %v8350 = vmul.f32 %v7870, %v8081
    %v8351 = vmul.f32 %v7871, %v8081
    %v8352 = vmul.f32 %v7872, %v8081
    %v8353 = vadd.f32 %v8337, %v8100
    %v8354 = vadd.f32 %v8338, %v8100
    %v8355 = vadd.f32 %v8339, %v8100
    %v8356 = vadd.f32 %v8340, %v8100
    %v8357 = vadd.f32 %v8341, %v8100
    %v8358 = vadd.f32 %v8342, %v8100
    %v8359 = vadd.f32 %v8343, %v8100
    %v8360 = vadd.f32 %v8344, %v8100
    %v8361 = vadd.f32 %v8345, %v8100
    %v8362 = vadd.f32 %v8346, %v8100
    %v8363 = vadd.f32 %v8347, %v8100
    %v8364 = vadd.f32 %v8348, %v8100
    %v8365 = vadd.f32 %v8349, %v8100
    %v8366 = vadd.f32 %v8350, %v8100
    %v8367 = vadd.f32 %v8351, %v8100
    %v8368 = vadd.f32 %v8352, %v8100
    %v8369 = vmax.f32 %v8353, 0.0
    %v8370 = vmax.f32 %v8354, 0.0
    %v8371 = vmax.f32 %v8355, 0.0
    %v8372 = vmax.f32 %v8356, 0.0
    %v8373 = vmax.f32 %v8357, 0.0
    %v8374 = vmax.f32 %v8358, 0.0
    %v8375 = vmax.f32 %v8359, 0.0
    %v8376 = vmax.f32 %v8360, 0.0
    %v8377 = vmax.f32 %v8361, 0.0
    %v8378 = vmax.f32 %v8362, 0.0
    %v8379 = vmax.f32 %v8363, 0.0
    %v8380 = vmax.f32 %v8364, 0.0
    %v8381 = vmax.f32 %v8365, 0.0
    %v8382 = vmax.f32 %v8366, 0.0
    %v8383 = vmax.f32 %v8367, 0.0
    %v8384 = vmax.f32 %v8368, 0.0
    %v8400 = vrot.slane %v8369, 1
    %v8401 = vrot.slane %v8370, 1
    %v8402 = vsel %vm5243, %v8400, %v8401
    %v8403 = vrot.slane %v8371, 1
    %v8404 = vsel %vm5243, %v8401, %v8403
    %v8405 = vrot.slane %v8372, 1
    %v8406 = vsel %vm5243, %v8403, %v8405
    %v8407 = vrot.slane %v8373, 1
    %v8408 = vsel %vm5243, %v8405, %v8407
    %v8409 = vrot.slane %v8374, 1
    %v8410 = vsel %vm5243, %v8407, %v8409
    %v8411 = vrot.slane %v8375, 1
    %v8412 = vsel %vm5243, %v8409, %v8411
    %v8413 = vrot.slane %v8376, 1
    %v8414 = vsel %vm5243, %v8411, %v8413
    %v8415 = vrot.slane %v8377, 1
    %v8416 = vsel %vm5243, %v8413, %v8415
    %v8417 = vrot.slane %v8378, 1
    %v8418 = vsel %vm5243, %v8415, %v8417
    %v8419 = vrot.slane %v8379, 1
    %v8420 = vsel %vm5243, %v8417, %v8419
    %v8421 = vrot.slane %v8380, 1
    %v8422 = vsel %vm5243, %v8419, %v8421
    %v8423 = vrot.slane %v8381, 1
    %v8424 = vsel %vm5243, %v8421, %v8423
    %v8425 = vrot.slane %v8382, 1
    %v8426 = vsel %vm5243, %v8423, %v8425
    %v8427 = vrot.slane %v8383, 1
    %v8428 = vsel %vm5243, %v8425, %v8427
    %v8444 = vmax.f32 %v8369, %v8402
    %v8445 = vmax.f32 %v8370, %v8404
    %v8446 = vmax.f32 %v8371, %v8406
    %v8447 = vmax.f32 %v8372, %v8408
    %v8448 = vmax.f32 %v8373, %v8410
    %v8449 = vmax.f32 %v8374, %v8412
    %v8450 = vmax.f32 %v8375, %v8414
    %v8451 = vmax.f32 %v8376, %v8416
    %v8452 = vmax.f32 %v8377, %v8418
    %v8453 = vmax.f32 %v8378, %v8420
    %v8454 = vmax.f32 %v8379, %v8422
    %v8455 = vmax.f32 %v8380, %v8424
    %v8456 = vmax.f32 %v8381, %v8426
    %v8457 = vmax.f32 %v8382, %v8428
    %v8458 = vmax.f32 %v8383, %v8427
    %v8460 = vrot.slane %v8384, 1
    %v8461 = vsel %vm5243, %v8427, %v8460
    %v8464 = vmax.f32 %v8383, %v8461
    %v8465 = vmax.f32 %v8384, %v8460
    %v8482 = vrot.slane %v8444, 2
    %v8483 = vrot.slane %v8445, 2
    %v8484 = vsel %vm5553, %v8482, %v8483
    %v8485 = vrot.slane %v8446, 2
    %v8486 = vsel %vm5553, %v8483, %v8485
    %v8487 = vrot.slane %v8447, 2
    %v8488 = vsel %vm5553, %v8485, %v8487
    %v8489 = vrot.slane %v8448, 2
    %v8490 = vsel %vm5553, %v8487, %v8489
    %v8491 = vrot.slane %v8449, 2
    %v8492 = vsel %vm5553, %v8489, %v8491
    %v8493 = vrot.slane %v8450, 2
    %v8494 = vsel %vm5553, %v8491, %v8493
    %v8495 = vrot.slane %v8451, 2
    %v8496 = vsel %vm5553, %v8493, %v8495
    %v8497 = vrot.slane %v8452, 2
    %v8498 = vsel %vm5553, %v8495, %v8497
    %v8499 = vrot.slane %v8453, 2
    %v8500 = vsel %vm5553, %v8497, %v8499
    %v8501 = vrot.slane %v8454, 2
    %v8502 = vsel %vm5553, %v8499, %v8501
    %v8503 = vrot.slane %v8455, 2
    %v8504 = vsel %vm5553, %v8501, %v8503
    %v8505 = vrot.slane %v8456, 2
    %v8506 = vsel %vm5553, %v8503, %v8505
    %v8507 = vrot.slane %v8457, 2
    %v8508 = vsel %vm5553, %v8505, %v8507
    %v8509 = vrot.slane %v8464, 2
    %v8510 = vsel %vm5553, %v8507, %v8509
    %v8511 = vrot.slane %v8465, 2
    %v8512 = vsel %vm5553, %v8509, %v8511
    %v8528 = vmax.f32 %v8444, %v8484
    %v8529 = vmax.f32 %v8445, %v8486
    %v8530 = vmax.f32 %v8446, %v8488
    %v8531 = vmax.f32 %v8447, %v8490
    %v8532 = vmax.f32 %v8448, %v8492
    %v8533 = vmax.f32 %v8449, %v8494
    %v8534 = vmax.f32 %v8450, %v8496
    %v8535 = vmax.f32 %v8451, %v8498
    %v8536 = vmax.f32 %v8452, %v8500
    %v8537 = vmax.f32 %v8453, %v8502
    %v8538 = vmax.f32 %v8454, %v8504
    %v8539 = vmax.f32 %v8455, %v8506
    %v8540 = vmax.f32 %v8456, %v8508
    %v8541 = vmax.f32 %v8457, %v8510
    %v8542 = vmax.f32 %v8458, %v8512
    %v8544 = vsel %vm5243, %v8542, 0
    %8546 = vmatpush.msra.mxu0 0.0
    %8547 = vmatpush.msra.mxu0 %v8544
    %8548 = vmatpush.msra.mxu0 %v8541
    %8549 = vmatpush.msra.mxu0 %v8540
    %8550 = vmatpush.msra.mxu0 %v8539
    %8551 = vmatpush.msra.mxu0 %v8538
    %8552 = vmatpush.msra.mxu0 %v8537
    %8553 = vmatpush.msra.mxu0 %v8536
    %8554 = vmatpush.msra.mxu0 %v8535
    %8555 = vmatpush.msra.mxu0 %v8534
    %8556 = vmatpush.msra.mxu0 %v8533
    %8557 = vmatpush.msra.mxu0 %v8532
    %8558 = vmatpush.msra.mxu0 %v8531
    %8559 = vmatpush.msra.mxu0 %v8530
    %8560 = vmatpush.msra.mxu0 %v8529
    %8561 = vmatpush.msra.mxu0 %v8528
    %8562 = vmatmul.f32.gmra.mxu0 %v8294
    %v8563 = vpop.f32.mrf.mxu0
    %v8564 = vadd.f32 0.0, %v8563
    %8565 = vmatmul.f32.gmra.mxu0 %v8297
    %v8566 = vpop.f32.mrf.mxu0
    %v8567 = vadd.f32 0.0, %v8566
    %8568 = vmatmul.f32.gmra.mxu0 %v8300
    %v8569 = vpop.f32.mrf.mxu0
    %v8570 = vadd.f32 0.0, %v8569
    %8571 = vmatmul.f32.gmra.mxu0 %v8303
    %v8572 = vpop.f32.mrf.mxu0
    %v8573 = vadd.f32 0.0, %v8572
    %8574 = vdwg.mxu0
    %v8575 = vld [vmem:[%s9] sm:$0xf]
    %v8576 = vld [vmem:[%s9 + $0x4] sm:$0xf]
    %v8577 = vld [vmem:[%s9 + $0x8] sm:$0xf]
    %v8578 = vld [vmem:[%s9 + $0xc] sm:$0xf]
    %s8579 = scalar_lea.vmem %s9, 16
    %v8580 = vld [vmem:[%s8579] sm:$0xf]
    %v8581 = vld [vmem:[%s8579 + $0x4] sm:$0xf]
    %v8582 = vld [vmem:[%s8579 + $0x8] sm:$0xf]
    %v8583 = vld [vmem:[%s8579 + $0xc] sm:$0xf]
    %s8584 = scalar_lea.vmem %s9, 32
    %v8585 = vld [vmem:[%s8584] sm:$0xf]
    %v8586 = vld [vmem:[%s8584 + $0x4] sm:$0xf]
    %v8587 = vld [vmem:[%s8584 + $0x8] sm:$0xf]
    %v8588 = vld [vmem:[%s8584 + $0xc] sm:$0xf]
    %v8589 = vpack.c.bf16 %v8329, %v8326
    %v8590 = vpack.c.bf16 %v8335, %v8332
    %v8592 = vshrl.u32 %v8589, 16
    %v8594 = vshll.u32 %v8589, 16
    %v8596 = vrot.slane %v8594, 1
    %v8597 = vor.u32 %v8592, %v8596
    %v8599 = vshll.u32 %v8590, 16
    %v8601 = vrot.slane %v8599, 1
    %v8602 = vsel %vm237, %v8597, %v8601
    %v8603 = vshrl.u32 %v8590, 16
    %v8605 = vor.u32 %v8603, %v8601
    %v8610 = vunpack.c.l.b16 %v8580
    %v8611 = vunpack.c.l.b16 %v8581
    %v8612 = vunpack.c.l.b16 %v8582
    %v8613 = vunpack.c.l.b16 %v8583
    %v8614 = vpack.c.b16 %v8611, %v8610
    %v8615 = vpack.c.b16 %v8613, %v8612
    %v8619 = vsel %vm4262, %v8602, 0
    %v8622 = vsel %vm4262, %v8605, 0
    %8624 = vmatpush.bf16.msra.mxu0 0
    %8625 = vmatpush.bf16.msra.mxu0 0
    %8626 = vmatpush.bf16.msra.mxu0 0
    %8627 = vmatpush.bf16.msra.mxu0 0
    %8628 = vmatpush.bf16.msra.mxu0 0
    %8629 = vmatpush.bf16.msra.mxu0 0
    %8630 = vmatpush.bf16.msra.mxu0 %v8615
    %8631 = vmatpush.bf16.msra.mxu0 %v8614
    %8632 = vmatmul.bf16.gmra.mxu0 %v8619
    %v8633 = vpop.f32.mrf.mxu0
    %v8634 = vadd.f32 0.0, %v8633
    %v8635 = vpop.f32.mrf.mxu0
    %v8636 = vadd.f32 0.0, %v8635
    %8637 = vmatmul.bf16.gmra.mxu0 %v8622
    %v8638 = vpop.f32.mrf.mxu0
    %v8639 = vadd.f32 0.0, %v8638
    %v8640 = vpop.f32.mrf.mxu0
    %v8641 = vadd.f32 0.0, %v8640
    %8642 = vdwg.mxu0
    %v8647 = vunpack.c.l.b16 %v8575
    %v8648 = vunpack.c.l.b16 %v8576
    %v8649 = vunpack.c.l.b16 %v8577
    %v8650 = vunpack.c.l.b16 %v8578
    %v8651 = vpack.c.b16 %v8648, %v8647
    %v8652 = vpack.c.b16 %v8650, %v8649
    %v8655 = vsel %vm4262, %v8589, 0
    %v8657 = vsel %vm4262, %v8590, 0
    %8659 = vmatpush.bf16.msra.mxu0 0
    %8660 = vmatpush.bf16.msra.mxu0 0
    %8661 = vmatpush.bf16.msra.mxu0 0
    %8662 = vmatpush.bf16.msra.mxu0 0
    %8663 = vmatpush.bf16.msra.mxu0 0
    %8664 = vmatpush.bf16.msra.mxu0 0
    %8665 = vmatpush.bf16.msra.mxu0 %v8652
    %8666 = vmatpush.bf16.msra.mxu0 %v8651
    %8667 = vmatmul.bf16.gmra.mxu0 %v8655
    %v8668 = vpop.f32.mrf.mxu0
    %v8669 = vadd.f32 %v8634, %v8668
    %v8670 = vpop.f32.mrf.mxu0
    %v8671 = vadd.f32 %v8636, %v8670
    %8672 = vmatmul.bf16.gmra.mxu0 %v8657
    %v8673 = vpop.f32.mrf.mxu0
    %v8674 = vadd.f32 %v8639, %v8673
    %v8675 = vpop.f32.mrf.mxu0
    %v8676 = vadd.f32 %v8641, %v8675
    %8677 = vdwg.mxu0
    %v8680 = vrot.slane %v8589, 1
    %v8681 = vrot.slane %v8590, 1
    %v8682 = vsel %vm1018, %v8680, %v8681
    %v8687 = vunpack.c.l.b16 %v8585
    %v8688 = vunpack.c.l.b16 %v8586
    %v8689 = vunpack.c.l.b16 %v8587
    %v8690 = vunpack.c.l.b16 %v8588
    %v8691 = vpack.c.b16 %v8688, %v8687
    %v8692 = vpack.c.b16 %v8690, %v8689
    %v8696 = vsel %vm4262, %v8682, 0
    %v8699 = vsel %vm4262, %v8681, 0
    %8701 = vmatpush.bf16.msra.mxu0 0
    %8702 = vmatpush.bf16.msra.mxu0 0
    %8703 = vmatpush.bf16.msra.mxu0 0
    %8704 = vmatpush.bf16.msra.mxu0 0
    %8705 = vmatpush.bf16.msra.mxu0 0
    %8706 = vmatpush.bf16.msra.mxu0 0
    %8707 = vmatpush.bf16.msra.mxu0 %v8692
    %8708 = vmatpush.bf16.msra.mxu0 %v8691
    %8709 = vmatmul.bf16.gmra.mxu0 %v8696
    %v8710 = vpop.f32.mrf.mxu0
    %v8711 = vadd.f32 0.0, %v8710
    %v8712 = vpop.f32.mrf.mxu0
    %v8713 = vadd.f32 0.0, %v8712
    %8714 = vmatmul.bf16.gmra.mxu0 %v8699
    %v8715 = vpop.f32.mrf.mxu0
    %v8716 = vadd.f32 0.0, %v8715
    %v8717 = vpop.f32.mrf.mxu0
    %v8718 = vadd.f32 0.0, %v8717
    %8719 = vdwg.mxu0
    %v8720 = vadd.f32 %v8669, %v8711
    %v8721 = vadd.f32 %v8671, %v8713
    %v8722 = vadd.f32 %v8674, %v8716
    %v8723 = vadd.f32 %v8676, %v8718
    %v8724 = vpack.c.bf16 %v8567, %v8564
    %v8725 = vpack.c.bf16 %v8573, %v8570
    %v8727 = vshrl.u32 %v8724, 16
    %v8729 = vshll.u32 %v8724, 16
    %v8731 = vrot.slane %v8729, 1
    %v8732 = vor.u32 %v8727, %v8731
    %v8734 = vshll.u32 %v8725, 16
    %v8736 = vrot.slane %v8734, 1
    %v8737 = vsel %vm237, %v8732, %v8736
    %v8738 = vshrl.u32 %v8725, 16
    %v8740 = vor.u32 %v8738, %v8736
    %v8742 = vsel %vm4262, %v8737, 0
    %v8745 = vsel %vm4262, %v8740, 0
    %8747 = vmatpush.bf16.msra.mxu0 0
    %8748 = vmatpush.bf16.msra.mxu0 0
    %8749 = vmatpush.bf16.msra.mxu0 0
    %8750 = vmatpush.bf16.msra.mxu0 0
    %8751 = vmatpush.bf16.msra.mxu0 0
    %8752 = vmatpush.bf16.msra.mxu0 0
    %8753 = vmatpush.bf16.msra.mxu0 %v8615
    %8754 = vmatpush.bf16.msra.mxu0 %v8614
    %8755 = vmatmul.bf16.gmra.mxu0 %v8742
    %v8756 = vpop.f32.mrf.mxu0
    %v8757 = vadd.f32 0.0, %v8756
    %v8758 = vpop.f32.mrf.mxu0
    %v8759 = vadd.f32 0.0, %v8758
    %8760 = vmatmul.bf16.gmra.mxu0 %v8745
    %v8761 = vpop.f32.mrf.mxu0
    %v8762 = vadd.f32 0.0, %v8761
    %v8763 = vpop.f32.mrf.mxu0
    %v8764 = vadd.f32 0.0, %v8763
    %8765 = vdwg.mxu0
    %v8766 = vsel %vm4262, %v8724, 0
    %v8768 = vsel %vm4262, %v8725, 0
    %8770 = vmatpush.bf16.msra.mxu0 0
    %8771 = vmatpush.bf16.msra.mxu0 0
    %8772 = vmatpush.bf16.msra.mxu0 0
    %8773 = vmatpush.bf16.msra.mxu0 0
    %8774 = vmatpush.bf16.msra.mxu0 0
    %8775 = vmatpush.bf16.msra.mxu0 0
    %8776 = vmatpush.bf16.msra.mxu0 %v8652
    %8777 = vmatpush.bf16.msra.mxu0 %v8651
    %8778 = vmatmul.bf16.gmra.mxu0 %v8766
    %v8779 = vpop.f32.mrf.mxu0
    %v8780 = vadd.f32 %v8757, %v8779
    %v8781 = vpop.f32.mrf.mxu0
    %v8782 = vadd.f32 %v8759, %v8781
    %8783 = vmatmul.bf16.gmra.mxu0 %v8768
    %v8784 = vpop.f32.mrf.mxu0
    %v8785 = vadd.f32 %v8762, %v8784
    %v8786 = vpop.f32.mrf.mxu0
    %v8787 = vadd.f32 %v8764, %v8786
    %8788 = vdwg.mxu0
    %v8791 = vrot.slane %v8724, 1
    %v8792 = vrot.slane %v8725, 1
    %v8793 = vsel %vm1018, %v8791, %v8792
    %v8795 = vsel %vm4262, %v8793, 0
    %v8798 = vsel %vm4262, %v8792, 0
    %8800 = vmatpush.bf16.msra.mxu0 0
    %8801 = vmatpush.bf16.msra.mxu0 0
    %8802 = vmatpush.bf16.msra.mxu0 0
    %8803 = vmatpush.bf16.msra.mxu0 0
    %8804 = vmatpush.bf16.msra.mxu0 0
    %8805 = vmatpush.bf16.msra.mxu0 0
    %8806 = vmatpush.bf16.msra.mxu0 %v8692
    %8807 = vmatpush.bf16.msra.mxu0 %v8691
    %8808 = vmatmul.bf16.gmra.mxu0 %v8795
    %v8809 = vpop.f32.mrf.mxu0
    %v8810 = vadd.f32 0.0, %v8809
    %v8811 = vpop.f32.mrf.mxu0
    %v8812 = vadd.f32 0.0, %v8811
    %8813 = vmatmul.bf16.gmra.mxu0 %v8798
    %v8814 = vpop.f32.mrf.mxu0
    %v8815 = vadd.f32 0.0, %v8814
    %v8816 = vpop.f32.mrf.mxu0
    %v8817 = vadd.f32 0.0, %v8816
    %8818 = vdwg.mxu0
    %v8819 = vadd.f32 %v8780, %v8810
    %v8820 = vadd.f32 %v8782, %v8812
    %v8821 = vadd.f32 %v8785, %v8815
    %v8822 = vadd.f32 %v8787, %v8817
    %vm8823 = vcmask 523264
    %v8824 = vsel %vm8823, %v8720, 0.0
    %v8825 = vsel %vm8823, %v8721, 0.0
    %v8826 = vadd.f32 %v8824, %v8825
    %v8827 = vsel %vm8823, %v8722, 0.0
    %v8828 = vadd.f32 %v8826, %v8827
    %vm8829 = vcmask 519168
    %v8830 = vsel %vm8829, %v8723, 0.0
    %v8831 = vadd.f32 %v8828, %v8830
    %v8832 = vrot.slane %v8831, 4
    %v8833 = vadd.f32 %v8831, %v8832
    %v8834 = vrot.slane %v8833, 2
    %v8835 = vadd.f32 %v8833, %v8834
    %v8836 = vrot.slane %v8835, 1
    %v8837 = vadd.f32 %v8835, %v8836
    %v8838 = vmul.f32 %v8720, %v8720
    %v8839 = vmul.f32 %v8721, %v8721
    %v8840 = vmul.f32 %v8722, %v8722
    %v8841 = vmul.f32 %v8723, %v8723
    %v8842 = vsel %vm8823, %v8838, 0.0
    %v8843 = vsel %vm8823, %v8839, 0.0
    %v8844 = vadd.f32 %v8842, %v8843
    %v8845 = vsel %vm8823, %v8840, 0.0
    %v8846 = vadd.f32 %v8844, %v8845
    %v8847 = vsel %vm8829, %v8841, 0.0
    %v8848 = vadd.f32 %v8846, %v8847
    %v8849 = vrot.slane %v8848, 4
    %v8850 = vadd.f32 %v8848, %v8849
    %v8851 = vrot.slane %v8850, 2
    %v8852 = vadd.f32 %v8850, %v8851
    %v8853 = vrot.slane %v8852, 1
    %v8854 = vadd.f32 %v8852, %v8853
    %v8855 = vsel %vm8823, %v8819, 0.0
    %v8856 = vsel %vm8823, %v8820, 0.0
    %v8857 = vadd.f32 %v8855, %v8856
    %v8858 = vsel %vm8823, %v8821, 0.0
    %v8859 = vadd.f32 %v8857, %v8858
    %v8860 = vsel %vm8829, %v8822, 0.0
    %v8861 = vadd.f32 %v8859, %v8860
    %v8862 = vrot.slane %v8861, 4
    %v8863 = vadd.f32 %v8861, %v8862
    %v8864 = vrot.slane %v8863, 2
    %v8865 = vadd.f32 %v8863, %v8864
    %v8866 = vrot.slane %v8865, 1
    %v8867 = vadd.f32 %v8865, %v8866
    %v8868 = vadd.f32 %v8837, %v8867
    %v8869 = vmul.f32 %v8819, %v8819
    %v8870 = vmul.f32 %v8820, %v8820
    %v8871 = vmul.f32 %v8821, %v8821
    %v8872 = vmul.f32 %v8822, %v8822
    %v8873 = vsel %vm8823, %v8869, 0.0
    %v8874 = vsel %vm8823, %v8870, 0.0
    %v8875 = vadd.f32 %v8873, %v8874
    %v8876 = vsel %vm8823, %v8871, 0.0
    %v8877 = vadd.f32 %v8875, %v8876
    %v8878 = vsel %vm8829, %v8872, 0.0
    %v8879 = vadd.f32 %v8877, %v8878
    %v8880 = vrot.slane %v8879, 4
    %v8881 = vadd.f32 %v8879, %v8880
    %v8882 = vrot.slane %v8881, 2
    %v8883 = vadd.f32 %v8881, %v8882
    %v8884 = vrot.slane %v8883, 1
    %v8885 = vadd.f32 %v8883, %v8884
    %v8886 = vadd.f32 %v8854, %v8885
    %v8887 = vmul.f32 %v8868, 0.017857144
    %v8888 = vmul.f32 %v8886, 0.017857144
    %v8889 = vmul.f32 %v8887, %v8887
    %v8890 = vsub.f32 %v8888, %v8889
    %v8891 = vld [vmem:[%s10] sm:$0x1]
    %v8892 = vadd.f32 %v8890, 1e-05
    %v8893 = vrsqrt.pop %v8892
    %v8894 = vmul.f32 %v8893, %v8892
    %v8895 = vmul.f32 %v8894, %v8893
    %v8896 = vmul.f32 0.5, %v8895
    %v8897 = vsub.f32 1.5, %v8896
    %v8898 = vmul.f32 %v8893, %v8897
    %vm8899 = vweird.f32 %v8892
    %vm8900 = vweird.f32 %v8893
    %vm8901 = vmor %vm8899, %vm8900
    %v8902 = vsel %vm8901, %v8893, %v8898
    %v8903 = vmul.f32 %v8891, %v8902
    %v8904 = vld [vmem:[%s11] sm:$0x1]
    %v8905 = vmul.f32 %v8887, %v8903
    %v8906 = vsub.f32 %v8904, %v8905
    %v8907 = vld [vmem:[%s12] sm:$0x7f]
    %v8909 = vperm.slane %v8903, 0
    %v8911 = vmul.f32 %v8720, %v8909
    %v8912 = vmul.f32 %v8721, %v8909
    %v8913 = vmul.f32 %v8722, %v8909
    %v8914 = vmul.f32 %v8723, %v8909
    %v8916 = vperm.slane %v8906, 0
    %v8918 = vadd.f32 %v8911, %v8916
    %v8919 = vadd.f32 %v8912, %v8916
    %v8920 = vadd.f32 %v8913, %v8916
    %v8921 = vadd.f32 %v8914, %v8916
    %v8922 = vmax.f32 %v8918, 0.0
    %v8923 = vmax.f32 %v8919, 0.0
    %v8924 = vmax.f32 %v8920, 0.0
    %v8925 = vmax.f32 %v8921, 0.0
    %v8930 = vrot.slane %v8922, 1
    %v8931 = vrot.slane %v8923, 1
    %v8932 = vsel %vm5243, %v8930, %v8931
    %v8933 = vrot.slane %v8924, 1
    %v8934 = vsel %vm5243, %v8931, %v8933
    %v8935 = vrot.slane %v8925, 1
    %v8936 = vsel %vm5243, %v8933, %v8935
    %v8941 = vmax.f32 %v8922, %v8932
    %v8942 = vmax.f32 %v8923, %v8934
    %v8943 = vmax.f32 %v8924, %v8936
    %v8944 = vmax.f32 %v8925, %v8935
    %v8949 = vrot.slane %v8941, 2
    %v8950 = vrot.slane %v8942, 2
    %v8951 = vsel %vm5553, %v8949, %v8950
    %v8952 = vrot.slane %v8943, 2
    %v8953 = vsel %vm5553, %v8950, %v8952
    %v8954 = vrot.slane %v8944, 2
    %v8955 = vsel %vm5553, %v8952, %v8954
    %v8960 = vmax.f32 %v8941, %v8951
    %v8961 = vmax.f32 %v8942, %v8953
    %v8962 = vmax.f32 %v8943, %v8955
    %v8963 = vmax.f32 %v8944, %v8954
    %vm8964 = vcmask 203776
    %v8966 = vsel %vm8964, %v8907, 0
    %vm8968 = vcmask 1040384
    %v8970 = vsel %vm8968, %v8963, 0
    %8972 = vmatpush.msra.mxu0 0.0
    %8973 = vmatpush.msra.mxu0 0.0
    %8974 = vmatpush.msra.mxu0 0.0
    %8975 = vmatpush.msra.mxu0 0.0
    %8976 = vmatpush.msra.mxu0 0.0
    %8977 = vmatpush.msra.mxu0 0.0
    %8978 = vmatpush.msra.mxu0 0.0
    %8979 = vmatpush.msra.mxu0 0.0
    %8980 = vmatpush.msra.mxu0 0.0
    %8981 = vmatpush.msra.mxu0 0.0
    %8982 = vmatpush.msra.mxu0 0.0
    %8983 = vmatpush.msra.mxu0 0.0
    %8984 = vmatpush.msra.mxu0 %v8970
    %8985 = vmatpush.msra.mxu0 %v8962
    %8986 = vmatpush.msra.mxu0 %v8961
    %8987 = vmatpush.msra.mxu0 %v8960
    %8988 = vmatmul.f32.gmra.mxu0 %v8966
    %v8989 = vpop.f32.mrf.mxu0
    %v8990 = vadd.f32 0.0, %v8989
    %8991 = vdwg.mxu0
    %v8992 = vmul.f32 %v8819, %v8909
    %v8993 = vmul.f32 %v8820, %v8909
    %v8994 = vmul.f32 %v8821, %v8909
    %v8995 = vmul.f32 %v8822, %v8909
    %v8996 = vadd.f32 %v8992, %v8916
    %v8997 = vadd.f32 %v8993, %v8916
    %v8998 = vadd.f32 %v8994, %v8916
    %v8999 = vadd.f32 %v8995, %v8916
    %v9000 = vmax.f32 %v8996, 0.0
    %v9001 = vmax.f32 %v8997, 0.0
    %v9002 = vmax.f32 %v8998, 0.0
    %v9003 = vmax.f32 %v8999, 0.0
    %v9008 = vrot.slane %v9000, 1
    %v9009 = vrot.slane %v9001, 1
    %v9010 = vsel %vm5243, %v9008, %v9009
    %v9011 = vrot.slane %v9002, 1
    %v9012 = vsel %vm5243, %v9009, %v9011
    %v9013 = vrot.slane %v9003, 1
    %v9014 = vsel %vm5243, %v9011, %v9013
    %v9019 = vmax.f32 %v9000, %v9010
    %v9020 = vmax.f32 %v9001, %v9012
    %v9021 = vmax.f32 %v9002, %v9014
    %v9022 = vmax.f32 %v9003, %v9013
    %v9027 = vrot.slane %v9019, 2
    %v9028 = vrot.slane %v9020, 2
    %v9029 = vsel %vm5553, %v9027, %v9028
    %v9030 = vrot.slane %v9021, 2
    %v9031 = vsel %vm5553, %v9028, %v9030
    %v9032 = vrot.slane %v9022, 2
    %v9033 = vsel %vm5553, %v9030, %v9032
    %v9038 = vmax.f32 %v9019, %v9029
    %v9039 = vmax.f32 %v9020, %v9031
    %v9040 = vmax.f32 %v9021, %v9033
    %v9041 = vmax.f32 %v9022, %v9032
    %v9043 = vsel %vm8968, %v9041, 0
    %9045 = vmatpush.msra.mxu0 0.0
    %9046 = vmatpush.msra.mxu0 0.0
    %9047 = vmatpush.msra.mxu0 0.0
    %9048 = vmatpush.msra.mxu0 0.0
    %9049 = vmatpush.msra.mxu0 0.0
    %9050 = vmatpush.msra.mxu0 0.0
    %9051 = vmatpush.msra.mxu0 0.0
    %9052 = vmatpush.msra.mxu0 0.0
    %9053 = vmatpush.msra.mxu0 0.0
    %9054 = vmatpush.msra.mxu0 0.0
    %9055 = vmatpush.msra.mxu0 0.0
    %9056 = vmatpush.msra.mxu0 0.0
    %9057 = vmatpush.msra.mxu0 %v9043
    %9058 = vmatpush.msra.mxu0 %v9040
    %9059 = vmatpush.msra.mxu0 %v9039
    %9060 = vmatpush.msra.mxu0 %v9038
    %9061 = vmatmul.f32.gmra.mxu0 %v8966
    %v9062 = vpop.f32.mrf.mxu0
    %v9063 = vadd.f32 0.0, %v9062
    %9064 = vdwg.mxu0
    %v9065 = vld [vmem:[%s13] sm:$0xf]
    %v9066 = vld [vmem:[%s13 + $0x4] sm:$0xf]
    %v9067 = vld [vmem:[%s13 + $0x8] sm:$0xf]
    %v9068 = vld [vmem:[%s13 + $0xc] sm:$0xf]
    %v9069 = vld [vmem:[%s13 + $0x10] sm:$0xf]
    %v9070 = vld [vmem:[%s13 + $0x14] sm:$0xf]
    %v9071 = vld [vmem:[%s13 + $0x18] sm:$0xf]
    %v9072 = vld [vmem:[%s13 + $0x1c] sm:$0xf]
    %s9073 = scalar_lea.vmem %s13, 32
    %v9074 = vld [vmem:[%s9073] sm:$0xf]
    %v9075 = vld [vmem:[%s9073 + $0x4] sm:$0xf]
    %v9076 = vld [vmem:[%s9073 + $0x8] sm:$0xf]
    %v9077 = vld [vmem:[%s9073 + $0xc] sm:$0xf]
    %v9078 = vld [vmem:[%s9073 + $0x10] sm:$0xf]
    %v9079 = vld [vmem:[%s9073 + $0x14] sm:$0xf]
    %v9080 = vld [vmem:[%s9073 + $0x18] sm:$0xf]
    %v9081 = vld [vmem:[%s9073 + $0x1c] sm:$0xf]
    %s9082 = scalar_lea.vmem %s13, 64
    %v9083 = vld [vmem:[%s9082] sm:$0xf]
    %v9084 = vld [vmem:[%s9082 + $0x4] sm:$0xf]
    %v9085 = vld [vmem:[%s9082 + $0x8] sm:$0xf]
    %v9086 = vld [vmem:[%s9082 + $0xc] sm:$0xf]
    %v9087 = vld [vmem:[%s9082 + $0x10] sm:$0xf]
    %v9088 = vld [vmem:[%s9082 + $0x14] sm:$0xf]
    %v9089 = vld [vmem:[%s9082 + $0x18] sm:$0xf]
    %v9090 = vld [vmem:[%s9082 + $0x1c] sm:$0xf]
    %v9091 = vpack.c.bf16 %v8990, %v8990
    %v9093 = vshrl.u32 %v9091, 16
    %v9095 = vshll.u32 %v9091, 16
    %v9097 = vrot.slane %v9095, 1
    %v9098 = vor.u32 %v9093, %v9097
    %v9107 = vunpack.c.l.b16 %v9074
    %v9108 = vunpack.c.l.b16 %v9075
    %v9109 = vunpack.c.l.b16 %v9076
    %v9110 = vunpack.c.l.b16 %v9077
    %v9111 = vunpack.c.l.b16 %v9078
    %v9112 = vunpack.c.l.b16 %v9079
    %v9113 = vunpack.c.l.b16 %v9080
    %v9114 = vunpack.c.l.b16 %v9081
    %v9115 = vpack.c.b16 %v9108, %v9107
    %v9116 = vpack.c.b16 %v9110, %v9109
    %v9117 = vpack.c.b16 %v9112, %v9111
    %v9118 = vpack.c.b16 %v9114, %v9113
    %v9124 = vsel %vm8823, %v9098, 0
    %9126 = vmatpush.bf16.msra.mxu0 0
    %9127 = vmatpush.bf16.msra.mxu0 0
    %9128 = vmatpush.bf16.msra.mxu0 0
    %9129 = vmatpush.bf16.msra.mxu0 0
    %9130 = vmatpush.bf16.msra.mxu0 %v9118
    %9131 = vmatpush.bf16.msra.mxu0 %v9117
    %9132 = vmatpush.bf16.msra.mxu0 %v9116
    %9133 = vmatpush.bf16.msra.mxu0 %v9115
    %9134 = vmatmul.bf16.gmra.mxu0 %v9124
    %v9135 = vpop.f32.mrf.mxu0
    %v9136 = vadd.f32 0.0, %v9135
    %v9137 = vpop.f32.mrf.mxu0
    %9138 = vdwg.mxu0
    %v9147 = vunpack.c.l.b16 %v9065
    %v9148 = vunpack.c.l.b16 %v9066
    %v9149 = vunpack.c.l.b16 %v9067
    %v9150 = vunpack.c.l.b16 %v9068
    %v9151 = vunpack.c.l.b16 %v9069
    %v9152 = vunpack.c.l.b16 %v9070
    %v9153 = vunpack.c.l.b16 %v9071
    %v9154 = vunpack.c.l.b16 %v9072
    %v9155 = vpack.c.b16 %v9148, %v9147
    %v9156 = vpack.c.b16 %v9150, %v9149
    %v9157 = vpack.c.b16 %v9152, %v9151
    %v9158 = vpack.c.b16 %v9154, %v9153
    %v9163 = vsel %vm8823, %v9091, 0
    %9165 = vmatpush.bf16.msra.mxu0 0
    %9166 = vmatpush.bf16.msra.mxu0 0
    %9167 = vmatpush.bf16.msra.mxu0 0
    %9168 = vmatpush.bf16.msra.mxu0 0
    %9169 = vmatpush.bf16.msra.mxu0 %v9158
    %9170 = vmatpush.bf16.msra.mxu0 %v9157
    %9171 = vmatpush.bf16.msra.mxu0 %v9156
    %9172 = vmatpush.bf16.msra.mxu0 %v9155
    %9173 = vmatmul.bf16.gmra.mxu0 %v9163
    %v9174 = vpop.f32.mrf.mxu0
    %v9175 = vadd.f32 %v9136, %v9174
    %v9176 = vpop.f32.mrf.mxu0
    %9177 = vdwg.mxu0
    %v9179 = vrot.slane %v9091, 1
    %v9188 = vunpack.c.l.b16 %v9083
    %v9189 = vunpack.c.l.b16 %v9084
    %v9190 = vunpack.c.l.b16 %v9085
    %v9191 = vunpack.c.l.b16 %v9086
    %v9192 = vunpack.c.l.b16 %v9087
    %v9193 = vunpack.c.l.b16 %v9088
    %v9194 = vunpack.c.l.b16 %v9089
    %v9195 = vunpack.c.l.b16 %v9090
    %v9196 = vpack.c.b16 %v9189, %v9188
    %v9197 = vpack.c.b16 %v9191, %v9190
    %v9198 = vpack.c.b16 %v9193, %v9192
    %v9199 = vpack.c.b16 %v9195, %v9194
    %v9205 = vsel %vm8823, %v9179, 0
    %9207 = vmatpush.bf16.msra.mxu0 0
    %9208 = vmatpush.bf16.msra.mxu0 0
    %9209 = vmatpush.bf16.msra.mxu0 0
    %9210 = vmatpush.bf16.msra.mxu0 0
    %9211 = vmatpush.bf16.msra.mxu0 %v9199
    %9212 = vmatpush.bf16.msra.mxu0 %v9198
    %9213 = vmatpush.bf16.msra.mxu0 %v9197
    %9214 = vmatpush.bf16.msra.mxu0 %v9196
    %9215 = vmatmul.bf16.gmra.mxu0 %v9205
    %v9216 = vpop.f32.mrf.mxu0
    %v9217 = vadd.f32 0.0, %v9216
    %v9218 = vpop.f32.mrf.mxu0
    %9219 = vdwg.mxu0
    %v9220 = vadd.f32 %v9175, %v9217
    %v9221 = vpack.c.bf16 %v9063, %v9063
    %v9223 = vshrl.u32 %v9221, 16
    %v9225 = vshll.u32 %v9221, 16
    %v9227 = vrot.slane %v9225, 1
    %v9228 = vor.u32 %v9223, %v9227
    %v9230 = vsel %vm8823, %v9228, 0
    %9232 = vmatpush.bf16.msra.mxu0 0
    %9233 = vmatpush.bf16.msra.mxu0 0
    %9234 = vmatpush.bf16.msra.mxu0 0
    %9235 = vmatpush.bf16.msra.mxu0 0
    %9236 = vmatpush.bf16.msra.mxu0 %v9118
    %9237 = vmatpush.bf16.msra.mxu0 %v9117
    %9238 = vmatpush.bf16.msra.mxu0 %v9116
    %9239 = vmatpush.bf16.msra.mxu0 %v9115
    %9240 = vmatmul.bf16.gmra.mxu0 %v9230
    %v9241 = vpop.f32.mrf.mxu0
    %v9242 = vadd.f32 0.0, %v9241
    %v9243 = vpop.f32.mrf.mxu0
    %9244 = vdwg.mxu0
    %v9245 = vsel %vm8823, %v9221, 0
    %9247 = vmatpush.bf16.msra.mxu0 0
    %9248 = vmatpush.bf16.msra.mxu0 0
    %9249 = vmatpush.bf16.msra.mxu0 0
    %9250 = vmatpush.bf16.msra.mxu0 0
    %9251 = vmatpush.bf16.msra.mxu0 %v9158
    %9252 = vmatpush.bf16.msra.mxu0 %v9157
    %9253 = vmatpush.bf16.msra.mxu0 %v9156
    %9254 = vmatpush.bf16.msra.mxu0 %v9155
    %9255 = vmatmul.bf16.gmra.mxu0 %v9245
    %v9256 = vpop.f32.mrf.mxu0
    %v9257 = vadd.f32 %v9242, %v9256
    %v9258 = vpop.f32.mrf.mxu0
    %9259 = vdwg.mxu0
    %v9261 = vrot.slane %v9221, 1
    %v9263 = vsel %vm8823, %v9261, 0
    %9265 = vmatpush.bf16.msra.mxu0 0
    %9266 = vmatpush.bf16.msra.mxu0 0
    %9267 = vmatpush.bf16.msra.mxu0 0
    %9268 = vmatpush.bf16.msra.mxu0 0
    %9269 = vmatpush.bf16.msra.mxu0 %v9199
    %9270 = vmatpush.bf16.msra.mxu0 %v9198
    %9271 = vmatpush.bf16.msra.mxu0 %v9197
    %9272 = vmatpush.bf16.msra.mxu0 %v9196
    %9273 = vmatmul.bf16.gmra.mxu0 %v9263
    %v9274 = vpop.f32.mrf.mxu0
    %v9275 = vadd.f32 0.0, %v9274
    %v9276 = vpop.f32.mrf.mxu0
    %9277 = vdwg.mxu0
    %v9278 = vadd.f32 %v9257, %v9275
    %vm9279 = vcmask 520192
    %v9280 = vsel %vm9279, %v9220, 0.0
    %v9281 = vrot.slane %v9280, 4
    %v9282 = vadd.f32 %v9280, %v9281
    %v9283 = vrot.slane %v9282, 2
    %v9284 = vadd.f32 %v9282, %v9283
    %v9285 = vrot.slane %v9284, 1
    %v9286 = vadd.f32 %v9284, %v9285
    %v9287 = vmul.f32 %v9220, %v9220
    %v9288 = vsel %vm9279, %v9287, 0.0
    %v9289 = vrot.slane %v9288, 4
    %v9290 = vadd.f32 %v9288, %v9289
    %v9291 = vrot.slane %v9290, 2
    %v9292 = vadd.f32 %v9290, %v9291
    %v9293 = vrot.slane %v9292, 1
    %v9294 = vadd.f32 %v9292, %v9293
    %v9295 = vsel %vm9279, %v9278, 0.0
    %v9296 = vrot.slane %v9295, 4
    %v9297 = vadd.f32 %v9295, %v9296
    %v9298 = vrot.slane %v9297, 2
    %v9299 = vadd.f32 %v9297, %v9298
    %v9300 = vrot.slane %v9299, 1
    %v9301 = vadd.f32 %v9299, %v9300
    %v9302 = vadd.f32 %v9286, %v9301
    %v9303 = vmul.f32 %v9278, %v9278
    %v9304 = vsel %vm9279, %v9303, 0.0
    %v9305 = vrot.slane %v9304, 4
    %v9306 = vadd.f32 %v9304, %v9305
    %v9307 = vrot.slane %v9306, 2
    %v9308 = vadd.f32 %v9306, %v9307
    %v9309 = vrot.slane %v9308, 1
    %v9310 = vadd.f32 %v9308, %v9309
    %v9311 = vadd.f32 %v9294, %v9310
    %v9312 = vmul.f32 %v9302, 0.1
    %v9313 = vmul.f32 %v9311, 0.1
    %v9314 = vmul.f32 %v9312, %v9312
    %v9315 = vsub.f32 %v9313, %v9314
    %v9316 = vld [vmem:[%s14] sm:$0x1]
    %v9317 = vadd.f32 %v9315, 1e-05
    %v9318 = vrsqrt.pop %v9317
    %v9319 = vmul.f32 %v9318, %v9317
    %v9320 = vmul.f32 %v9319, %v9318
    %v9321 = vmul.f32 0.5, %v9320
    %v9322 = vsub.f32 1.5, %v9321
    %v9323 = vmul.f32 %v9318, %v9322
    %vm9324 = vweird.f32 %v9317
    %vm9325 = vweird.f32 %v9318
    %vm9326 = vmor %vm9324, %vm9325
    %v9327 = vsel %vm9326, %v9318, %v9323
    %v9328 = vmul.f32 %v9316, %v9327
    %v9329 = vld [vmem:[%s15] sm:$0x1]
    %v9330 = vmul.f32 %v9312, %v9328
    %v9331 = vsub.f32 %v9329, %v9330
    %v9332 = vld [vmem:[%s16] sm:$0x1]
    %v9334 = vperm.slane %v9328, 0
    %v9336 = vmul.f32 %v9220, %v9334
    %v9338 = vperm.slane %v9331, 0
    %v9340 = vadd.f32 %v9336, %v9338
    %v9341 = vmax.f32 %v9340, 0.0
    %v9343 = vrot.slane %v9341, 1
    %v9345 = vmax.f32 %v9341, %v9343
    %v9347 = vrot.slane %v9345, 2
    %v9349 = vmax.f32 %v9345, %v9347
    %vm9350 = vcmask 15360
    %v9352 = vsel %vm9350, %v9332, 0
    %vm9354 = vcmask 1041408
    %v9356 = vsel %vm9354, %v9349, 0
    %9358 = vmatpush.msra.mxu0 0.0
    %9359 = vmatpush.msra.mxu0 0.0
    %9360 = vmatpush.msra.mxu0 0.0
    %9361 = vmatpush.msra.mxu0 0.0
    %9362 = vmatpush.msra.mxu0 0.0
    %9363 = vmatpush.msra.mxu0 0.0
    %9364 = vmatpush.msra.mxu0 0.0
    %9365 = vmatpush.msra.mxu0 0.0
    %9366 = vmatpush.msra.mxu0 0.0
    %9367 = vmatpush.msra.mxu0 0.0
    %9368 = vmatpush.msra.mxu0 0.0
    %9369 = vmatpush.msra.mxu0 0.0
    %9370 = vmatpush.msra.mxu0 0.0
    %9371 = vmatpush.msra.mxu0 0.0
    %9372 = vmatpush.msra.mxu0 0.0
    %9373 = vmatpush.msra.mxu0 %v9356
    %9374 = vmatmul.f32.gmra.mxu0 %v9352
    %v9375 = vpop.f32.mrf.mxu0
    %v9376 = vadd.f32 0.0, %v9375
    %9377 = vdwg.mxu0
    %v9378 = vmul.f32 %v9278, %v9334
    %v9379 = vadd.f32 %v9378, %v9338
    %v9380 = vmax.f32 %v9379, 0.0
    %v9382 = vrot.slane %v9380, 1
    %v9384 = vmax.f32 %v9380, %v9382
    %v9386 = vrot.slane %v9384, 2
    %v9388 = vmax.f32 %v9384, %v9386
    %v9390 = vsel %vm9354, %v9388, 0
    %9392 = vmatpush.msra.mxu0 0.0
    %9393 = vmatpush.msra.mxu0 0.0
    %9394 = vmatpush.msra.mxu0 0.0
    %9395 = vmatpush.msra.mxu0 0.0
    %9396 = vmatpush.msra.mxu0 0.0
    %9397 = vmatpush.msra.mxu0 0.0
    %9398 = vmatpush.msra.mxu0 0.0
    %9399 = vmatpush.msra.mxu0 0.0
    %9400 = vmatpush.msra.mxu0 0.0
    %9401 = vmatpush.msra.mxu0 0.0
    %9402 = vmatpush.msra.mxu0 0.0
    %9403 = vmatpush.msra.mxu0 0.0
    %9404 = vmatpush.msra.mxu0 0.0
    %9405 = vmatpush.msra.mxu0 0.0
    %9406 = vmatpush.msra.mxu0 0.0
    %9407 = vmatpush.msra.mxu0 %v9390
    %9408 = vmatmul.f32.gmra.mxu0 %v9352
    %v9409 = vpop.f32.mrf.mxu0
    %v9410 = vadd.f32 0.0, %v9409
    %9411 = vdwg.mxu0
    %v9412 = vld [vmem:[%s17] sm:$0xf]
    %v9413 = vld [vmem:[%s17 + $0x4] sm:$0xf]
    %v9414 = vld [vmem:[%s17 + $0x8] sm:$0xf]
    %v9415 = vld [vmem:[%s17 + $0xc] sm:$0xf]
    %v9416 = vld [vmem:[%s17 + $0x10] sm:$0xf]
    %v9417 = vld [vmem:[%s17 + $0x14] sm:$0xf]
    %v9418 = vld [vmem:[%s17 + $0x18] sm:$0xf]
    %v9419 = vld [vmem:[%s17 + $0x1c] sm:$0xf]
    %v9420 = vld [vmem:[%s18] sm:$0x1]
    %v9421 = vadd.f32 %v9376, 0.0
    %v9422 = vpack.c.bf16 %v9421, %v9421
    %v9431 = vunpack.c.l.b16 %v9412
    %v9432 = vunpack.c.l.b16 %v9413
    %v9433 = vunpack.c.l.b16 %v9414
    %v9434 = vunpack.c.l.b16 %v9415
    %v9435 = vunpack.c.l.b16 %v9416
    %v9436 = vunpack.c.l.b16 %v9417
    %v9437 = vunpack.c.l.b16 %v9418
    %v9438 = vunpack.c.l.b16 %v9419
    %v9439 = vpack.c.b16 %v9432, %v9431
    %v9440 = vpack.c.b16 %v9434, %v9433
    %v9441 = vpack.c.b16 %v9436, %v9435
    %v9442 = vpack.c.b16 %v9438, %v9437
    %v9448 = vsel %vm8823, %v9422, 0
    %9450 = vmatpush.bf16.msra.mxu0 0
    %9451 = vmatpush.bf16.msra.mxu0 0
    %9452 = vmatpush.bf16.msra.mxu0 0
    %9453 = vmatpush.bf16.msra.mxu0 0
    %9454 = vmatpush.bf16.msra.mxu0 %v9442
    %9455 = vmatpush.bf16.msra.mxu0 %v9441
    %9456 = vmatpush.bf16.msra.mxu0 %v9440
    %9457 = vmatpush.bf16.msra.mxu0 %v9439
    %9458 = vmatmul.bf16.gmra.mxu0 %v9448
    %v9459 = vpop.f32.mrf.mxu0
    %v9460 = vadd.f32 %v9420, %v9459
    %v9461 = vpop.f32.mrf.mxu0
    %9462 = vdwg.mxu0
    %vm9463 = vcmask 8192
    %v9464 = vsel %vm9463, %v9460, -inf
    %9465 = vmax.xlane.f32.xlu0 %v9464
    %v9466 = vpop.xlane.xlu0 %9465
    %v9467 = vsub.f32 %v9460, %v9466
    %v9468 = vmul.f32 %v9467, 1.442695
    %v9469 = vpow.pop %v9468
    %v9470 = vsel %vm9463, %v9469, 0.0
    %9471 = vadd.xlane.f32.xlu0 %v9470
    %v9472 = vpop.xlane.xlu0 %9471
    %v9473 = vlog2.pop %v9472
    %v9474 = vmul.f32 %v9473, 0.6931472
    %v9475 = vsub.f32 %v9467, %v9474
    %9476 = vst.msk [vmem:[#allocation2] sm:$0x1] %vm9463, %v9475
    %v9477 = vadd.f32 %v9410, 0.0
    %v9478 = vpack.c.bf16 %v9477, %v9477
    %v9480 = vsel %vm8823, %v9478, 0
    %9482 = vmatpush.bf16.msra.mxu0 0
    %9483 = vmatpush.bf16.msra.mxu0 0
    %9484 = vmatpush.bf16.msra.mxu0 0
    %9485 = vmatpush.bf16.msra.mxu0 0
    %9486 = vmatpush.bf16.msra.mxu0 %v9442
    %9487 = vmatpush.bf16.msra.mxu0 %v9441
    %9488 = vmatpush.bf16.msra.mxu0 %v9440
    %9489 = vmatpush.bf16.msra.mxu0 %v9439
    %9490 = vmatmul.bf16.gmra.mxu0 %v9480
    %v9491 = vpop.f32.mrf.mxu0
    %v9492 = vadd.f32 %v9420, %v9491
    %v9493 = vpop.f32.mrf.mxu0
    %9494 = vdwg.mxu0
    %v9495 = vsel %vm9463, %v9492, -inf
    %9496 = vmax.xlane.f32.xlu0 %v9495
    %v9497 = vpop.xlane.xlu0 %9496
    %v9498 = vsub.f32 %v9492, %v9497
    %v9499 = vmul.f32 %v9498, 1.442695
    %v9500 = vpow.pop %v9499
    %v9501 = vsel %vm9463, %v9500, 0.0
    %9502 = vadd.xlane.f32.xlu0 %v9501
    %v9503 = vpop.xlane.xlu0 %9502
    %v9504 = vlog2.pop %v9503
    %v9505 = vmul.f32 %v9504, 0.6931472
    %v9506 = vsub.f32 %v9498, %v9505
    %9507 = vst.msk [vmem:[#allocation2 + $0x1] sm:$0x1] %vm9463, %v9506
    // Predicated region
    $region78: #{tpu_custom_call.1} parent=1 // pred_check
      _
    $region79: #{tpu_custom_call.1} parent=1 // pred_check_branch
      %9509 = sbr.rel (0) target = $region81
    $region80: #{tpu_custom_call.1} parent=1 // pred_region
      %9511 = vsyncadd [#allocation3], 0
      %s9513 = sshll.u32 [#allocation2], 4
      %s9514 = int_to_ptr.vmem [resolvable:$true] %s9513
      %s9515 = sshll.u32 %s19, 4
      %s9516 = int_to_ptr.hbm [resolvable:$true] %s9515
      %9518 = dma.vmem_to_hbm [thread:$0]  %s9514, 32, %s9516, [#allocation3]
    $region81: #{tpu_custom_call.1} parent=1 // pred_fallthru
      _
    // Predicated region
    $region82: #{tpu_custom_call.1} parent=1 // pred_check
      _
    $region83: #{tpu_custom_call.1} parent=1 // pred_check_branch
      %9520 = sbr.rel (0) target = $region85
    $region84: #{tpu_custom_call.1} parent=1 // pred_region
      %9522 = dma.done [#allocation3], 32
    $region85: #{tpu_custom_call.1} parent=1 // pred_fallthru
      _
    %9523 = vsyncpa [#allocation3], 1

</llo_original>
